<compile_context>
chip_gen: v5e
topology: v5e:2x2
jax: 0.10.0
libtpu: 0.0.40
codegen_flags: <defaults>
</compile_context>

<pallas_src>
import functools

import jax
import jax.numpy as jnp
import numpy as np
from jax import lax
from jax.experimental import pallas as pl
from jax.experimental.pallas import tpu as pltpu

LRELU_SLOPE = 0.2
BN_EPS = 1e-5


def _leaky(x):
    return jnp.where(x > 0, x, LRELU_SLOPE * x)


# ------------------------------ Pallas kernels ------------------------------

def conv_lrelu_kernel(x_ref, w_ref, b_ref, o_ref):
    # (tm, K)bf16 @ (K, C)bf16 -> f32 ; + bias ; LeakyReLU ; store bf16.
    y = jnp.dot(x_ref[...], w_ref[...], preferred_element_type=jnp.float32)
    o_ref[...] = _leaky(y + b_ref[...]).astype(o_ref.dtype)


def conv2_fc_kernel(p2_ref, w2c_ref, b2c_ref, g2_ref, bt2_ref,
                    w1_ref, b1_ref, g1_ref, bt1_ref, w2f_ref, b2f_ref,
                    o_ref, h2_ref, flat_ref, acc_ref,
                    *, nb, n_real, n_pos, c2, tk):
    """Fused conv2 -> LeakyReLU -> BatchNorm2d -> flatten -> fc1 ->
    BatchNorm1d -> LeakyReLU -> fc2 -> Sigmoid.

    Grid axis 0 ("arbitrary") iterates the fc1 K tiles.  At k == 0 the whole
    conv2 stage runs and its flattened, normalized output is left in VMEM
    (flat_ref); every step accumulates one fc1 K-tile matmul; the last step
    applies BatchNorm1d + LeakyReLU + fc2 + sigmoid.

    p2 rows are ordered (spatial s, batch n) with the batch padded to nb
    (multiple of 8) so all slices are sublane/lane tile aligned.  BatchNorm
    statistics mask the padded batch rows.
    """
    k = pl.program_id(0)

    @pl.when(k == 0)
    def _():
        rows = n_pos * nb
        # conv2 as one im2col matmul over all (spatial, batch) rows.
        y = jnp.dot(p2_ref[...], w2c_ref[...],
                    preferred_element_type=jnp.float32)      # (rows, c2) f32
        y = _leaky(y + b2c_ref[...])
        # BatchNorm2d batch statistics over the n_real * n_pos real rows.
        rmask = (lax.broadcasted_iota(jnp.int32, (rows, c2), 0) % nb
                 < n_real).astype(jnp.float32)
        cnt = float(n_real * n_pos)
        s1 = jnp.sum(y * rmask, axis=0, keepdims=True)
        s2 = jnp.sum(y * y * rmask, axis=0, keepdims=True)
        mean = s1 / cnt
        var = jnp.maximum(s2 / cnt - mean * mean, 0.0)
        scale = g2_ref[...] * lax.rsqrt(var + BN_EPS)
        shift = bt2_ref[...] - mean * scale
        h2_ref[...] = y * scale + shift
        # conv -> fc flatten entirely in VMEM: (s, n, c) -> (n, s*c2 + c).
        # All slices are 8-sublane / 128-lane aligned.
        for s in range(n_pos):
            flat_ref[:, s * c2:(s + 1) * c2] = h2_ref[s * nb:(s + 1) * nb, :]
        acc_ref[...] = jnp.zeros_like(acc_ref)

    # fc1 partial matmul on the k-th 128-aligned K tile (bf16 weight stream).
    off = pl.multiple_of(k * tk, 128)
    xk = flat_ref[:, pl.ds(off, tk)].astype(jnp.bfloat16)
    acc_ref[...] += jnp.dot(xk, w1_ref[...],
                            preferred_element_type=jnp.float32)

    @pl.when(k == pl.num_programs(0) - 1)
    def _():
        hdim = acc_ref.shape[1]
        y1 = acc_ref[...] + b1_ref[...]                       # (nb, hdim) f32
        # BatchNorm1d batch statistics over the n_real real batch rows.
        bmask = (lax.broadcasted_iota(jnp.int32, (nb, hdim), 0)
                 < n_real).astype(jnp.float32)
        cnt = float(n_real)
        m1 = jnp.sum(y1 * bmask, axis=0, keepdims=True) / cnt
        v1 = jnp.maximum(
            jnp.sum(y1 * y1 * bmask, axis=0, keepdims=True) / cnt - m1 * m1,
            0.0)
        h = _leaky((y1 - m1) * lax.rsqrt(v1 + BN_EPS) * g1_ref[...]
                   + bt1_ref[...])
        # fc2 (1024 -> 1): broadcast-multiply + lane reduction; exact sigmoid.
        z = jnp.sum(h * w2f_ref[...], axis=-1, keepdims=True) + b2f_ref[0]
        o_ref[...] = 1.0 / (1.0 + jnp.exp(-z))


# ----------------------------- pallas_call wrappers --------------------------

def _pick_m_tile(M, cap=1024, align=16):
    """Largest divisor of M that is <= cap and a multiple of `align`
    (bf16-safe sublane tiling); fall back to the full extent."""
    hi = min(M, cap)
    hi -= hi % align
    for t in range(hi, align - 1, -align):
        if M % t == 0:
            return t
    return M


def conv_lrelu(x, w, b):
    """x: (M, K) bf16, w: (K, C) bf16, b: (C,) f32 -> (M, C) bf16."""
    M, K = x.shape
    C = w.shape[1]
    tm = _pick_m_tile(M)
    return pl.pallas_call(
        conv_lrelu_kernel,
        out_shape=jax.ShapeDtypeStruct((M, C), jnp.bfloat16),
        grid=(M // tm,),
        in_specs=[pl.BlockSpec((tm, K), lambda i: (i, 0)),
                  pl.BlockSpec((K, C), lambda i: (0, 0)),
                  pl.BlockSpec((1, C), lambda i: (0, 0))],
        out_specs=pl.BlockSpec((tm, C), lambda i: (i, 0)),
        compiler_params=pltpu.CompilerParams(
            dimension_semantics=("parallel",)),
    )(x, w, b.reshape(1, C).astype(jnp.float32))


def conv2_fc_fused(p2, w2c, b2c, g2, bt2, w1, b1, g1, bt1, w2f, b2f,
                   *, n_real, nb, n_pos, tk=896):
    """p2: (n_pos*nb, 1024) bf16 (rows ordered (spatial, batch));
    w2c: (1024, 128) bf16; w1: (6272, 1024) bf16; returns (nb, 1) f32."""
    rows, kc = p2.shape
    c2 = w2c.shape[1]
    kf, hdim = w1.shape
    assert rows == n_pos * nb and kf == n_pos * c2
    assert tk % 128 == 0 and kf % tk == 0
    nk = kf // tk
    kernel = functools.partial(conv2_fc_kernel, nb=nb, n_real=n_real,
                               n_pos=n_pos, c2=c2, tk=tk)
    return pl.pallas_call(
        kernel,
        out_shape=jax.ShapeDtypeStruct((nb, 1), jnp.float32),
        grid=(nk,),
        in_specs=[
            pl.BlockSpec((rows, kc), lambda k: (0, 0)),      # conv2 im2col
            pl.BlockSpec((kc, c2), lambda k: (0, 0)),        # conv2 weight
            pl.BlockSpec((1, c2), lambda k: (0, 0)),         # conv2 bias
            pl.BlockSpec((1, c2), lambda k: (0, 0)),         # bn2 gamma
            pl.BlockSpec((1, c2), lambda k: (0, 0)),         # bn2 beta
            pl.BlockSpec((tk, hdim), lambda k: (k, 0)),      # fc1 weight tile
            pl.BlockSpec((1, hdim), lambda k: (0, 0)),       # fc1 bias
            pl.BlockSpec((1, hdim), lambda k: (0, 0)),       # bn1 gamma
            pl.BlockSpec((1, hdim), lambda k: (0, 0)),       # bn1 beta
            pl.BlockSpec((1, hdim), lambda k: (0, 0)),       # fc2 weight
            pl.BlockSpec(memory_space=pltpu.MemorySpace.SMEM),  # fc2 bias
        ],
        out_specs=pl.BlockSpec((nb, 1), lambda k: (0, 0)),
        scratch_shapes=[pltpu.VMEM((rows, c2), jnp.float32),   # h2 (post-BN)
                        pltpu.VMEM((nb, kf), jnp.float32),     # flattened h2
                        pltpu.VMEM((nb, hdim), jnp.float32)],  # fc1 accumulator
        compiler_params=pltpu.CompilerParams(
            dimension_semantics=("arbitrary",),
            vmem_limit_bytes=32 * 1024 * 1024),
    )(p2, w2c,
      b2c.reshape(1, c2).astype(jnp.float32),
      g2.reshape(1, c2).astype(jnp.float32),
      bt2.reshape(1, c2).astype(jnp.float32),
      w1,
      b1.reshape(1, hdim).astype(jnp.float32),
      g1.reshape(1, hdim).astype(jnp.float32),
      bt1.reshape(1, hdim).astype(jnp.float32),
      w2f.reshape(1, hdim).astype(jnp.float32),
      b2f.reshape(1).astype(jnp.float32))


# ----------------------------- glue (im2col etc.) ----------------------------

def im2col_nhwc(x, k, s, p):
    """x: (N, H, W, C) -> (N, Ho, Wo, k*k*C); patch features ordered (kH,kW,C)."""
    N, H, W, C = x.shape
    xp = jnp.pad(x, ((0, 0), (p, p), (p, p), (0, 0)))
    Ho = (H + 2 * p - k) // s + 1
    Wo = (W + 2 * p - k) // s + 1
    taps = []
    for i in range(k):
        for j in range(k):
            taps.append(xp[:, i:i + s * Ho:s, j:j + s * Wo:s, :])
    patches = jnp.stack(taps, axis=3)             # (N, Ho, Wo, k*k, C)
    return patches.reshape(N, Ho, Wo, k * k * C), Ho, Wo


def _prep_weights(params, c_pad):
    """PyTorch-layout weights -> bf16 matmul matrices for the NHWC pipeline."""
    c_out1, c_in1 = params["conv1_w"].shape[:2]
    c_out2 = params["conv2_w"].shape[0]
    # OIHW -> (kH, kW, I, O); pad conv1's input channels to c_pad so the
    # im2col K dim is a multiple of 128; flatten to (kH*kW*I, O).
    w1 = jnp.transpose(params["conv1_w"], (2, 3, 1, 0))
    w1 = jnp.pad(w1, ((0, 0), (0, 0), (0, c_pad - c_in1), (0, 0)))
    w1 = w1.reshape(-1, c_out1)
    w2 = jnp.transpose(params["conv2_w"], (2, 3, 1, 0)).reshape(-1, c_out2)
    # fc1 columns are (C, H, W) in PyTorch; permute to (H, W, C) to match the
    # NHWC flatten done inside the fused kernel.
    f1 = params["fc1_w"].reshape(1024, c_out2, 7, 7).transpose(0, 2, 3, 1)
    f1 = f1.reshape(1024, -1).T                                # (6272, 1024)
    return (w1.astype(jnp.bfloat16), w2.astype(jnp.bfloat16),
            f1.astype(jnp.bfloat16))


def init_params(key, num_class):
    ks = jax.random.split(key, 6)
    c_in = num_class + 1
    return dict(
        conv1_w=0.02 * jax.random.normal(ks[0], (64, c_in, 4, 4), jnp.float32),
        conv1_b=jnp.zeros((64,), jnp.float32),
        conv2_w=0.02 * jax.random.normal(ks[1], (128, 64, 4, 4), jnp.float32),
        conv2_b=jnp.zeros((128,), jnp.float32),
        bn2_g=1.0 + 0.02 * jax.random.normal(ks[2], (128,), jnp.float32),
        bn2_b=jnp.zeros((128,), jnp.float32),
        fc1_w=0.02 * jax.random.normal(ks[3], (1024, 128 * 7 * 7), jnp.float32),
        fc1_b=jnp.zeros((1024,), jnp.float32),
        bn1_g=1.0 + 0.02 * jax.random.normal(ks[4], (1024,), jnp.float32),
        bn1_b=jnp.zeros((1024,), jnp.float32),
        fc2_w=0.02 * jax.random.normal(ks[5], (1, 1024), jnp.float32),
        fc2_b=jnp.zeros((1,), jnp.float32),
    )


def discriminator_forward(params, img, labels, num_class):
    N = img.shape[0]
    c_in = num_class + 1
    c_pad = ((c_in + 7) // 8) * 8          # 16*c_pad -> K1 multiple of 128
    nb = ((N + 7) // 8) * 8                # sublane-aligned batch rows

    w1m, w2m, f1m = _prep_weights(params, c_pad)

    # NHWC input: image channel, one-hot label planes, zero channel padding.
    one_hot = jax.nn.one_hot(labels, num_class, dtype=jnp.float32)
    y2 = jnp.broadcast_to(one_hot[:, None, None, :], (N, 28, 28, num_class))
    x = jnp.concatenate([jnp.transpose(img, (0, 2, 3, 1)), y2], axis=-1)
    x = jnp.pad(x, ((0, 0), (0, 0), (0, 0), (0, c_pad - c_in)))
    x = x.astype(jnp.bfloat16)

    # conv1 (k=4, s=2, p=1) + LeakyReLU  ->  (N, 14, 14, 64) bf16 (NHWC).
    # TODO(synk): the im2col patch matrices are still built by XLA in the
    # wrapper (moving im2col fully in-kernel is a further optimization).
    p1, Ho, Wo = im2col_nhwc(x, 4, 2, 1)
    h1 = conv_lrelu(p1.reshape(N * Ho * Wo, -1), w1m, params["conv1_b"])
    h1 = h1.reshape(N, Ho, Wo, 64)

    # conv2 + LeakyReLU + BatchNorm2d + flatten + fc stack: ONE fused kernel.
    # Rows of the conv2 im2col are (spatial, batch)-ordered with the batch
    # padded to nb so the in-VMEM flatten is tile aligned.
    h1p = jnp.pad(h1, ((0, nb - N), (0, 0), (0, 0), (0, 0)))
    p2, Ho2, Wo2 = im2col_nhwc(h1p, 4, 2, 1)                  # (nb,7,7,1024)
    n_pos = Ho2 * Wo2
    p2 = jnp.transpose(p2, (1, 2, 0, 3)).reshape(n_pos * nb, -1)

    out = conv2_fc_fused(
        p2, w2m, params["conv2_b"], params["bn2_g"], params["bn2_b"],
        f1m, params["fc1_b"], params["bn1_g"], params["bn1_b"],
        params["fc2_w"], params["fc2_b"],
        n_real=N, nb=nb, n_pos=n_pos)
    return out[:N]


def reference_forward(params, img, labels, num_class):
    """Plain-JAX f32 reference with exact PyTorch (training-mode BN) semantics."""
    N = img.shape[0]
    one_hot = jax.nn.one_hot(labels, num_class, dtype=jnp.float32)
    y2 = jnp.broadcast_to(one_hot[:, :, None, None], (N, num_class, 28, 28))
    x = jnp.concatenate([img, y2], axis=1)
    dn = ("NCHW", "OIHW", "NCHW")
    h1 = lax.conv_general_dilated(x, params["conv1_w"], (2, 2),
                                  [(1, 1), (1, 1)], dimension_numbers=dn)
    h1 = _leaky(h1 + params["conv1_b"][None, :, None, None])
    h2 = lax.conv_general_dilated(h1, params["conv2_w"], (2, 2),
                                  [(1, 1), (1, 1)], dimension_numbers=dn)
    h2 = _leaky(h2 + params["conv2_b"][None, :, None, None])
    m = h2.mean(axis=(0, 2, 3), keepdims=True)
    v = h2.var(axis=(0, 2, 3), keepdims=True)
    h2 = ((h2 - m) / jnp.sqrt(v + BN_EPS) * params["bn2_g"][None, :, None, None]
          + params["bn2_b"][None, :, None, None])
    flat = h2.reshape(N, -1)                                   # (C,H,W) order
    h3 = flat @ params["fc1_w"].T + params["fc1_b"]
    m = h3.mean(0, keepdims=True)
    v = h3.var(0, keepdims=True)
    h3 = _leaky((h3 - m) / jnp.sqrt(v + BN_EPS) * params["bn1_g"]
                + params["bn1_b"])
    y = h3 @ params["fc2_w"].T + params["fc2_b"]
    return jax.nn.sigmoid(y)


if __name__ == "__main__":
    num_class = 10   # small synthetic class count (EMNIST-bymerge would be 47)
    batch = 4        # >1 so BatchNorm batch statistics are well-defined
    key = jax.random.PRNGKey(0)
    k_img, k_lbl, k_par = jax.random.split(key, 3)

    img = jax.random.normal(k_img, (batch, 1, 28, 28), jnp.float32)
    labels = jax.random.randint(k_lbl, (batch,), 0, num_class)
    params = init_params(k_par, num_class)

    fwd = jax.jit(discriminator_forward, static_argnums=3)
    out = jax.block_until_ready(fwd(params, img, labels, num_class))

    ref = reference_forward(params, img, labels, num_class)
    assert out.shape == (batch, 1)
    np.testing.assert_allclose(np.asarray(out), np.asarray(ref),
                               atol=5e-2, rtol=0)

    print("KERNEL_OK")
</pallas_src>

<mosaic_0001>
module attributes {stable_mosaic.version = 11 : i64} {
  func.func @conv_lrelu_kernel(%arg0: i32, %arg1: memref<784x256xbf16, #tpu.memory_space<vmem>>, %arg2: memref<256x64xbf16, #tpu.memory_space<vmem>>, %arg3: memref<1x64xf32, #tpu.memory_space<vmem>>, %arg4: memref<784x64xbf16, #tpu.memory_space<vmem>>) attributes {dimension_semantics = [#tpu.dimension_semantics<parallel>], iteration_bounds = array<i64: 1>, scalar_prefetch = 0 : i64, scratch_operands = 0 : i64, tpu.core_type = #tpu.core_type<tc>, window_params = [{transform_indices = @transform_0, window_bounds = array<i64: 784, 256>}, {pipeline_mode = #tpu.pipeline_mode<synchronous>, transform_indices = @transform_1, window_bounds = array<i64: 256, 64>}, {pipeline_mode = #tpu.pipeline_mode<synchronous>, transform_indices = @transform_2, window_bounds = array<i64: 1, 64>}, {transform_indices = @transform_3, window_bounds = array<i64: 784, 64>}]} {
    %c0 = arith.constant 0 : index
    %c0_0 = arith.constant 0 : index
    %0 = vector.load %arg1[%c0, %c0_0] : memref<784x256xbf16, #tpu.memory_space<vmem>>, vector<784x256xbf16>
    %c0_1 = arith.constant 0 : index
    %c0_2 = arith.constant 0 : index
    %1 = vector.load %arg2[%c0_1, %c0_2] : memref<256x64xbf16, #tpu.memory_space<vmem>>, vector<256x64xbf16>
    %cst = arith.constant dense<0.000000e+00> : vector<784x64xf32>
    %2 = tpu.matmul %0, %1, %cst {dimension_numbers = #tpu.dot_dimension_numbers<[1], [0], [0], [1], [0, 0, 1, 1], [], []>} : vector<784x256xbf16>, vector<256x64xbf16>, vector<784x64xf32> -> vector<784x64xf32>
    %c0_3 = arith.constant 0 : index
    %c0_4 = arith.constant 0 : index
    %3 = vector.load %arg3[%c0_3, %c0_4] : memref<1x64xf32, #tpu.memory_space<vmem>>, vector<1x64xf32>
    %4 = vector.broadcast %3 : vector<1x64xf32> to vector<784x64xf32>
    %5 = arith.addf %2, %4 : vector<784x64xf32>
    %cst_5 = arith.constant 0.000000e+00 : f32
    %6 = vector.broadcast %cst_5 : f32 to vector<784x64xf32>
    %7 = arith.cmpf ogt, %5, %6 : vector<784x64xf32>
    %cst_6 = arith.constant 2.000000e-01 : f32
    %8 = vector.broadcast %cst_6 : f32 to vector<784x64xf32>
    %9 = arith.mulf %8, %5 : vector<784x64xf32>
    %10 = arith.select %7, %5, %9 : vector<784x64xi1>, vector<784x64xf32>
    %11 = arith.truncf %10 : vector<784x64xf32> to vector<784x64xbf16>
    %c0_7 = arith.constant 0 : index
    %c0_8 = arith.constant 0 : index
    %12 = vector.load %arg4[%c0_7, %c0_8] : memref<784x64xbf16, #tpu.memory_space<vmem>>, vector<784x64xbf16>
    tpu.vector_store %arg4[%c0_7, %c0_8], %11 {strides = array<i32>} : memref<784x64xbf16, #tpu.memory_space<vmem>>, vector<784x64xbf16>,
    return
  }
  func.func @transform_0(%arg0: i32) -> (i32, i32) {
    %c0_i32 = arith.constant 0 : i32
    %c0_i32_0 = arith.constant 0 : i32
    return %arg0, %c0_i32 : i32, i32
  }
  func.func @transform_1(%arg0: i32) -> (i32, i32) {
    %c0_i32 = arith.constant 0 : i32
    %c0_i32_0 = arith.constant 0 : i32
    %c0_i32_1 = arith.constant 0 : i32
    return %c0_i32, %c0_i32_0 : i32, i32
  }
  func.func @transform_2(%arg0: i32) -> (i32, i32) {
    %c0_i32 = arith.constant 0 : i32
    %c0_i32_0 = arith.constant 0 : i32
    %c0_i32_1 = arith.constant 0 : i32
    return %c0_i32, %c0_i32_0 : i32, i32
  }
  func.func @transform_3(%arg0: i32) -> (i32, i32) {
    %c0_i32 = arith.constant 0 : i32
    %c0_i32_0 = arith.constant 0 : i32
    return %arg0, %c0_i32 : i32, i32
  }
}

module attributes {stable_mosaic.version = 11 : i64} {
  func.func @conv2_fc_kernel(%arg0: i32, %arg1: memref<392x1024xbf16, #tpu.memory_space<vmem>>, %arg2: memref<1024x128xbf16, #tpu.memory_space<vmem>>, %arg3: memref<1x128xf32, #tpu.memory_space<vmem>>, %arg4: memref<1x128xf32, #tpu.memory_space<vmem>>, %arg5: memref<1x128xf32, #tpu.memory_space<vmem>>, %arg6: memref<896x1024xbf16, #tpu.memory_space<vmem>>, %arg7: memref<1x1024xf32, #tpu.memory_space<vmem>>, %arg8: memref<1x1024xf32, #tpu.memory_space<vmem>>, %arg9: memref<1x1024xf32, #tpu.memory_space<vmem>>, %arg10: memref<1x1024xf32, #tpu.memory_space<vmem>>, %arg11: memref<1xf32, #tpu.memory_space<smem>>, %arg12: memref<8x1xf32, #tpu.memory_space<vmem>>, %arg13: memref<392x128xf32, #tpu.memory_space<vmem>>, %arg14: memref<8x6272xf32, #tpu.memory_space<vmem>>, %arg15: memref<8x1024xf32, #tpu.memory_space<vmem>>) attributes {dimension_semantics = [#tpu.dimension_semantics<arbitrary>], iteration_bounds = array<i64: 7>, scalar_prefetch = 0 : i64, scratch_operands = 3 : i64, tpu.core_type = #tpu.core_type<tc>, window_params = [{pipeline_mode = #tpu.pipeline_mode<synchronous>, transform_indices = @transform_0, window_bounds = array<i64: 392, 1024>}, {pipeline_mode = #tpu.pipeline_mode<synchronous>, transform_indices = @transform_1, window_bounds = array<i64: 1024, 128>}, {pipeline_mode = #tpu.pipeline_mode<synchronous>, transform_indices = @transform_2, window_bounds = array<i64: 1, 128>}, {pipeline_mode = #tpu.pipeline_mode<synchronous>, transform_indices = @transform_3, window_bounds = array<i64: 1, 128>}, {pipeline_mode = #tpu.pipeline_mode<synchronous>, transform_indices = @transform_4, window_bounds = array<i64: 1, 128>}, {transform_indices = @transform_5, window_bounds = array<i64: 896, 1024>}, {pipeline_mode = #tpu.pipeline_mode<synchronous>, transform_indices = @transform_6, window_bounds = array<i64: 1, 1024>}, {pipeline_mode = #tpu.pipeline_mode<synchronous>, transform_indices = @transform_7, window_bounds = array<i64: 1, 1024>}, {pipeline_mode = #tpu.pipeline_mode<synchronous>, transform_indices = @transform_8, window_bounds = array<i64: 1, 1024>}, {pipeline_mode = #tpu.pipeline_mode<synchronous>, transform_indices = @transform_9, window_bounds = array<i64: 1, 1024>}, {transform_indices = @transform_10, window_bounds = array<i64: 1>}, {pipeline_mode = #tpu.pipeline_mode<synchronous>, transform_indices = @transform_11, window_bounds = array<i64: 8, 1>}]} {
    %c0_i32 = arith.constant 0 : i32
    %0 = arith.cmpi eq, %arg0, %c0_i32 : i32
    %1 = arith.extui %0 : i1 to i32
    %c0_i32_0 = arith.constant 0 : i32
    %2 = arith.cmpi ne, %1, %c0_i32_0 : i32
    scf.if %2 {
      %c0_8 = arith.constant 0 : index
      %c0_9 = arith.constant 0 : index
      %16 = vector.load %arg1[%c0_8, %c0_9] : memref<392x1024xbf16, #tpu.memory_space<vmem>>, vector<392x1024xbf16>
      %c0_10 = arith.constant 0 : index
      %c0_11 = arith.constant 0 : index
      %17 = vector.load %arg2[%c0_10, %c0_11] : memref<1024x128xbf16, #tpu.memory_space<vmem>>, vector<1024x128xbf16>
      %cst_12 = arith.constant dense<0.000000e+00> : vector<392x128xf32>
      %18 = tpu.matmul %16, %17, %cst_12 {dimension_numbers = #tpu.dot_dimension_numbers<[1], [0], [0], [1], [0, 0, 1, 1], [], []>} : vector<392x1024xbf16>, vector<1024x128xbf16>, vector<392x128xf32> -> vector<392x128xf32>
      %c0_13 = arith.constant 0 : index
      %c0_14 = arith.constant 0 : index
      %19 = vector.load %arg3[%c0_13, %c0_14] : memref<1x128xf32, #tpu.memory_space<vmem>>, vector<1x128xf32>
      %20 = vector.broadcast %19 : vector<1x128xf32> to vector<392x128xf32>
      %21 = arith.addf %18, %20 : vector<392x128xf32>
      %cst_15 = arith.constant 0.000000e+00 : f32
      %22 = vector.broadcast %cst_15 : f32 to vector<392x128xf32>
      %23 = arith.cmpf ogt, %21, %22 : vector<392x128xf32>
      %cst_16 = arith.constant 2.000000e-01 : f32
      %24 = vector.broadcast %cst_16 : f32 to vector<392x128xf32>
      %25 = arith.mulf %24, %21 : vector<392x128xf32>
      %26 = arith.select %23, %21, %25 : vector<392x128xi1>, vector<392x128xf32>
      %27 = tpu.iota {dimensions = array<i32: 0>} : vector<392x128xi32>
      %c8_i32 = arith.constant 8 : i32
      %c0_i32_17 = arith.constant 0 : i32
      %28 = arith.cmpi eq, %c8_i32, %c0_i32_17 : i32
      %c1_i32 = arith.constant 1 : i32
      %29 = arith.select %28, %c1_i32, %c8_i32 : i32
      %30 = vector.broadcast %29 : i32 to vector<392x128xi32>
      %31 = arith.remsi %27, %30 : vector<392x128xi32>
      %c0_i32_18 = arith.constant 0 : i32
      %32 = vector.broadcast %c0_i32_18 : i32 to vector<392x128xi32>
      %33 = arith.cmpi ne, %31, %32 : vector<392x128xi32>
      %c0_i32_19 = arith.constant 0 : i32
      %34 = vector.broadcast %c0_i32_19 : i32 to vector<392x128xi32>
      %35 = arith.cmpi slt, %31, %34 : vector<392x128xi32>
      %c0_i32_20 = arith.constant 0 : i32
      %36 = arith.cmpi slt, %29, %c0_i32_20 : i32
      %37 = vector.broadcast %36 : i1 to vector<392x128xi1>
      %38 = vector.broadcast %37 : vector<392x128xi1> to vector<392x128xi1>
      %39 = arith.xori %35, %38 : vector<392x128xi1>
      %40 = arith.andi %39, %33 : vector<392x128xi1>
      %41 = vector.broadcast %29 : i32 to vector<392x128xi32>
      %42 = arith.addi %31, %41 : vector<392x128xi32>
      %43 = arith.select %40, %42, %31 : vector<392x128xi1>, vector<392x128xi32>
      %c4_i32 = arith.constant 4 : i32
      %44 = vector.broadcast %c4_i32 : i32 to vector<392x128xi32>
      %45 = arith.cmpi slt, %43, %44 : vector<392x128xi32>
      %46 = arith.extui %45 : vector<392x128xi1> to vector<392x128xi32>
      %47 = arith.sitofp %46 : vector<392x128xi32> to vector<392x128xf32>
      %48 = arith.mulf %26, %47 : vector<392x128xf32>
      %cst_21 = arith.constant dense<0.000000e+00> : vector<128xf32>
      %49 = vector.multi_reduction <add>, %48, %cst_21 [0] : vector<392x128xf32> to vector<128xf32>
      %50 = vector.shape_cast %49 : vector<128xf32> to vector<1x128xf32>
      %51 = arith.mulf %26, %26 : vector<392x128xf32>
      %52 = arith.mulf %51, %47 : vector<392x128xf32>
      %cst_22 = arith.constant dense<0.000000e+00> : vector<128xf32>
      %53 = vector.multi_reduction <add>, %52, %cst_22 [0] : vector<392x128xf32> to vector<128xf32>
      %54 = vector.shape_cast %53 : vector<128xf32> to vector<1x128xf32>
      %cst_23 = arith.constant 1.960000e+02 : f32
      %55 = vector.broadcast %cst_23 : f32 to vector<1x128xf32>
      %56 = arith.divf %50, %55 : vector<1x128xf32>
      %cst_24 = arith.constant 1.960000e+02 : f32
      %57 = vector.broadcast %cst_24 : f32 to vector<1x128xf32>
      %58 = arith.divf %54, %57 : vector<1x128xf32>
      %59 = arith.mulf %56, %56 : vector<1x128xf32>
      %60 = arith.subf %58, %59 : vector<1x128xf32>
      %cst_25 = arith.constant 0.000000e+00 : f32
      %61 = vector.broadcast %cst_25 : f32 to vector<1x128xf32>
      %62 = arith.maximumf %60, %61 : vector<1x128xf32>
      %c0_26 = arith.constant 0 : index
      %c0_27 = arith.constant 0 : index
      %63 = vector.load %arg4[%c0_26, %c0_27] : memref<1x128xf32, #tpu.memory_space<vmem>>, vector<1x128xf32>
      %cst_28 = arith.constant 9.99999974E-6 : f32
      %64 = vector.broadcast %cst_28 : f32 to vector<1x128xf32>
      %65 = arith.addf %62, %64 : vector<1x128xf32>
      %66 = math.rsqrt %65 : vector<1x128xf32>
      %67 = arith.mulf %63, %66 : vector<1x128xf32>
      %c0_29 = arith.constant 0 : index
      %c0_30 = arith.constant 0 : index
      %68 = vector.load %arg5[%c0_29, %c0_30] : memref<1x128xf32, #tpu.memory_space<vmem>>, vector<1x128xf32>
      %69 = arith.mulf %56, %67 : vector<1x128xf32>
      %70 = arith.subf %68, %69 : vector<1x128xf32>
      %71 = vector.broadcast %67 : vector<1x128xf32> to vector<392x128xf32>
      %72 = arith.mulf %26, %71 : vector<392x128xf32>
      %73 = vector.broadcast %70 : vector<1x128xf32> to vector<392x128xf32>
      %74 = arith.addf %72, %73 : vector<392x128xf32>
      %c0_31 = arith.constant 0 : index
      %c0_32 = arith.constant 0 : index
      %75 = vector.load %arg13[%c0_31, %c0_32] : memref<392x128xf32, #tpu.memory_space<vmem>>, vector<392x128xf32>
      tpu.vector_store %arg13[%c0_31, %c0_32], %74 {strides = array<i32>} : memref<392x128xf32, #tpu.memory_space<vmem>>, vector<392x128xf32>,
      %c0_33 = arith.constant 0 : index
      %c0_34 = arith.constant 0 : index
      %76 = vector.load %arg13[%c0_33, %c0_34] : memref<392x128xf32, #tpu.memory_space<vmem>>, vector<8x128xf32>
      %c0_35 = arith.constant 0 : index
      %c0_36 = arith.constant 0 : index
      %77 = vector.load %arg14[%c0_35, %c0_36] : memref<8x6272xf32, #tpu.memory_space<vmem>>, vector<8x128xf32>
      tpu.vector_store %arg14[%c0_35, %c0_36], %76 {strides = array<i32>} : memref<8x6272xf32, #tpu.memory_space<vmem>>, vector<8x128xf32>,
      %c8 = arith.constant 8 : index
      %c0_37 = arith.constant 0 : index
      %78 = vector.load %arg13[%c8, %c0_37] : memref<392x128xf32, #tpu.memory_space<vmem>>, vector<8x128xf32>
      %c0_38 = arith.constant 0 : index
      %c128 = arith.constant 128 : index
      %79 = vector.load %arg14[%c0_38, %c128] : memref<8x6272xf32, #tpu.memory_space<vmem>>, vector<8x128xf32>
      tpu.vector_store %arg14[%c0_38, %c128], %78 {strides = array<i32>} : memref<8x6272xf32, #tpu.memory_space<vmem>>, vector<8x128xf32>,
      %c16 = arith.constant 16 : index
      %c0_39 = arith.constant 0 : index
      %80 = vector.load %arg13[%c16, %c0_39] : memref<392x128xf32, #tpu.memory_space<vmem>>, vector<8x128xf32>
      %c0_40 = arith.constant 0 : index
      %c256 = arith.constant 256 : index
      %81 = vector.load %arg14[%c0_40, %c256] : memref<8x6272xf32, #tpu.memory_space<vmem>>, vector<8x128xf32>
      tpu.vector_store %arg14[%c0_40, %c256], %80 {strides = array<i32>} : memref<8x6272xf32, #tpu.memory_space<vmem>>, vector<8x128xf32>,
      %c24 = arith.constant 24 : index
      %c0_41 = arith.constant 0 : index
      %82 = vector.load %arg13[%c24, %c0_41] : memref<392x128xf32, #tpu.memory_space<vmem>>, vector<8x128xf32>
      %c0_42 = arith.constant 0 : index
      %c384 = arith.constant 384 : index
      %83 = vector.load %arg14[%c0_42, %c384] : memref<8x6272xf32, #tpu.memory_space<vmem>>, vector<8x128xf32>
      tpu.vector_store %arg14[%c0_42, %c384], %82 {strides = array<i32>} : memref<8x6272xf32, #tpu.memory_space<vmem>>, vector<8x128xf32>,
      %c32 = arith.constant 32 : index
      %c0_43 = arith.constant 0 : index
      %84 = vector.load %arg13[%c32, %c0_43] : memref<392x128xf32, #tpu.memory_space<vmem>>, vector<8x128xf32>
      %c0_44 = arith.constant 0 : index
      %c512 = arith.constant 512 : index
      %85 = vector.load %arg14[%c0_44, %c512] : memref<8x6272xf32, #tpu.memory_space<vmem>>, vector<8x128xf32>
      tpu.vector_store %arg14[%c0_44, %c512], %84 {strides = array<i32>} : memref<8x6272xf32, #tpu.memory_space<vmem>>, vector<8x128xf32>,
      %c40 = arith.constant 40 : index
      %c0_45 = arith.constant 0 : index
      %86 = vector.load %arg13[%c40, %c0_45] : memref<392x128xf32, #tpu.memory_space<vmem>>, vector<8x128xf32>
      %c0_46 = arith.constant 0 : index
      %c640 = arith.constant 640 : index
      %87 = vector.load %arg14[%c0_46, %c640] : memref<8x6272xf32, #tpu.memory_space<vmem>>, vector<8x128xf32>
      tpu.vector_store %arg14[%c0_46, %c640], %86 {strides = array<i32>} : memref<8x6272xf32, #tpu.memory_space<vmem>>, vector<8x128xf32>,
      %c48 = arith.constant 48 : index
      %c0_47 = arith.constant 0 : index
      %88 = vector.load %arg13[%c48, %c0_47] : memref<392x128xf32, #tpu.memory_space<vmem>>, vector<8x128xf32>
      %c0_48 = arith.constant 0 : index
      %c768 = arith.constant 768 : index
      %89 = vector.load %arg14[%c0_48, %c768] : memref<8x6272xf32, #tpu.memory_space<vmem>>, vector<8x128xf32>
      tpu.vector_store %arg14[%c0_48, %c768], %88 {strides = array<i32>} : memref<8x6272xf32, #tpu.memory_space<vmem>>, vector<8x128xf32>,
      %c56 = arith.constant 56 : index
      %c0_49 = arith.constant 0 : index
      %90 = vector.load %arg13[%c56, %c0_49] : memref<392x128xf32, #tpu.memory_space<vmem>>, vector<8x128xf32>
      %c0_50 = arith.constant 0 : index
      %c896 = arith.constant 896 : index
      %91 = vector.load %arg14[%c0_50, %c896] : memref<8x6272xf32, #tpu.memory_space<vmem>>, vector<8x128xf32>
      tpu.vector_store %arg14[%c0_50, %c896], %90 {strides = array<i32>} : memref<8x6272xf32, #tpu.memory_space<vmem>>, vector<8x128xf32>,
      %c64 = arith.constant 64 : index
      %c0_51 = arith.constant 0 : index
      %92 = vector.load %arg13[%c64, %c0_51] : memref<392x128xf32, #tpu.memory_space<vmem>>, vector<8x128xf32>
      %c0_52 = arith.constant 0 : index
      %c1024 = arith.constant 1024 : index
      %93 = vector.load %arg14[%c0_52, %c1024] : memref<8x6272xf32, #tpu.memory_space<vmem>>, vector<8x128xf32>
      tpu.vector_store %arg14[%c0_52, %c1024], %92 {strides = array<i32>} : memref<8x6272xf32, #tpu.memory_space<vmem>>, vector<8x128xf32>,
      %c72 = arith.constant 72 : index
      %c0_53 = arith.constant 0 : index
      %94 = vector.load %arg13[%c72, %c0_53] : memref<392x128xf32, #tpu.memory_space<vmem>>, vector<8x128xf32>
      %c0_54 = arith.constant 0 : index
      %c1152 = arith.constant 1152 : index
      %95 = vector.load %arg14[%c0_54, %c1152] : memref<8x6272xf32, #tpu.memory_space<vmem>>, vector<8x128xf32>
      tpu.vector_store %arg14[%c0_54, %c1152], %94 {strides = array<i32>} : memref<8x6272xf32, #tpu.memory_space<vmem>>, vector<8x128xf32>,
      %c80 = arith.constant 80 : index
      %c0_55 = arith.constant 0 : index
      %96 = vector.load %arg13[%c80, %c0_55] : memref<392x128xf32, #tpu.memory_space<vmem>>, vector<8x128xf32>
      %c0_56 = arith.constant 0 : index
      %c1280 = arith.constant 1280 : index
      %97 = vector.load %arg14[%c0_56, %c1280] : memref<8x6272xf32, #tpu.memory_space<vmem>>, vector<8x128xf32>
      tpu.vector_store %arg14[%c0_56, %c1280], %96 {strides = array<i32>} : memref<8x6272xf32, #tpu.memory_space<vmem>>, vector<8x128xf32>,
      %c88 = arith.constant 88 : index
      %c0_57 = arith.constant 0 : index
      %98 = vector.load %arg13[%c88, %c0_57] : memref<392x128xf32, #tpu.memory_space<vmem>>, vector<8x128xf32>
      %c0_58 = arith.constant 0 : index
      %c1408 = arith.constant 1408 : index
      %99 = vector.load %arg14[%c0_58, %c1408] : memref<8x6272xf32, #tpu.memory_space<vmem>>, vector<8x128xf32>
      tpu.vector_store %arg14[%c0_58, %c1408], %98 {strides = array<i32>} : memref<8x6272xf32, #tpu.memory_space<vmem>>, vector<8x128xf32>,
      %c96 = arith.constant 96 : index
      %c0_59 = arith.constant 0 : index
      %100 = vector.load %arg13[%c96, %c0_59] : memref<392x128xf32, #tpu.memory_space<vmem>>, vector<8x128xf32>
      %c0_60 = arith.constant 0 : index
      %c1536 = arith.constant 1536 : index
      %101 = vector.load %arg14[%c0_60, %c1536] : memref<8x6272xf32, #tpu.memory_space<vmem>>, vector<8x128xf32>
      tpu.vector_store %arg14[%c0_60, %c1536], %100 {strides = array<i32>} : memref<8x6272xf32, #tpu.memory_space<vmem>>, vector<8x128xf32>,
      %c104 = arith.constant 104 : index
      %c0_61 = arith.constant 0 : index
      %102 = vector.load %arg13[%c104, %c0_61] : memref<392x128xf32, #tpu.memory_space<vmem>>, vector<8x128xf32>
      %c0_62 = arith.constant 0 : index
      %c1664 = arith.constant 1664 : index
      %103 = vector.load %arg14[%c0_62, %c1664] : memref<8x6272xf32, #tpu.memory_space<vmem>>, vector<8x128xf32>
      tpu.vector_store %arg14[%c0_62, %c1664], %102 {strides = array<i32>} : memref<8x6272xf32, #tpu.memory_space<vmem>>, vector<8x128xf32>,
      %c112 = arith.constant 112 : index
      %c0_63 = arith.constant 0 : index
      %104 = vector.load %arg13[%c112, %c0_63] : memref<392x128xf32, #tpu.memory_space<vmem>>, vector<8x128xf32>
      %c0_64 = arith.constant 0 : index
      %c1792 = arith.constant 1792 : index
      %105 = vector.load %arg14[%c0_64, %c1792] : memref<8x6272xf32, #tpu.memory_space<vmem>>, vector<8x128xf32>
      tpu.vector_store %arg14[%c0_64, %c1792], %104 {strides = array<i32>} : memref<8x6272xf32, #tpu.memory_space<vmem>>, vector<8x128xf32>,
      %c120 = arith.constant 120 : index
      %c0_65 = arith.constant 0 : index
      %106 = vector.load %arg13[%c120, %c0_65] : memref<392x128xf32, #tpu.memory_space<vmem>>, vector<8x128xf32>
      %c0_66 = arith.constant 0 : index
      %c1920 = arith.constant 1920 : index
      %107 = vector.load %arg14[%c0_66, %c1920] : memref<8x6272xf32, #tpu.memory_space<vmem>>, vector<8x128xf32>
      tpu.vector_store %arg14[%c0_66, %c1920], %106 {strides = array<i32>} : memref<8x6272xf32, #tpu.memory_space<vmem>>, vector<8x128xf32>,
      %c128_67 = arith.constant 128 : index
      %c0_68 = arith.constant 0 : index
      %108 = vector.load %arg13[%c128_67, %c0_68] : memref<392x128xf32, #tpu.memory_space<vmem>>, vector<8x128xf32>
      %c0_69 = arith.constant 0 : index
      %c2048 = arith.constant 2048 : index
      %109 = vector.load %arg14[%c0_69, %c2048] : memref<8x6272xf32, #tpu.memory_space<vmem>>, vector<8x128xf32>
      tpu.vector_store %arg14[%c0_69, %c2048], %108 {strides = array<i32>} : memref<8x6272xf32, #tpu.memory_space<vmem>>, vector<8x128xf32>,
      %c136 = arith.constant 136 : index
      %c0_70 = arith.constant 0 : index
      %110 = vector.load %arg13[%c136, %c0_70] : memref<392x128xf32, #tpu.memory_space<vmem>>, vector<8x128xf32>
      %c0_71 = arith.constant 0 : index
      %c2176 = arith.constant 2176 : index
      %111 = vector.load %arg14[%c0_71, %c2176] : memref<8x6272xf32, #tpu.memory_space<vmem>>, vector<8x128xf32>
      tpu.vector_store %arg14[%c0_71, %c2176], %110 {strides = array<i32>} : memref<8x6272xf32, #tpu.memory_space<vmem>>, vector<8x128xf32>,
      %c144 = arith.constant 144 : index
      %c0_72 = arith.constant 0 : index
      %112 = vector.load %arg13[%c144, %c0_72] : memref<392x128xf32, #tpu.memory_space<vmem>>, vector<8x128xf32>
      %c0_73 = arith.constant 0 : index
      %c2304 = arith.constant 2304 : index
      %113 = vector.load %arg14[%c0_73, %c2304] : memref<8x6272xf32, #tpu.memory_space<vmem>>, vector<8x128xf32>
      tpu.vector_store %arg14[%c0_73, %c2304], %112 {strides = array<i32>} : memref<8x6272xf32, #tpu.memory_space<vmem>>, vector<8x128xf32>,
      %c152 = arith.constant 152 : index
      %c0_74 = arith.constant 0 : index
      %114 = vector.load %arg13[%c152, %c0_74] : memref<392x128xf32, #tpu.memory_space<vmem>>, vector<8x128xf32>
      %c0_75 = arith.constant 0 : index
      %c2432 = arith.constant 2432 : index
      %115 = vector.load %arg14[%c0_75, %c2432] : memref<8x6272xf32, #tpu.memory_space<vmem>>, vector<8x128xf32>
      tpu.vector_store %arg14[%c0_75, %c2432], %114 {strides = array<i32>} : memref<8x6272xf32, #tpu.memory_space<vmem>>, vector<8x128xf32>,
      %c160 = arith.constant 160 : index
      %c0_76 = arith.constant 0 : index
      %116 = vector.load %arg13[%c160, %c0_76] : memref<392x128xf32, #tpu.memory_space<vmem>>, vector<8x128xf32>
      %c0_77 = arith.constant 0 : index
      %c2560 = arith.constant 2560 : index
      %117 = vector.load %arg14[%c0_77, %c2560] : memref<8x6272xf32, #tpu.memory_space<vmem>>, vector<8x128xf32>
      tpu.vector_store %arg14[%c0_77, %c2560], %116 {strides = array<i32>} : memref<8x6272xf32, #tpu.memory_space<vmem>>, vector<8x128xf32>,
      %c168 = arith.constant 168 : index
      %c0_78 = arith.constant 0 : index
      %118 = vector.load %arg13[%c168, %c0_78] : memref<392x128xf32, #tpu.memory_space<vmem>>, vector<8x128xf32>
      %c0_79 = arith.constant 0 : index
      %c2688 = arith.constant 2688 : index
      %119 = vector.load %arg14[%c0_79, %c2688] : memref<8x6272xf32, #tpu.memory_space<vmem>>, vector<8x128xf32>
      tpu.vector_store %arg14[%c0_79, %c2688], %118 {strides = array<i32>} : memref<8x6272xf32, #tpu.memory_space<vmem>>, vector<8x128xf32>,
      %c176 = arith.constant 176 : index
      %c0_80 = arith.constant 0 : index
      %120 = vector.load %arg13[%c176, %c0_80] : memref<392x128xf32, #tpu.memory_space<vmem>>, vector<8x128xf32>
      %c0_81 = arith.constant 0 : index
      %c2816 = arith.constant 2816 : index
      %121 = vector.load %arg14[%c0_81, %c2816] : memref<8x6272xf32, #tpu.memory_space<vmem>>, vector<8x128xf32>
      tpu.vector_store %arg14[%c0_81, %c2816], %120 {strides = array<i32>} : memref<8x6272xf32, #tpu.memory_space<vmem>>, vector<8x128xf32>,
      %c184 = arith.constant 184 : index
      %c0_82 = arith.constant 0 : index
      %122 = vector.load %arg13[%c184, %c0_82] : memref<392x128xf32, #tpu.memory_space<vmem>>, vector<8x128xf32>
      %c0_83 = arith.constant 0 : index
      %c2944 = arith.constant 2944 : index
      %123 = vector.load %arg14[%c0_83, %c2944] : memref<8x6272xf32, #tpu.memory_space<vmem>>, vector<8x128xf32>
      tpu.vector_store %arg14[%c0_83, %c2944], %122 {strides = array<i32>} : memref<8x6272xf32, #tpu.memory_space<vmem>>, vector<8x128xf32>,
      %c192 = arith.constant 192 : index
      %c0_84 = arith.constant 0 : index
      %124 = vector.load %arg13[%c192, %c0_84] : memref<392x128xf32, #tpu.memory_space<vmem>>, vector<8x128xf32>
      %c0_85 = arith.constant 0 : index
      %c3072 = arith.constant 3072 : index
      %125 = vector.load %arg14[%c0_85, %c3072] : memref<8x6272xf32, #tpu.memory_space<vmem>>, vector<8x128xf32>
      tpu.vector_store %arg14[%c0_85, %c3072], %124 {strides = array<i32>} : memref<8x6272xf32, #tpu.memory_space<vmem>>, vector<8x128xf32>,
      %c200 = arith.constant 200 : index
      %c0_86 = arith.constant 0 : index
      %126 = vector.load %arg13[%c200, %c0_86] : memref<392x128xf32, #tpu.memory_space<vmem>>, vector<8x128xf32>
      %c0_87 = arith.constant 0 : index
      %c3200 = arith.constant 3200 : index
      %127 = vector.load %arg14[%c0_87, %c3200] : memref<8x6272xf32, #tpu.memory_space<vmem>>, vector<8x128xf32>
      tpu.vector_store %arg14[%c0_87, %c3200], %126 {strides = array<i32>} : memref<8x6272xf32, #tpu.memory_space<vmem>>, vector<8x128xf32>,
      %c208 = arith.constant 208 : index
      %c0_88 = arith.constant 0 : index
      %128 = vector.load %arg13[%c208, %c0_88] : memref<392x128xf32, #tpu.memory_space<vmem>>, vector<8x128xf32>
      %c0_89 = arith.constant 0 : index
      %c3328 = arith.constant 3328 : index
      %129 = vector.load %arg14[%c0_89, %c3328] : memref<8x6272xf32, #tpu.memory_space<vmem>>, vector<8x128xf32>
      tpu.vector_store %arg14[%c0_89, %c3328], %128 {strides = array<i32>} : memref<8x6272xf32, #tpu.memory_space<vmem>>, vector<8x128xf32>,
      %c216 = arith.constant 216 : index
      %c0_90 = arith.constant 0 : index
      %130 = vector.load %arg13[%c216, %c0_90] : memref<392x128xf32, #tpu.memory_space<vmem>>, vector<8x128xf32>
      %c0_91 = arith.constant 0 : index
      %c3456 = arith.constant 3456 : index
      %131 = vector.load %arg14[%c0_91, %c3456] : memref<8x6272xf32, #tpu.memory_space<vmem>>, vector<8x128xf32>
      tpu.vector_store %arg14[%c0_91, %c3456], %130 {strides = array<i32>} : memref<8x6272xf32, #tpu.memory_space<vmem>>, vector<8x128xf32>,
      %c224 = arith.constant 224 : index
      %c0_92 = arith.constant 0 : index
      %132 = vector.load %arg13[%c224, %c0_92] : memref<392x128xf32, #tpu.memory_space<vmem>>, vector<8x128xf32>
      %c0_93 = arith.constant 0 : index
      %c3584 = arith.constant 3584 : index
      %133 = vector.load %arg14[%c0_93, %c3584] : memref<8x6272xf32, #tpu.memory_space<vmem>>, vector<8x128xf32>
      tpu.vector_store %arg14[%c0_93, %c3584], %132 {strides = array<i32>} : memref<8x6272xf32, #tpu.memory_space<vmem>>, vector<8x128xf32>,
      %c232 = arith.constant 232 : index
      %c0_94 = arith.constant 0 : index
      %134 = vector.load %arg13[%c232, %c0_94] : memref<392x128xf32, #tpu.memory_space<vmem>>, vector<8x128xf32>
      %c0_95 = arith.constant 0 : index
      %c3712 = arith.constant 3712 : index
      %135 = vector.load %arg14[%c0_95, %c3712] : memref<8x6272xf32, #tpu.memory_space<vmem>>, vector<8x128xf32>
      tpu.vector_store %arg14[%c0_95, %c3712], %134 {strides = array<i32>} : memref<8x6272xf32, #tpu.memory_space<vmem>>, vector<8x128xf32>,
      %c240 = arith.constant 240 : index
      %c0_96 = arith.constant 0 : index
      %136 = vector.load %arg13[%c240, %c0_96] : memref<392x128xf32, #tpu.memory_space<vmem>>, vector<8x128xf32>
      %c0_97 = arith.constant 0 : index
      %c3840 = arith.constant 3840 : index
      %137 = vector.load %arg14[%c0_97, %c3840] : memref<8x6272xf32, #tpu.memory_space<vmem>>, vector<8x128xf32>
      tpu.vector_store %arg14[%c0_97, %c3840], %136 {strides = array<i32>} : memref<8x6272xf32, #tpu.memory_space<vmem>>, vector<8x128xf32>,
      %c248 = arith.constant 248 : index
      %c0_98 = arith.constant 0 : index
      %138 = vector.load %arg13[%c248, %c0_98] : memref<392x128xf32, #tpu.memory_space<vmem>>, vector<8x128xf32>
      %c0_99 = arith.constant 0 : index
      %c3968 = arith.constant 3968 : index
      %139 = vector.load %arg14[%c0_99, %c3968] : memref<8x6272xf32, #tpu.memory_space<vmem>>, vector<8x128xf32>
      tpu.vector_store %arg14[%c0_99, %c3968], %138 {strides = array<i32>} : memref<8x6272xf32, #tpu.memory_space<vmem>>, vector<8x128xf32>,
      %c256_100 = arith.constant 256 : index
      %c0_101 = arith.constant 0 : index
      %140 = vector.load %arg13[%c256_100, %c0_101] : memref<392x128xf32, #tpu.memory_space<vmem>>, vector<8x128xf32>
      %c0_102 = arith.constant 0 : index
      %c4096 = arith.constant 4096 : index
      %141 = vector.load %arg14[%c0_102, %c4096] : memref<8x6272xf32, #tpu.memory_space<vmem>>, vector<8x128xf32>
      tpu.vector_store %arg14[%c0_102, %c4096], %140 {strides = array<i32>} : memref<8x6272xf32, #tpu.memory_space<vmem>>, vector<8x128xf32>,
      %c264 = arith.constant 264 : index
      %c0_103 = arith.constant 0 : index
      %142 = vector.load %arg13[%c264, %c0_103] : memref<392x128xf32, #tpu.memory_space<vmem>>, vector<8x128xf32>
      %c0_104 = arith.constant 0 : index
      %c4224 = arith.constant 4224 : index
      %143 = vector.load %arg14[%c0_104, %c4224] : memref<8x6272xf32, #tpu.memory_space<vmem>>, vector<8x128xf32>
      tpu.vector_store %arg14[%c0_104, %c4224], %142 {strides = array<i32>} : memref<8x6272xf32, #tpu.memory_space<vmem>>, vector<8x128xf32>,
      %c272 = arith.constant 272 : index
      %c0_105 = arith.constant 0 : index
      %144 = vector.load %arg13[%c272, %c0_105] : memref<392x128xf32, #tpu.memory_space<vmem>>, vector<8x128xf32>
      %c0_106 = arith.constant 0 : index
      %c4352 = arith.constant 4352 : index
      %145 = vector.load %arg14[%c0_106, %c4352] : memref<8x6272xf32, #tpu.memory_space<vmem>>, vector<8x128xf32>
      tpu.vector_store %arg14[%c0_106, %c4352], %144 {strides = array<i32>} : memref<8x6272xf32, #tpu.memory_space<vmem>>, vector<8x128xf32>,
      %c280 = arith.constant 280 : index
      %c0_107 = arith.constant 0 : index
      %146 = vector.load %arg13[%c280, %c0_107] : memref<392x128xf32, #tpu.memory_space<vmem>>, vector<8x128xf32>
      %c0_108 = arith.constant 0 : index
      %c4480 = arith.constant 4480 : index
      %147 = vector.load %arg14[%c0_108, %c4480] : memref<8x6272xf32, #tpu.memory_space<vmem>>, vector<8x128xf32>
      tpu.vector_store %arg14[%c0_108, %c4480], %146 {strides = array<i32>} : memref<8x6272xf32, #tpu.memory_space<vmem>>, vector<8x128xf32>,
      %c288 = arith.constant 288 : index
      %c0_109 = arith.constant 0 : index
      %148 = vector.load %arg13[%c288, %c0_109] : memref<392x128xf32, #tpu.memory_space<vmem>>, vector<8x128xf32>
      %c0_110 = arith.constant 0 : index
      %c4608 = arith.constant 4608 : index
      %149 = vector.load %arg14[%c0_110, %c4608] : memref<8x6272xf32, #tpu.memory_space<vmem>>, vector<8x128xf32>
      tpu.vector_store %arg14[%c0_110, %c4608], %148 {strides = array<i32>} : memref<8x6272xf32, #tpu.memory_space<vmem>>, vector<8x128xf32>,
      %c296 = arith.constant 296 : index
      %c0_111 = arith.constant 0 : index
      %150 = vector.load %arg13[%c296, %c0_111] : memref<392x128xf32, #tpu.memory_space<vmem>>, vector<8x128xf32>
      %c0_112 = arith.constant 0 : index
      %c4736 = arith.constant 4736 : index
      %151 = vector.load %arg14[%c0_112, %c4736] : memref<8x6272xf32, #tpu.memory_space<vmem>>, vector<8x128xf32>
      tpu.vector_store %arg14[%c0_112, %c4736], %150 {strides = array<i32>} : memref<8x6272xf32, #tpu.memory_space<vmem>>, vector<8x128xf32>,
      %c304 = arith.constant 304 : index
      %c0_113 = arith.constant 0 : index
      %152 = vector.load %arg13[%c304, %c0_113] : memref<392x128xf32, #tpu.memory_space<vmem>>, vector<8x128xf32>
      %c0_114 = arith.constant 0 : index
      %c4864 = arith.constant 4864 : index
      %153 = vector.load %arg14[%c0_114, %c4864] : memref<8x6272xf32, #tpu.memory_space<vmem>>, vector<8x128xf32>
      tpu.vector_store %arg14[%c0_114, %c4864], %152 {strides = array<i32>} : memref<8x6272xf32, #tpu.memory_space<vmem>>, vector<8x128xf32>,
      %c312 = arith.constant 312 : index
      %c0_115 = arith.constant 0 : index
      %154 = vector.load %arg13[%c312, %c0_115] : memref<392x128xf32, #tpu.memory_space<vmem>>, vector<8x128xf32>
      %c0_116 = arith.constant 0 : index
      %c4992 = arith.constant 4992 : index
      %155 = vector.load %arg14[%c0_116, %c4992] : memref<8x6272xf32, #tpu.memory_space<vmem>>, vector<8x128xf32>
      tpu.vector_store %arg14[%c0_116, %c4992], %154 {strides = array<i32>} : memref<8x6272xf32, #tpu.memory_space<vmem>>, vector<8x128xf32>,
      %c320 = arith.constant 320 : index
      %c0_117 = arith.constant 0 : index
      %156 = vector.load %arg13[%c320, %c0_117] : memref<392x128xf32, #tpu.memory_space<vmem>>, vector<8x128xf32>
      %c0_118 = arith.constant 0 : index
      %c5120 = arith.constant 5120 : index
      %157 = vector.load %arg14[%c0_118, %c5120] : memref<8x6272xf32, #tpu.memory_space<vmem>>, vector<8x128xf32>
      tpu.vector_store %arg14[%c0_118, %c5120], %156 {strides = array<i32>} : memref<8x6272xf32, #tpu.memory_space<vmem>>, vector<8x128xf32>,
      %c328 = arith.constant 328 : index
      %c0_119 = arith.constant 0 : index
      %158 = vector.load %arg13[%c328, %c0_119] : memref<392x128xf32, #tpu.memory_space<vmem>>, vector<8x128xf32>
      %c0_120 = arith.constant 0 : index
      %c5248 = arith.constant 5248 : index
      %159 = vector.load %arg14[%c0_120, %c5248] : memref<8x6272xf32, #tpu.memory_space<vmem>>, vector<8x128xf32>
      tpu.vector_store %arg14[%c0_120, %c5248], %158 {strides = array<i32>} : memref<8x6272xf32, #tpu.memory_space<vmem>>, vector<8x128xf32>,
      %c336 = arith.constant 336 : index
      %c0_121 = arith.constant 0 : index
      %160 = vector.load %arg13[%c336, %c0_121] : memref<392x128xf32, #tpu.memory_space<vmem>>, vector<8x128xf32>
      %c0_122 = arith.constant 0 : index
      %c5376 = arith.constant 5376 : index
      %161 = vector.load %arg14[%c0_122, %c5376] : memref<8x6272xf32, #tpu.memory_space<vmem>>, vector<8x128xf32>
      tpu.vector_store %arg14[%c0_122, %c5376], %160 {strides = array<i32>} : memref<8x6272xf32, #tpu.memory_space<vmem>>, vector<8x128xf32>,
      %c344 = arith.constant 344 : index
      %c0_123 = arith.constant 0 : index
      %162 = vector.load %arg13[%c344, %c0_123] : memref<392x128xf32, #tpu.memory_space<vmem>>, vector<8x128xf32>
      %c0_124 = arith.constant 0 : index
      %c5504 = arith.constant 5504 : index
      %163 = vector.load %arg14[%c0_124, %c5504] : memref<8x6272xf32, #tpu.memory_space<vmem>>, vector<8x128xf32>
      tpu.vector_store %arg14[%c0_124, %c5504], %162 {strides = array<i32>} : memref<8x6272xf32, #tpu.memory_space<vmem>>, vector<8x128xf32>,
      %c352 = arith.constant 352 : index
      %c0_125 = arith.constant 0 : index
      %164 = vector.load %arg13[%c352, %c0_125] : memref<392x128xf32, #tpu.memory_space<vmem>>, vector<8x128xf32>
      %c0_126 = arith.constant 0 : index
      %c5632 = arith.constant 5632 : index
      %165 = vector.load %arg14[%c0_126, %c5632] : memref<8x6272xf32, #tpu.memory_space<vmem>>, vector<8x128xf32>
      tpu.vector_store %arg14[%c0_126, %c5632], %164 {strides = array<i32>} : memref<8x6272xf32, #tpu.memory_space<vmem>>, vector<8x128xf32>,
      %c360 = arith.constant 360 : index
      %c0_127 = arith.constant 0 : index
      %166 = vector.load %arg13[%c360, %c0_127] : memref<392x128xf32, #tpu.memory_space<vmem>>, vector<8x128xf32>
      %c0_128 = arith.constant 0 : index
      %c5760 = arith.constant 5760 : index
      %167 = vector.load %arg14[%c0_128, %c5760] : memref<8x6272xf32, #tpu.memory_space<vmem>>, vector<8x128xf32>
      tpu.vector_store %arg14[%c0_128, %c5760], %166 {strides = array<i32>} : memref<8x6272xf32, #tpu.memory_space<vmem>>, vector<8x128xf32>,
      %c368 = arith.constant 368 : index
      %c0_129 = arith.constant 0 : index
      %168 = vector.load %arg13[%c368, %c0_129] : memref<392x128xf32, #tpu.memory_space<vmem>>, vector<8x128xf32>
      %c0_130 = arith.constant 0 : index
      %c5888 = arith.constant 5888 : index
      %169 = vector.load %arg14[%c0_130, %c5888] : memref<8x6272xf32, #tpu.memory_space<vmem>>, vector<8x128xf32>
      tpu.vector_store %arg14[%c0_130, %c5888], %168 {strides = array<i32>} : memref<8x6272xf32, #tpu.memory_space<vmem>>, vector<8x128xf32>,
      %c376 = arith.constant 376 : index
      %c0_131 = arith.constant 0 : index
      %170 = vector.load %arg13[%c376, %c0_131] : memref<392x128xf32, #tpu.memory_space<vmem>>, vector<8x128xf32>
      %c0_132 = arith.constant 0 : index
      %c6016 = arith.constant 6016 : index
      %171 = vector.load %arg14[%c0_132, %c6016] : memref<8x6272xf32, #tpu.memory_space<vmem>>, vector<8x128xf32>
      tpu.vector_store %arg14[%c0_132, %c6016], %170 {strides = array<i32>} : memref<8x6272xf32, #tpu.memory_space<vmem>>, vector<8x128xf32>,
      %c384_133 = arith.constant 384 : index
      %c0_134 = arith.constant 0 : index
      %172 = vector.load %arg13[%c384_133, %c0_134] : memref<392x128xf32, #tpu.memory_space<vmem>>, vector<8x128xf32>
      %c0_135 = arith.constant 0 : index
      %c6144 = arith.constant 6144 : index
      %173 = vector.load %arg14[%c0_135, %c6144] : memref<8x6272xf32, #tpu.memory_space<vmem>>, vector<8x128xf32>
      tpu.vector_store %arg14[%c0_135, %c6144], %172 {strides = array<i32>} : memref<8x6272xf32, #tpu.memory_space<vmem>>, vector<8x128xf32>,
      %cst_136 = arith.constant 0.000000e+00 : f32
      %174 = vector.broadcast %cst_136 : f32 to vector<8x1024xf32>
      %c0_137 = arith.constant 0 : index
      %c0_138 = arith.constant 0 : index
      %175 = vector.load %arg15[%c0_137, %c0_138] : memref<8x1024xf32, #tpu.memory_space<vmem>>, vector<8x1024xf32>
      tpu.vector_store %arg15[%c0_137, %c0_138], %174 {strides = array<i32>} : memref<8x1024xf32, #tpu.memory_space<vmem>>, vector<8x1024xf32>,
    } else {
    }
    %c896_i32 = arith.constant 896 : i32
    %3 = arith.muli %arg0, %c896_i32 : i32
    %4 = tpu.assume_multiple %3, 128 : i32
    %c0 = arith.constant 0 : index
    %5 = arith.index_cast %4 : i32 to index
    %6 = vector.load %arg14[%c0, %5] : memref<8x6272xf32, #tpu.memory_space<vmem>>, vector<8x896xf32>
    %7 = arith.truncf %6 : vector<8x896xf32> to vector<8x896xbf16>
    %c0_1 = arith.constant 0 : index
    %c0_2 = arith.constant 0 : index
    %8 = vector.load %arg15[%c0_1, %c0_2] : memref<8x1024xf32, #tpu.memory_space<vmem>>, vector<8x1024xf32>
    %c0_3 = arith.constant 0 : index
    %c0_4 = arith.constant 0 : index
    %9 = vector.load %arg6[%c0_3, %c0_4] : memref<896x1024xbf16, #tpu.memory_space<vmem>>, vector<896x1024xbf16>
    %cst = arith.constant dense<0.000000e+00> : vector<8x1024xf32>
    %10 = tpu.matmul %7, %9, %cst {dimension_numbers = #tpu.dot_dimension_numbers<[1], [0], [0], [1], [0, 0, 1, 1], [], []>} : vector<8x896xbf16>, vector<896x1024xbf16>, vector<8x1024xf32> -> vector<8x1024xf32>
    %11 = arith.addf %8, %10 : vector<8x1024xf32>
    %c0_5 = arith.constant 0 : index
    %c0_6 = arith.constant 0 : index
    %12 = vector.load %arg15[%c0_5, %c0_6] : memref<8x1024xf32, #tpu.memory_space<vmem>>, vector<8x1024xf32>
    tpu.vector_store %arg15[%c0_5, %c0_6], %11 {strides = array<i32>} : memref<8x1024xf32, #tpu.memory_space<vmem>>, vector<8x1024xf32>,
    %c6_i32 = arith.constant 6 : i32
    %13 = arith.cmpi eq, %arg0, %c6_i32 : i32
    %14 = arith.extui %13 : i1 to i32
    %c0_i32_7 = arith.constant 0 : i32
    %15 = arith.cmpi ne, %14, %c0_i32_7 : i32
    scf.if %15 {
      %c0_8 = arith.constant 0 : index
      %c0_9 = arith.constant 0 : index
      %16 = vector.load %arg15[%c0_8, %c0_9] : memref<8x1024xf32, #tpu.memory_space<vmem>>, vector<8x1024xf32>
      %c0_10 = arith.constant 0 : index
      %c0_11 = arith.constant 0 : index
      %17 = vector.load %arg7[%c0_10, %c0_11] : memref<1x1024xf32, #tpu.memory_space<vmem>>, vector<1x1024xf32>
      %18 = vector.broadcast %17 : vector<1x1024xf32> to vector<8x1024xf32>
      %19 = arith.addf %16, %18 : vector<8x1024xf32>
      %20 = tpu.iota {dimensions = array<i32: 0>} : vector<8x1024xi32>
      %c4_i32 = arith.constant 4 : i32
      %21 = vector.broadcast %c4_i32 : i32 to vector<8x1024xi32>
      %22 = arith.cmpi slt, %20, %21 : vector<8x1024xi32>
      %23 = arith.extui %22 : vector<8x1024xi1> to vector<8x1024xi32>
      %24 = arith.sitofp %23 : vector<8x1024xi32> to vector<8x1024xf32>
      %25 = arith.mulf %19, %24 : vector<8x1024xf32>
      %cst_12 = arith.constant dense<0.000000e+00> : vector<1024xf32>
      %26 = vector.multi_reduction <add>, %25, %cst_12 [0] : vector<8x1024xf32> to vector<1024xf32>
      %27 = vector.shape_cast %26 : vector<1024xf32> to vector<1x1024xf32>
      %cst_13 = arith.constant 4.000000e+00 : f32
      %28 = vector.broadcast %cst_13 : f32 to vector<1x1024xf32>
      %29 = arith.divf %27, %28 : vector<1x1024xf32>
      %30 = arith.mulf %19, %19 : vector<8x1024xf32>
      %31 = arith.mulf %30, %24 : vector<8x1024xf32>
      %cst_14 = arith.constant dense<0.000000e+00> : vector<1024xf32>
      %32 = vector.multi_reduction <add>, %31, %cst_14 [0] : vector<8x1024xf32> to vector<1024xf32>
      %33 = vector.shape_cast %32 : vector<1024xf32> to vector<1x1024xf32>
      %cst_15 = arith.constant 4.000000e+00 : f32
      %34 = vector.broadcast %cst_15 : f32 to vector<1x1024xf32>
      %35 = arith.divf %33, %34 : vector<1x1024xf32>
      %36 = arith.mulf %29, %29 : vector<1x1024xf32>
      %37 = arith.subf %35, %36 : vector<1x1024xf32>
      %cst_16 = arith.constant 0.000000e+00 : f32
      %38 = vector.broadcast %cst_16 : f32 to vector<1x1024xf32>
      %39 = arith.maximumf %37, %38 : vector<1x1024xf32>
      %40 = vector.broadcast %29 : vector<1x1024xf32> to vector<8x1024xf32>
      %41 = arith.subf %19, %40 : vector<8x1024xf32>
      %cst_17 = arith.constant 9.99999974E-6 : f32
      %42 = vector.broadcast %cst_17 : f32 to vector<1x1024xf32>
      %43 = arith.addf %39, %42 : vector<1x1024xf32>
      %44 = math.rsqrt %43 : vector<1x1024xf32>
      %45 = vector.broadcast %44 : vector<1x1024xf32> to vector<8x1024xf32>
      %46 = arith.mulf %41, %45 : vector<8x1024xf32>
      %c0_18 = arith.constant 0 : index
      %c0_19 = arith.constant 0 : index
      %47 = vector.load %arg8[%c0_18, %c0_19] : memref<1x1024xf32, #tpu.memory_space<vmem>>, vector<1x1024xf32>
      %48 = vector.broadcast %47 : vector<1x1024xf32> to vector<8x1024xf32>
      %49 = arith.mulf %46, %48 : vector<8x1024xf32>
      %c0_20 = arith.constant 0 : index
      %c0_21 = arith.constant 0 : index
      %50 = vector.load %arg9[%c0_20, %c0_21] : memref<1x1024xf32, #tpu.memory_space<vmem>>, vector<1x1024xf32>
      %51 = vector.broadcast %50 : vector<1x1024xf32> to vector<8x1024xf32>
      %52 = arith.addf %49, %51 : vector<8x1024xf32>
      %cst_22 = arith.constant 0.000000e+00 : f32
      %53 = vector.broadcast %cst_22 : f32 to vector<8x1024xf32>
      %54 = arith.cmpf ogt, %52, %53 : vector<8x1024xf32>
      %cst_23 = arith.constant 2.000000e-01 : f32
      %55 = vector.broadcast %cst_23 : f32 to vector<8x1024xf32>
      %56 = arith.mulf %55, %52 : vector<8x1024xf32>
      %57 = arith.select %54, %52, %56 : vector<8x1024xi1>, vector<8x1024xf32>
      %c0_24 = arith.constant 0 : index
      %c0_25 = arith.constant 0 : index
      %58 = vector.load %arg10[%c0_24, %c0_25] : memref<1x1024xf32, #tpu.memory_space<vmem>>, vector<1x1024xf32>
      %59 = vector.broadcast %58 : vector<1x1024xf32> to vector<8x1024xf32>
      %60 = arith.mulf %57, %59 : vector<8x1024xf32>
      %cst_26 = arith.constant dense<0.000000e+00> : vector<8xf32>
      %61 = vector.multi_reduction <add>, %60, %cst_26 [1] : vector<8x1024xf32> to vector<8xf32>
      %62 = vector.shape_cast %61 : vector<8xf32> to vector<8x1xf32>
      %c0_27 = arith.constant 0 : index
      %63 = memref.load %arg11[%c0_27] : memref<1xf32, #tpu.memory_space<smem>>
      %64 = vector.broadcast %63 : f32 to vector<8x1xf32>
      %65 = arith.addf %62, %64 : vector<8x1xf32>
      %cst_28 = arith.constant 0.000000e+00 : f32
      %66 = vector.broadcast %cst_28 : f32 to vector<8x1xf32>
      %67 = arith.subf %66, %65 : vector<8x1xf32>
      %68 = math.exp %67 : vector<8x1xf32>
      %cst_29 = arith.constant 1.000000e+00 : f32
      %69 = vector.broadcast %cst_29 : f32 to vector<8x1xf32>
      %70 = arith.addf %69, %68 : vector<8x1xf32>
      %cst_30 = arith.constant 1.000000e+00 : f32
      %71 = vector.broadcast %cst_30 : f32 to vector<8x1xf32>
      %72 = arith.divf %71, %70 : vector<8x1xf32>
      %c0_31 = arith.constant 0 : index
      %c0_32 = arith.constant 0 : index
      %73 = vector.load %arg12[%c0_31, %c0_32] : memref<8x1xf32, #tpu.memory_space<vmem>>, vector<8x1xf32>
      tpu.vector_store %arg12[%c0_31, %c0_32], %72 {strides = array<i32>} : memref<8x1xf32, #tpu.memory_space<vmem>>, vector<8x1xf32>,
    } else {
    }
    return
  }
  func.func @transform_0(%arg0: i32) -> (i32, i32) {
    %c0_i32 = arith.constant 0 : i32
    %c0_i32_0 = arith.constant 0 : i32
    %c0_i32_1 = arith.constant 0 : i32
    return %c0_i32, %c0_i32_0 : i32, i32
  }
  func.func @transform_1(%arg0: i32) -> (i32, i32) {
    %c0_i32 = arith.constant 0 : i32
    %c0_i32_0 = arith.constant 0 : i32
    %c0_i32_1 = arith.constant 0 : i32
    return %c0_i32, %c0_i32_0 : i32, i32
  }
  func.func @transform_2(%arg0: i32) -> (i32, i32) {
    %c0_i32 = arith.constant 0 : i32
    %c0_i32_0 = arith.constant 0 : i32
    %c0_i32_1 = arith.constant 0 : i32
    return %c0_i32, %c0_i32_0 : i32, i32
  }
  func.func @transform_3(%arg0: i32) -> (i32, i32) {
    %c0_i32 = arith.constant 0 : i32
    %c0_i32_0 = arith.constant 0 : i32
    %c0_i32_1 = arith.constant 0 : i32
    return %c0_i32, %c0_i32_0 : i32, i32
  }
  func.func @transform_4(%arg0: i32) -> (i32, i32) {
    %c0_i32 = arith.constant 0 : i32
    %c0_i32_0 = arith.constant 0 : i32
    %c0_i32_1 = arith.constant 0 : i32
    return %c0_i32, %c0_i32_0 : i32, i32
  }
  func.func @transform_5(%arg0: i32) -> (i32, i32) {
    %c0_i32 = arith.constant 0 : i32
    %c0_i32_0 = arith.constant 0 : i32
    return %arg0, %c0_i32 : i32, i32
  }
  func.func @transform_6(%arg0: i32) -> (i32, i32) {
    %c0_i32 = arith.constant 0 : i32
    %c0_i32_0 = arith.constant 0 : i32
    %c0_i32_1 = arith.constant 0 : i32
    return %c0_i32, %c0_i32_0 : i32, i32
  }
  func.func @transform_7(%arg0: i32) -> (i32, i32) {
    %c0_i32 = arith.constant 0 : i32
    %c0_i32_0 = arith.constant 0 : i32
    %c0_i32_1 = arith.constant 0 : i32
    return %c0_i32, %c0_i32_0 : i32, i32
  }
  func.func @transform_8(%arg0: i32) -> (i32, i32) {
    %c0_i32 = arith.constant 0 : i32
    %c0_i32_0 = arith.constant 0 : i32
    %c0_i32_1 = arith.constant 0 : i32
    return %c0_i32, %c0_i32_0 : i32, i32
  }
  func.func @transform_9(%arg0: i32) -> (i32, i32) {
    %c0_i32 = arith.constant 0 : i32
    %c0_i32_0 = arith.constant 0 : i32
    %c0_i32_1 = arith.constant 0 : i32
    return %c0_i32, %c0_i32_0 : i32, i32
  }
  func.func @transform_10(%arg0: i32) -> i32 {
    %c0_i32 = arith.constant 0 : i32
    %c0_i32_0 = arith.constant 0 : i32
    return %c0_i32 : i32
  }
  func.func @transform_11(%arg0: i32) -> (i32, i32) {
    %c0_i32 = arith.constant 0 : i32
    %c0_i32_0 = arith.constant 0 : i32
    %c0_i32_1 = arith.constant 0 : i32
    return %c0_i32, %c0_i32_0 : i32, i32
  }
}

</mosaic_0001>

<llo_original>
// kernel: discriminator_forward.2
$region0: #{discriminator_forward.2}
  #allocation0 [shape = 'u32[]', space=smem, size = 0x4, offset = 0x4, fixed_abs, tag = 'smem constant byte address 0x4 - core index']
  #allocation1 [shape = 'u32[72,128]{1,0:T(1,128)}', space=vmem, size = 0x9000, scoped, tag = 'internal scratch']
  %s0 = inlined_call_operand.vmem [shape: bf16[784,256], index: 0, kind: input, shape index: {}]
  %s1 = inlined_call_operand.vmem [shape: bf16[256,64], index: 1, kind: input, shape index: {}]
  %s2 = inlined_call_operand.vmem [shape: f32[1,64], index: 2, kind: input, shape index: {}]
  %s3 = inlined_call_operand.vmem [shape: bf16[784,64], index: 3, kind: output, shape index: {}]
  %s4 = sld [smem:[#allocation0]]
  $region22: #{discriminator_forward.2} parent=0
    _
  %s6 = ssub.s32 1, %s4
  %s7 = scalar_select 0, %s6, %s4
  // Predicated region
  $region2: #{discriminator_forward.2} parent=0 // pred_check
    _
  $region3: #{discriminator_forward.2} parent=0 // pred_check_branch
    %9 = sbr.rel (0) target = $region5
  $region4: #{discriminator_forward.2} parent=0 // pred_region
    _
  $region5: #{discriminator_forward.2} parent=0 // pred_fallthru
    _
  // Predicated region
  $region6: #{discriminator_forward.2} parent=0 // pred_check
    _
  $region7: #{discriminator_forward.2} parent=0 // pred_check_branch
    %11 = sbr.rel (0) target = $region9
  $region8: #{discriminator_forward.2} parent=0 // pred_region
    _
  $region9: #{discriminator_forward.2} parent=0 // pred_fallthru
    _
  // Predicated region
  $region10: #{discriminator_forward.2} parent=0 // pred_check
    _
  $region11: #{discriminator_forward.2} parent=0 // pred_check_branch
    %13 = sbr.rel (0) target = $region13
  $region12: #{discriminator_forward.2} parent=0 // pred_region
    _
  $region13: #{discriminator_forward.2} parent=0 // pred_fallthru
    _
  %v14 = vld [vmem:[%s0] sm:$0xff]
  %v15 = vld [vmem:[%s0 + $0x8] sm:$0xff]
  %v16 = vld [vmem:[%s0 + $0x10] sm:$0xff]
  %v17 = vld [vmem:[%s0 + $0x18] sm:$0xff]
  %v18 = vld [vmem:[%s0 + $0x20] sm:$0xff]
  %v19 = vld [vmem:[%s0 + $0x28] sm:$0xff]
  %v20 = vld [vmem:[%s0 + $0x30] sm:$0xff]
  %v21 = vld [vmem:[%s0 + $0x38] sm:$0xff]
  %v22 = vld [vmem:[%s0 + $0x40] sm:$0xff]
  %v23 = vld [vmem:[%s0 + $0x48] sm:$0xff]
  %v24 = vld [vmem:[%s0 + $0x50] sm:$0xff]
  %v25 = vld [vmem:[%s0 + $0x58] sm:$0xff]
  %v26 = vld [vmem:[%s0 + $0x60] sm:$0xff]
  %v27 = vld [vmem:[%s0 + $0x68] sm:$0xff]
  %v28 = vld [vmem:[%s0 + $0x70] sm:$0xff]
  %v29 = vld [vmem:[%s0 + $0x78] sm:$0xff]
  %v30 = vld [vmem:[%s0 + $0x80] sm:$0xff]
  %v31 = vld [vmem:[%s0 + $0x88] sm:$0xff]
  %v32 = vld [vmem:[%s0 + $0x90] sm:$0xff]
  %v33 = vld [vmem:[%s0 + $0x98] sm:$0xff]
  %v34 = vld [vmem:[%s0 + $0xa0] sm:$0xff]
  %v35 = vld [vmem:[%s0 + $0xa8] sm:$0xff]
  %v36 = vld [vmem:[%s0 + $0xb0] sm:$0xff]
  %v37 = vld [vmem:[%s0 + $0xb8] sm:$0xff]
  %v38 = vld [vmem:[%s0 + $0xc0] sm:$0xff]
  %v39 = vld [vmem:[%s0 + $0xc8] sm:$0xff]
  %v40 = vld [vmem:[%s0 + $0xd0] sm:$0xff]
  %v41 = vld [vmem:[%s0 + $0xd8] sm:$0xff]
  %v42 = vld [vmem:[%s0 + $0xe0] sm:$0xff]
  %v43 = vld [vmem:[%s0 + $0xe8] sm:$0xff]
  %v44 = vld [vmem:[%s0 + $0xf0] sm:$0xff]
  %v45 = vld [vmem:[%s0 + $0xf8] sm:$0xff]
  %v46 = vld [vmem:[%s0 + $0x100] sm:$0xff]
  %v47 = vld [vmem:[%s0 + $0x108] sm:$0xff]
  %v48 = vld [vmem:[%s0 + $0x110] sm:$0xff]
  %v49 = vld [vmem:[%s0 + $0x118] sm:$0xff]
  %v50 = vld [vmem:[%s0 + $0x120] sm:$0xff]
  %v51 = vld [vmem:[%s0 + $0x128] sm:$0xff]
  %v52 = vld [vmem:[%s0 + $0x130] sm:$0xff]
  %v53 = vld [vmem:[%s0 + $0x138] sm:$0xff]
  %v54 = vld [vmem:[%s0 + $0x140] sm:$0xff]
  %v55 = vld [vmem:[%s0 + $0x148] sm:$0xff]
  %v56 = vld [vmem:[%s0 + $0x150] sm:$0xff]
  %v57 = vld [vmem:[%s0 + $0x158] sm:$0xff]
  %v58 = vld [vmem:[%s0 + $0x160] sm:$0xff]
  %v59 = vld [vmem:[%s0 + $0x168] sm:$0xff]
  %v60 = vld [vmem:[%s0 + $0x170] sm:$0xff]
  %v61 = vld [vmem:[%s0 + $0x178] sm:$0xff]
  %v62 = vld [vmem:[%s0 + $0x180] sm:$0xff]
  %v63 = vld [vmem:[%s0 + $0x188] sm:$0xff]
  %v64 = vld [vmem:[%s0 + $0x190] sm:$0xff]
  %v65 = vld [vmem:[%s0 + $0x198] sm:$0xff]
  %v66 = vld [vmem:[%s0 + $0x1a0] sm:$0xff]
  %v67 = vld [vmem:[%s0 + $0x1a8] sm:$0xff]
  %v68 = vld [vmem:[%s0 + $0x1b0] sm:$0xff]
  %v69 = vld [vmem:[%s0 + $0x1b8] sm:$0xff]
  %v70 = vld [vmem:[%s0 + $0x1c0] sm:$0xff]
  %v71 = vld [vmem:[%s0 + $0x1c8] sm:$0xff]
  %v72 = vld [vmem:[%s0 + $0x1d0] sm:$0xff]
  %v73 = vld [vmem:[%s0 + $0x1d8] sm:$0xff]
  %v74 = vld [vmem:[%s0 + $0x1e0] sm:$0xff]
  %v75 = vld [vmem:[%s0 + $0x1e8] sm:$0xff]
  %v76 = vld [vmem:[%s0 + $0x1f0] sm:$0xff]
  %v77 = vld [vmem:[%s0 + $0x1f8] sm:$0xff]
  %v78 = vld [vmem:[%s0 + $0x200] sm:$0xff]
  %v79 = vld [vmem:[%s0 + $0x208] sm:$0xff]
  %v80 = vld [vmem:[%s0 + $0x210] sm:$0xff]
  %v81 = vld [vmem:[%s0 + $0x218] sm:$0xff]
  %v82 = vld [vmem:[%s0 + $0x220] sm:$0xff]
  %v83 = vld [vmem:[%s0 + $0x228] sm:$0xff]
  %v84 = vld [vmem:[%s0 + $0x230] sm:$0xff]
  %v85 = vld [vmem:[%s0 + $0x238] sm:$0xff]
  %v86 = vld [vmem:[%s0 + $0x240] sm:$0xff]
  %v87 = vld [vmem:[%s0 + $0x248] sm:$0xff]
  %v88 = vld [vmem:[%s0 + $0x250] sm:$0xff]
  %v89 = vld [vmem:[%s0 + $0x258] sm:$0xff]
  %v90 = vld [vmem:[%s0 + $0x260] sm:$0xff]
  %v91 = vld [vmem:[%s0 + $0x268] sm:$0xff]
  %v92 = vld [vmem:[%s0 + $0x270] sm:$0xff]
  %v93 = vld [vmem:[%s0 + $0x278] sm:$0xff]
  %v94 = vld [vmem:[%s0 + $0x280] sm:$0xff]
  %v95 = vld [vmem:[%s0 + $0x288] sm:$0xff]
  %v96 = vld [vmem:[%s0 + $0x290] sm:$0xff]
  %v97 = vld [vmem:[%s0 + $0x298] sm:$0xff]
  %v98 = vld [vmem:[%s0 + $0x2a0] sm:$0xff]
  %v99 = vld [vmem:[%s0 + $0x2a8] sm:$0xff]
  %v100 = vld [vmem:[%s0 + $0x2b0] sm:$0xff]
  %v101 = vld [vmem:[%s0 + $0x2b8] sm:$0xff]
  %v102 = vld [vmem:[%s0 + $0x2c0] sm:$0xff]
  %v103 = vld [vmem:[%s0 + $0x2c8] sm:$0xff]
  %v104 = vld [vmem:[%s0 + $0x2d0] sm:$0xff]
  %v105 = vld [vmem:[%s0 + $0x2d8] sm:$0xff]
  %v106 = vld [vmem:[%s0 + $0x2e0] sm:$0xff]
  %v107 = vld [vmem:[%s0 + $0x2e8] sm:$0xff]
  %v108 = vld [vmem:[%s0 + $0x2f0] sm:$0xff]
  %v109 = vld [vmem:[%s0 + $0x2f8] sm:$0xff]
  %v110 = vld [vmem:[%s0 + $0x300] sm:$0xff]
  %v111 = vld [vmem:[%s0 + $0x308] sm:$0xff]
  %v112 = vld [vmem:[%s1] sm:$0xf]
  %v113 = vld [vmem:[%s1 + $0x4] sm:$0xf]
  %v114 = vld [vmem:[%s1 + $0x8] sm:$0xf]
  %v115 = vld [vmem:[%s1 + $0xc] sm:$0xf]
  %v116 = vld [vmem:[%s1 + $0x10] sm:$0xf]
  %v117 = vld [vmem:[%s1 + $0x14] sm:$0xf]
  %v118 = vld [vmem:[%s1 + $0x18] sm:$0xf]
  %v119 = vld [vmem:[%s1 + $0x1c] sm:$0xf]
  %v120 = vld [vmem:[%s1 + $0x20] sm:$0xf]
  %v121 = vld [vmem:[%s1 + $0x24] sm:$0xf]
  %v122 = vld [vmem:[%s1 + $0x28] sm:$0xf]
  %v123 = vld [vmem:[%s1 + $0x2c] sm:$0xf]
  %v124 = vld [vmem:[%s1 + $0x30] sm:$0xf]
  %v125 = vld [vmem:[%s1 + $0x34] sm:$0xf]
  %v126 = vld [vmem:[%s1 + $0x38] sm:$0xf]
  %v127 = vld [vmem:[%s1 + $0x3c] sm:$0xf]
  %v128 = vld [vmem:[%s1 + $0x40] sm:$0xf]
  %v129 = vld [vmem:[%s1 + $0x44] sm:$0xf]
  %v130 = vld [vmem:[%s1 + $0x48] sm:$0xf]
  %v131 = vld [vmem:[%s1 + $0x4c] sm:$0xf]
  %v132 = vld [vmem:[%s1 + $0x50] sm:$0xf]
  %v133 = vld [vmem:[%s1 + $0x54] sm:$0xf]
  %v134 = vld [vmem:[%s1 + $0x58] sm:$0xf]
  %v135 = vld [vmem:[%s1 + $0x5c] sm:$0xf]
  %v136 = vld [vmem:[%s1 + $0x60] sm:$0xf]
  %v137 = vld [vmem:[%s1 + $0x64] sm:$0xf]
  %v138 = vld [vmem:[%s1 + $0x68] sm:$0xf]
  %v139 = vld [vmem:[%s1 + $0x6c] sm:$0xf]
  %v140 = vld [vmem:[%s1 + $0x70] sm:$0xf]
  %v141 = vld [vmem:[%s1 + $0x74] sm:$0xf]
  %v142 = vld [vmem:[%s1 + $0x78] sm:$0xf]
  %v143 = vld [vmem:[%s1 + $0x7c] sm:$0xf]
  %v144 = vld [vmem:[%s2] sm:$0x1]
  %v146 = vperm.slane %v144, 0
  %v246 = vunpack.c.l.b16 %v14
  %v247 = vunpack.c.h.b16 %v14
  %v248 = vunpack.c.l.b16 %v15
  %v249 = vunpack.c.h.b16 %v15
  %v250 = vunpack.c.l.b16 %v16
  %v251 = vunpack.c.h.b16 %v16
  %v252 = vunpack.c.l.b16 %v17
  %v253 = vunpack.c.h.b16 %v17
  %v254 = vunpack.c.l.b16 %v18
  %v255 = vunpack.c.h.b16 %v18
  %v256 = vunpack.c.l.b16 %v19
  %v257 = vunpack.c.h.b16 %v19
  %v258 = vunpack.c.l.b16 %v20
  %v259 = vunpack.c.h.b16 %v20
  %v260 = vunpack.c.l.b16 %v21
  %v261 = vunpack.c.h.b16 %v21
  %v262 = vunpack.c.l.b16 %v22
  %v263 = vunpack.c.h.b16 %v22
  %v264 = vunpack.c.l.b16 %v23
  %v265 = vunpack.c.h.b16 %v23
  %v266 = vunpack.c.l.b16 %v24
  %v267 = vunpack.c.h.b16 %v24
  %v268 = vunpack.c.l.b16 %v25
  %v269 = vunpack.c.h.b16 %v25
  %v270 = vunpack.c.l.b16 %v26
  %v271 = vunpack.c.h.b16 %v26
  %v272 = vunpack.c.l.b16 %v27
  %v273 = vunpack.c.h.b16 %v27
  %v274 = vunpack.c.l.b16 %v28
  %v275 = vunpack.c.h.b16 %v28
  %v276 = vunpack.c.l.b16 %v29
  %v277 = vunpack.c.h.b16 %v29
  %v278 = vunpack.c.l.b16 %v30
  %v279 = vunpack.c.h.b16 %v30
  %v280 = vunpack.c.l.b16 %v31
  %v281 = vunpack.c.h.b16 %v31
  %v282 = vunpack.c.l.b16 %v32
  %v283 = vunpack.c.h.b16 %v32
  %v284 = vunpack.c.l.b16 %v33
  %v285 = vunpack.c.h.b16 %v33
  %v286 = vunpack.c.l.b16 %v34
  %v287 = vunpack.c.h.b16 %v34
  %v288 = vunpack.c.l.b16 %v35
  %v289 = vunpack.c.h.b16 %v35
  %v290 = vunpack.c.l.b16 %v36
  %v291 = vunpack.c.h.b16 %v36
  %v292 = vunpack.c.l.b16 %v37
  %v293 = vunpack.c.h.b16 %v37
  %v294 = vunpack.c.l.b16 %v38
  %v295 = vunpack.c.h.b16 %v38
  %v296 = vunpack.c.l.b16 %v39
  %v297 = vunpack.c.h.b16 %v39
  %v298 = vunpack.c.l.b16 %v40
  %v299 = vunpack.c.h.b16 %v40
  %v300 = vunpack.c.l.b16 %v41
  %v301 = vunpack.c.h.b16 %v41
  %v302 = vunpack.c.l.b16 %v42
  %v303 = vunpack.c.h.b16 %v42
  %v304 = vunpack.c.l.b16 %v43
  %v305 = vunpack.c.h.b16 %v43
  %v306 = vunpack.c.l.b16 %v44
  %v307 = vunpack.c.h.b16 %v44
  %v308 = vunpack.c.l.b16 %v45
  %v309 = vunpack.c.h.b16 %v45
  %v310 = vunpack.c.l.b16 %v46
  %v311 = vunpack.c.h.b16 %v46
  %v312 = vunpack.c.l.b16 %v47
  %v313 = vunpack.c.h.b16 %v47
  %v314 = vunpack.c.l.b16 %v48
  %v315 = vunpack.c.h.b16 %v48
  %v316 = vunpack.c.l.b16 %v49
  %v317 = vunpack.c.h.b16 %v49
  %v318 = vunpack.c.l.b16 %v50
  %v319 = vunpack.c.h.b16 %v50
  %v320 = vunpack.c.l.b16 %v51
  %v321 = vunpack.c.h.b16 %v51
  %v322 = vunpack.c.l.b16 %v52
  %v323 = vunpack.c.h.b16 %v52
  %v324 = vunpack.c.l.b16 %v53
  %v325 = vunpack.c.h.b16 %v53
  %v326 = vunpack.c.l.b16 %v54
  %v327 = vunpack.c.h.b16 %v54
  %v328 = vunpack.c.l.b16 %v55
  %v329 = vunpack.c.h.b16 %v55
  %v330 = vunpack.c.l.b16 %v56
  %v331 = vunpack.c.h.b16 %v56
  %v332 = vunpack.c.l.b16 %v57
  %v333 = vunpack.c.h.b16 %v57
  %v334 = vunpack.c.l.b16 %v58
  %v335 = vunpack.c.h.b16 %v58
  %v336 = vunpack.c.l.b16 %v59
  %v337 = vunpack.c.h.b16 %v59
  %v338 = vunpack.c.l.b16 %v60
  %v339 = vunpack.c.h.b16 %v60
  %v340 = vunpack.c.l.b16 %v61
  %v341 = vunpack.c.h.b16 %v61
  %v342 = vunpack.c.l.b16 %v62
  %v343 = vunpack.c.h.b16 %v62
  %v344 = vunpack.c.l.b16 %v63
  %v345 = vunpack.c.h.b16 %v63
  %v346 = vunpack.c.l.b16 %v64
  %v347 = vunpack.c.h.b16 %v64
  %v348 = vunpack.c.l.b16 %v65
  %v349 = vunpack.c.h.b16 %v65
  %v350 = vunpack.c.l.b16 %v66
  %v351 = vunpack.c.h.b16 %v66
  %v352 = vunpack.c.l.b16 %v67
  %v353 = vunpack.c.h.b16 %v67
  %v354 = vunpack.c.l.b16 %v68
  %v355 = vunpack.c.h.b16 %v68
  %v356 = vunpack.c.l.b16 %v69
  %v357 = vunpack.c.h.b16 %v69
  %v358 = vunpack.c.l.b16 %v70
  %v359 = vunpack.c.h.b16 %v70
  %v360 = vunpack.c.l.b16 %v71
  %v361 = vunpack.c.h.b16 %v71
  %v362 = vunpack.c.l.b16 %v72
  %v363 = vunpack.c.h.b16 %v72
  %v364 = vunpack.c.l.b16 %v73
  %v365 = vunpack.c.h.b16 %v73
  %v366 = vunpack.c.l.b16 %v74
  %v367 = vunpack.c.h.b16 %v74
  %v368 = vunpack.c.l.b16 %v75
  %v369 = vunpack.c.h.b16 %v75
  %v370 = vunpack.c.l.b16 %v76
  %v371 = vunpack.c.h.b16 %v76
  %v372 = vunpack.c.l.b16 %v77
  %v373 = vunpack.c.h.b16 %v77
  %v374 = vunpack.c.l.b16 %v78
  %v375 = vunpack.c.h.b16 %v78
  %v376 = vunpack.c.l.b16 %v79
  %v377 = vunpack.c.h.b16 %v79
  %v378 = vunpack.c.l.b16 %v80
  %v379 = vunpack.c.h.b16 %v80
  %v380 = vunpack.c.l.b16 %v81
  %v381 = vunpack.c.h.b16 %v81
  %v382 = vunpack.c.l.b16 %v82
  %v383 = vunpack.c.h.b16 %v82
  %v384 = vunpack.c.l.b16 %v83
  %v385 = vunpack.c.h.b16 %v83
  %v386 = vunpack.c.l.b16 %v84
  %v387 = vunpack.c.h.b16 %v84
  %v388 = vunpack.c.l.b16 %v85
  %v389 = vunpack.c.h.b16 %v85
  %v390 = vunpack.c.l.b16 %v86
  %v391 = vunpack.c.h.b16 %v86
  %v392 = vunpack.c.l.b16 %v87
  %v393 = vunpack.c.h.b16 %v87
  %v394 = vunpack.c.l.b16 %v88
  %v395 = vunpack.c.h.b16 %v88
  %v396 = vunpack.c.l.b16 %v89
  %v397 = vunpack.c.h.b16 %v89
  %v398 = vunpack.c.l.b16 %v90
  %v399 = vunpack.c.h.b16 %v90
  %v400 = vunpack.c.l.b16 %v91
  %v401 = vunpack.c.h.b16 %v91
  %v402 = vunpack.c.l.b16 %v92
  %v403 = vunpack.c.h.b16 %v92
  %v404 = vunpack.c.l.b16 %v93
  %v405 = vunpack.c.h.b16 %v93
  %v406 = vunpack.c.l.b16 %v94
  %v407 = vunpack.c.h.b16 %v94
  %v408 = vunpack.c.l.b16 %v95
  %v409 = vunpack.c.h.b16 %v95
  %v410 = vunpack.c.l.b16 %v96
  %v411 = vunpack.c.h.b16 %v96
  %v412 = vunpack.c.l.b16 %v97
  %v413 = vunpack.c.h.b16 %v97
  %v414 = vunpack.c.l.b16 %v98
  %v415 = vunpack.c.h.b16 %v98
  %v416 = vunpack.c.l.b16 %v99
  %v417 = vunpack.c.h.b16 %v99
  %v418 = vunpack.c.l.b16 %v100
  %v419 = vunpack.c.h.b16 %v100
  %v420 = vunpack.c.l.b16 %v101
  %v421 = vunpack.c.h.b16 %v101
  %v422 = vunpack.c.l.b16 %v102
  %v423 = vunpack.c.h.b16 %v102
  %v424 = vunpack.c.l.b16 %v103
  %v425 = vunpack.c.h.b16 %v103
  %v426 = vunpack.c.l.b16 %v104
  %v427 = vunpack.c.h.b16 %v104
  %v428 = vunpack.c.l.b16 %v105
  %v429 = vunpack.c.h.b16 %v105
  %v430 = vunpack.c.l.b16 %v106
  %v431 = vunpack.c.h.b16 %v106
  %v432 = vunpack.c.l.b16 %v107
  %v433 = vunpack.c.h.b16 %v107
  %v434 = vunpack.c.l.b16 %v108
  %v435 = vunpack.c.h.b16 %v108
  %v436 = vunpack.c.l.b16 %v109
  %v437 = vunpack.c.h.b16 %v109
  %v438 = vunpack.c.l.b16 %v110
  %v439 = vunpack.c.h.b16 %v110
  %v440 = vunpack.c.l.b16 %v111
  %v441 = vunpack.c.h.b16 %v111
  %v442 = vpack.c.b16 %v248, %v246
  %v443 = vpack.c.b16 %v249, %v247
  %v444 = vpack.c.b16 %v252, %v250
  %v445 = vpack.c.b16 %v253, %v251
  %v446 = vpack.c.b16 %v256, %v254
  %v447 = vpack.c.b16 %v257, %v255
  %v448 = vpack.c.b16 %v260, %v258
  %v449 = vpack.c.b16 %v261, %v259
  %v450 = vpack.c.b16 %v264, %v262
  %v451 = vpack.c.b16 %v265, %v263
  %v452 = vpack.c.b16 %v268, %v266
  %v453 = vpack.c.b16 %v269, %v267
  %v454 = vpack.c.b16 %v272, %v270
  %v455 = vpack.c.b16 %v273, %v271
  %v456 = vpack.c.b16 %v276, %v274
  %v457 = vpack.c.b16 %v277, %v275
  %v458 = vpack.c.b16 %v280, %v278
  %v459 = vpack.c.b16 %v281, %v279
  %v460 = vpack.c.b16 %v284, %v282
  %v461 = vpack.c.b16 %v285, %v283
  %v462 = vpack.c.b16 %v288, %v286
  %v463 = vpack.c.b16 %v289, %v287
  %v464 = vpack.c.b16 %v292, %v290
  %v465 = vpack.c.b16 %v293, %v291
  %v466 = vpack.c.b16 %v296, %v294
  %v467 = vpack.c.b16 %v297, %v295
  %v468 = vpack.c.b16 %v300, %v298
  %v469 = vpack.c.b16 %v301, %v299
  %v470 = vpack.c.b16 %v304, %v302
  %v471 = vpack.c.b16 %v305, %v303
  %v472 = vpack.c.b16 %v308, %v306
  %v473 = vpack.c.b16 %v309, %v307
  %v474 = vpack.c.b16 %v312, %v310
  %v475 = vpack.c.b16 %v313, %v311
  %v476 = vpack.c.b16 %v316, %v314
  %v477 = vpack.c.b16 %v317, %v315
  %v478 = vpack.c.b16 %v320, %v318
  %v479 = vpack.c.b16 %v321, %v319
  %v480 = vpack.c.b16 %v324, %v322
  %v481 = vpack.c.b16 %v325, %v323
  %v482 = vpack.c.b16 %v328, %v326
  %v483 = vpack.c.b16 %v329, %v327
  %v484 = vpack.c.b16 %v332, %v330
  %v485 = vpack.c.b16 %v333, %v331
  %v486 = vpack.c.b16 %v336, %v334
  %v487 = vpack.c.b16 %v337, %v335
  %v488 = vpack.c.b16 %v340, %v338
  %v489 = vpack.c.b16 %v341, %v339
  %v490 = vpack.c.b16 %v344, %v342
  %v491 = vpack.c.b16 %v345, %v343
  %v492 = vpack.c.b16 %v348, %v346
  %v493 = vpack.c.b16 %v349, %v347
  %v494 = vpack.c.b16 %v352, %v350
  %v495 = vpack.c.b16 %v353, %v351
  %v496 = vpack.c.b16 %v356, %v354
  %v497 = vpack.c.b16 %v357, %v355
  %v498 = vpack.c.b16 %v360, %v358
  %v499 = vpack.c.b16 %v361, %v359
  %v500 = vpack.c.b16 %v364, %v362
  %v501 = vpack.c.b16 %v365, %v363
  %v502 = vpack.c.b16 %v368, %v366
  %v503 = vpack.c.b16 %v369, %v367
  %v504 = vpack.c.b16 %v372, %v370
  %v505 = vpack.c.b16 %v373, %v371
  %v506 = vpack.c.b16 %v376, %v374
  %v507 = vpack.c.b16 %v377, %v375
  %v508 = vpack.c.b16 %v380, %v378
  %v509 = vpack.c.b16 %v381, %v379
  %v510 = vpack.c.b16 %v384, %v382
  %v511 = vpack.c.b16 %v385, %v383
  %v512 = vpack.c.b16 %v388, %v386
  %v513 = vpack.c.b16 %v389, %v387
  %v514 = vpack.c.b16 %v392, %v390
  %v515 = vpack.c.b16 %v393, %v391
  %v516 = vpack.c.b16 %v396, %v394
  %v517 = vpack.c.b16 %v397, %v395
  %v518 = vpack.c.b16 %v400, %v398
  %v519 = vpack.c.b16 %v401, %v399
  %v520 = vpack.c.b16 %v404, %v402
  %v521 = vpack.c.b16 %v405, %v403
  %v522 = vpack.c.b16 %v408, %v406
  %v523 = vpack.c.b16 %v409, %v407
  %v524 = vpack.c.b16 %v412, %v410
  %v525 = vpack.c.b16 %v413, %v411
  %v526 = vpack.c.b16 %v416, %v414
  %v527 = vpack.c.b16 %v417, %v415
  %v528 = vpack.c.b16 %v420, %v418
  %v529 = vpack.c.b16 %v421, %v419
  %v530 = vpack.c.b16 %v424, %v422
  %v531 = vpack.c.b16 %v425, %v423
  %v532 = vpack.c.b16 %v428, %v426
  %v533 = vpack.c.b16 %v429, %v427
  %v534 = vpack.c.b16 %v432, %v430
  %v535 = vpack.c.b16 %v433, %v431
  %v536 = vpack.c.b16 %v436, %v434
  %v537 = vpack.c.b16 %v437, %v435
  %v538 = vpack.c.b16 %v440, %v438
  %v539 = vpack.c.b16 %v441, %v439
  %v670 = vunpack.c.l.b16 %v112
  %v671 = vunpack.c.l.b16 %v113
  %v672 = vunpack.c.l.b16 %v114
  %v673 = vunpack.c.l.b16 %v115
  %v674 = vunpack.c.l.b16 %v116
  %v675 = vunpack.c.l.b16 %v117
  %v676 = vunpack.c.l.b16 %v118
  %v677 = vunpack.c.l.b16 %v119
  %v678 = vunpack.c.l.b16 %v120
  %v679 = vunpack.c.l.b16 %v121
  %v680 = vunpack.c.l.b16 %v122
  %v681 = vunpack.c.l.b16 %v123
  %v682 = vunpack.c.l.b16 %v124
  %v683 = vunpack.c.l.b16 %v125
  %v684 = vunpack.c.l.b16 %v126
  %v685 = vunpack.c.l.b16 %v127
  %v686 = vunpack.c.l.b16 %v128
  %v687 = vunpack.c.l.b16 %v129
  %v688 = vunpack.c.l.b16 %v130
  %v689 = vunpack.c.l.b16 %v131
  %v690 = vunpack.c.l.b16 %v132
  %v691 = vunpack.c.l.b16 %v133
  %v692 = vunpack.c.l.b16 %v134
  %v693 = vunpack.c.l.b16 %v135
  %v694 = vunpack.c.l.b16 %v136
  %v695 = vunpack.c.l.b16 %v137
  %v696 = vunpack.c.l.b16 %v138
  %v697 = vunpack.c.l.b16 %v139
  %v698 = vunpack.c.l.b16 %v140
  %v699 = vunpack.c.l.b16 %v141
  %v700 = vunpack.c.l.b16 %v142
  %v701 = vunpack.c.l.b16 %v143
  %v702 = vpack.c.b16 %v671, %v670
  %v703 = vpack.c.b16 %v673, %v672
  %v704 = vpack.c.b16 %v675, %v674
  %v705 = vpack.c.b16 %v677, %v676
  %v706 = vpack.c.b16 %v679, %v678
  %v707 = vpack.c.b16 %v681, %v680
  %v708 = vpack.c.b16 %v683, %v682
  %v709 = vpack.c.b16 %v685, %v684
  %v710 = vpack.c.b16 %v687, %v686
  %v711 = vpack.c.b16 %v689, %v688
  %v712 = vpack.c.b16 %v691, %v690
  %v713 = vpack.c.b16 %v693, %v692
  %v714 = vpack.c.b16 %v695, %v694
  %v715 = vpack.c.b16 %v697, %v696
  %v716 = vpack.c.b16 %v699, %v698
  %v717 = vpack.c.b16 %v701, %v700
  %734 = vmatpush.bf16.msra.mxu0 %v709
  %735 = vmatpush.bf16.msra.mxu0 %v708
  %736 = vmatpush.bf16.msra.mxu0 %v707
  %737 = vmatpush.bf16.msra.mxu0 %v706
  %738 = vmatpush.bf16.msra.mxu0 %v705
  %739 = vmatpush.bf16.msra.mxu0 %v704
  %740 = vmatpush.bf16.msra.mxu0 %v703
  %741 = vmatpush.bf16.msra.mxu0 %v702
  %742 = vmatmul.bf16.gmra.mxu0 %v442
  %v743 = vpop.f32.mrf.mxu0
  %v744 = vadd.f32 %v146, %v743
  %v745 = vpop.f32.mrf.mxu0
  %v746 = vadd.f32 %v146, %v745
  %747 = vmatmul.bf16.gmra.mxu0 %v444
  %v748 = vpop.f32.mrf.mxu0
  %v749 = vadd.f32 %v146, %v748
  %v750 = vpop.f32.mrf.mxu0
  %v751 = vadd.f32 %v146, %v750
  %752 = vmatmul.bf16.gmra.mxu0 %v446
  %v753 = vpop.f32.mrf.mxu0
  %v754 = vadd.f32 %v146, %v753
  %v755 = vpop.f32.mrf.mxu0
  %v756 = vadd.f32 %v146, %v755
  %757 = vmatmul.bf16.gmra.mxu0 %v448
  %v758 = vpop.f32.mrf.mxu0
  %v759 = vadd.f32 %v146, %v758
  %v760 = vpop.f32.mrf.mxu0
  %v761 = vadd.f32 %v146, %v760
  %762 = vmatmul.bf16.gmra.mxu0 %v450
  %v763 = vpop.f32.mrf.mxu0
  %v764 = vadd.f32 %v146, %v763
  %v765 = vpop.f32.mrf.mxu0
  %v766 = vadd.f32 %v146, %v765
  %767 = vmatmul.bf16.gmra.mxu0 %v452
  %v768 = vpop.f32.mrf.mxu0
  %v769 = vadd.f32 %v146, %v768
  %v770 = vpop.f32.mrf.mxu0
  %v771 = vadd.f32 %v146, %v770
  %772 = vmatmul.bf16.gmra.mxu0 %v454
  %v773 = vpop.f32.mrf.mxu0
  %v774 = vadd.f32 %v146, %v773
  %v775 = vpop.f32.mrf.mxu0
  %v776 = vadd.f32 %v146, %v775
  %777 = vmatmul.bf16.gmra.mxu0 %v456
  %v778 = vpop.f32.mrf.mxu0
  %v779 = vadd.f32 %v146, %v778
  %v780 = vpop.f32.mrf.mxu0
  %v781 = vadd.f32 %v146, %v780
  %782 = vmatmul.bf16.gmra.mxu0 %v458
  %v783 = vpop.f32.mrf.mxu0
  %v784 = vadd.f32 %v146, %v783
  %v785 = vpop.f32.mrf.mxu0
  %v786 = vadd.f32 %v146, %v785
  %787 = vmatmul.bf16.gmra.mxu0 %v460
  %v788 = vpop.f32.mrf.mxu0
  %v789 = vadd.f32 %v146, %v788
  %v790 = vpop.f32.mrf.mxu0
  %v791 = vadd.f32 %v146, %v790
  %792 = vmatmul.bf16.gmra.mxu0 %v462
  %v793 = vpop.f32.mrf.mxu0
  %v794 = vadd.f32 %v146, %v793
  %v795 = vpop.f32.mrf.mxu0
  %v796 = vadd.f32 %v146, %v795
  %797 = vmatmul.bf16.gmra.mxu0 %v464
  %v798 = vpop.f32.mrf.mxu0
  %v799 = vadd.f32 %v146, %v798
  %v800 = vpop.f32.mrf.mxu0
  %v801 = vadd.f32 %v146, %v800
  %802 = vmatmul.bf16.gmra.mxu0 %v466
  %v803 = vpop.f32.mrf.mxu0
  %v804 = vadd.f32 %v146, %v803
  %v805 = vpop.f32.mrf.mxu0
  %v806 = vadd.f32 %v146, %v805
  %807 = vmatmul.bf16.gmra.mxu0 %v468
  %v808 = vpop.f32.mrf.mxu0
  %v809 = vadd.f32 %v146, %v808
  %v810 = vpop.f32.mrf.mxu0
  %v811 = vadd.f32 %v146, %v810
  %812 = vmatmul.bf16.gmra.mxu0 %v470
  %v813 = vpop.f32.mrf.mxu0
  %v814 = vadd.f32 %v146, %v813
  %v815 = vpop.f32.mrf.mxu0
  %v816 = vadd.f32 %v146, %v815
  %817 = vmatmul.bf16.gmra.mxu0 %v472
  %v818 = vpop.f32.mrf.mxu0
  %v819 = vadd.f32 %v146, %v818
  %v820 = vpop.f32.mrf.mxu0
  %v821 = vadd.f32 %v146, %v820
  %822 = vmatmul.bf16.gmra.mxu0 %v474
  %v823 = vpop.f32.mrf.mxu0
  %v824 = vadd.f32 %v146, %v823
  %v825 = vpop.f32.mrf.mxu0
  %v826 = vadd.f32 %v146, %v825
  %827 = vmatmul.bf16.gmra.mxu0 %v476
  %v828 = vpop.f32.mrf.mxu0
  %v829 = vadd.f32 %v146, %v828
  %v830 = vpop.f32.mrf.mxu0
  %v831 = vadd.f32 %v146, %v830
  %832 = vmatmul.bf16.gmra.mxu0 %v478
  %v833 = vpop.f32.mrf.mxu0
  %v834 = vadd.f32 %v146, %v833
  %v835 = vpop.f32.mrf.mxu0
  %v836 = vadd.f32 %v146, %v835
  %837 = vmatmul.bf16.gmra.mxu0 %v480
  %v838 = vpop.f32.mrf.mxu0
  %v839 = vadd.f32 %v146, %v838
  %v840 = vpop.f32.mrf.mxu0
  %v841 = vadd.f32 %v146, %v840
  %842 = vmatmul.bf16.gmra.mxu0 %v482
  %v843 = vpop.f32.mrf.mxu0
  %v844 = vadd.f32 %v146, %v843
  %v845 = vpop.f32.mrf.mxu0
  %v846 = vadd.f32 %v146, %v845
  %847 = vmatmul.bf16.gmra.mxu0 %v484
  %v848 = vpop.f32.mrf.mxu0
  %v849 = vadd.f32 %v146, %v848
  %v850 = vpop.f32.mrf.mxu0
  %v851 = vadd.f32 %v146, %v850
  %852 = vmatmul.bf16.gmra.mxu0 %v486
  %v853 = vpop.f32.mrf.mxu0
  %v854 = vadd.f32 %v146, %v853
  %v855 = vpop.f32.mrf.mxu0
  %v856 = vadd.f32 %v146, %v855
  %857 = vmatmul.bf16.gmra.mxu0 %v488
  %v858 = vpop.f32.mrf.mxu0
  %v859 = vadd.f32 %v146, %v858
  %v860 = vpop.f32.mrf.mxu0
  %v861 = vadd.f32 %v146, %v860
  %862 = vmatmul.bf16.gmra.mxu0 %v490
  %v863 = vpop.f32.mrf.mxu0
  %v864 = vadd.f32 %v146, %v863
  %v865 = vpop.f32.mrf.mxu0
  %v866 = vadd.f32 %v146, %v865
  %867 = vmatmul.bf16.gmra.mxu0 %v492
  %v868 = vpop.f32.mrf.mxu0
  %v869 = vadd.f32 %v146, %v868
  %v870 = vpop.f32.mrf.mxu0
  %v871 = vadd.f32 %v146, %v870
  %872 = vmatmul.bf16.gmra.mxu0 %v494
  %v873 = vpop.f32.mrf.mxu0
  %v874 = vadd.f32 %v146, %v873
  %v875 = vpop.f32.mrf.mxu0
  %v876 = vadd.f32 %v146, %v875
  %877 = vmatmul.bf16.gmra.mxu0 %v496
  %v878 = vpop.f32.mrf.mxu0
  %v879 = vadd.f32 %v146, %v878
  %v880 = vpop.f32.mrf.mxu0
  %v881 = vadd.f32 %v146, %v880
  %882 = vmatmul.bf16.gmra.mxu0 %v498
  %v883 = vpop.f32.mrf.mxu0
  %v884 = vadd.f32 %v146, %v883
  %v885 = vpop.f32.mrf.mxu0
  %v886 = vadd.f32 %v146, %v885
  %887 = vmatmul.bf16.gmra.mxu0 %v500
  %v888 = vpop.f32.mrf.mxu0
  %v889 = vadd.f32 %v146, %v888
  %v890 = vpop.f32.mrf.mxu0
  %v891 = vadd.f32 %v146, %v890
  %892 = vmatmul.bf16.gmra.mxu0 %v502
  %v893 = vpop.f32.mrf.mxu0
  %v894 = vadd.f32 %v146, %v893
  %v895 = vpop.f32.mrf.mxu0
  %v896 = vadd.f32 %v146, %v895
  %897 = vmatmul.bf16.gmra.mxu0 %v504
  %v898 = vpop.f32.mrf.mxu0
  %v899 = vadd.f32 %v146, %v898
  %v900 = vpop.f32.mrf.mxu0
  %v901 = vadd.f32 %v146, %v900
  %902 = vmatmul.bf16.gmra.mxu0 %v506
  %v903 = vpop.f32.mrf.mxu0
  %v904 = vadd.f32 %v146, %v903
  %v905 = vpop.f32.mrf.mxu0
  %v906 = vadd.f32 %v146, %v905
  %907 = vmatmul.bf16.gmra.mxu0 %v508
  %v908 = vpop.f32.mrf.mxu0
  %v909 = vadd.f32 %v146, %v908
  %v910 = vpop.f32.mrf.mxu0
  %v911 = vadd.f32 %v146, %v910
  %912 = vmatmul.bf16.gmra.mxu0 %v510
  %v913 = vpop.f32.mrf.mxu0
  %v914 = vadd.f32 %v146, %v913
  %v915 = vpop.f32.mrf.mxu0
  %v916 = vadd.f32 %v146, %v915
  %917 = vmatmul.bf16.gmra.mxu0 %v512
  %v918 = vpop.f32.mrf.mxu0
  %v919 = vadd.f32 %v146, %v918
  %v920 = vpop.f32.mrf.mxu0
  %v921 = vadd.f32 %v146, %v920
  %922 = vmatmul.bf16.gmra.mxu0 %v514
  %v923 = vpop.f32.mrf.mxu0
  %v924 = vadd.f32 %v146, %v923
  %v925 = vpop.f32.mrf.mxu0
  %v926 = vadd.f32 %v146, %v925
  %927 = vmatmul.bf16.gmra.mxu0 %v516
  %v928 = vpop.f32.mrf.mxu0
  %v929 = vadd.f32 %v146, %v928
  %v930 = vpop.f32.mrf.mxu0
  %v931 = vadd.f32 %v146, %v930
  %932 = vmatmul.bf16.gmra.mxu0 %v518
  %v933 = vpop.f32.mrf.mxu0
  %v934 = vadd.f32 %v146, %v933
  %v935 = vpop.f32.mrf.mxu0
  %v936 = vadd.f32 %v146, %v935
  %937 = vmatmul.bf16.gmra.mxu0 %v520
  %v938 = vpop.f32.mrf.mxu0
  %v939 = vadd.f32 %v146, %v938
  %v940 = vpop.f32.mrf.mxu0
  %v941 = vadd.f32 %v146, %v940
  %942 = vmatmul.bf16.gmra.mxu0 %v522
  %v943 = vpop.f32.mrf.mxu0
  %v944 = vadd.f32 %v146, %v943
  %v945 = vpop.f32.mrf.mxu0
  %v946 = vadd.f32 %v146, %v945
  %947 = vmatmul.bf16.gmra.mxu0 %v524
  %v948 = vpop.f32.mrf.mxu0
  %v949 = vadd.f32 %v146, %v948
  %v950 = vpop.f32.mrf.mxu0
  %v951 = vadd.f32 %v146, %v950
  %952 = vmatmul.bf16.gmra.mxu0 %v526
  %v953 = vpop.f32.mrf.mxu0
  %v954 = vadd.f32 %v146, %v953
  %v955 = vpop.f32.mrf.mxu0
  %v956 = vadd.f32 %v146, %v955
  %957 = vmatmul.bf16.gmra.mxu0 %v528
  %v958 = vpop.f32.mrf.mxu0
  %v959 = vadd.f32 %v146, %v958
  %v960 = vpop.f32.mrf.mxu0
  %v961 = vadd.f32 %v146, %v960
  %962 = vmatmul.bf16.gmra.mxu0 %v530
  %v963 = vpop.f32.mrf.mxu0
  %v964 = vadd.f32 %v146, %v963
  %v965 = vpop.f32.mrf.mxu0
  %v966 = vadd.f32 %v146, %v965
  %967 = vmatmul.bf16.gmra.mxu0 %v532
  %v968 = vpop.f32.mrf.mxu0
  %v969 = vadd.f32 %v146, %v968
  %v970 = vpop.f32.mrf.mxu0
  %v971 = vadd.f32 %v146, %v970
  %972 = vmatmul.bf16.gmra.mxu0 %v534
  %v973 = vpop.f32.mrf.mxu0
  %v974 = vadd.f32 %v146, %v973
  %v975 = vpop.f32.mrf.mxu0
  %v976 = vadd.f32 %v146, %v975
  %977 = vmatmul.bf16.gmra.mxu0 %v536
  %v978 = vpop.f32.mrf.mxu0
  %v979 = vadd.f32 %v146, %v978
  %v980 = vpop.f32.mrf.mxu0
  %v981 = vadd.f32 %v146, %v980
  %982 = vmatmul.bf16.gmra.mxu0 %v538
  %v983 = vpop.f32.mrf.mxu0
  %v984 = vadd.f32 %v146, %v983
  %v985 = vpop.f32.mrf.mxu0
  %v986 = vadd.f32 %v146, %v985
  %987 = vdwg.mxu0
  %988 = vmatpush.bf16.msra.mxu0 %v717
  %989 = vmatpush.bf16.msra.mxu0 %v716
  %990 = vmatpush.bf16.msra.mxu0 %v715
  %991 = vmatpush.bf16.msra.mxu0 %v714
  %992 = vmatpush.bf16.msra.mxu0 %v713
  %993 = vmatpush.bf16.msra.mxu0 %v712
  %994 = vmatpush.bf16.msra.mxu0 %v711
  %995 = vmatpush.bf16.msra.mxu0 %v710
  %996 = vmatmul.bf16.gmra.mxu0 %v443
  %v997 = vpop.f32.mrf.mxu0
  %v998 = vadd.f32 %v744, %v997
  %v999 = vpop.f32.mrf.mxu0
  %v1000 = vadd.f32 %v746, %v999
  %1001 = vmatmul.bf16.gmra.mxu0 %v445
  %v1002 = vpop.f32.mrf.mxu0
  %v1003 = vadd.f32 %v749, %v1002
  %v1004 = vpop.f32.mrf.mxu0
  %v1005 = vadd.f32 %v751, %v1004
  %1006 = vmatmul.bf16.gmra.mxu0 %v447
  %v1007 = vpop.f32.mrf.mxu0
  %v1008 = vadd.f32 %v754, %v1007
  %v1009 = vpop.f32.mrf.mxu0
  %v1010 = vadd.f32 %v756, %v1009
  %1011 = vmatmul.bf16.gmra.mxu0 %v449
  %v1012 = vpop.f32.mrf.mxu0
  %v1013 = vadd.f32 %v759, %v1012
  %v1014 = vpop.f32.mrf.mxu0
  %v1015 = vadd.f32 %v761, %v1014
  %1016 = vmatmul.bf16.gmra.mxu0 %v451
  %v1017 = vpop.f32.mrf.mxu0
  %v1018 = vadd.f32 %v764, %v1017
  %v1019 = vpop.f32.mrf.mxu0
  %v1020 = vadd.f32 %v766, %v1019
  %1021 = vmatmul.bf16.gmra.mxu0 %v453
  %v1022 = vpop.f32.mrf.mxu0
  %v1023 = vadd.f32 %v769, %v1022
  %v1024 = vpop.f32.mrf.mxu0
  %v1025 = vadd.f32 %v771, %v1024
  %1026 = vmatmul.bf16.gmra.mxu0 %v455
  %v1027 = vpop.f32.mrf.mxu0
  %v1028 = vadd.f32 %v774, %v1027
  %v1029 = vpop.f32.mrf.mxu0
  %v1030 = vadd.f32 %v776, %v1029
  %1031 = vmatmul.bf16.gmra.mxu0 %v457
  %v1032 = vpop.f32.mrf.mxu0
  %v1033 = vadd.f32 %v779, %v1032
  %v1034 = vpop.f32.mrf.mxu0
  %v1035 = vadd.f32 %v781, %v1034
  %1036 = vmatmul.bf16.gmra.mxu0 %v459
  %v1037 = vpop.f32.mrf.mxu0
  %v1038 = vadd.f32 %v784, %v1037
  %v1039 = vpop.f32.mrf.mxu0
  %v1040 = vadd.f32 %v786, %v1039
  %1041 = vmatmul.bf16.gmra.mxu0 %v461
  %v1042 = vpop.f32.mrf.mxu0
  %v1043 = vadd.f32 %v789, %v1042
  %v1044 = vpop.f32.mrf.mxu0
  %v1045 = vadd.f32 %v791, %v1044
  %1046 = vmatmul.bf16.gmra.mxu0 %v463
  %v1047 = vpop.f32.mrf.mxu0
  %v1048 = vadd.f32 %v794, %v1047
  %v1049 = vpop.f32.mrf.mxu0
  %v1050 = vadd.f32 %v796, %v1049
  %1051 = vmatmul.bf16.gmra.mxu0 %v465
  %v1052 = vpop.f32.mrf.mxu0
  %v1053 = vadd.f32 %v799, %v1052
  %v1054 = vpop.f32.mrf.mxu0
  %v1055 = vadd.f32 %v801, %v1054
  %1056 = vmatmul.bf16.gmra.mxu0 %v467
  %v1057 = vpop.f32.mrf.mxu0
  %v1058 = vadd.f32 %v804, %v1057
  %v1059 = vpop.f32.mrf.mxu0
  %v1060 = vadd.f32 %v806, %v1059
  %1061 = vmatmul.bf16.gmra.mxu0 %v469
  %v1062 = vpop.f32.mrf.mxu0
  %v1063 = vadd.f32 %v809, %v1062
  %v1064 = vpop.f32.mrf.mxu0
  %v1065 = vadd.f32 %v811, %v1064
  %1066 = vmatmul.bf16.gmra.mxu0 %v471
  %v1067 = vpop.f32.mrf.mxu0
  %v1068 = vadd.f32 %v814, %v1067
  %v1069 = vpop.f32.mrf.mxu0
  %v1070 = vadd.f32 %v816, %v1069
  %1071 = vmatmul.bf16.gmra.mxu0 %v473
  %v1072 = vpop.f32.mrf.mxu0
  %v1073 = vadd.f32 %v819, %v1072
  %v1074 = vpop.f32.mrf.mxu0
  %v1075 = vadd.f32 %v821, %v1074
  %1076 = vmatmul.bf16.gmra.mxu0 %v475
  %v1077 = vpop.f32.mrf.mxu0
  %v1078 = vadd.f32 %v824, %v1077
  %v1079 = vpop.f32.mrf.mxu0
  %v1080 = vadd.f32 %v826, %v1079
  %1081 = vmatmul.bf16.gmra.mxu0 %v477
  %v1082 = vpop.f32.mrf.mxu0
  %v1083 = vadd.f32 %v829, %v1082
  %v1084 = vpop.f32.mrf.mxu0
  %v1085 = vadd.f32 %v831, %v1084
  %1086 = vmatmul.bf16.gmra.mxu0 %v479
  %v1087 = vpop.f32.mrf.mxu0
  %v1088 = vadd.f32 %v834, %v1087
  %v1089 = vpop.f32.mrf.mxu0
  %v1090 = vadd.f32 %v836, %v1089
  %1091 = vmatmul.bf16.gmra.mxu0 %v481
  %v1092 = vpop.f32.mrf.mxu0
  %v1093 = vadd.f32 %v839, %v1092
  %v1094 = vpop.f32.mrf.mxu0
  %v1095 = vadd.f32 %v841, %v1094
  %1096 = vmatmul.bf16.gmra.mxu0 %v483
  %v1097 = vpop.f32.mrf.mxu0
  %v1098 = vadd.f32 %v844, %v1097
  %v1099 = vpop.f32.mrf.mxu0
  %v1100 = vadd.f32 %v846, %v1099
  %1101 = vmatmul.bf16.gmra.mxu0 %v485
  %v1102 = vpop.f32.mrf.mxu0
  %v1103 = vadd.f32 %v849, %v1102
  %v1104 = vpop.f32.mrf.mxu0
  %v1105 = vadd.f32 %v851, %v1104
  %1106 = vmatmul.bf16.gmra.mxu0 %v487
  %v1107 = vpop.f32.mrf.mxu0
  %v1108 = vadd.f32 %v854, %v1107
  %v1109 = vpop.f32.mrf.mxu0
  %v1110 = vadd.f32 %v856, %v1109
  %1111 = vmatmul.bf16.gmra.mxu0 %v489
  %v1112 = vpop.f32.mrf.mxu0
  %v1113 = vadd.f32 %v859, %v1112
  %v1114 = vpop.f32.mrf.mxu0
  %v1115 = vadd.f32 %v861, %v1114
  %1116 = vmatmul.bf16.gmra.mxu0 %v491
  %v1117 = vpop.f32.mrf.mxu0
  %v1118 = vadd.f32 %v864, %v1117
  %v1119 = vpop.f32.mrf.mxu0
  %v1120 = vadd.f32 %v866, %v1119
  %1121 = vmatmul.bf16.gmra.mxu0 %v493
  %v1122 = vpop.f32.mrf.mxu0
  %v1123 = vadd.f32 %v869, %v1122
  %v1124 = vpop.f32.mrf.mxu0
  %v1125 = vadd.f32 %v871, %v1124
  %1126 = vmatmul.bf16.gmra.mxu0 %v495
  %v1127 = vpop.f32.mrf.mxu0
  %v1128 = vadd.f32 %v874, %v1127
  %v1129 = vpop.f32.mrf.mxu0
  %v1130 = vadd.f32 %v876, %v1129
  %1131 = vmatmul.bf16.gmra.mxu0 %v497
  %v1132 = vpop.f32.mrf.mxu0
  %v1133 = vadd.f32 %v879, %v1132
  %v1134 = vpop.f32.mrf.mxu0
  %v1135 = vadd.f32 %v881, %v1134
  %1136 = vmatmul.bf16.gmra.mxu0 %v499
  %v1137 = vpop.f32.mrf.mxu0
  %v1138 = vadd.f32 %v884, %v1137
  %v1139 = vpop.f32.mrf.mxu0
  %v1140 = vadd.f32 %v886, %v1139
  %1141 = vmatmul.bf16.gmra.mxu0 %v501
  %v1142 = vpop.f32.mrf.mxu0
  %v1143 = vadd.f32 %v889, %v1142
  %v1144 = vpop.f32.mrf.mxu0
  %v1145 = vadd.f32 %v891, %v1144
  %1146 = vmatmul.bf16.gmra.mxu0 %v503
  %v1147 = vpop.f32.mrf.mxu0
  %v1148 = vadd.f32 %v894, %v1147
  %v1149 = vpop.f32.mrf.mxu0
  %v1150 = vadd.f32 %v896, %v1149
  %1151 = vmatmul.bf16.gmra.mxu0 %v505
  %v1152 = vpop.f32.mrf.mxu0
  %v1153 = vadd.f32 %v899, %v1152
  %v1154 = vpop.f32.mrf.mxu0
  %v1155 = vadd.f32 %v901, %v1154
  %1156 = vmatmul.bf16.gmra.mxu0 %v507
  %v1157 = vpop.f32.mrf.mxu0
  %v1158 = vadd.f32 %v904, %v1157
  %v1159 = vpop.f32.mrf.mxu0
  %v1160 = vadd.f32 %v906, %v1159
  %1161 = vmatmul.bf16.gmra.mxu0 %v509
  %v1162 = vpop.f32.mrf.mxu0
  %v1163 = vadd.f32 %v909, %v1162
  %v1164 = vpop.f32.mrf.mxu0
  %v1165 = vadd.f32 %v911, %v1164
  %1166 = vmatmul.bf16.gmra.mxu0 %v511
  %v1167 = vpop.f32.mrf.mxu0
  %v1168 = vadd.f32 %v914, %v1167
  %v1169 = vpop.f32.mrf.mxu0
  %v1170 = vadd.f32 %v916, %v1169
  %1171 = vmatmul.bf16.gmra.mxu0 %v513
  %v1172 = vpop.f32.mrf.mxu0
  %v1173 = vadd.f32 %v919, %v1172
  %v1174 = vpop.f32.mrf.mxu0
  %v1175 = vadd.f32 %v921, %v1174
  %1176 = vmatmul.bf16.gmra.mxu0 %v515
  %v1177 = vpop.f32.mrf.mxu0
  %v1178 = vadd.f32 %v924, %v1177
  %v1179 = vpop.f32.mrf.mxu0
  %v1180 = vadd.f32 %v926, %v1179
  %1181 = vmatmul.bf16.gmra.mxu0 %v517
  %v1182 = vpop.f32.mrf.mxu0
  %v1183 = vadd.f32 %v929, %v1182
  %v1184 = vpop.f32.mrf.mxu0
  %v1185 = vadd.f32 %v931, %v1184
  %1186 = vmatmul.bf16.gmra.mxu0 %v519
  %v1187 = vpop.f32.mrf.mxu0
  %v1188 = vadd.f32 %v934, %v1187
  %v1189 = vpop.f32.mrf.mxu0
  %v1190 = vadd.f32 %v936, %v1189
  %1191 = vmatmul.bf16.gmra.mxu0 %v521
  %v1192 = vpop.f32.mrf.mxu0
  %v1193 = vadd.f32 %v939, %v1192
  %v1194 = vpop.f32.mrf.mxu0
  %v1195 = vadd.f32 %v941, %v1194
  %1196 = vmatmul.bf16.gmra.mxu0 %v523
  %v1197 = vpop.f32.mrf.mxu0
  %v1198 = vadd.f32 %v944, %v1197
  %v1199 = vpop.f32.mrf.mxu0
  %v1200 = vadd.f32 %v946, %v1199
  %1201 = vmatmul.bf16.gmra.mxu0 %v525
  %v1202 = vpop.f32.mrf.mxu0
  %v1203 = vadd.f32 %v949, %v1202
  %v1204 = vpop.f32.mrf.mxu0
  %v1205 = vadd.f32 %v951, %v1204
  %1206 = vmatmul.bf16.gmra.mxu0 %v527
  %v1207 = vpop.f32.mrf.mxu0
  %v1208 = vadd.f32 %v954, %v1207
  %v1209 = vpop.f32.mrf.mxu0
  %v1210 = vadd.f32 %v956, %v1209
  %1211 = vmatmul.bf16.gmra.mxu0 %v529
  %v1212 = vpop.f32.mrf.mxu0
  %v1213 = vadd.f32 %v959, %v1212
  %v1214 = vpop.f32.mrf.mxu0
  %v1215 = vadd.f32 %v961, %v1214
  %1216 = vmatmul.bf16.gmra.mxu0 %v531
  %v1217 = vpop.f32.mrf.mxu0
  %v1218 = vadd.f32 %v964, %v1217
  %v1219 = vpop.f32.mrf.mxu0
  %v1220 = vadd.f32 %v966, %v1219
  %1221 = vmatmul.bf16.gmra.mxu0 %v533
  %v1222 = vpop.f32.mrf.mxu0
  %v1223 = vadd.f32 %v969, %v1222
  %v1224 = vpop.f32.mrf.mxu0
  %v1225 = vadd.f32 %v971, %v1224
  %1226 = vmatmul.bf16.gmra.mxu0 %v535
  %v1227 = vpop.f32.mrf.mxu0
  %v1228 = vadd.f32 %v974, %v1227
  %v1229 = vpop.f32.mrf.mxu0
  %v1230 = vadd.f32 %v976, %v1229
  %1231 = vmatmul.bf16.gmra.mxu0 %v537
  %v1232 = vpop.f32.mrf.mxu0
  %v1233 = vadd.f32 %v979, %v1232
  %v1234 = vpop.f32.mrf.mxu0
  %v1235 = vadd.f32 %v981, %v1234
  %1236 = vmatmul.bf16.gmra.mxu0 %v539
  %v1237 = vpop.f32.mrf.mxu0
  %v1238 = vadd.f32 %v984, %v1237
  %v1239 = vpop.f32.mrf.mxu0
  %v1240 = vadd.f32 %v986, %v1239
  %1241 = vdwg.mxu0
  %vm1242 = vcmp.gt.f32.partialorder %v998, 0.0
  %vm1243 = vcmp.gt.f32.partialorder %v1000, 0.0
  %vm1244 = vcmp.gt.f32.partialorder %v1003, 0.0
  %vm1245 = vcmp.gt.f32.partialorder %v1005, 0.0
  %vm1246 = vcmp.gt.f32.partialorder %v1008, 0.0
  %vm1247 = vcmp.gt.f32.partialorder %v1010, 0.0
  %vm1248 = vcmp.gt.f32.partialorder %v1013, 0.0
  %vm1249 = vcmp.gt.f32.partialorder %v1015, 0.0
  %vm1250 = vcmp.gt.f32.partialorder %v1018, 0.0
  %vm1251 = vcmp.gt.f32.partialorder %v1020, 0.0
  %vm1252 = vcmp.gt.f32.partialorder %v1023, 0.0
  %vm1253 = vcmp.gt.f32.partialorder %v1025, 0.0
  %vm1254 = vcmp.gt.f32.partialorder %v1028, 0.0
  %vm1255 = vcmp.gt.f32.partialorder %v1030, 0.0
  %vm1256 = vcmp.gt.f32.partialorder %v1033, 0.0
  %vm1257 = vcmp.gt.f32.partialorder %v1035, 0.0
  %vm1258 = vcmp.gt.f32.partialorder %v1038, 0.0
  %vm1259 = vcmp.gt.f32.partialorder %v1040, 0.0
  %vm1260 = vcmp.gt.f32.partialorder %v1043, 0.0
  %vm1261 = vcmp.gt.f32.partialorder %v1045, 0.0
  %vm1262 = vcmp.gt.f32.partialorder %v1048, 0.0
  %vm1263 = vcmp.gt.f32.partialorder %v1050, 0.0
  %vm1264 = vcmp.gt.f32.partialorder %v1053, 0.0
  %vm1265 = vcmp.gt.f32.partialorder %v1055, 0.0
  %vm1266 = vcmp.gt.f32.partialorder %v1058, 0.0
  %vm1267 = vcmp.gt.f32.partialorder %v1060, 0.0
  %vm1268 = vcmp.gt.f32.partialorder %v1063, 0.0
  %vm1269 = vcmp.gt.f32.partialorder %v1065, 0.0
  %vm1270 = vcmp.gt.f32.partialorder %v1068, 0.0
  %vm1271 = vcmp.gt.f32.partialorder %v1070, 0.0
  %vm1272 = vcmp.gt.f32.partialorder %v1073, 0.0
  %vm1273 = vcmp.gt.f32.partialorder %v1075, 0.0
  %vm1274 = vcmp.gt.f32.partialorder %v1078, 0.0
  %vm1275 = vcmp.gt.f32.partialorder %v1080, 0.0
  %vm1276 = vcmp.gt.f32.partialorder %v1083, 0.0
  %vm1277 = vcmp.gt.f32.partialorder %v1085, 0.0
  %vm1278 = vcmp.gt.f32.partialorder %v1088, 0.0
  %vm1279 = vcmp.gt.f32.partialorder %v1090, 0.0
  %vm1280 = vcmp.gt.f32.partialorder %v1093, 0.0
  %vm1281 = vcmp.gt.f32.partialorder %v1095, 0.0
  %vm1282 = vcmp.gt.f32.partialorder %v1098, 0.0
  %vm1283 = vcmp.gt.f32.partialorder %v1100, 0.0
  %vm1284 = vcmp.gt.f32.partialorder %v1103, 0.0
  %vm1285 = vcmp.gt.f32.partialorder %v1105, 0.0
  %vm1286 = vcmp.gt.f32.partialorder %v1108, 0.0
  %vm1287 = vcmp.gt.f32.partialorder %v1110, 0.0
  %vm1288 = vcmp.gt.f32.partialorder %v1113, 0.0
  %vm1289 = vcmp.gt.f32.partialorder %v1115, 0.0
  %vm1290 = vcmp.gt.f32.partialorder %v1118, 0.0
  %vm1291 = vcmp.gt.f32.partialorder %v1120, 0.0
  %vm1292 = vcmp.gt.f32.partialorder %v1123, 0.0
  %vm1293 = vcmp.gt.f32.partialorder %v1125, 0.0
  %vm1294 = vcmp.gt.f32.partialorder %v1128, 0.0
  %vm1295 = vcmp.gt.f32.partialorder %v1130, 0.0
  %vm1296 = vcmp.gt.f32.partialorder %v1133, 0.0
  %vm1297 = vcmp.gt.f32.partialorder %v1135, 0.0
  %vm1298 = vcmp.gt.f32.partialorder %v1138, 0.0
  %vm1299 = vcmp.gt.f32.partialorder %v1140, 0.0
  %vm1300 = vcmp.gt.f32.partialorder %v1143, 0.0
  %vm1301 = vcmp.gt.f32.partialorder %v1145, 0.0
  %vm1302 = vcmp.gt.f32.partialorder %v1148, 0.0
  %vm1303 = vcmp.gt.f32.partialorder %v1150, 0.0
  %vm1304 = vcmp.gt.f32.partialorder %v1153, 0.0
  %vm1305 = vcmp.gt.f32.partialorder %v1155, 0.0
  %vm1306 = vcmp.gt.f32.partialorder %v1158, 0.0
  %vm1307 = vcmp.gt.f32.partialorder %v1160, 0.0
  %vm1308 = vcmp.gt.f32.partialorder %v1163, 0.0
  %vm1309 = vcmp.gt.f32.partialorder %v1165, 0.0
  %vm1310 = vcmp.gt.f32.partialorder %v1168, 0.0
  %vm1311 = vcmp.gt.f32.partialorder %v1170, 0.0
  %vm1312 = vcmp.gt.f32.partialorder %v1173, 0.0
  %vm1313 = vcmp.gt.f32.partialorder %v1175, 0.0
  %vm1314 = vcmp.gt.f32.partialorder %v1178, 0.0
  %vm1315 = vcmp.gt.f32.partialorder %v1180, 0.0
  %vm1316 = vcmp.gt.f32.partialorder %v1183, 0.0
  %vm1317 = vcmp.gt.f32.partialorder %v1185, 0.0
  %vm1318 = vcmp.gt.f32.partialorder %v1188, 0.0
  %vm1319 = vcmp.gt.f32.partialorder %v1190, 0.0
  %vm1320 = vcmp.gt.f32.partialorder %v1193, 0.0
  %vm1321 = vcmp.gt.f32.partialorder %v1195, 0.0
  %vm1322 = vcmp.gt.f32.partialorder %v1198, 0.0
  %vm1323 = vcmp.gt.f32.partialorder %v1200, 0.0
  %vm1324 = vcmp.gt.f32.partialorder %v1203, 0.0
  %vm1325 = vcmp.gt.f32.partialorder %v1205, 0.0
  %vm1326 = vcmp.gt.f32.partialorder %v1208, 0.0
  %vm1327 = vcmp.gt.f32.partialorder %v1210, 0.0
  %vm1328 = vcmp.gt.f32.partialorder %v1213, 0.0
  %vm1329 = vcmp.gt.f32.partialorder %v1215, 0.0
  %vm1330 = vcmp.gt.f32.partialorder %v1218, 0.0
  %vm1331 = vcmp.gt.f32.partialorder %v1220, 0.0
  %vm1332 = vcmp.gt.f32.partialorder %v1223, 0.0
  %vm1333 = vcmp.gt.f32.partialorder %v1225, 0.0
  %vm1334 = vcmp.gt.f32.partialorder %v1228, 0.0
  %vm1335 = vcmp.gt.f32.partialorder %v1230, 0.0
  %vm1336 = vcmp.gt.f32.partialorder %v1233, 0.0
  %vm1337 = vcmp.gt.f32.partialorder %v1235, 0.0
  %vm1338 = vcmp.gt.f32.partialorder %v1238, 0.0
  %vm1339 = vcmp.gt.f32.partialorder %v1240, 0.0
  %v1340 = vmul.f32 %v998, 0.2
  %v1341 = vmul.f32 %v1000, 0.2
  %v1342 = vmul.f32 %v1003, 0.2
  %v1343 = vmul.f32 %v1005, 0.2
  %v1344 = vmul.f32 %v1008, 0.2
  %v1345 = vmul.f32 %v1010, 0.2
  %v1346 = vmul.f32 %v1013, 0.2
  %v1347 = vmul.f32 %v1015, 0.2
  %v1348 = vmul.f32 %v1018, 0.2
  %v1349 = vmul.f32 %v1020, 0.2
  %v1350 = vmul.f32 %v1023, 0.2
  %v1351 = vmul.f32 %v1025, 0.2
  %v1352 = vmul.f32 %v1028, 0.2
  %v1353 = vmul.f32 %v1030, 0.2
  %v1354 = vmul.f32 %v1033, 0.2
  %v1355 = vmul.f32 %v1035, 0.2
  %v1356 = vmul.f32 %v1038, 0.2
  %v1357 = vmul.f32 %v1040, 0.2
  %v1358 = vmul.f32 %v1043, 0.2
  %v1359 = vmul.f32 %v1045, 0.2
  %v1360 = vmul.f32 %v1048, 0.2
  %v1361 = vmul.f32 %v1050, 0.2
  %v1362 = vmul.f32 %v1053, 0.2
  %v1363 = vmul.f32 %v1055, 0.2
  %v1364 = vmul.f32 %v1058, 0.2
  %v1365 = vmul.f32 %v1060, 0.2
  %v1366 = vmul.f32 %v1063, 0.2
  %v1367 = vmul.f32 %v1065, 0.2
  %v1368 = vmul.f32 %v1068, 0.2
  %v1369 = vmul.f32 %v1070, 0.2
  %v1370 = vmul.f32 %v1073, 0.2
  %v1371 = vmul.f32 %v1075, 0.2
  %v1372 = vmul.f32 %v1078, 0.2
  %v1373 = vmul.f32 %v1080, 0.2
  %v1374 = vmul.f32 %v1083, 0.2
  %v1375 = vmul.f32 %v1085, 0.2
  %v1376 = vmul.f32 %v1088, 0.2
  %v1377 = vmul.f32 %v1090, 0.2
  %v1378 = vmul.f32 %v1093, 0.2
  %v1379 = vmul.f32 %v1095, 0.2
  %v1380 = vmul.f32 %v1098, 0.2
  %v1381 = vmul.f32 %v1100, 0.2
  %v1382 = vmul.f32 %v1103, 0.2
  %v1383 = vmul.f32 %v1105, 0.2
  %v1384 = vmul.f32 %v1108, 0.2
  %v1385 = vmul.f32 %v1110, 0.2
  %v1386 = vmul.f32 %v1113, 0.2
  %v1387 = vmul.f32 %v1115, 0.2
  %v1388 = vmul.f32 %v1118, 0.2
  %v1389 = vmul.f32 %v1120, 0.2
  %v1390 = vmul.f32 %v1123, 0.2
  %v1391 = vmul.f32 %v1125, 0.2
  %v1392 = vmul.f32 %v1128, 0.2
  %v1393 = vmul.f32 %v1130, 0.2
  %v1394 = vmul.f32 %v1133, 0.2
  %v1395 = vmul.f32 %v1135, 0.2
  %v1396 = vmul.f32 %v1138, 0.2
  %v1397 = vmul.f32 %v1140, 0.2
  %v1398 = vmul.f32 %v1143, 0.2
  %v1399 = vmul.f32 %v1145, 0.2
  %v1400 = vmul.f32 %v1148, 0.2
  %v1401 = vmul.f32 %v1150, 0.2
  %v1402 = vmul.f32 %v1153, 0.2
  %v1403 = vmul.f32 %v1155, 0.2
  %v1404 = vmul.f32 %v1158, 0.2
  %v1405 = vmul.f32 %v1160, 0.2
  %v1406 = vmul.f32 %v1163, 0.2
  %v1407 = vmul.f32 %v1165, 0.2
  %v1408 = vmul.f32 %v1168, 0.2
  %v1409 = vmul.f32 %v1170, 0.2
  %v1410 = vmul.f32 %v1173, 0.2
  %v1411 = vmul.f32 %v1175, 0.2
  %v1412 = vmul.f32 %v1178, 0.2
  %v1413 = vmul.f32 %v1180, 0.2
  %v1414 = vmul.f32 %v1183, 0.2
  %v1415 = vmul.f32 %v1185, 0.2
  %v1416 = vmul.f32 %v1188, 0.2
  %v1417 = vmul.f32 %v1190, 0.2
  %v1418 = vmul.f32 %v1193, 0.2
  %v1419 = vmul.f32 %v1195, 0.2
  %v1420 = vmul.f32 %v1198, 0.2
  %v1421 = vmul.f32 %v1200, 0.2
  %v1422 = vmul.f32 %v1203, 0.2
  %v1423 = vmul.f32 %v1205, 0.2
  %v1424 = vmul.f32 %v1208, 0.2
  %v1425 = vmul.f32 %v1210, 0.2
  %v1426 = vmul.f32 %v1213, 0.2
  %v1427 = vmul.f32 %v1215, 0.2
  %v1428 = vmul.f32 %v1218, 0.2
  %v1429 = vmul.f32 %v1220, 0.2
  %v1430 = vmul.f32 %v1223, 0.2
  %v1431 = vmul.f32 %v1225, 0.2
  %v1432 = vmul.f32 %v1228, 0.2
  %v1433 = vmul.f32 %v1230, 0.2
  %v1434 = vmul.f32 %v1233, 0.2
  %v1435 = vmul.f32 %v1235, 0.2
  %v1436 = vmul.f32 %v1238, 0.2
  %v1437 = vmul.f32 %v1240, 0.2
  %v1438 = vsel %vm1242, %v998, %v1340
  %v1439 = vsel %vm1243, %v1000, %v1341
  %v1440 = vsel %vm1244, %v1003, %v1342
  %v1441 = vsel %vm1245, %v1005, %v1343
  %v1442 = vsel %vm1246, %v1008, %v1344
  %v1443 = vsel %vm1247, %v1010, %v1345
  %v1444 = vsel %vm1248, %v1013, %v1346
  %v1445 = vsel %vm1249, %v1015, %v1347
  %v1446 = vsel %vm1250, %v1018, %v1348
  %v1447 = vsel %vm1251, %v1020, %v1349
  %v1448 = vsel %vm1252, %v1023, %v1350
  %v1449 = vsel %vm1253, %v1025, %v1351
  %v1450 = vsel %vm1254, %v1028, %v1352
  %v1451 = vsel %vm1255, %v1030, %v1353
  %v1452 = vsel %vm1256, %v1033, %v1354
  %v1453 = vsel %vm1257, %v1035, %v1355
  %v1454 = vsel %vm1258, %v1038, %v1356
  %v1455 = vsel %vm1259, %v1040, %v1357
  %v1456 = vsel %vm1260, %v1043, %v1358
  %v1457 = vsel %vm1261, %v1045, %v1359
  %v1458 = vsel %vm1262, %v1048, %v1360
  %v1459 = vsel %vm1263, %v1050, %v1361
  %v1460 = vsel %vm1264, %v1053, %v1362
  %v1461 = vsel %vm1265, %v1055, %v1363
  %v1462 = vsel %vm1266, %v1058, %v1364
  %v1463 = vsel %vm1267, %v1060, %v1365
  %v1464 = vsel %vm1268, %v1063, %v1366
  %v1465 = vsel %vm1269, %v1065, %v1367
  %v1466 = vsel %vm1270, %v1068, %v1368
  %v1467 = vsel %vm1271, %v1070, %v1369
  %v1468 = vsel %vm1272, %v1073, %v1370
  %v1469 = vsel %vm1273, %v1075, %v1371
  %v1470 = vsel %vm1274, %v1078, %v1372
  %v1471 = vsel %vm1275, %v1080, %v1373
  %v1472 = vsel %vm1276, %v1083, %v1374
  %v1473 = vsel %vm1277, %v1085, %v1375
  %v1474 = vsel %vm1278, %v1088, %v1376
  %v1475 = vsel %vm1279, %v1090, %v1377
  %v1476 = vsel %vm1280, %v1093, %v1378
  %v1477 = vsel %vm1281, %v1095, %v1379
  %v1478 = vsel %vm1282, %v1098, %v1380
  %v1479 = vsel %vm1283, %v1100, %v1381
  %v1480 = vsel %vm1284, %v1103, %v1382
  %v1481 = vsel %vm1285, %v1105, %v1383
  %v1482 = vsel %vm1286, %v1108, %v1384
  %v1483 = vsel %vm1287, %v1110, %v1385
  %v1484 = vsel %vm1288, %v1113, %v1386
  %v1485 = vsel %vm1289, %v1115, %v1387
  %v1486 = vsel %vm1290, %v1118, %v1388
  %v1487 = vsel %vm1291, %v1120, %v1389
  %v1488 = vsel %vm1292, %v1123, %v1390
  %v1489 = vsel %vm1293, %v1125, %v1391
  %v1490 = vsel %vm1294, %v1128, %v1392
  %v1491 = vsel %vm1295, %v1130, %v1393
  %v1492 = vsel %vm1296, %v1133, %v1394
  %v1493 = vsel %vm1297, %v1135, %v1395
  %v1494 = vsel %vm1298, %v1138, %v1396
  %v1495 = vsel %vm1299, %v1140, %v1397
  %v1496 = vsel %vm1300, %v1143, %v1398
  %v1497 = vsel %vm1301, %v1145, %v1399
  %v1498 = vsel %vm1302, %v1148, %v1400
  %v1499 = vsel %vm1303, %v1150, %v1401
  %v1500 = vsel %vm1304, %v1153, %v1402
  %v1501 = vsel %vm1305, %v1155, %v1403
  %v1502 = vsel %vm1306, %v1158, %v1404
  %v1503 = vsel %vm1307, %v1160, %v1405
  %v1504 = vsel %vm1308, %v1163, %v1406
  %v1505 = vsel %vm1309, %v1165, %v1407
  %v1506 = vsel %vm1310, %v1168, %v1408
  %v1507 = vsel %vm1311, %v1170, %v1409
  %v1508 = vsel %vm1312, %v1173, %v1410
  %v1509 = vsel %vm1313, %v1175, %v1411
  %v1510 = vsel %vm1314, %v1178, %v1412
  %v1511 = vsel %vm1315, %v1180, %v1413
  %v1512 = vsel %vm1316, %v1183, %v1414
  %v1513 = vsel %vm1317, %v1185, %v1415
  %v1514 = vsel %vm1318, %v1188, %v1416
  %v1515 = vsel %vm1319, %v1190, %v1417
  %v1516 = vsel %vm1320, %v1193, %v1418
  %v1517 = vsel %vm1321, %v1195, %v1419
  %v1518 = vsel %vm1322, %v1198, %v1420
  %v1519 = vsel %vm1323, %v1200, %v1421
  %v1520 = vsel %vm1324, %v1203, %v1422
  %v1521 = vsel %vm1325, %v1205, %v1423
  %v1522 = vsel %vm1326, %v1208, %v1424
  %v1523 = vsel %vm1327, %v1210, %v1425
  %v1524 = vsel %vm1328, %v1213, %v1426
  %v1525 = vsel %vm1329, %v1215, %v1427
  %v1526 = vsel %vm1330, %v1218, %v1428
  %v1527 = vsel %vm1331, %v1220, %v1429
  %v1528 = vsel %vm1332, %v1223, %v1430
  %v1529 = vsel %vm1333, %v1225, %v1431
  %v1530 = vsel %vm1334, %v1228, %v1432
  %v1531 = vsel %vm1335, %v1230, %v1433
  %v1532 = vsel %vm1336, %v1233, %v1434
  %v1533 = vsel %vm1337, %v1235, %v1435
  %v1534 = vsel %vm1338, %v1238, %v1436
  %v1535 = vsel %vm1339, %v1240, %v1437
  %v1536 = vpack.c.bf16 %v1438, %v1438
  %v1537 = vpack.c.bf16 %v1439, %v1439
  %v1538 = vpack.c.bf16 %v1440, %v1440
  %v1539 = vpack.c.bf16 %v1441, %v1441
  %v1540 = vpack.c.bf16 %v1442, %v1442
  %v1541 = vpack.c.bf16 %v1443, %v1443
  %v1542 = vpack.c.bf16 %v1444, %v1444
  %v1543 = vpack.c.bf16 %v1445, %v1445
  %v1544 = vpack.c.bf16 %v1446, %v1446
  %v1545 = vpack.c.bf16 %v1447, %v1447
  %v1546 = vpack.c.bf16 %v1448, %v1448
  %v1547 = vpack.c.bf16 %v1449, %v1449
  %v1548 = vpack.c.bf16 %v1450, %v1450
  %v1549 = vpack.c.bf16 %v1451, %v1451
  %v1550 = vpack.c.bf16 %v1452, %v1452
  %v1551 = vpack.c.bf16 %v1453, %v1453
  %v1552 = vpack.c.bf16 %v1454, %v1454
  %v1553 = vpack.c.bf16 %v1455, %v1455
  %v1554 = vpack.c.bf16 %v1456, %v1456
  %v1555 = vpack.c.bf16 %v1457, %v1457
  %v1556 = vpack.c.bf16 %v1458, %v1458
  %v1557 = vpack.c.bf16 %v1459, %v1459
  %v1558 = vpack.c.bf16 %v1460, %v1460
  %v1559 = vpack.c.bf16 %v1461, %v1461
  %v1560 = vpack.c.bf16 %v1462, %v1462
  %v1561 = vpack.c.bf16 %v1463, %v1463
  %v1562 = vpack.c.bf16 %v1464, %v1464
  %v1563 = vpack.c.bf16 %v1465, %v1465
  %v1564 = vpack.c.bf16 %v1466, %v1466
  %v1565 = vpack.c.bf16 %v1467, %v1467
  %v1566 = vpack.c.bf16 %v1468, %v1468
  %v1567 = vpack.c.bf16 %v1469, %v1469
  %v1568 = vpack.c.bf16 %v1470, %v1470
  %v1569 = vpack.c.bf16 %v1471, %v1471
  %v1570 = vpack.c.bf16 %v1472, %v1472
  %v1571 = vpack.c.bf16 %v1473, %v1473
  %v1572 = vpack.c.bf16 %v1474, %v1474
  %v1573 = vpack.c.bf16 %v1475, %v1475
  %v1574 = vpack.c.bf16 %v1476, %v1476
  %v1575 = vpack.c.bf16 %v1477, %v1477
  %v1576 = vpack.c.bf16 %v1478, %v1478
  %v1577 = vpack.c.bf16 %v1479, %v1479
  %v1578 = vpack.c.bf16 %v1480, %v1480
  %v1579 = vpack.c.bf16 %v1481, %v1481
  %v1580 = vpack.c.bf16 %v1482, %v1482
  %v1581 = vpack.c.bf16 %v1483, %v1483
  %v1582 = vpack.c.bf16 %v1484, %v1484
  %v1583 = vpack.c.bf16 %v1485, %v1485
  %v1584 = vpack.c.bf16 %v1486, %v1486
  %v1585 = vpack.c.bf16 %v1487, %v1487
  %v1586 = vpack.c.bf16 %v1488, %v1488
  %v1587 = vpack.c.bf16 %v1489, %v1489
  %v1588 = vpack.c.bf16 %v1490, %v1490
  %v1589 = vpack.c.bf16 %v1491, %v1491
  %v1590 = vpack.c.bf16 %v1492, %v1492
  %v1591 = vpack.c.bf16 %v1493, %v1493
  %v1592 = vpack.c.bf16 %v1494, %v1494
  %v1593 = vpack.c.bf16 %v1495, %v1495
  %v1594 = vpack.c.bf16 %v1496, %v1496
  %v1595 = vpack.c.bf16 %v1497, %v1497
  %v1596 = vpack.c.bf16 %v1498, %v1498
  %v1597 = vpack.c.bf16 %v1499, %v1499
  %v1598 = vpack.c.bf16 %v1500, %v1500
  %v1599 = vpack.c.bf16 %v1501, %v1501
  %v1600 = vpack.c.bf16 %v1502, %v1502
  %v1601 = vpack.c.bf16 %v1503, %v1503
  %v1602 = vpack.c.bf16 %v1504, %v1504
  %v1603 = vpack.c.bf16 %v1505, %v1505
  %v1604 = vpack.c.bf16 %v1506, %v1506
  %v1605 = vpack.c.bf16 %v1507, %v1507
  %v1606 = vpack.c.bf16 %v1508, %v1508
  %v1607 = vpack.c.bf16 %v1509, %v1509
  %v1608 = vpack.c.bf16 %v1510, %v1510
  %v1609 = vpack.c.bf16 %v1511, %v1511
  %v1610 = vpack.c.bf16 %v1512, %v1512
  %v1611 = vpack.c.bf16 %v1513, %v1513
  %v1612 = vpack.c.bf16 %v1514, %v1514
  %v1613 = vpack.c.bf16 %v1515, %v1515
  %v1614 = vpack.c.bf16 %v1516, %v1516
  %v1615 = vpack.c.bf16 %v1517, %v1517
  %v1616 = vpack.c.bf16 %v1518, %v1518
  %v1617 = vpack.c.bf16 %v1519, %v1519
  %v1618 = vpack.c.bf16 %v1520, %v1520
  %v1619 = vpack.c.bf16 %v1521, %v1521
  %v1620 = vpack.c.bf16 %v1522, %v1522
  %v1621 = vpack.c.bf16 %v1523, %v1523
  %v1622 = vpack.c.bf16 %v1524, %v1524
  %v1623 = vpack.c.bf16 %v1525, %v1525
  %v1624 = vpack.c.bf16 %v1526, %v1526
  %v1625 = vpack.c.bf16 %v1527, %v1527
  %v1626 = vpack.c.bf16 %v1528, %v1528
  %v1627 = vpack.c.bf16 %v1529, %v1529
  %v1628 = vpack.c.bf16 %v1530, %v1530
  %v1629 = vpack.c.bf16 %v1531, %v1531
  %v1630 = vpack.c.bf16 %v1532, %v1532
  %v1631 = vpack.c.bf16 %v1533, %v1533
  %v1632 = vpack.c.bf16 %v1534, %v1534
  %v1633 = vpack.c.bf16 %v1535, %v1535
  %vm1634 = vcmask 519168
  %1635 = vst.msk [vmem:[%s3] sm:$0xf] %vm1634, %v1536
  %1636 = vst.msk [vmem:[%s3 + $0x4] sm:$0xf] %vm1634, %v1537
  %1637 = vst.msk [vmem:[%s3 + $0x8] sm:$0xf] %vm1634, %v1538
  %1638 = vst.msk [vmem:[%s3 + $0xc] sm:$0xf] %vm1634, %v1539
  %1639 = vst.msk [vmem:[%s3 + $0x10] sm:$0xf] %vm1634, %v1540
  %1640 = vst.msk [vmem:[%s3 + $0x14] sm:$0xf] %vm1634, %v1541
  %1641 = vst.msk [vmem:[%s3 + $0x18] sm:$0xf] %vm1634, %v1542
  %1642 = vst.msk [vmem:[%s3 + $0x1c] sm:$0xf] %vm1634, %v1543
  %1643 = vst.msk [vmem:[%s3 + $0x20] sm:$0xf] %vm1634, %v1544
  %1644 = vst.msk [vmem:[%s3 + $0x24] sm:$0xf] %vm1634, %v1545
  %1645 = vst.msk [vmem:[%s3 + $0x28] sm:$0xf] %vm1634, %v1546
  %1646 = vst.msk [vmem:[%s3 + $0x2c] sm:$0xf] %vm1634, %v1547
  %1647 = vst.msk [vmem:[%s3 + $0x30] sm:$0xf] %vm1634, %v1548
  %1648 = vst.msk [vmem:[%s3 + $0x34] sm:$0xf] %vm1634, %v1549
  %1649 = vst.msk [vmem:[%s3 + $0x38] sm:$0xf] %vm1634, %v1550
  %1650 = vst.msk [vmem:[%s3 + $0x3c] sm:$0xf] %vm1634, %v1551
  %1651 = vst.msk [vmem:[%s3 + $0x40] sm:$0xf] %vm1634, %v1552
  %1652 = vst.msk [vmem:[%s3 + $0x44] sm:$0xf] %vm1634, %v1553
  %1653 = vst.msk [vmem:[%s3 + $0x48] sm:$0xf] %vm1634, %v1554
  %1654 = vst.msk [vmem:[%s3 + $0x4c] sm:$0xf] %vm1634, %v1555
  %1655 = vst.msk [vmem:[%s3 + $0x50] sm:$0xf] %vm1634, %v1556
  %1656 = vst.msk [vmem:[%s3 + $0x54] sm:$0xf] %vm1634, %v1557
  %1657 = vst.msk [vmem:[%s3 + $0x58] sm:$0xf] %vm1634, %v1558
  %1658 = vst.msk [vmem:[%s3 + $0x5c] sm:$0xf] %vm1634, %v1559
  %1659 = vst.msk [vmem:[%s3 + $0x60] sm:$0xf] %vm1634, %v1560
  %1660 = vst.msk [vmem:[%s3 + $0x64] sm:$0xf] %vm1634, %v1561
  %1661 = vst.msk [vmem:[%s3 + $0x68] sm:$0xf] %vm1634, %v1562
  %1662 = vst.msk [vmem:[%s3 + $0x6c] sm:$0xf] %vm1634, %v1563
  %1663 = vst.msk [vmem:[%s3 + $0x70] sm:$0xf] %vm1634, %v1564
  %1664 = vst.msk [vmem:[%s3 + $0x74] sm:$0xf] %vm1634, %v1565
  %1665 = vst.msk [vmem:[%s3 + $0x78] sm:$0xf] %vm1634, %v1566
  %1666 = vst.msk [vmem:[%s3 + $0x7c] sm:$0xf] %vm1634, %v1567
  %1667 = vst.msk [vmem:[%s3 + $0x80] sm:$0xf] %vm1634, %v1568
  %1668 = vst.msk [vmem:[%s3 + $0x84] sm:$0xf] %vm1634, %v1569
  %1669 = vst.msk [vmem:[%s3 + $0x88] sm:$0xf] %vm1634, %v1570
  %1670 = vst.msk [vmem:[%s3 + $0x8c] sm:$0xf] %vm1634, %v1571
  %1671 = vst.msk [vmem:[%s3 + $0x90] sm:$0xf] %vm1634, %v1572
  %1672 = vst.msk [vmem:[%s3 + $0x94] sm:$0xf] %vm1634, %v1573
  %1673 = vst.msk [vmem:[%s3 + $0x98] sm:$0xf] %vm1634, %v1574
  %1674 = vst.msk [vmem:[%s3 + $0x9c] sm:$0xf] %vm1634, %v1575
  %1675 = vst.msk [vmem:[%s3 + $0xa0] sm:$0xf] %vm1634, %v1576
  %1676 = vst.msk [vmem:[%s3 + $0xa4] sm:$0xf] %vm1634, %v1577
  %1677 = vst.msk [vmem:[%s3 + $0xa8] sm:$0xf] %vm1634, %v1578
  %1678 = vst.msk [vmem:[%s3 + $0xac] sm:$0xf] %vm1634, %v1579
  %1679 = vst.msk [vmem:[%s3 + $0xb0] sm:$0xf] %vm1634, %v1580
  %1680 = vst.msk [vmem:[%s3 + $0xb4] sm:$0xf] %vm1634, %v1581
  %1681 = vst.msk [vmem:[%s3 + $0xb8] sm:$0xf] %vm1634, %v1582
  %1682 = vst.msk [vmem:[%s3 + $0xbc] sm:$0xf] %vm1634, %v1583
  %1683 = vst.msk [vmem:[%s3 + $0xc0] sm:$0xf] %vm1634, %v1584
  %1684 = vst.msk [vmem:[%s3 + $0xc4] sm:$0xf] %vm1634, %v1585
  %1685 = vst.msk [vmem:[%s3 + $0xc8] sm:$0xf] %vm1634, %v1586
  %1686 = vst.msk [vmem:[%s3 + $0xcc] sm:$0xf] %vm1634, %v1587
  %1687 = vst.msk [vmem:[%s3 + $0xd0] sm:$0xf] %vm1634, %v1588
  %1688 = vst.msk [vmem:[%s3 + $0xd4] sm:$0xf] %vm1634, %v1589
  %1689 = vst.msk [vmem:[%s3 + $0xd8] sm:$0xf] %vm1634, %v1590
  %1690 = vst.msk [vmem:[%s3 + $0xdc] sm:$0xf] %vm1634, %v1591
  %1691 = vst.msk [vmem:[%s3 + $0xe0] sm:$0xf] %vm1634, %v1592
  %1692 = vst.msk [vmem:[%s3 + $0xe4] sm:$0xf] %vm1634, %v1593
  %1693 = vst.msk [vmem:[%s3 + $0xe8] sm:$0xf] %vm1634, %v1594
  %1694 = vst.msk [vmem:[%s3 + $0xec] sm:$0xf] %vm1634, %v1595
  %1695 = vst.msk [vmem:[%s3 + $0xf0] sm:$0xf] %vm1634, %v1596
  %1696 = vst.msk [vmem:[%s3 + $0xf4] sm:$0xf] %vm1634, %v1597
  %1697 = vst.msk [vmem:[%s3 + $0xf8] sm:$0xf] %vm1634, %v1598
  %1698 = vst.msk [vmem:[%s3 + $0xfc] sm:$0xf] %vm1634, %v1599
  %1699 = vst.msk [vmem:[%s3 + $0x100] sm:$0xf] %vm1634, %v1600
  %1700 = vst.msk [vmem:[%s3 + $0x104] sm:$0xf] %vm1634, %v1601
  %1701 = vst.msk [vmem:[%s3 + $0x108] sm:$0xf] %vm1634, %v1602
  %1702 = vst.msk [vmem:[%s3 + $0x10c] sm:$0xf] %vm1634, %v1603
  %1703 = vst.msk [vmem:[%s3 + $0x110] sm:$0xf] %vm1634, %v1604
  %1704 = vst.msk [vmem:[%s3 + $0x114] sm:$0xf] %vm1634, %v1605
  %1705 = vst.msk [vmem:[%s3 + $0x118] sm:$0xf] %vm1634, %v1606
  %1706 = vst.msk [vmem:[%s3 + $0x11c] sm:$0xf] %vm1634, %v1607
  %1707 = vst.msk [vmem:[%s3 + $0x120] sm:$0xf] %vm1634, %v1608
  %1708 = vst.msk [vmem:[%s3 + $0x124] sm:$0xf] %vm1634, %v1609
  %1709 = vst.msk [vmem:[%s3 + $0x128] sm:$0xf] %vm1634, %v1610
  %1710 = vst.msk [vmem:[%s3 + $0x12c] sm:$0xf] %vm1634, %v1611
  %1711 = vst.msk [vmem:[%s3 + $0x130] sm:$0xf] %vm1634, %v1612
  %1712 = vst.msk [vmem:[%s3 + $0x134] sm:$0xf] %vm1634, %v1613
  %1713 = vst.msk [vmem:[%s3 + $0x138] sm:$0xf] %vm1634, %v1614
  %1714 = vst.msk [vmem:[%s3 + $0x13c] sm:$0xf] %vm1634, %v1615
  %1715 = vst.msk [vmem:[%s3 + $0x140] sm:$0xf] %vm1634, %v1616
  %1716 = vst.msk [vmem:[%s3 + $0x144] sm:$0xf] %vm1634, %v1617
  %1717 = vst.msk [vmem:[%s3 + $0x148] sm:$0xf] %vm1634, %v1618
  %1718 = vst.msk [vmem:[%s3 + $0x14c] sm:$0xf] %vm1634, %v1619
  %1719 = vst.msk [vmem:[%s3 + $0x150] sm:$0xf] %vm1634, %v1620
  %1720 = vst.msk [vmem:[%s3 + $0x154] sm:$0xf] %vm1634, %v1621
  %1721 = vst.msk [vmem:[%s3 + $0x158] sm:$0xf] %vm1634, %v1622
  %1722 = vst.msk [vmem:[%s3 + $0x15c] sm:$0xf] %vm1634, %v1623
  %1723 = vst.msk [vmem:[%s3 + $0x160] sm:$0xf] %vm1634, %v1624
  %1724 = vst.msk [vmem:[%s3 + $0x164] sm:$0xf] %vm1634, %v1625
  %1725 = vst.msk [vmem:[%s3 + $0x168] sm:$0xf] %vm1634, %v1626
  %1726 = vst.msk [vmem:[%s3 + $0x16c] sm:$0xf] %vm1634, %v1627
  %1727 = vst.msk [vmem:[%s3 + $0x170] sm:$0xf] %vm1634, %v1628
  %1728 = vst.msk [vmem:[%s3 + $0x174] sm:$0xf] %vm1634, %v1629
  %1729 = vst.msk [vmem:[%s3 + $0x178] sm:$0xf] %vm1634, %v1630
  %1730 = vst.msk [vmem:[%s3 + $0x17c] sm:$0xf] %vm1634, %v1631
  %1731 = vst.msk [vmem:[%s3 + $0x180] sm:$0xf] %vm1634, %v1632
  %1732 = vst.msk [vmem:[%s3 + $0x184] sm:$0xf] %vm1634, %v1633
  // Predicated region
  $region14: #{discriminator_forward.2} parent=0 // pred_check
    _
  $region15: #{discriminator_forward.2} parent=0 // pred_check_branch
    %1734 = sbr.rel (0) target = $region17
  $region16: #{discriminator_forward.2} parent=0 // pred_region
    _
  $region17: #{discriminator_forward.2} parent=0 // pred_fallthru
    _
  // Predicated region
  $region18: #{discriminator_forward.2} parent=0 // pred_check
    _
  $region19: #{discriminator_forward.2} parent=0 // pred_check_branch
    %1736 = sbr.rel (0) target = $region21
  $region20: #{discriminator_forward.2} parent=0 // pred_region
    _
  $region21: #{discriminator_forward.2} parent=0 // pred_fallthru
    _

// kernel: discriminator_forward.3
$region0: #{discriminator_forward.3}
  #allocation0 [shape = 'u32[]', space=smem, size = 0x4, offset = 0x4, fixed_abs, tag = 'smem constant byte address 0x4 - core index']
  #allocation1 [shape = 'u32[72,128]{1,0:T(1,128)}', space=vmem, size = 0x9000, scoped, tag = 'internal scratch']
  #allocation2 [shape = 'f32[392,128]{1,0:T(8,128)}', space=vmem, size = 0x31000, scoped, tag = 'scratch operand']
  #allocation3 [shape = 'f32[8,6272]{1,0:T(8,128)}', space=vmem, size = 0x31000, scoped, tag = 'scratch operand']
  #allocation4 [shape = 'f32[8,1024]{1,0:T(8,128)}', space=vmem, size = 0x8000, scoped, tag = 'scratch operand']
  #allocation5 [shape = 'f32[1]{0:T(128)S(6)}', space=smem, size = 0x200, scoped, tag = 'scoped memory for discriminator_forward.3']
  %s0 = inlined_call_operand.vmem [shape: bf16[392,1024], index: 0, kind: input, shape index: {}]
  %s1 = inlined_call_operand.vmem [shape: bf16[1024,128], index: 1, kind: input, shape index: {}]
  %s2 = inlined_call_operand.vmem [shape: f32[1,128], index: 2, kind: input, shape index: {}]
  %s3 = inlined_call_operand.vmem [shape: f32[1,128], index: 3, kind: input, shape index: {}]
  %s4 = inlined_call_operand.vmem [shape: f32[1,128], index: 4, kind: input, shape index: {}]
  %s5 = inlined_call_operand.vmem [shape: bf16[6272,1024], index: 5, kind: input, shape index: {}]
  %s6 = inlined_call_operand.vmem [shape: f32[1,1024], index: 6, kind: input, shape index: {}]
  %s7 = inlined_call_operand.vmem [shape: f32[1,1024], index: 7, kind: input, shape index: {}]
  %s8 = inlined_call_operand.vmem [shape: f32[1,1024], index: 8, kind: input, shape index: {}]
  %s9 = inlined_call_operand.vmem [shape: f32[1,1024], index: 9, kind: input, shape index: {}]
  %s10 = inlined_call_operand.<no memory space> [shape: f32[1], index: 10, kind: input, shape index: {}]
  %s11 = inlined_call_operand.vmem [shape: f32[8,1], index: 11, kind: output, shape index: {}]
  %s12 = sld [smem:[#allocation0]]
  $region85: #{discriminator_forward.3} parent=0
    _
  %s14 = ssub.s32 1, %s12
  %s15 = scalar_select 0, %s14, %s12
  %16 = sst [smem:[#allocation5]] %s10
  loop: start=0, step=1, limit=9
  $region2: #{discriminator_forward.3} parent=0 // loop_pre_header
    _
  $region3: #{discriminator_forward.3} parent=0 // loop_header
    %s18 = sphi 0, %s22
    %p19 = scmp.ge.s32.totalorder %s18, 9
    %s26 = sphi 0, %s26
    %s28 = sphi 0, %s26
    %s29 = sphi 0, %s28
    %s43 = sphi 0, %s29
    %s47 = sphi 0, %s47
    %s49 = sphi 0, %s47
    %s50 = sphi 0, %s49
    %s64 = sphi 0, %s50
    %s68 = sphi 0, %s68
    %s70 = sphi 0, %s68
    %s71 = sphi 0, %s70
    %s85 = sphi 0, %s71
    %s89 = sphi 0, %s89
    %s91 = sphi 0, %s89
    %s92 = sphi 0, %s91
    %s106 = sphi 0, %s92
    %s110 = sphi 0, %s110
    %s112 = sphi 0, %s110
    %s113 = sphi 0, %s112
    %s127 = sphi 0, %s113
    %s133 = sphi 0, %s135
    %s136 = sphi 0, %s133
    %s137 = sphi 0, %s136
    %s153 = sphi 0, %s137
    %s157 = sphi 0, %s157
    %s159 = sphi 0, %s157
    %s160 = sphi 0, %s159
    %s174 = sphi 0, %s160
    %s178 = sphi 0, %s178
    %s180 = sphi 0, %s178
    %s181 = sphi 0, %s180
    %s195 = sphi 0, %s181
    %s199 = sphi 0, %s199
    %s201 = sphi 0, %s199
    %s202 = sphi 0, %s201
    %s216 = sphi 0, %s202
    %s220 = sphi 0, %s220
    %s222 = sphi 0, %s220
    %s223 = sphi 0, %s222
    %s237 = sphi 0, %s223
    %s241 = sphi 0, %s241
    %s243 = sphi 0, %s241
    %s244 = sphi 0, %s243
    %s258 = sphi 0, %s244
    %s262 = sphi 0, %s262
    %s264 = sphi 0, %s262
    %s265 = sphi 0, %s264
    %s279 = sphi 0, %s265
  $region4: #{discriminator_forward.3} parent=0 // loop_header_branch
    %21 = sbr.rel (%p19) target = $region8
  $region5: #{discriminator_forward.3} parent=0 // loop_body
    %s23 = ssub.s32 %s18, 1
    %s24 = ssub.s32 %s18, 2
    %s25 = sadd.s32 %s18, 1
    %s27 = sadd.s32 %s26, 1
    %p30 = scmp.eq.s32.totalorder %s18, 6
    %p31 = scmp.ne.s32.totalorder %s26, %s28
    %p32 = scmp.eq.s32.totalorder %s18, 0
    %p33 = por %p31, %p32
    %p34 = scmp.ne.s32.totalorder %s26, %s28
    %p35 = scmp.eq.s32.totalorder %s23, 6
    %p36 = por %p34, %p35
    %p37 = scmp.ne.s32.totalorder %s28, %s29
    %p38 = scmp.eq.s32.totalorder %s23, 0
    %p39 = por %p37, %p38
    %p40 = scmp.ne.s32.totalorder %s28, %s29
    %p41 = scmp.eq.s32.totalorder %s24, 6
    %p42 = por %p40, %p41
    %p44 = scmp.ne.s32.totalorder %s29, %s43
    %p45 = scmp.eq.s32.totalorder %s24, 0
    %p46 = por %p44, %p45
    %s48 = sadd.s32 %s47, 1
    %p51 = scmp.eq.s32.totalorder %s18, 6
    %p52 = scmp.ne.s32.totalorder %s47, %s49
    %p53 = scmp.eq.s32.totalorder %s18, 0
    %p54 = por %p52, %p53
    %p55 = scmp.ne.s32.totalorder %s47, %s49
    %p56 = scmp.eq.s32.totalorder %s23, 6
    %p57 = por %p55, %p56
    %p58 = scmp.ne.s32.totalorder %s49, %s50
    %p59 = scmp.eq.s32.totalorder %s23, 0
    %p60 = por %p58, %p59
    %p61 = scmp.ne.s32.totalorder %s49, %s50
    %p62 = scmp.eq.s32.totalorder %s24, 6
    %p63 = por %p61, %p62
    %p65 = scmp.ne.s32.totalorder %s50, %s64
    %p66 = scmp.eq.s32.totalorder %s24, 0
    %p67 = por %p65, %p66
    %s69 = sadd.s32 %s68, 1
    %p72 = scmp.eq.s32.totalorder %s18, 6
    %p73 = scmp.ne.s32.totalorder %s68, %s70
    %p74 = scmp.eq.s32.totalorder %s18, 0
    %p75 = por %p73, %p74
    %p76 = scmp.ne.s32.totalorder %s68, %s70
    %p77 = scmp.eq.s32.totalorder %s23, 6
    %p78 = por %p76, %p77
    %p79 = scmp.ne.s32.totalorder %s70, %s71
    %p80 = scmp.eq.s32.totalorder %s23, 0
    %p81 = por %p79, %p80
    %p82 = scmp.ne.s32.totalorder %s70, %s71
    %p83 = scmp.eq.s32.totalorder %s24, 6
    %p84 = por %p82, %p83
    %p86 = scmp.ne.s32.totalorder %s71, %s85
    %p87 = scmp.eq.s32.totalorder %s24, 0
    %p88 = por %p86, %p87
    %s90 = sadd.s32 %s89, 1
    %p93 = scmp.eq.s32.totalorder %s18, 6
    %p94 = scmp.ne.s32.totalorder %s89, %s91
    %p95 = scmp.eq.s32.totalorder %s18, 0
    %p96 = por %p94, %p95
    %p97 = scmp.ne.s32.totalorder %s89, %s91
    %p98 = scmp.eq.s32.totalorder %s23, 6
    %p99 = por %p97, %p98
    %p100 = scmp.ne.s32.totalorder %s91, %s92
    %p101 = scmp.eq.s32.totalorder %s23, 0
    %p102 = por %p100, %p101
    %p103 = scmp.ne.s32.totalorder %s91, %s92
    %p104 = scmp.eq.s32.totalorder %s24, 6
    %p105 = por %p103, %p104
    %p107 = scmp.ne.s32.totalorder %s92, %s106
    %p108 = scmp.eq.s32.totalorder %s24, 0
    %p109 = por %p107, %p108
    %s111 = sadd.s32 %s110, 1
    %p114 = scmp.eq.s32.totalorder %s18, 6
    %p115 = scmp.ne.s32.totalorder %s110, %s112
    %p116 = scmp.eq.s32.totalorder %s18, 0
    %p117 = por %p115, %p116
    %p118 = scmp.ne.s32.totalorder %s110, %s112
    %p119 = scmp.eq.s32.totalorder %s23, 6
    %p120 = por %p118, %p119
    %p121 = scmp.ne.s32.totalorder %s112, %s113
    %p122 = scmp.eq.s32.totalorder %s23, 0
    %p123 = por %p121, %p122
    %p124 = scmp.ne.s32.totalorder %s112, %s113
    %p125 = scmp.eq.s32.totalorder %s24, 6
    %p126 = por %p124, %p125
    %p128 = scmp.ne.s32.totalorder %s113, %s127
    %p129 = scmp.eq.s32.totalorder %s24, 0
    %p130 = por %p128, %p129
    %s131 = ssub.s32 %s18, %s25
    %p132 = scmp.eq.s32.totalorder %s131, 0
    %s134 = sadd.s32 %s133, 1
    %s135 = scalar_select %p132, %s133, %s134
    %p138 = pneg %p132
    %p139 = scmp.eq.s32.totalorder %s18, 6
    %p140 = por %p138, %p139
    %p141 = scmp.ne.s32.totalorder %s133, %s136
    %p142 = scmp.eq.s32.totalorder %s18, 0
    %p143 = por %p141, %p142
    %p144 = scmp.ne.s32.totalorder %s133, %s136
    %p145 = scmp.eq.s32.totalorder %s23, 6
    %p146 = por %p144, %p145
    %p147 = scmp.ne.s32.totalorder %s136, %s137
    %p148 = scmp.eq.s32.totalorder %s23, 0
    %p149 = por %p147, %p148
    %p150 = scmp.ne.s32.totalorder %s136, %s137
    %p151 = scmp.eq.s32.totalorder %s24, 6
    %p152 = por %p150, %p151
    %p154 = scmp.ne.s32.totalorder %s137, %s153
    %p155 = scmp.eq.s32.totalorder %s24, 0
    %p156 = por %p154, %p155
    %s158 = sadd.s32 %s157, 1
    %p161 = scmp.eq.s32.totalorder %s18, 6
    %p162 = scmp.ne.s32.totalorder %s157, %s159
    %p163 = scmp.eq.s32.totalorder %s18, 0
    %p164 = por %p162, %p163
    %p165 = scmp.ne.s32.totalorder %s157, %s159
    %p166 = scmp.eq.s32.totalorder %s23, 6
    %p167 = por %p165, %p166
    %p168 = scmp.ne.s32.totalorder %s159, %s160
    %p169 = scmp.eq.s32.totalorder %s23, 0
    %p170 = por %p168, %p169
    %p171 = scmp.ne.s32.totalorder %s159, %s160
    %p172 = scmp.eq.s32.totalorder %s24, 6
    %p173 = por %p171, %p172
    %p175 = scmp.ne.s32.totalorder %s160, %s174
    %p176 = scmp.eq.s32.totalorder %s24, 0
    %p177 = por %p175, %p176
    %s179 = sadd.s32 %s178, 1
    %p182 = scmp.eq.s32.totalorder %s18, 6
    %p183 = scmp.ne.s32.totalorder %s178, %s180
    %p184 = scmp.eq.s32.totalorder %s18, 0
    %p185 = por %p183, %p184
    %p186 = scmp.ne.s32.totalorder %s178, %s180
    %p187 = scmp.eq.s32.totalorder %s23, 6
    %p188 = por %p186, %p187
    %p189 = scmp.ne.s32.totalorder %s180, %s181
    %p190 = scmp.eq.s32.totalorder %s23, 0
    %p191 = por %p189, %p190
    %p192 = scmp.ne.s32.totalorder %s180, %s181
    %p193 = scmp.eq.s32.totalorder %s24, 6
    %p194 = por %p192, %p193
    %p196 = scmp.ne.s32.totalorder %s181, %s195
    %p197 = scmp.eq.s32.totalorder %s24, 0
    %p198 = por %p196, %p197
    %s200 = sadd.s32 %s199, 1
    %p203 = scmp.eq.s32.totalorder %s18, 6
    %p204 = scmp.ne.s32.totalorder %s199, %s201
    %p205 = scmp.eq.s32.totalorder %s18, 0
    %p206 = por %p204, %p205
    %p207 = scmp.ne.s32.totalorder %s199, %s201
    %p208 = scmp.eq.s32.totalorder %s23, 6
    %p209 = por %p207, %p208
    %p210 = scmp.ne.s32.totalorder %s201, %s202
    %p211 = scmp.eq.s32.totalorder %s23, 0
    %p212 = por %p210, %p211
    %p213 = scmp.ne.s32.totalorder %s201, %s202
    %p214 = scmp.eq.s32.totalorder %s24, 6
    %p215 = por %p213, %p214
    %p217 = scmp.ne.s32.totalorder %s202, %s216
    %p218 = scmp.eq.s32.totalorder %s24, 0
    %p219 = por %p217, %p218
    %s221 = sadd.s32 %s220, 1
    %p224 = scmp.eq.s32.totalorder %s18, 6
    %p225 = scmp.ne.s32.totalorder %s220, %s222
    %p226 = scmp.eq.s32.totalorder %s18, 0
    %p227 = por %p225, %p226
    %p228 = scmp.ne.s32.totalorder %s220, %s222
    %p229 = scmp.eq.s32.totalorder %s23, 6
    %p230 = por %p228, %p229
    %p231 = scmp.ne.s32.totalorder %s222, %s223
    %p232 = scmp.eq.s32.totalorder %s23, 0
    %p233 = por %p231, %p232
    %p234 = scmp.ne.s32.totalorder %s222, %s223
    %p235 = scmp.eq.s32.totalorder %s24, 6
    %p236 = por %p234, %p235
    %p238 = scmp.ne.s32.totalorder %s223, %s237
    %p239 = scmp.eq.s32.totalorder %s24, 0
    %p240 = por %p238, %p239
    %s242 = sadd.s32 %s241, 1
    %p245 = scmp.eq.s32.totalorder %s18, 6
    %p246 = scmp.ne.s32.totalorder %s241, %s243
    %p247 = scmp.eq.s32.totalorder %s18, 0
    %p248 = por %p246, %p247
    %p249 = scmp.ne.s32.totalorder %s241, %s243
    %p250 = scmp.eq.s32.totalorder %s23, 6
    %p251 = por %p249, %p250
    %p252 = scmp.ne.s32.totalorder %s243, %s244
    %p253 = scmp.eq.s32.totalorder %s23, 0
    %p254 = por %p252, %p253
    %p255 = scmp.ne.s32.totalorder %s243, %s244
    %p256 = scmp.eq.s32.totalorder %s24, 6
    %p257 = por %p255, %p256
    %p259 = scmp.ne.s32.totalorder %s244, %s258
    %p260 = scmp.eq.s32.totalorder %s24, 0
    %p261 = por %p259, %p260
    %s263 = sadd.s32 %s262, 1
    %p266 = scmp.eq.s32.totalorder %s18, 6
    %p267 = scmp.ne.s32.totalorder %s262, %s264
    %p268 = scmp.eq.s32.totalorder %s18, 0
    %p269 = por %p267, %p268
    %p270 = scmp.ne.s32.totalorder %s262, %s264
    %p271 = scmp.eq.s32.totalorder %s23, 6
    %p272 = por %p270, %p271
    %p273 = scmp.ne.s32.totalorder %s264, %s265
    %p274 = scmp.eq.s32.totalorder %s23, 0
    %p275 = por %p273, %p274
    %p276 = scmp.ne.s32.totalorder %s264, %s265
    %p277 = scmp.eq.s32.totalorder %s24, 6
    %p278 = por %p276, %p277
    %p280 = scmp.ne.s32.totalorder %s265, %s279
    %p281 = scmp.eq.s32.totalorder %s24, 0
    %p282 = por %p280, %p281
    %p283 = scmp.le.s32.totalorder 1, %s18
    %p284 = scmp.lt.s32.totalorder %s18, 8
    %p285 = pnand %p283, %p284
    %p286 = pneg %p285
    // Predicated region
    $region9: #{discriminator_forward.3} parent=5 // pred_check
      _
    $region10: #{discriminator_forward.3} parent=5 // pred_check_branch
      %288 = sbr.rel (%p285) target = $region12
    $region11: #{discriminator_forward.3} parent=5 // pred_region
      %s289 = ssub.s32 %s18, 1
      // Predicated region
      $region13: #{discriminator_forward.3} parent=11 // pred_check
        %p290 = pneg %p39
      $region14: #{discriminator_forward.3} parent=11 // pred_check_branch
        %292 = sbr.rel (%p290) target = $region16
      $region15: #{discriminator_forward.3} parent=11 // pred_region
        _
      $region16: #{discriminator_forward.3} parent=11 // pred_fallthru
        _
      // Predicated region
      $region17: #{discriminator_forward.3} parent=11 // pred_check
        %p293 = pneg %p60
      $region18: #{discriminator_forward.3} parent=11 // pred_check_branch
        %295 = sbr.rel (%p293) target = $region20
      $region19: #{discriminator_forward.3} parent=11 // pred_region
        _
      $region20: #{discriminator_forward.3} parent=11 // pred_fallthru
        _
      // Predicated region
      $region21: #{discriminator_forward.3} parent=11 // pred_check
        %p296 = pneg %p81
      $region22: #{discriminator_forward.3} parent=11 // pred_check_branch
        %298 = sbr.rel (%p296) target = $region24
      $region23: #{discriminator_forward.3} parent=11 // pred_region
        _
      $region24: #{discriminator_forward.3} parent=11 // pred_fallthru
        _
      // Predicated region
      $region25: #{discriminator_forward.3} parent=11 // pred_check
        %p299 = pneg %p102
      $region26: #{discriminator_forward.3} parent=11 // pred_check_branch
        %301 = sbr.rel (%p299) target = $region28
      $region27: #{discriminator_forward.3} parent=11 // pred_region
        _
      $region28: #{discriminator_forward.3} parent=11 // pred_fallthru
        _
      // Predicated region
      $region29: #{discriminator_forward.3} parent=11 // pred_check
        %p302 = pneg %p123
      $region30: #{discriminator_forward.3} parent=11 // pred_check_branch
        %304 = sbr.rel (%p302) target = $region32
      $region31: #{discriminator_forward.3} parent=11 // pred_region
        _
      $region32: #{discriminator_forward.3} parent=11 // pred_fallthru
        _
      // Predicated region
      $region33: #{discriminator_forward.3} parent=11 // pred_check
        %p305 = pneg %p170
      $region34: #{discriminator_forward.3} parent=11 // pred_check_branch
        %307 = sbr.rel (%p305) target = $region36
      $region35: #{discriminator_forward.3} parent=11 // pred_region
        _
      $region36: #{discriminator_forward.3} parent=11 // pred_fallthru
        _
      // Predicated region
      $region37: #{discriminator_forward.3} parent=11 // pred_check
        %p308 = pneg %p191
      $region38: #{discriminator_forward.3} parent=11 // pred_check_branch
        %310 = sbr.rel (%p308) target = $region40
      $region39: #{discriminator_forward.3} parent=11 // pred_region
        _
      $region40: #{discriminator_forward.3} parent=11 // pred_fallthru
        _
      // Predicated region
      $region41: #{discriminator_forward.3} parent=11 // pred_check
        %p311 = pneg %p212
      $region42: #{discriminator_forward.3} parent=11 // pred_check_branch
        %313 = sbr.rel (%p311) target = $region44
      $region43: #{discriminator_forward.3} parent=11 // pred_region
        _
      $region44: #{discriminator_forward.3} parent=11 // pred_fallthru
        _
      // Predicated region
      $region45: #{discriminator_forward.3} parent=11 // pred_check
        %p314 = pneg %p233
      $region46: #{discriminator_forward.3} parent=11 // pred_check_branch
        %316 = sbr.rel (%p314) target = $region48
      $region47: #{discriminator_forward.3} parent=11 // pred_region
        _
      $region48: #{discriminator_forward.3} parent=11 // pred_fallthru
        _
      // Predicated region
      $region49: #{discriminator_forward.3} parent=11 // pred_check
        %p317 = pneg %p254
      $region50: #{discriminator_forward.3} parent=11 // pred_check_branch
        %319 = sbr.rel (%p317) target = $region52
      $region51: #{discriminator_forward.3} parent=11 // pred_region
        _
      $region52: #{discriminator_forward.3} parent=11 // pred_fallthru
        _
    $region12: #{discriminator_forward.3} parent=5 // pred_fallthru
      _
    %p320 = scmp.lt.s32.totalorder %s18, 7
    // Predicated region
    $region53: #{discriminator_forward.3} parent=5 // pred_check
      %p321 = pneg %p320
    $region54: #{discriminator_forward.3} parent=5 // pred_check_branch
      %323 = sbr.rel (%p321) target = $region56
    $region55: #{discriminator_forward.3} parent=5 // pred_region
      // Predicated region
      $region57: #{discriminator_forward.3} parent=55 // pred_check
        %p324 = pneg %p143
      $region58: #{discriminator_forward.3} parent=55 // pred_check_branch
        %326 = sbr.rel (%p324) target = $region60
      $region59: #{discriminator_forward.3} parent=55 // pred_region
        %s327 = smul.u32 112, %s18
        %p328 = scmp.lt.s32.totalorder %s327, 783
        %s329 = scalar_select %p328, %s327, 783
        %s330 = smul.addr %s329, 8
        %s331 = smul.addr %s330, 4
        %s332 = scalar_lea.vmem %s5, %s331
        %s333 = smul.u32 112, %s18
      $region60: #{discriminator_forward.3} parent=55 // pred_fallthru
        _
    $region56: #{discriminator_forward.3} parent=5 // pred_fallthru
      _
    %p334 = scmp.le.s32.totalorder 1, %s18
    %p335 = scmp.lt.s32.totalorder %s18, 8
    %p336 = pnand %p334, %p335
    %p337 = pneg %p336
    // Predicated region
    $region61: #{discriminator_forward.3} parent=5 // pred_check
      _
    $region62: #{discriminator_forward.3} parent=5 // pred_check_branch
      %339 = sbr.rel (%p336) target = $region64
    $region63: #{discriminator_forward.3} parent=5 // pred_region
      %s340 = ssub.s32 %s18, 1
      %p341 = pneg %p39
      %p342 = pneg %p36
      %p343 = pneg %p60
      %p344 = pneg %p57
      %p345 = pneg %p81
      %p346 = pneg %p78
      %p347 = pneg %p102
      %p348 = pneg %p99
      %p349 = pneg %p123
      %p350 = pneg %p120
      %s351 = smul.u32 112, %s23
      %p352 = scmp.lt.s32.totalorder %s351, 783
      %s353 = scalar_select %p352, %s351, 783
      %s354 = smul.addr %s353, 8
      %s355 = smul.addr %s354, 4
      %s356 = scalar_lea.vmem %s5, %s355
      %p357 = pneg %p149
      %p358 = pneg %p146
      %p359 = pneg %p170
      %p360 = pneg %p167
      %p361 = pneg %p191
      %p362 = pneg %p188
      %p363 = pneg %p212
      %p364 = pneg %p209
      %p365 = pneg %p233
      %p366 = pneg %p230
      %p367 = pneg %p254
      %p368 = pneg %p251
      %p369 = pneg %p275
      %p370 = pneg %p272
      %s371 = smul.u32 112, %s23
      %p372 = scmp.lt.s32.totalorder %s371, 783
      %s373 = scalar_select %p372, %s371, 783
      %s374 = smul.addr %s373, 8
      %s375 = smul.addr %s374, 4
      %s376 = scalar_lea.vmem %s5, %s375
      %s377 = smul.u32 112, %s23
      %p378 = scmp.eq.s32.totalorder %s23, 0
      // Predicated region
      $region65: #{discriminator_forward.3} parent=63 // pred_check
        %p379 = pneg %p378
      $region66: #{discriminator_forward.3} parent=63 // pred_check_branch
        %381 = sbr.rel (%p379) target = $region68
      $region67: #{discriminator_forward.3} parent=63 // pred_region
        %v382 = vld [vmem:[%s0] sm:$0xff]
        %v383 = vld [vmem:[%s0 + $0x8] sm:$0xff]
        %v384 = vld [vmem:[%s0 + $0x10] sm:$0xff]
        %v385 = vld [vmem:[%s0 + $0x18] sm:$0xff]
        %v386 = vld [vmem:[%s0 + $0x20] sm:$0xff]
        %v387 = vld [vmem:[%s0 + $0x28] sm:$0xff]
        %v388 = vld [vmem:[%s0 + $0x30] sm:$0xff]
        %v389 = vld [vmem:[%s0 + $0x38] sm:$0xff]
        %v390 = vld [vmem:[%s0 + $0x40] sm:$0xff]
        %v391 = vld [vmem:[%s0 + $0x48] sm:$0xff]
        %v392 = vld [vmem:[%s0 + $0x50] sm:$0xff]
        %v393 = vld [vmem:[%s0 + $0x58] sm:$0xff]
        %v394 = vld [vmem:[%s0 + $0x60] sm:$0xff]
        %v395 = vld [vmem:[%s0 + $0x68] sm:$0xff]
        %v396 = vld [vmem:[%s0 + $0x70] sm:$0xff]
        %v397 = vld [vmem:[%s0 + $0x78] sm:$0xff]
        %v398 = vld [vmem:[%s0 + $0x80] sm:$0xff]
        %v399 = vld [vmem:[%s0 + $0x88] sm:$0xff]
        %v400 = vld [vmem:[%s0 + $0x90] sm:$0xff]
        %v401 = vld [vmem:[%s0 + $0x98] sm:$0xff]
        %v402 = vld [vmem:[%s0 + $0xa0] sm:$0xff]
        %v403 = vld [vmem:[%s0 + $0xa8] sm:$0xff]
        %v404 = vld [vmem:[%s0 + $0xb0] sm:$0xff]
        %v405 = vld [vmem:[%s0 + $0xb8] sm:$0xff]
        %v406 = vld [vmem:[%s0 + $0xc0] sm:$0xff]
        %v407 = vld [vmem:[%s0 + $0xc8] sm:$0xff]
        %v408 = vld [vmem:[%s0 + $0xd0] sm:$0xff]
        %v409 = vld [vmem:[%s0 + $0xd8] sm:$0xff]
        %v410 = vld [vmem:[%s0 + $0xe0] sm:$0xff]
        %v411 = vld [vmem:[%s0 + $0xe8] sm:$0xff]
        %v412 = vld [vmem:[%s0 + $0xf0] sm:$0xff]
        %v413 = vld [vmem:[%s0 + $0xf8] sm:$0xff]
        %v414 = vld [vmem:[%s0 + $0x100] sm:$0xff]
        %v415 = vld [vmem:[%s0 + $0x108] sm:$0xff]
        %v416 = vld [vmem:[%s0 + $0x110] sm:$0xff]
        %v417 = vld [vmem:[%s0 + $0x118] sm:$0xff]
        %v418 = vld [vmem:[%s0 + $0x120] sm:$0xff]
        %v419 = vld [vmem:[%s0 + $0x128] sm:$0xff]
        %v420 = vld [vmem:[%s0 + $0x130] sm:$0xff]
        %v421 = vld [vmem:[%s0 + $0x138] sm:$0xff]
        %v422 = vld [vmem:[%s0 + $0x140] sm:$0xff]
        %v423 = vld [vmem:[%s0 + $0x148] sm:$0xff]
        %v424 = vld [vmem:[%s0 + $0x150] sm:$0xff]
        %v425 = vld [vmem:[%s0 + $0x158] sm:$0xff]
        %v426 = vld [vmem:[%s0 + $0x160] sm:$0xff]
        %v427 = vld [vmem:[%s0 + $0x168] sm:$0xff]
        %v428 = vld [vmem:[%s0 + $0x170] sm:$0xff]
        %v429 = vld [vmem:[%s0 + $0x178] sm:$0xff]
        %v430 = vld [vmem:[%s0 + $0x180] sm:$0xff]
        %v431 = vld [vmem:[%s0 + $0x188] sm:$0xff]
        %v432 = vld [vmem:[%s0 + $0x190] sm:$0xff]
        %v433 = vld [vmem:[%s0 + $0x198] sm:$0xff]
        %v434 = vld [vmem:[%s0 + $0x1a0] sm:$0xff]
        %v435 = vld [vmem:[%s0 + $0x1a8] sm:$0xff]
        %v436 = vld [vmem:[%s0 + $0x1b0] sm:$0xff]
        %v437 = vld [vmem:[%s0 + $0x1b8] sm:$0xff]
        %v438 = vld [vmem:[%s0 + $0x1c0] sm:$0xff]
        %v439 = vld [vmem:[%s0 + $0x1c8] sm:$0xff]
        %v440 = vld [vmem:[%s0 + $0x1d0] sm:$0xff]
        %v441 = vld [vmem:[%s0 + $0x1d8] sm:$0xff]
        %v442 = vld [vmem:[%s0 + $0x1e0] sm:$0xff]
        %v443 = vld [vmem:[%s0 + $0x1e8] sm:$0xff]
        %v444 = vld [vmem:[%s0 + $0x1f0] sm:$0xff]
        %v445 = vld [vmem:[%s0 + $0x1f8] sm:$0xff]
        %v446 = vld [vmem:[%s0 + $0x200] sm:$0xff]
        %v447 = vld [vmem:[%s0 + $0x208] sm:$0xff]
        %v448 = vld [vmem:[%s0 + $0x210] sm:$0xff]
        %v449 = vld [vmem:[%s0 + $0x218] sm:$0xff]
        %v450 = vld [vmem:[%s0 + $0x220] sm:$0xff]
        %v451 = vld [vmem:[%s0 + $0x228] sm:$0xff]
        %v452 = vld [vmem:[%s0 + $0x230] sm:$0xff]
        %v453 = vld [vmem:[%s0 + $0x238] sm:$0xff]
        %v454 = vld [vmem:[%s0 + $0x240] sm:$0xff]
        %v455 = vld [vmem:[%s0 + $0x248] sm:$0xff]
        %v456 = vld [vmem:[%s0 + $0x250] sm:$0xff]
        %v457 = vld [vmem:[%s0 + $0x258] sm:$0xff]
        %v458 = vld [vmem:[%s0 + $0x260] sm:$0xff]
        %v459 = vld [vmem:[%s0 + $0x268] sm:$0xff]
        %v460 = vld [vmem:[%s0 + $0x270] sm:$0xff]
        %v461 = vld [vmem:[%s0 + $0x278] sm:$0xff]
        %v462 = vld [vmem:[%s0 + $0x280] sm:$0xff]
        %v463 = vld [vmem:[%s0 + $0x288] sm:$0xff]
        %v464 = vld [vmem:[%s0 + $0x290] sm:$0xff]
        %v465 = vld [vmem:[%s0 + $0x298] sm:$0xff]
        %v466 = vld [vmem:[%s0 + $0x2a0] sm:$0xff]
        %v467 = vld [vmem:[%s0 + $0x2a8] sm:$0xff]
        %v468 = vld [vmem:[%s0 + $0x2b0] sm:$0xff]
        %v469 = vld [vmem:[%s0 + $0x2b8] sm:$0xff]
        %v470 = vld [vmem:[%s0 + $0x2c0] sm:$0xff]
        %v471 = vld [vmem:[%s0 + $0x2c8] sm:$0xff]
        %v472 = vld [vmem:[%s0 + $0x2d0] sm:$0xff]
        %v473 = vld [vmem:[%s0 + $0x2d8] sm:$0xff]
        %v474 = vld [vmem:[%s0 + $0x2e0] sm:$0xff]
        %v475 = vld [vmem:[%s0 + $0x2e8] sm:$0xff]
        %v476 = vld [vmem:[%s0 + $0x2f0] sm:$0xff]
        %v477 = vld [vmem:[%s0 + $0x2f8] sm:$0xff]
        %v478 = vld [vmem:[%s0 + $0x300] sm:$0xff]
        %v479 = vld [vmem:[%s0 + $0x308] sm:$0xff]
        %v480 = vld [vmem:[%s0 + $0x310] sm:$0xff]
        %v481 = vld [vmem:[%s0 + $0x318] sm:$0xff]
        %v482 = vld [vmem:[%s0 + $0x320] sm:$0xff]
        %v483 = vld [vmem:[%s0 + $0x328] sm:$0xff]
        %v484 = vld [vmem:[%s0 + $0x330] sm:$0xff]
        %v485 = vld [vmem:[%s0 + $0x338] sm:$0xff]
        %v486 = vld [vmem:[%s0 + $0x340] sm:$0xff]
        %v487 = vld [vmem:[%s0 + $0x348] sm:$0xff]
        %v488 = vld [vmem:[%s0 + $0x350] sm:$0xff]
        %v489 = vld [vmem:[%s0 + $0x358] sm:$0xff]
        %v490 = vld [vmem:[%s0 + $0x360] sm:$0xff]
        %v491 = vld [vmem:[%s0 + $0x368] sm:$0xff]
        %v492 = vld [vmem:[%s0 + $0x370] sm:$0xff]
        %v493 = vld [vmem:[%s0 + $0x378] sm:$0xff]
        %v494 = vld [vmem:[%s0 + $0x380] sm:$0xff]
        %v495 = vld [vmem:[%s0 + $0x388] sm:$0xff]
        %v496 = vld [vmem:[%s0 + $0x390] sm:$0xff]
        %v497 = vld [vmem:[%s0 + $0x398] sm:$0xff]
        %v498 = vld [vmem:[%s0 + $0x3a0] sm:$0xff]
        %v499 = vld [vmem:[%s0 + $0x3a8] sm:$0xff]
        %v500 = vld [vmem:[%s0 + $0x3b0] sm:$0xff]
        %v501 = vld [vmem:[%s0 + $0x3b8] sm:$0xff]
        %v502 = vld [vmem:[%s0 + $0x3c0] sm:$0xff]
        %v503 = vld [vmem:[%s0 + $0x3c8] sm:$0xff]
        %v504 = vld [vmem:[%s0 + $0x3d0] sm:$0xff]
        %v505 = vld [vmem:[%s0 + $0x3d8] sm:$0xff]
        %v506 = vld [vmem:[%s0 + $0x3e0] sm:$0xff]
        %v507 = vld [vmem:[%s0 + $0x3e8] sm:$0xff]
        %v508 = vld [vmem:[%s0 + $0x3f0] sm:$0xff]
        %v509 = vld [vmem:[%s0 + $0x3f8] sm:$0xff]
        %v510 = vld [vmem:[%s0 + $0x400] sm:$0xff]
        %v511 = vld [vmem:[%s0 + $0x408] sm:$0xff]
        %v512 = vld [vmem:[%s0 + $0x410] sm:$0xff]
        %v513 = vld [vmem:[%s0 + $0x418] sm:$0xff]
        %v514 = vld [vmem:[%s0 + $0x420] sm:$0xff]
        %v515 = vld [vmem:[%s0 + $0x428] sm:$0xff]
        %v516 = vld [vmem:[%s0 + $0x430] sm:$0xff]
        %v517 = vld [vmem:[%s0 + $0x438] sm:$0xff]
        %v518 = vld [vmem:[%s0 + $0x440] sm:$0xff]
        %v519 = vld [vmem:[%s0 + $0x448] sm:$0xff]
        %v520 = vld [vmem:[%s0 + $0x450] sm:$0xff]
        %v521 = vld [vmem:[%s0 + $0x458] sm:$0xff]
        %v522 = vld [vmem:[%s0 + $0x460] sm:$0xff]
        %v523 = vld [vmem:[%s0 + $0x468] sm:$0xff]
        %v524 = vld [vmem:[%s0 + $0x470] sm:$0xff]
        %v525 = vld [vmem:[%s0 + $0x478] sm:$0xff]
        %v526 = vld [vmem:[%s0 + $0x480] sm:$0xff]
        %v527 = vld [vmem:[%s0 + $0x488] sm:$0xff]
        %v528 = vld [vmem:[%s0 + $0x490] sm:$0xff]
        %v529 = vld [vmem:[%s0 + $0x498] sm:$0xff]
        %v530 = vld [vmem:[%s0 + $0x4a0] sm:$0xff]
        %v531 = vld [vmem:[%s0 + $0x4a8] sm:$0xff]
        %v532 = vld [vmem:[%s0 + $0x4b0] sm:$0xff]
        %v533 = vld [vmem:[%s0 + $0x4b8] sm:$0xff]
        %v534 = vld [vmem:[%s0 + $0x4c0] sm:$0xff]
        %v535 = vld [vmem:[%s0 + $0x4c8] sm:$0xff]
        %v536 = vld [vmem:[%s0 + $0x4d0] sm:$0xff]
        %v537 = vld [vmem:[%s0 + $0x4d8] sm:$0xff]
        %v538 = vld [vmem:[%s0 + $0x4e0] sm:$0xff]
        %v539 = vld [vmem:[%s0 + $0x4e8] sm:$0xff]
        %v540 = vld [vmem:[%s0 + $0x4f0] sm:$0xff]
        %v541 = vld [vmem:[%s0 + $0x4f8] sm:$0xff]
        %v542 = vld [vmem:[%s0 + $0x500] sm:$0xff]
        %v543 = vld [vmem:[%s0 + $0x508] sm:$0xff]
        %v544 = vld [vmem:[%s0 + $0x510] sm:$0xff]
        %v545 = vld [vmem:[%s0 + $0x518] sm:$0xff]
        %v546 = vld [vmem:[%s0 + $0x520] sm:$0xff]
        %v547 = vld [vmem:[%s0 + $0x528] sm:$0xff]
        %v548 = vld [vmem:[%s0 + $0x530] sm:$0xff]
        %v549 = vld [vmem:[%s0 + $0x538] sm:$0xff]
        %v550 = vld [vmem:[%s0 + $0x540] sm:$0xff]
        %v551 = vld [vmem:[%s0 + $0x548] sm:$0xff]
        %v552 = vld [vmem:[%s0 + $0x550] sm:$0xff]
        %v553 = vld [vmem:[%s0 + $0x558] sm:$0xff]
        %v554 = vld [vmem:[%s0 + $0x560] sm:$0xff]
        %v555 = vld [vmem:[%s0 + $0x568] sm:$0xff]
        %v556 = vld [vmem:[%s0 + $0x570] sm:$0xff]
        %v557 = vld [vmem:[%s0 + $0x578] sm:$0xff]
        %v558 = vld [vmem:[%s0 + $0x580] sm:$0xff]
        %v559 = vld [vmem:[%s0 + $0x588] sm:$0xff]
        %v560 = vld [vmem:[%s0 + $0x590] sm:$0xff]
        %v561 = vld [vmem:[%s0 + $0x598] sm:$0xff]
        %v562 = vld [vmem:[%s0 + $0x5a0] sm:$0xff]
        %v563 = vld [vmem:[%s0 + $0x5a8] sm:$0xff]
        %v564 = vld [vmem:[%s0 + $0x5b0] sm:$0xff]
        %v565 = vld [vmem:[%s0 + $0x5b8] sm:$0xff]
        %v566 = vld [vmem:[%s0 + $0x5c0] sm:$0xff]
        %v567 = vld [vmem:[%s0 + $0x5c8] sm:$0xff]
        %v568 = vld [vmem:[%s0 + $0x5d0] sm:$0xff]
        %v569 = vld [vmem:[%s0 + $0x5d8] sm:$0xff]
        %v570 = vld [vmem:[%s0 + $0x5e0] sm:$0xff]
        %v571 = vld [vmem:[%s0 + $0x5e8] sm:$0xff]
        %v572 = vld [vmem:[%s0 + $0x5f0] sm:$0xff]
        %v573 = vld [vmem:[%s0 + $0x5f8] sm:$0xff]
        %v574 = vld [vmem:[%s0 + $0x600] sm:$0xff]
        %v575 = vld [vmem:[%s0 + $0x608] sm:$0xff]
        %v576 = vld [vmem:[%s0 + $0x610] sm:$0xff]
        %v577 = vld [vmem:[%s0 + $0x618] sm:$0xff]
        %v578 = vld [vmem:[%s1] sm:$0xf]
        %v579 = vld [vmem:[%s1 + $0x4] sm:$0xf]
        %v580 = vld [vmem:[%s1 + $0x8] sm:$0xf]
        %v581 = vld [vmem:[%s1 + $0xc] sm:$0xf]
        %v582 = vld [vmem:[%s1 + $0x10] sm:$0xf]
        %v583 = vld [vmem:[%s1 + $0x14] sm:$0xf]
        %v584 = vld [vmem:[%s1 + $0x18] sm:$0xf]
        %v585 = vld [vmem:[%s1 + $0x1c] sm:$0xf]
        %v586 = vld [vmem:[%s1 + $0x20] sm:$0xf]
        %v587 = vld [vmem:[%s1 + $0x24] sm:$0xf]
        %v588 = vld [vmem:[%s1 + $0x28] sm:$0xf]
        %v589 = vld [vmem:[%s1 + $0x2c] sm:$0xf]
        %v590 = vld [vmem:[%s1 + $0x30] sm:$0xf]
        %v591 = vld [vmem:[%s1 + $0x34] sm:$0xf]
        %v592 = vld [vmem:[%s1 + $0x38] sm:$0xf]
        %v593 = vld [vmem:[%s1 + $0x3c] sm:$0xf]
        %v594 = vld [vmem:[%s1 + $0x40] sm:$0xf]
        %v595 = vld [vmem:[%s1 + $0x44] sm:$0xf]
        %v596 = vld [vmem:[%s1 + $0x48] sm:$0xf]
        %v597 = vld [vmem:[%s1 + $0x4c] sm:$0xf]
        %v598 = vld [vmem:[%s1 + $0x50] sm:$0xf]
        %v599 = vld [vmem:[%s1 + $0x54] sm:$0xf]
        %v600 = vld [vmem:[%s1 + $0x58] sm:$0xf]
        %v601 = vld [vmem:[%s1 + $0x5c] sm:$0xf]
        %v602 = vld [vmem:[%s1 + $0x60] sm:$0xf]
        %v603 = vld [vmem:[%s1 + $0x64] sm:$0xf]
        %v604 = vld [vmem:[%s1 + $0x68] sm:$0xf]
        %v605 = vld [vmem:[%s1 + $0x6c] sm:$0xf]
        %v606 = vld [vmem:[%s1 + $0x70] sm:$0xf]
        %v607 = vld [vmem:[%s1 + $0x74] sm:$0xf]
        %v608 = vld [vmem:[%s1 + $0x78] sm:$0xf]
        %v609 = vld [vmem:[%s1 + $0x7c] sm:$0xf]
        %v610 = vld [vmem:[%s1 + $0x80] sm:$0xf]
        %v611 = vld [vmem:[%s1 + $0x84] sm:$0xf]
        %v612 = vld [vmem:[%s1 + $0x88] sm:$0xf]
        %v613 = vld [vmem:[%s1 + $0x8c] sm:$0xf]
        %v614 = vld [vmem:[%s1 + $0x90] sm:$0xf]
        %v615 = vld [vmem:[%s1 + $0x94] sm:$0xf]
        %v616 = vld [vmem:[%s1 + $0x98] sm:$0xf]
        %v617 = vld [vmem:[%s1 + $0x9c] sm:$0xf]
        %v618 = vld [vmem:[%s1 + $0xa0] sm:$0xf]
        %v619 = vld [vmem:[%s1 + $0xa4] sm:$0xf]
        %v620 = vld [vmem:[%s1 + $0xa8] sm:$0xf]
        %v621 = vld [vmem:[%s1 + $0xac] sm:$0xf]
        %v622 = vld [vmem:[%s1 + $0xb0] sm:$0xf]
        %v623 = vld [vmem:[%s1 + $0xb4] sm:$0xf]
        %v624 = vld [vmem:[%s1 + $0xb8] sm:$0xf]
        %v625 = vld [vmem:[%s1 + $0xbc] sm:$0xf]
        %v626 = vld [vmem:[%s1 + $0xc0] sm:$0xf]
        %v627 = vld [vmem:[%s1 + $0xc4] sm:$0xf]
        %v628 = vld [vmem:[%s1 + $0xc8] sm:$0xf]
        %v629 = vld [vmem:[%s1 + $0xcc] sm:$0xf]
        %v630 = vld [vmem:[%s1 + $0xd0] sm:$0xf]
        %v631 = vld [vmem:[%s1 + $0xd4] sm:$0xf]
        %v632 = vld [vmem:[%s1 + $0xd8] sm:$0xf]
        %v633 = vld [vmem:[%s1 + $0xdc] sm:$0xf]
        %v634 = vld [vmem:[%s1 + $0xe0] sm:$0xf]
        %v635 = vld [vmem:[%s1 + $0xe4] sm:$0xf]
        %v636 = vld [vmem:[%s1 + $0xe8] sm:$0xf]
        %v637 = vld [vmem:[%s1 + $0xec] sm:$0xf]
        %v638 = vld [vmem:[%s1 + $0xf0] sm:$0xf]
        %v639 = vld [vmem:[%s1 + $0xf4] sm:$0xf]
        %v640 = vld [vmem:[%s1 + $0xf8] sm:$0xf]
        %v641 = vld [vmem:[%s1 + $0xfc] sm:$0xf]
        %v642 = vld [vmem:[%s1 + $0x100] sm:$0xf]
        %v643 = vld [vmem:[%s1 + $0x104] sm:$0xf]
        %v644 = vld [vmem:[%s1 + $0x108] sm:$0xf]
        %v645 = vld [vmem:[%s1 + $0x10c] sm:$0xf]
        %v646 = vld [vmem:[%s1 + $0x110] sm:$0xf]
        %v647 = vld [vmem:[%s1 + $0x114] sm:$0xf]
        %v648 = vld [vmem:[%s1 + $0x118] sm:$0xf]
        %v649 = vld [vmem:[%s1 + $0x11c] sm:$0xf]
        %v650 = vld [vmem:[%s1 + $0x120] sm:$0xf]
        %v651 = vld [vmem:[%s1 + $0x124] sm:$0xf]
        %v652 = vld [vmem:[%s1 + $0x128] sm:$0xf]
        %v653 = vld [vmem:[%s1 + $0x12c] sm:$0xf]
        %v654 = vld [vmem:[%s1 + $0x130] sm:$0xf]
        %v655 = vld [vmem:[%s1 + $0x134] sm:$0xf]
        %v656 = vld [vmem:[%s1 + $0x138] sm:$0xf]
        %v657 = vld [vmem:[%s1 + $0x13c] sm:$0xf]
        %v658 = vld [vmem:[%s1 + $0x140] sm:$0xf]
        %v659 = vld [vmem:[%s1 + $0x144] sm:$0xf]
        %v660 = vld [vmem:[%s1 + $0x148] sm:$0xf]
        %v661 = vld [vmem:[%s1 + $0x14c] sm:$0xf]
        %v662 = vld [vmem:[%s1 + $0x150] sm:$0xf]
        %v663 = vld [vmem:[%s1 + $0x154] sm:$0xf]
        %v664 = vld [vmem:[%s1 + $0x158] sm:$0xf]
        %v665 = vld [vmem:[%s1 + $0x15c] sm:$0xf]
        %v666 = vld [vmem:[%s1 + $0x160] sm:$0xf]
        %v667 = vld [vmem:[%s1 + $0x164] sm:$0xf]
        %v668 = vld [vmem:[%s1 + $0x168] sm:$0xf]
        %v669 = vld [vmem:[%s1 + $0x16c] sm:$0xf]
        %v670 = vld [vmem:[%s1 + $0x170] sm:$0xf]
        %v671 = vld [vmem:[%s1 + $0x174] sm:$0xf]
        %v672 = vld [vmem:[%s1 + $0x178] sm:$0xf]
        %v673 = vld [vmem:[%s1 + $0x17c] sm:$0xf]
        %v674 = vld [vmem:[%s1 + $0x180] sm:$0xf]
        %v675 = vld [vmem:[%s1 + $0x184] sm:$0xf]
        %v676 = vld [vmem:[%s1 + $0x188] sm:$0xf]
        %v677 = vld [vmem:[%s1 + $0x18c] sm:$0xf]
        %v678 = vld [vmem:[%s1 + $0x190] sm:$0xf]
        %v679 = vld [vmem:[%s1 + $0x194] sm:$0xf]
        %v680 = vld [vmem:[%s1 + $0x198] sm:$0xf]
        %v681 = vld [vmem:[%s1 + $0x19c] sm:$0xf]
        %v682 = vld [vmem:[%s1 + $0x1a0] sm:$0xf]
        %v683 = vld [vmem:[%s1 + $0x1a4] sm:$0xf]
        %v684 = vld [vmem:[%s1 + $0x1a8] sm:$0xf]
        %v685 = vld [vmem:[%s1 + $0x1ac] sm:$0xf]
        %v686 = vld [vmem:[%s1 + $0x1b0] sm:$0xf]
        %v687 = vld [vmem:[%s1 + $0x1b4] sm:$0xf]
        %v688 = vld [vmem:[%s1 + $0x1b8] sm:$0xf]
        %v689 = vld [vmem:[%s1 + $0x1bc] sm:$0xf]
        %v690 = vld [vmem:[%s1 + $0x1c0] sm:$0xf]
        %v691 = vld [vmem:[%s1 + $0x1c4] sm:$0xf]
        %v692 = vld [vmem:[%s1 + $0x1c8] sm:$0xf]
        %v693 = vld [vmem:[%s1 + $0x1cc] sm:$0xf]
        %v694 = vld [vmem:[%s1 + $0x1d0] sm:$0xf]
        %v695 = vld [vmem:[%s1 + $0x1d4] sm:$0xf]
        %v696 = vld [vmem:[%s1 + $0x1d8] sm:$0xf]
        %v697 = vld [vmem:[%s1 + $0x1dc] sm:$0xf]
        %v698 = vld [vmem:[%s1 + $0x1e0] sm:$0xf]
        %v699 = vld [vmem:[%s1 + $0x1e4] sm:$0xf]
        %v700 = vld [vmem:[%s1 + $0x1e8] sm:$0xf]
        %v701 = vld [vmem:[%s1 + $0x1ec] sm:$0xf]
        %v702 = vld [vmem:[%s1 + $0x1f0] sm:$0xf]
        %v703 = vld [vmem:[%s1 + $0x1f4] sm:$0xf]
        %v704 = vld [vmem:[%s1 + $0x1f8] sm:$0xf]
        %v705 = vld [vmem:[%s1 + $0x1fc] sm:$0xf]
        %v706 = vld [vmem:[%s2] sm:$0x1]
        %v708 = vperm.slane %v706, 0
        %v906 = vunpack.c.l.b16 %v382
        %v907 = vunpack.c.h.b16 %v382
        %v908 = vunpack.c.l.b16 %v383
        %v909 = vunpack.c.h.b16 %v383
        %v910 = vunpack.c.l.b16 %v384
        %v911 = vunpack.c.h.b16 %v384
        %v912 = vunpack.c.l.b16 %v385
        %v913 = vunpack.c.h.b16 %v385
        %v914 = vunpack.c.l.b16 %v386
        %v915 = vunpack.c.h.b16 %v386
        %v916 = vunpack.c.l.b16 %v387
        %v917 = vunpack.c.h.b16 %v387
        %v918 = vunpack.c.l.b16 %v388
        %v919 = vunpack.c.h.b16 %v388
        %v920 = vunpack.c.l.b16 %v389
        %v921 = vunpack.c.h.b16 %v389
        %v922 = vunpack.c.l.b16 %v390
        %v923 = vunpack.c.h.b16 %v390
        %v924 = vunpack.c.l.b16 %v391
        %v925 = vunpack.c.h.b16 %v391
        %v926 = vunpack.c.l.b16 %v392
        %v927 = vunpack.c.h.b16 %v392
        %v928 = vunpack.c.l.b16 %v393
        %v929 = vunpack.c.h.b16 %v393
        %v930 = vunpack.c.l.b16 %v394
        %v931 = vunpack.c.h.b16 %v394
        %v932 = vunpack.c.l.b16 %v395
        %v933 = vunpack.c.h.b16 %v395
        %v934 = vunpack.c.l.b16 %v396
        %v935 = vunpack.c.h.b16 %v396
        %v936 = vunpack.c.l.b16 %v397
        %v937 = vunpack.c.h.b16 %v397
        %v938 = vunpack.c.l.b16 %v398
        %v939 = vunpack.c.h.b16 %v398
        %v940 = vunpack.c.l.b16 %v399
        %v941 = vunpack.c.h.b16 %v399
        %v942 = vunpack.c.l.b16 %v400
        %v943 = vunpack.c.h.b16 %v400
        %v944 = vunpack.c.l.b16 %v401
        %v945 = vunpack.c.h.b16 %v401
        %v946 = vunpack.c.l.b16 %v402
        %v947 = vunpack.c.h.b16 %v402
        %v948 = vunpack.c.l.b16 %v403
        %v949 = vunpack.c.h.b16 %v403
        %v950 = vunpack.c.l.b16 %v404
        %v951 = vunpack.c.h.b16 %v404
        %v952 = vunpack.c.l.b16 %v405
        %v953 = vunpack.c.h.b16 %v405
        %v954 = vunpack.c.l.b16 %v406
        %v955 = vunpack.c.h.b16 %v406
        %v956 = vunpack.c.l.b16 %v407
        %v957 = vunpack.c.h.b16 %v407
        %v958 = vunpack.c.l.b16 %v408
        %v959 = vunpack.c.h.b16 %v408
        %v960 = vunpack.c.l.b16 %v409
        %v961 = vunpack.c.h.b16 %v409
        %v962 = vunpack.c.l.b16 %v410
        %v963 = vunpack.c.h.b16 %v410
        %v964 = vunpack.c.l.b16 %v411
        %v965 = vunpack.c.h.b16 %v411
        %v966 = vunpack.c.l.b16 %v412
        %v967 = vunpack.c.h.b16 %v412
        %v968 = vunpack.c.l.b16 %v413
        %v969 = vunpack.c.h.b16 %v413
        %v970 = vunpack.c.l.b16 %v414
        %v971 = vunpack.c.h.b16 %v414
        %v972 = vunpack.c.l.b16 %v415
        %v973 = vunpack.c.h.b16 %v415
        %v974 = vunpack.c.l.b16 %v416
        %v975 = vunpack.c.h.b16 %v416
        %v976 = vunpack.c.l.b16 %v417
        %v977 = vunpack.c.h.b16 %v417
        %v978 = vunpack.c.l.b16 %v418
        %v979 = vunpack.c.h.b16 %v418
        %v980 = vunpack.c.l.b16 %v419
        %v981 = vunpack.c.h.b16 %v419
        %v982 = vunpack.c.l.b16 %v420
        %v983 = vunpack.c.h.b16 %v420
        %v984 = vunpack.c.l.b16 %v421
        %v985 = vunpack.c.h.b16 %v421
        %v986 = vunpack.c.l.b16 %v422
        %v987 = vunpack.c.h.b16 %v422
        %v988 = vunpack.c.l.b16 %v423
        %v989 = vunpack.c.h.b16 %v423
        %v990 = vunpack.c.l.b16 %v424
        %v991 = vunpack.c.h.b16 %v424
        %v992 = vunpack.c.l.b16 %v425
        %v993 = vunpack.c.h.b16 %v425
        %v994 = vunpack.c.l.b16 %v426
        %v995 = vunpack.c.h.b16 %v426
        %v996 = vunpack.c.l.b16 %v427
        %v997 = vunpack.c.h.b16 %v427
        %v998 = vunpack.c.l.b16 %v428
        %v999 = vunpack.c.h.b16 %v428
        %v1000 = vunpack.c.l.b16 %v429
        %v1001 = vunpack.c.h.b16 %v429
        %v1002 = vunpack.c.l.b16 %v430
        %v1003 = vunpack.c.h.b16 %v430
        %v1004 = vunpack.c.l.b16 %v431
        %v1005 = vunpack.c.h.b16 %v431
        %v1006 = vunpack.c.l.b16 %v432
        %v1007 = vunpack.c.h.b16 %v432
        %v1008 = vunpack.c.l.b16 %v433
        %v1009 = vunpack.c.h.b16 %v433
        %v1010 = vunpack.c.l.b16 %v434
        %v1011 = vunpack.c.h.b16 %v434
        %v1012 = vunpack.c.l.b16 %v435
        %v1013 = vunpack.c.h.b16 %v435
        %v1014 = vunpack.c.l.b16 %v436
        %v1015 = vunpack.c.h.b16 %v436
        %v1016 = vunpack.c.l.b16 %v437
        %v1017 = vunpack.c.h.b16 %v437
        %v1018 = vunpack.c.l.b16 %v438
        %v1019 = vunpack.c.h.b16 %v438
        %v1020 = vunpack.c.l.b16 %v439
        %v1021 = vunpack.c.h.b16 %v439
        %v1022 = vunpack.c.l.b16 %v440
        %v1023 = vunpack.c.h.b16 %v440
        %v1024 = vunpack.c.l.b16 %v441
        %v1025 = vunpack.c.h.b16 %v441
        %v1026 = vunpack.c.l.b16 %v442
        %v1027 = vunpack.c.h.b16 %v442
        %v1028 = vunpack.c.l.b16 %v443
        %v1029 = vunpack.c.h.b16 %v443
        %v1030 = vunpack.c.l.b16 %v444
        %v1031 = vunpack.c.h.b16 %v444
        %v1032 = vunpack.c.l.b16 %v445
        %v1033 = vunpack.c.h.b16 %v445
        %v1034 = vunpack.c.l.b16 %v446
        %v1035 = vunpack.c.h.b16 %v446
        %v1036 = vunpack.c.l.b16 %v447
        %v1037 = vunpack.c.h.b16 %v447
        %v1038 = vunpack.c.l.b16 %v448
        %v1039 = vunpack.c.h.b16 %v448
        %v1040 = vunpack.c.l.b16 %v449
        %v1041 = vunpack.c.h.b16 %v449
        %v1042 = vunpack.c.l.b16 %v450
        %v1043 = vunpack.c.h.b16 %v450
        %v1044 = vunpack.c.l.b16 %v451
        %v1045 = vunpack.c.h.b16 %v451
        %v1046 = vunpack.c.l.b16 %v452
        %v1047 = vunpack.c.h.b16 %v452
        %v1048 = vunpack.c.l.b16 %v453
        %v1049 = vunpack.c.h.b16 %v453
        %v1050 = vunpack.c.l.b16 %v454
        %v1051 = vunpack.c.h.b16 %v454
        %v1052 = vunpack.c.l.b16 %v455
        %v1053 = vunpack.c.h.b16 %v455
        %v1054 = vunpack.c.l.b16 %v456
        %v1055 = vunpack.c.h.b16 %v456
        %v1056 = vunpack.c.l.b16 %v457
        %v1057 = vunpack.c.h.b16 %v457
        %v1058 = vunpack.c.l.b16 %v458
        %v1059 = vunpack.c.h.b16 %v458
        %v1060 = vunpack.c.l.b16 %v459
        %v1061 = vunpack.c.h.b16 %v459
        %v1062 = vunpack.c.l.b16 %v460
        %v1063 = vunpack.c.h.b16 %v460
        %v1064 = vunpack.c.l.b16 %v461
        %v1065 = vunpack.c.h.b16 %v461
        %v1066 = vunpack.c.l.b16 %v462
        %v1067 = vunpack.c.h.b16 %v462
        %v1068 = vunpack.c.l.b16 %v463
        %v1069 = vunpack.c.h.b16 %v463
        %v1070 = vunpack.c.l.b16 %v464
        %v1071 = vunpack.c.h.b16 %v464
        %v1072 = vunpack.c.l.b16 %v465
        %v1073 = vunpack.c.h.b16 %v465
        %v1074 = vunpack.c.l.b16 %v466
        %v1075 = vunpack.c.h.b16 %v466
        %v1076 = vunpack.c.l.b16 %v467
        %v1077 = vunpack.c.h.b16 %v467
        %v1078 = vunpack.c.l.b16 %v468
        %v1079 = vunpack.c.h.b16 %v468
        %v1080 = vunpack.c.l.b16 %v469
        %v1081 = vunpack.c.h.b16 %v469
        %v1082 = vunpack.c.l.b16 %v470
        %v1083 = vunpack.c.h.b16 %v470
        %v1084 = vunpack.c.l.b16 %v471
        %v1085 = vunpack.c.h.b16 %v471
        %v1086 = vunpack.c.l.b16 %v472
        %v1087 = vunpack.c.h.b16 %v472
        %v1088 = vunpack.c.l.b16 %v473
        %v1089 = vunpack.c.h.b16 %v473
        %v1090 = vunpack.c.l.b16 %v474
        %v1091 = vunpack.c.h.b16 %v474
        %v1092 = vunpack.c.l.b16 %v475
        %v1093 = vunpack.c.h.b16 %v475
        %v1094 = vunpack.c.l.b16 %v476
        %v1095 = vunpack.c.h.b16 %v476
        %v1096 = vunpack.c.l.b16 %v477
        %v1097 = vunpack.c.h.b16 %v477
        %v1098 = vunpack.c.l.b16 %v478
        %v1099 = vunpack.c.h.b16 %v478
        %v1100 = vunpack.c.l.b16 %v479
        %v1101 = vunpack.c.h.b16 %v479
        %v1102 = vunpack.c.l.b16 %v480
        %v1103 = vunpack.c.h.b16 %v480
        %v1104 = vunpack.c.l.b16 %v481
        %v1105 = vunpack.c.h.b16 %v481
        %v1106 = vunpack.c.l.b16 %v482
        %v1107 = vunpack.c.h.b16 %v482
        %v1108 = vunpack.c.l.b16 %v483
        %v1109 = vunpack.c.h.b16 %v483
        %v1110 = vunpack.c.l.b16 %v484
        %v1111 = vunpack.c.h.b16 %v484
        %v1112 = vunpack.c.l.b16 %v485
        %v1113 = vunpack.c.h.b16 %v485
        %v1114 = vunpack.c.l.b16 %v486
        %v1115 = vunpack.c.h.b16 %v486
        %v1116 = vunpack.c.l.b16 %v487
        %v1117 = vunpack.c.h.b16 %v487
        %v1118 = vunpack.c.l.b16 %v488
        %v1119 = vunpack.c.h.b16 %v488
        %v1120 = vunpack.c.l.b16 %v489
        %v1121 = vunpack.c.h.b16 %v489
        %v1122 = vunpack.c.l.b16 %v490
        %v1123 = vunpack.c.h.b16 %v490
        %v1124 = vunpack.c.l.b16 %v491
        %v1125 = vunpack.c.h.b16 %v491
        %v1126 = vunpack.c.l.b16 %v492
        %v1127 = vunpack.c.h.b16 %v492
        %v1128 = vunpack.c.l.b16 %v493
        %v1129 = vunpack.c.h.b16 %v493
        %v1130 = vunpack.c.l.b16 %v494
        %v1131 = vunpack.c.h.b16 %v494
        %v1132 = vunpack.c.l.b16 %v495
        %v1133 = vunpack.c.h.b16 %v495
        %v1134 = vunpack.c.l.b16 %v496
        %v1135 = vunpack.c.h.b16 %v496
        %v1136 = vunpack.c.l.b16 %v497
        %v1137 = vunpack.c.h.b16 %v497
        %v1138 = vunpack.c.l.b16 %v498
        %v1139 = vunpack.c.h.b16 %v498
        %v1140 = vunpack.c.l.b16 %v499
        %v1141 = vunpack.c.h.b16 %v499
        %v1142 = vunpack.c.l.b16 %v500
        %v1143 = vunpack.c.h.b16 %v500
        %v1144 = vunpack.c.l.b16 %v501
        %v1145 = vunpack.c.h.b16 %v501
        %v1146 = vunpack.c.l.b16 %v502
        %v1147 = vunpack.c.h.b16 %v502
        %v1148 = vunpack.c.l.b16 %v503
        %v1149 = vunpack.c.h.b16 %v503
        %v1150 = vunpack.c.l.b16 %v504
        %v1151 = vunpack.c.h.b16 %v504
        %v1152 = vunpack.c.l.b16 %v505
        %v1153 = vunpack.c.h.b16 %v505
        %v1154 = vunpack.c.l.b16 %v506
        %v1155 = vunpack.c.h.b16 %v506
        %v1156 = vunpack.c.l.b16 %v507
        %v1157 = vunpack.c.h.b16 %v507
        %v1158 = vunpack.c.l.b16 %v508
        %v1159 = vunpack.c.h.b16 %v508
        %v1160 = vunpack.c.l.b16 %v509
        %v1161 = vunpack.c.h.b16 %v509
        %v1162 = vunpack.c.l.b16 %v510
        %v1163 = vunpack.c.h.b16 %v510
        %v1164 = vunpack.c.l.b16 %v511
        %v1165 = vunpack.c.h.b16 %v511
        %v1166 = vunpack.c.l.b16 %v512
        %v1167 = vunpack.c.h.b16 %v512
        %v1168 = vunpack.c.l.b16 %v513
        %v1169 = vunpack.c.h.b16 %v513
        %v1170 = vunpack.c.l.b16 %v514
        %v1171 = vunpack.c.h.b16 %v514
        %v1172 = vunpack.c.l.b16 %v515
        %v1173 = vunpack.c.h.b16 %v515
        %v1174 = vunpack.c.l.b16 %v516
        %v1175 = vunpack.c.h.b16 %v516
        %v1176 = vunpack.c.l.b16 %v517
        %v1177 = vunpack.c.h.b16 %v517
        %v1178 = vunpack.c.l.b16 %v518
        %v1179 = vunpack.c.h.b16 %v518
        %v1180 = vunpack.c.l.b16 %v519
        %v1181 = vunpack.c.h.b16 %v519
        %v1182 = vunpack.c.l.b16 %v520
        %v1183 = vunpack.c.h.b16 %v520
        %v1184 = vunpack.c.l.b16 %v521
        %v1185 = vunpack.c.h.b16 %v521
        %v1186 = vunpack.c.l.b16 %v522
        %v1187 = vunpack.c.h.b16 %v522
        %v1188 = vunpack.c.l.b16 %v523
        %v1189 = vunpack.c.h.b16 %v523
        %v1190 = vunpack.c.l.b16 %v524
        %v1191 = vunpack.c.h.b16 %v524
        %v1192 = vunpack.c.l.b16 %v525
        %v1193 = vunpack.c.h.b16 %v525
        %v1194 = vunpack.c.l.b16 %v526
        %v1195 = vunpack.c.h.b16 %v526
        %v1196 = vunpack.c.l.b16 %v527
        %v1197 = vunpack.c.h.b16 %v527
        %v1198 = vunpack.c.l.b16 %v528
        %v1199 = vunpack.c.h.b16 %v528
        %v1200 = vunpack.c.l.b16 %v529
        %v1201 = vunpack.c.h.b16 %v529
        %v1202 = vunpack.c.l.b16 %v530
        %v1203 = vunpack.c.h.b16 %v530
        %v1204 = vunpack.c.l.b16 %v531
        %v1205 = vunpack.c.h.b16 %v531
        %v1206 = vunpack.c.l.b16 %v532
        %v1207 = vunpack.c.h.b16 %v532
        %v1208 = vunpack.c.l.b16 %v533
        %v1209 = vunpack.c.h.b16 %v533
        %v1210 = vunpack.c.l.b16 %v534
        %v1211 = vunpack.c.h.b16 %v534
        %v1212 = vunpack.c.l.b16 %v535
        %v1213 = vunpack.c.h.b16 %v535
        %v1214 = vunpack.c.l.b16 %v536
        %v1215 = vunpack.c.h.b16 %v536
        %v1216 = vunpack.c.l.b16 %v537
        %v1217 = vunpack.c.h.b16 %v537
        %v1218 = vunpack.c.l.b16 %v538
        %v1219 = vunpack.c.h.b16 %v538
        %v1220 = vunpack.c.l.b16 %v539
        %v1221 = vunpack.c.h.b16 %v539
        %v1222 = vunpack.c.l.b16 %v540
        %v1223 = vunpack.c.h.b16 %v540
        %v1224 = vunpack.c.l.b16 %v541
        %v1225 = vunpack.c.h.b16 %v541
        %v1226 = vunpack.c.l.b16 %v542
        %v1227 = vunpack.c.h.b16 %v542
        %v1228 = vunpack.c.l.b16 %v543
        %v1229 = vunpack.c.h.b16 %v543
        %v1230 = vunpack.c.l.b16 %v544
        %v1231 = vunpack.c.h.b16 %v544
        %v1232 = vunpack.c.l.b16 %v545
        %v1233 = vunpack.c.h.b16 %v545
        %v1234 = vunpack.c.l.b16 %v546
        %v1235 = vunpack.c.h.b16 %v546
        %v1236 = vunpack.c.l.b16 %v547
        %v1237 = vunpack.c.h.b16 %v547
        %v1238 = vunpack.c.l.b16 %v548
        %v1239 = vunpack.c.h.b16 %v548
        %v1240 = vunpack.c.l.b16 %v549
        %v1241 = vunpack.c.h.b16 %v549
        %v1242 = vunpack.c.l.b16 %v550
        %v1243 = vunpack.c.h.b16 %v550
        %v1244 = vunpack.c.l.b16 %v551
        %v1245 = vunpack.c.h.b16 %v551
        %v1246 = vunpack.c.l.b16 %v552
        %v1247 = vunpack.c.h.b16 %v552
        %v1248 = vunpack.c.l.b16 %v553
        %v1249 = vunpack.c.h.b16 %v553
        %v1250 = vunpack.c.l.b16 %v554
        %v1251 = vunpack.c.h.b16 %v554
        %v1252 = vunpack.c.l.b16 %v555
        %v1253 = vunpack.c.h.b16 %v555
        %v1254 = vunpack.c.l.b16 %v556
        %v1255 = vunpack.c.h.b16 %v556
        %v1256 = vunpack.c.l.b16 %v557
        %v1257 = vunpack.c.h.b16 %v557
        %v1258 = vunpack.c.l.b16 %v558
        %v1259 = vunpack.c.h.b16 %v558
        %v1260 = vunpack.c.l.b16 %v559
        %v1261 = vunpack.c.h.b16 %v559
        %v1262 = vunpack.c.l.b16 %v560
        %v1263 = vunpack.c.h.b16 %v560
        %v1264 = vunpack.c.l.b16 %v561
        %v1265 = vunpack.c.h.b16 %v561
        %v1266 = vunpack.c.l.b16 %v562
        %v1267 = vunpack.c.h.b16 %v562
        %v1268 = vunpack.c.l.b16 %v563
        %v1269 = vunpack.c.h.b16 %v563
        %v1270 = vunpack.c.l.b16 %v564
        %v1271 = vunpack.c.h.b16 %v564
        %v1272 = vunpack.c.l.b16 %v565
        %v1273 = vunpack.c.h.b16 %v565
        %v1274 = vunpack.c.l.b16 %v566
        %v1275 = vunpack.c.h.b16 %v566
        %v1276 = vunpack.c.l.b16 %v567
        %v1277 = vunpack.c.h.b16 %v567
        %v1278 = vunpack.c.l.b16 %v568
        %v1279 = vunpack.c.h.b16 %v568
        %v1280 = vunpack.c.l.b16 %v569
        %v1281 = vunpack.c.h.b16 %v569
        %v1282 = vunpack.c.l.b16 %v570
        %v1283 = vunpack.c.h.b16 %v570
        %v1284 = vunpack.c.l.b16 %v571
        %v1285 = vunpack.c.h.b16 %v571
        %v1286 = vunpack.c.l.b16 %v572
        %v1287 = vunpack.c.h.b16 %v572
        %v1288 = vunpack.c.l.b16 %v573
        %v1289 = vunpack.c.h.b16 %v573
        %v1290 = vunpack.c.l.b16 %v574
        %v1291 = vunpack.c.h.b16 %v574
        %v1292 = vunpack.c.l.b16 %v575
        %v1293 = vunpack.c.h.b16 %v575
        %v1294 = vunpack.c.l.b16 %v576
        %v1295 = vunpack.c.h.b16 %v576
        %v1296 = vunpack.c.l.b16 %v577
        %v1297 = vunpack.c.h.b16 %v577
        %v1298 = vpack.c.b16 %v914, %v906
        %v1299 = vpack.c.b16 %v915, %v907
        %v1300 = vpack.c.b16 %v916, %v908
        %v1301 = vpack.c.b16 %v917, %v909
        %v1302 = vpack.c.b16 %v918, %v910
        %v1303 = vpack.c.b16 %v919, %v911
        %v1304 = vpack.c.b16 %v920, %v912
        %v1305 = vpack.c.b16 %v921, %v913
        %v1306 = vpack.c.b16 %v930, %v922
        %v1307 = vpack.c.b16 %v931, %v923
        %v1308 = vpack.c.b16 %v932, %v924
        %v1309 = vpack.c.b16 %v933, %v925
        %v1310 = vpack.c.b16 %v934, %v926
        %v1311 = vpack.c.b16 %v935, %v927
        %v1312 = vpack.c.b16 %v936, %v928
        %v1313 = vpack.c.b16 %v937, %v929
        %v1314 = vpack.c.b16 %v946, %v938
        %v1315 = vpack.c.b16 %v947, %v939
        %v1316 = vpack.c.b16 %v948, %v940
        %v1317 = vpack.c.b16 %v949, %v941
        %v1318 = vpack.c.b16 %v950, %v942
        %v1319 = vpack.c.b16 %v951, %v943
        %v1320 = vpack.c.b16 %v952, %v944
        %v1321 = vpack.c.b16 %v953, %v945
        %v1322 = vpack.c.b16 %v962, %v954
        %v1323 = vpack.c.b16 %v963, %v955
        %v1324 = vpack.c.b16 %v964, %v956
        %v1325 = vpack.c.b16 %v965, %v957
        %v1326 = vpack.c.b16 %v966, %v958
        %v1327 = vpack.c.b16 %v967, %v959
        %v1328 = vpack.c.b16 %v968, %v960
        %v1329 = vpack.c.b16 %v969, %v961
        %v1330 = vpack.c.b16 %v978, %v970
        %v1331 = vpack.c.b16 %v979, %v971
        %v1332 = vpack.c.b16 %v980, %v972
        %v1333 = vpack.c.b16 %v981, %v973
        %v1334 = vpack.c.b16 %v982, %v974
        %v1335 = vpack.c.b16 %v983, %v975
        %v1336 = vpack.c.b16 %v984, %v976
        %v1337 = vpack.c.b16 %v985, %v977
        %v1338 = vpack.c.b16 %v994, %v986
        %v1339 = vpack.c.b16 %v995, %v987
        %v1340 = vpack.c.b16 %v996, %v988
        %v1341 = vpack.c.b16 %v997, %v989
        %v1342 = vpack.c.b16 %v998, %v990
        %v1343 = vpack.c.b16 %v999, %v991
        %v1344 = vpack.c.b16 %v1000, %v992
        %v1345 = vpack.c.b16 %v1001, %v993
        %v1346 = vpack.c.b16 %v1010, %v1002
        %v1347 = vpack.c.b16 %v1011, %v1003
        %v1348 = vpack.c.b16 %v1012, %v1004
        %v1349 = vpack.c.b16 %v1013, %v1005
        %v1350 = vpack.c.b16 %v1014, %v1006
        %v1351 = vpack.c.b16 %v1015, %v1007
        %v1352 = vpack.c.b16 %v1016, %v1008
        %v1353 = vpack.c.b16 %v1017, %v1009
        %v1354 = vpack.c.b16 %v1026, %v1018
        %v1355 = vpack.c.b16 %v1027, %v1019
        %v1356 = vpack.c.b16 %v1028, %v1020
        %v1357 = vpack.c.b16 %v1029, %v1021
        %v1358 = vpack.c.b16 %v1030, %v1022
        %v1359 = vpack.c.b16 %v1031, %v1023
        %v1360 = vpack.c.b16 %v1032, %v1024
        %v1361 = vpack.c.b16 %v1033, %v1025
        %v1362 = vpack.c.b16 %v1042, %v1034
        %v1363 = vpack.c.b16 %v1043, %v1035
        %v1364 = vpack.c.b16 %v1044, %v1036
        %v1365 = vpack.c.b16 %v1045, %v1037
        %v1366 = vpack.c.b16 %v1046, %v1038
        %v1367 = vpack.c.b16 %v1047, %v1039
        %v1368 = vpack.c.b16 %v1048, %v1040
        %v1369 = vpack.c.b16 %v1049, %v1041
        %v1370 = vpack.c.b16 %v1058, %v1050
        %v1371 = vpack.c.b16 %v1059, %v1051
        %v1372 = vpack.c.b16 %v1060, %v1052
        %v1373 = vpack.c.b16 %v1061, %v1053
        %v1374 = vpack.c.b16 %v1062, %v1054
        %v1375 = vpack.c.b16 %v1063, %v1055
        %v1376 = vpack.c.b16 %v1064, %v1056
        %v1377 = vpack.c.b16 %v1065, %v1057
        %v1378 = vpack.c.b16 %v1074, %v1066
        %v1379 = vpack.c.b16 %v1075, %v1067
        %v1380 = vpack.c.b16 %v1076, %v1068
        %v1381 = vpack.c.b16 %v1077, %v1069
        %v1382 = vpack.c.b16 %v1078, %v1070
        %v1383 = vpack.c.b16 %v1079, %v1071
        %v1384 = vpack.c.b16 %v1080, %v1072
        %v1385 = vpack.c.b16 %v1081, %v1073
        %v1386 = vpack.c.b16 %v1090, %v1082
        %v1387 = vpack.c.b16 %v1091, %v1083
        %v1388 = vpack.c.b16 %v1092, %v1084
        %v1389 = vpack.c.b16 %v1093, %v1085
        %v1390 = vpack.c.b16 %v1094, %v1086
        %v1391 = vpack.c.b16 %v1095, %v1087
        %v1392 = vpack.c.b16 %v1096, %v1088
        %v1393 = vpack.c.b16 %v1097, %v1089
        %v1394 = vpack.c.b16 %v1106, %v1098
        %v1395 = vpack.c.b16 %v1107, %v1099
        %v1396 = vpack.c.b16 %v1108, %v1100
        %v1397 = vpack.c.b16 %v1109, %v1101
        %v1398 = vpack.c.b16 %v1110, %v1102
        %v1399 = vpack.c.b16 %v1111, %v1103
        %v1400 = vpack.c.b16 %v1112, %v1104
        %v1401 = vpack.c.b16 %v1113, %v1105
        %v1402 = vpack.c.b16 %v1122, %v1114
        %v1403 = vpack.c.b16 %v1123, %v1115
        %v1404 = vpack.c.b16 %v1124, %v1116
        %v1405 = vpack.c.b16 %v1125, %v1117
        %v1406 = vpack.c.b16 %v1126, %v1118
        %v1407 = vpack.c.b16 %v1127, %v1119
        %v1408 = vpack.c.b16 %v1128, %v1120
        %v1409 = vpack.c.b16 %v1129, %v1121
        %v1410 = vpack.c.b16 %v1138, %v1130
        %v1411 = vpack.c.b16 %v1139, %v1131
        %v1412 = vpack.c.b16 %v1140, %v1132
        %v1413 = vpack.c.b16 %v1141, %v1133
        %v1414 = vpack.c.b16 %v1142, %v1134
        %v1415 = vpack.c.b16 %v1143, %v1135
        %v1416 = vpack.c.b16 %v1144, %v1136
        %v1417 = vpack.c.b16 %v1145, %v1137
        %v1418 = vpack.c.b16 %v1154, %v1146
        %v1419 = vpack.c.b16 %v1155, %v1147
        %v1420 = vpack.c.b16 %v1156, %v1148
        %v1421 = vpack.c.b16 %v1157, %v1149
        %v1422 = vpack.c.b16 %v1158, %v1150
        %v1423 = vpack.c.b16 %v1159, %v1151
        %v1424 = vpack.c.b16 %v1160, %v1152
        %v1425 = vpack.c.b16 %v1161, %v1153
        %v1426 = vpack.c.b16 %v1170, %v1162
        %v1427 = vpack.c.b16 %v1171, %v1163
        %v1428 = vpack.c.b16 %v1172, %v1164
        %v1429 = vpack.c.b16 %v1173, %v1165
        %v1430 = vpack.c.b16 %v1174, %v1166
        %v1431 = vpack.c.b16 %v1175, %v1167
        %v1432 = vpack.c.b16 %v1176, %v1168
        %v1433 = vpack.c.b16 %v1177, %v1169
        %v1434 = vpack.c.b16 %v1186, %v1178
        %v1435 = vpack.c.b16 %v1187, %v1179
        %v1436 = vpack.c.b16 %v1188, %v1180
        %v1437 = vpack.c.b16 %v1189, %v1181
        %v1438 = vpack.c.b16 %v1190, %v1182
        %v1439 = vpack.c.b16 %v1191, %v1183
        %v1440 = vpack.c.b16 %v1192, %v1184
        %v1441 = vpack.c.b16 %v1193, %v1185
        %v1442 = vpack.c.b16 %v1202, %v1194
        %v1443 = vpack.c.b16 %v1203, %v1195
        %v1444 = vpack.c.b16 %v1204, %v1196
        %v1445 = vpack.c.b16 %v1205, %v1197
        %v1446 = vpack.c.b16 %v1206, %v1198
        %v1447 = vpack.c.b16 %v1207, %v1199
        %v1448 = vpack.c.b16 %v1208, %v1200
        %v1449 = vpack.c.b16 %v1209, %v1201
        %v1450 = vpack.c.b16 %v1218, %v1210
        %v1451 = vpack.c.b16 %v1219, %v1211
        %v1452 = vpack.c.b16 %v1220, %v1212
        %v1453 = vpack.c.b16 %v1221, %v1213
        %v1454 = vpack.c.b16 %v1222, %v1214
        %v1455 = vpack.c.b16 %v1223, %v1215
        %v1456 = vpack.c.b16 %v1224, %v1216
        %v1457 = vpack.c.b16 %v1225, %v1217
        %v1458 = vpack.c.b16 %v1234, %v1226
        %v1459 = vpack.c.b16 %v1235, %v1227
        %v1460 = vpack.c.b16 %v1236, %v1228
        %v1461 = vpack.c.b16 %v1237, %v1229
        %v1462 = vpack.c.b16 %v1238, %v1230
        %v1463 = vpack.c.b16 %v1239, %v1231
        %v1464 = vpack.c.b16 %v1240, %v1232
        %v1465 = vpack.c.b16 %v1241, %v1233
        %v1466 = vpack.c.b16 %v1250, %v1242
        %v1467 = vpack.c.b16 %v1251, %v1243
        %v1468 = vpack.c.b16 %v1252, %v1244
        %v1469 = vpack.c.b16 %v1253, %v1245
        %v1470 = vpack.c.b16 %v1254, %v1246
        %v1471 = vpack.c.b16 %v1255, %v1247
        %v1472 = vpack.c.b16 %v1256, %v1248
        %v1473 = vpack.c.b16 %v1257, %v1249
        %v1474 = vpack.c.b16 %v1266, %v1258
        %v1475 = vpack.c.b16 %v1267, %v1259
        %v1476 = vpack.c.b16 %v1268, %v1260
        %v1477 = vpack.c.b16 %v1269, %v1261
        %v1478 = vpack.c.b16 %v1270, %v1262
        %v1479 = vpack.c.b16 %v1271, %v1263
        %v1480 = vpack.c.b16 %v1272, %v1264
        %v1481 = vpack.c.b16 %v1273, %v1265
        %v1482 = vpack.c.b16 %v1282, %v1274
        %v1483 = vpack.c.b16 %v1283, %v1275
        %v1484 = vpack.c.b16 %v1284, %v1276
        %v1485 = vpack.c.b16 %v1285, %v1277
        %v1486 = vpack.c.b16 %v1286, %v1278
        %v1487 = vpack.c.b16 %v1287, %v1279
        %v1488 = vpack.c.b16 %v1288, %v1280
        %v1489 = vpack.c.b16 %v1289, %v1281
        %v1490 = vpack.c.b16 %v1290, %v1290
        %v1491 = vpack.c.b16 %v1291, %v1291
        %v1492 = vpack.c.b16 %v1292, %v1292
        %v1493 = vpack.c.b16 %v1293, %v1293
        %v1494 = vpack.c.b16 %v1294, %v1294
        %v1495 = vpack.c.b16 %v1295, %v1295
        %v1496 = vpack.c.b16 %v1296, %v1296
        %v1497 = vpack.c.b16 %v1297, %v1297
        %v1826 = vunpack.c.l.b16 %v578
        %v1827 = vunpack.c.l.b16 %v579
        %v1828 = vunpack.c.l.b16 %v580
        %v1829 = vunpack.c.l.b16 %v581
        %v1830 = vunpack.c.l.b16 %v582
        %v1831 = vunpack.c.l.b16 %v583
        %v1832 = vunpack.c.l.b16 %v584
        %v1833 = vunpack.c.l.b16 %v585
        %v1834 = vunpack.c.l.b16 %v586
        %v1835 = vunpack.c.l.b16 %v587
        %v1836 = vunpack.c.l.b16 %v588
        %v1837 = vunpack.c.l.b16 %v589
        %v1838 = vunpack.c.l.b16 %v590
        %v1839 = vunpack.c.l.b16 %v591
        %v1840 = vunpack.c.l.b16 %v592
        %v1841 = vunpack.c.l.b16 %v593
        %v1842 = vunpack.c.l.b16 %v594
        %v1843 = vunpack.c.l.b16 %v595
        %v1844 = vunpack.c.l.b16 %v596
        %v1845 = vunpack.c.l.b16 %v597
        %v1846 = vunpack.c.l.b16 %v598
        %v1847 = vunpack.c.l.b16 %v599
        %v1848 = vunpack.c.l.b16 %v600
        %v1849 = vunpack.c.l.b16 %v601
        %v1850 = vunpack.c.l.b16 %v602
        %v1851 = vunpack.c.l.b16 %v603
        %v1852 = vunpack.c.l.b16 %v604
        %v1853 = vunpack.c.l.b16 %v605
        %v1854 = vunpack.c.l.b16 %v606
        %v1855 = vunpack.c.l.b16 %v607
        %v1856 = vunpack.c.l.b16 %v608
        %v1857 = vunpack.c.l.b16 %v609
        %v1858 = vunpack.c.l.b16 %v610
        %v1859 = vunpack.c.l.b16 %v611
        %v1860 = vunpack.c.l.b16 %v612
        %v1861 = vunpack.c.l.b16 %v613
        %v1862 = vunpack.c.l.b16 %v614
        %v1863 = vunpack.c.l.b16 %v615
        %v1864 = vunpack.c.l.b16 %v616
        %v1865 = vunpack.c.l.b16 %v617
        %v1866 = vunpack.c.l.b16 %v618
        %v1867 = vunpack.c.l.b16 %v619
        %v1868 = vunpack.c.l.b16 %v620
        %v1869 = vunpack.c.l.b16 %v621
        %v1870 = vunpack.c.l.b16 %v622
        %v1871 = vunpack.c.l.b16 %v623
        %v1872 = vunpack.c.l.b16 %v624
        %v1873 = vunpack.c.l.b16 %v625
        %v1874 = vunpack.c.l.b16 %v626
        %v1875 = vunpack.c.l.b16 %v627
        %v1876 = vunpack.c.l.b16 %v628
        %v1877 = vunpack.c.l.b16 %v629
        %v1878 = vunpack.c.l.b16 %v630
        %v1879 = vunpack.c.l.b16 %v631
        %v1880 = vunpack.c.l.b16 %v632
        %v1881 = vunpack.c.l.b16 %v633
        %v1882 = vunpack.c.l.b16 %v634
        %v1883 = vunpack.c.l.b16 %v635
        %v1884 = vunpack.c.l.b16 %v636
        %v1885 = vunpack.c.l.b16 %v637
        %v1886 = vunpack.c.l.b16 %v638
        %v1887 = vunpack.c.l.b16 %v639
        %v1888 = vunpack.c.l.b16 %v640
        %v1889 = vunpack.c.l.b16 %v641
        %v1890 = vunpack.c.l.b16 %v642
        %v1891 = vunpack.c.l.b16 %v643
        %v1892 = vunpack.c.l.b16 %v644
        %v1893 = vunpack.c.l.b16 %v645
        %v1894 = vunpack.c.l.b16 %v646
        %v1895 = vunpack.c.l.b16 %v647
        %v1896 = vunpack.c.l.b16 %v648
        %v1897 = vunpack.c.l.b16 %v649
        %v1898 = vunpack.c.l.b16 %v650
        %v1899 = vunpack.c.l.b16 %v651
        %v1900 = vunpack.c.l.b16 %v652
        %v1901 = vunpack.c.l.b16 %v653
        %v1902 = vunpack.c.l.b16 %v654
        %v1903 = vunpack.c.l.b16 %v655
        %v1904 = vunpack.c.l.b16 %v656
        %v1905 = vunpack.c.l.b16 %v657
        %v1906 = vunpack.c.l.b16 %v658
        %v1907 = vunpack.c.l.b16 %v659
        %v1908 = vunpack.c.l.b16 %v660
        %v1909 = vunpack.c.l.b16 %v661
        %v1910 = vunpack.c.l.b16 %v662
        %v1911 = vunpack.c.l.b16 %v663
        %v1912 = vunpack.c.l.b16 %v664
        %v1913 = vunpack.c.l.b16 %v665
        %v1914 = vunpack.c.l.b16 %v666
        %v1915 = vunpack.c.l.b16 %v667
        %v1916 = vunpack.c.l.b16 %v668
        %v1917 = vunpack.c.l.b16 %v669
        %v1918 = vunpack.c.l.b16 %v670
        %v1919 = vunpack.c.l.b16 %v671
        %v1920 = vunpack.c.l.b16 %v672
        %v1921 = vunpack.c.l.b16 %v673
        %v1922 = vunpack.c.l.b16 %v674
        %v1923 = vunpack.c.l.b16 %v675
        %v1924 = vunpack.c.l.b16 %v676
        %v1925 = vunpack.c.l.b16 %v677
        %v1926 = vunpack.c.l.b16 %v678
        %v1927 = vunpack.c.l.b16 %v679
        %v1928 = vunpack.c.l.b16 %v680
        %v1929 = vunpack.c.l.b16 %v681
        %v1930 = vunpack.c.l.b16 %v682
        %v1931 = vunpack.c.l.b16 %v683
        %v1932 = vunpack.c.l.b16 %v684
        %v1933 = vunpack.c.l.b16 %v685
        %v1934 = vunpack.c.l.b16 %v686
        %v1935 = vunpack.c.l.b16 %v687
        %v1936 = vunpack.c.l.b16 %v688
        %v1937 = vunpack.c.l.b16 %v689
        %v1938 = vunpack.c.l.b16 %v690
        %v1939 = vunpack.c.l.b16 %v691
        %v1940 = vunpack.c.l.b16 %v692
        %v1941 = vunpack.c.l.b16 %v693
        %v1942 = vunpack.c.l.b16 %v694
        %v1943 = vunpack.c.l.b16 %v695
        %v1944 = vunpack.c.l.b16 %v696
        %v1945 = vunpack.c.l.b16 %v697
        %v1946 = vunpack.c.l.b16 %v698
        %v1947 = vunpack.c.l.b16 %v699
        %v1948 = vunpack.c.l.b16 %v700
        %v1949 = vunpack.c.l.b16 %v701
        %v1950 = vunpack.c.l.b16 %v702
        %v1951 = vunpack.c.l.b16 %v703
        %v1952 = vunpack.c.l.b16 %v704
        %v1953 = vunpack.c.l.b16 %v705
        %v1954 = vpack.c.b16 %v1827, %v1826
        %v1955 = vpack.c.b16 %v1829, %v1828
        %v1956 = vpack.c.b16 %v1831, %v1830
        %v1957 = vpack.c.b16 %v1833, %v1832
        %v1958 = vpack.c.b16 %v1835, %v1834
        %v1959 = vpack.c.b16 %v1837, %v1836
        %v1960 = vpack.c.b16 %v1839, %v1838
        %v1961 = vpack.c.b16 %v1841, %v1840
        %v1962 = vpack.c.b16 %v1843, %v1842
        %v1963 = vpack.c.b16 %v1845, %v1844
        %v1964 = vpack.c.b16 %v1847, %v1846
        %v1965 = vpack.c.b16 %v1849, %v1848
        %v1966 = vpack.c.b16 %v1851, %v1850
        %v1967 = vpack.c.b16 %v1853, %v1852
        %v1968 = vpack.c.b16 %v1855, %v1854
        %v1969 = vpack.c.b16 %v1857, %v1856
        %v1970 = vpack.c.b16 %v1859, %v1858
        %v1971 = vpack.c.b16 %v1861, %v1860
        %v1972 = vpack.c.b16 %v1863, %v1862
        %v1973 = vpack.c.b16 %v1865, %v1864
        %v1974 = vpack.c.b16 %v1867, %v1866
        %v1975 = vpack.c.b16 %v1869, %v1868
        %v1976 = vpack.c.b16 %v1871, %v1870
        %v1977 = vpack.c.b16 %v1873, %v1872
        %v1978 = vpack.c.b16 %v1875, %v1874
        %v1979 = vpack.c.b16 %v1877, %v1876
        %v1980 = vpack.c.b16 %v1879, %v1878
        %v1981 = vpack.c.b16 %v1881, %v1880
        %v1982 = vpack.c.b16 %v1883, %v1882
        %v1983 = vpack.c.b16 %v1885, %v1884
        %v1984 = vpack.c.b16 %v1887, %v1886
        %v1985 = vpack.c.b16 %v1889, %v1888
        %v1986 = vpack.c.b16 %v1891, %v1890
        %v1987 = vpack.c.b16 %v1893, %v1892
        %v1988 = vpack.c.b16 %v1895, %v1894
        %v1989 = vpack.c.b16 %v1897, %v1896
        %v1990 = vpack.c.b16 %v1899, %v1898
        %v1991 = vpack.c.b16 %v1901, %v1900
        %v1992 = vpack.c.b16 %v1903, %v1902
        %v1993 = vpack.c.b16 %v1905, %v1904
        %v1994 = vpack.c.b16 %v1907, %v1906
        %v1995 = vpack.c.b16 %v1909, %v1908
        %v1996 = vpack.c.b16 %v1911, %v1910
        %v1997 = vpack.c.b16 %v1913, %v1912
        %v1998 = vpack.c.b16 %v1915, %v1914
        %v1999 = vpack.c.b16 %v1917, %v1916
        %v2000 = vpack.c.b16 %v1919, %v1918
        %v2001 = vpack.c.b16 %v1921, %v1920
        %v2002 = vpack.c.b16 %v1923, %v1922
        %v2003 = vpack.c.b16 %v1925, %v1924
        %v2004 = vpack.c.b16 %v1927, %v1926
        %v2005 = vpack.c.b16 %v1929, %v1928
        %v2006 = vpack.c.b16 %v1931, %v1930
        %v2007 = vpack.c.b16 %v1933, %v1932
        %v2008 = vpack.c.b16 %v1935, %v1934
        %v2009 = vpack.c.b16 %v1937, %v1936
        %v2010 = vpack.c.b16 %v1939, %v1938
        %v2011 = vpack.c.b16 %v1941, %v1940
        %v2012 = vpack.c.b16 %v1943, %v1942
        %v2013 = vpack.c.b16 %v1945, %v1944
        %v2014 = vpack.c.b16 %v1947, %v1946
        %v2015 = vpack.c.b16 %v1949, %v1948
        %v2016 = vpack.c.b16 %v1951, %v1950
        %v2017 = vpack.c.b16 %v1953, %v1952
        %2082 = vmatpush.bf16.msra.mxu0 %v1961
        %2083 = vmatpush.bf16.msra.mxu0 %v1960
        %2084 = vmatpush.bf16.msra.mxu0 %v1959
        %2085 = vmatpush.bf16.msra.mxu0 %v1958
        %2086 = vmatpush.bf16.msra.mxu0 %v1957
        %2087 = vmatpush.bf16.msra.mxu0 %v1956
        %2088 = vmatpush.bf16.msra.mxu0 %v1955
        %2089 = vmatpush.bf16.msra.mxu0 %v1954
        %2090 = vmatmul.bf16.gmra.mxu0 %v1298
        %v2091 = vpop.f32.mrf.mxu0
        %v2092 = vadd.f32 %v708, %v2091
        %v2093 = vpop.f32.mrf.mxu0
        %v2094 = vadd.f32 %v708, %v2093
        %2095 = vmatmul.bf16.gmra.mxu0 %v1306
        %v2096 = vpop.f32.mrf.mxu0
        %v2097 = vadd.f32 %v708, %v2096
        %v2098 = vpop.f32.mrf.mxu0
        %v2099 = vadd.f32 %v708, %v2098
        %2100 = vmatmul.bf16.gmra.mxu0 %v1314
        %v2101 = vpop.f32.mrf.mxu0
        %v2102 = vadd.f32 %v708, %v2101
        %v2103 = vpop.f32.mrf.mxu0
        %v2104 = vadd.f32 %v708, %v2103
        %2105 = vmatmul.bf16.gmra.mxu0 %v1322
        %v2106 = vpop.f32.mrf.mxu0
        %v2107 = vadd.f32 %v708, %v2106
        %v2108 = vpop.f32.mrf.mxu0
        %v2109 = vadd.f32 %v708, %v2108
        %2110 = vmatmul.bf16.gmra.mxu0 %v1330
        %v2111 = vpop.f32.mrf.mxu0
        %v2112 = vadd.f32 %v708, %v2111
        %v2113 = vpop.f32.mrf.mxu0
        %v2114 = vadd.f32 %v708, %v2113
        %2115 = vmatmul.bf16.gmra.mxu0 %v1338
        %v2116 = vpop.f32.mrf.mxu0
        %v2117 = vadd.f32 %v708, %v2116
        %v2118 = vpop.f32.mrf.mxu0
        %v2119 = vadd.f32 %v708, %v2118
        %2120 = vmatmul.bf16.gmra.mxu0 %v1346
        %v2121 = vpop.f32.mrf.mxu0
        %v2122 = vadd.f32 %v708, %v2121
        %v2123 = vpop.f32.mrf.mxu0
        %v2124 = vadd.f32 %v708, %v2123
        %2125 = vmatmul.bf16.gmra.mxu0 %v1354
        %v2126 = vpop.f32.mrf.mxu0
        %v2127 = vadd.f32 %v708, %v2126
        %v2128 = vpop.f32.mrf.mxu0
        %v2129 = vadd.f32 %v708, %v2128
        %2130 = vmatmul.bf16.gmra.mxu0 %v1362
        %v2131 = vpop.f32.mrf.mxu0
        %v2132 = vadd.f32 %v708, %v2131
        %v2133 = vpop.f32.mrf.mxu0
        %v2134 = vadd.f32 %v708, %v2133
        %2135 = vmatmul.bf16.gmra.mxu0 %v1370
        %v2136 = vpop.f32.mrf.mxu0
        %v2137 = vadd.f32 %v708, %v2136
        %v2138 = vpop.f32.mrf.mxu0
        %v2139 = vadd.f32 %v708, %v2138
        %2140 = vmatmul.bf16.gmra.mxu0 %v1378
        %v2141 = vpop.f32.mrf.mxu0
        %v2142 = vadd.f32 %v708, %v2141
        %v2143 = vpop.f32.mrf.mxu0
        %v2144 = vadd.f32 %v708, %v2143
        %2145 = vmatmul.bf16.gmra.mxu0 %v1386
        %v2146 = vpop.f32.mrf.mxu0
        %v2147 = vadd.f32 %v708, %v2146
        %v2148 = vpop.f32.mrf.mxu0
        %v2149 = vadd.f32 %v708, %v2148
        %2150 = vmatmul.bf16.gmra.mxu0 %v1394
        %v2151 = vpop.f32.mrf.mxu0
        %v2152 = vadd.f32 %v708, %v2151
        %v2153 = vpop.f32.mrf.mxu0
        %v2154 = vadd.f32 %v708, %v2153
        %2155 = vmatmul.bf16.gmra.mxu0 %v1402
        %v2156 = vpop.f32.mrf.mxu0
        %v2157 = vadd.f32 %v708, %v2156
        %v2158 = vpop.f32.mrf.mxu0
        %v2159 = vadd.f32 %v708, %v2158
        %2160 = vmatmul.bf16.gmra.mxu0 %v1410
        %v2161 = vpop.f32.mrf.mxu0
        %v2162 = vadd.f32 %v708, %v2161
        %v2163 = vpop.f32.mrf.mxu0
        %v2164 = vadd.f32 %v708, %v2163
        %2165 = vmatmul.bf16.gmra.mxu0 %v1418
        %v2166 = vpop.f32.mrf.mxu0
        %v2167 = vadd.f32 %v708, %v2166
        %v2168 = vpop.f32.mrf.mxu0
        %v2169 = vadd.f32 %v708, %v2168
        %2170 = vmatmul.bf16.gmra.mxu0 %v1426
        %v2171 = vpop.f32.mrf.mxu0
        %v2172 = vadd.f32 %v708, %v2171
        %v2173 = vpop.f32.mrf.mxu0
        %v2174 = vadd.f32 %v708, %v2173
        %2175 = vmatmul.bf16.gmra.mxu0 %v1434
        %v2176 = vpop.f32.mrf.mxu0
        %v2177 = vadd.f32 %v708, %v2176
        %v2178 = vpop.f32.mrf.mxu0
        %v2179 = vadd.f32 %v708, %v2178
        %2180 = vmatmul.bf16.gmra.mxu0 %v1442
        %v2181 = vpop.f32.mrf.mxu0
        %v2182 = vadd.f32 %v708, %v2181
        %v2183 = vpop.f32.mrf.mxu0
        %v2184 = vadd.f32 %v708, %v2183
        %2185 = vmatmul.bf16.gmra.mxu0 %v1450
        %v2186 = vpop.f32.mrf.mxu0
        %v2187 = vadd.f32 %v708, %v2186
        %v2188 = vpop.f32.mrf.mxu0
        %v2189 = vadd.f32 %v708, %v2188
        %2190 = vmatmul.bf16.gmra.mxu0 %v1458
        %v2191 = vpop.f32.mrf.mxu0
        %v2192 = vadd.f32 %v708, %v2191
        %v2193 = vpop.f32.mrf.mxu0
        %v2194 = vadd.f32 %v708, %v2193
        %2195 = vmatmul.bf16.gmra.mxu0 %v1466
        %v2196 = vpop.f32.mrf.mxu0
        %v2197 = vadd.f32 %v708, %v2196
        %v2198 = vpop.f32.mrf.mxu0
        %v2199 = vadd.f32 %v708, %v2198
        %2200 = vmatmul.bf16.gmra.mxu0 %v1474
        %v2201 = vpop.f32.mrf.mxu0
        %v2202 = vadd.f32 %v708, %v2201
        %v2203 = vpop.f32.mrf.mxu0
        %v2204 = vadd.f32 %v708, %v2203
        %2205 = vmatmul.bf16.gmra.mxu0 %v1482
        %v2206 = vpop.f32.mrf.mxu0
        %v2207 = vadd.f32 %v708, %v2206
        %v2208 = vpop.f32.mrf.mxu0
        %v2209 = vadd.f32 %v708, %v2208
        %2210 = vmatmul.bf16.gmra.mxu0 %v1490
        %v2211 = vpop.f32.mrf.mxu0
        %v2212 = vadd.f32 %v708, %v2211
        %v2213 = vpop.f32.mrf.mxu0
        %2214 = vdwg.mxu0
        %2215 = vmatpush.bf16.msra.mxu0 %v1969
        %2216 = vmatpush.bf16.msra.mxu0 %v1968
        %2217 = vmatpush.bf16.msra.mxu0 %v1967
        %2218 = vmatpush.bf16.msra.mxu0 %v1966
        %2219 = vmatpush.bf16.msra.mxu0 %v1965
        %2220 = vmatpush.bf16.msra.mxu0 %v1964
        %2221 = vmatpush.bf16.msra.mxu0 %v1963
        %2222 = vmatpush.bf16.msra.mxu0 %v1962
        %2223 = vmatmul.bf16.gmra.mxu0 %v1299
        %v2224 = vpop.f32.mrf.mxu0
        %v2225 = vadd.f32 %v2092, %v2224
        %v2226 = vpop.f32.mrf.mxu0
        %v2227 = vadd.f32 %v2094, %v2226
        %2228 = vmatmul.bf16.gmra.mxu0 %v1307
        %v2229 = vpop.f32.mrf.mxu0
        %v2230 = vadd.f32 %v2097, %v2229
        %v2231 = vpop.f32.mrf.mxu0
        %v2232 = vadd.f32 %v2099, %v2231
        %2233 = vmatmul.bf16.gmra.mxu0 %v1315
        %v2234 = vpop.f32.mrf.mxu0
        %v2235 = vadd.f32 %v2102, %v2234
        %v2236 = vpop.f32.mrf.mxu0
        %v2237 = vadd.f32 %v2104, %v2236
        %2238 = vmatmul.bf16.gmra.mxu0 %v1323
        %v2239 = vpop.f32.mrf.mxu0
        %v2240 = vadd.f32 %v2107, %v2239
        %v2241 = vpop.f32.mrf.mxu0
        %v2242 = vadd.f32 %v2109, %v2241
        %2243 = vmatmul.bf16.gmra.mxu0 %v1331
        %v2244 = vpop.f32.mrf.mxu0
        %v2245 = vadd.f32 %v2112, %v2244
        %v2246 = vpop.f32.mrf.mxu0
        %v2247 = vadd.f32 %v2114, %v2246
        %2248 = vmatmul.bf16.gmra.mxu0 %v1339
        %v2249 = vpop.f32.mrf.mxu0
        %v2250 = vadd.f32 %v2117, %v2249
        %v2251 = vpop.f32.mrf.mxu0
        %v2252 = vadd.f32 %v2119, %v2251
        %2253 = vmatmul.bf16.gmra.mxu0 %v1347
        %v2254 = vpop.f32.mrf.mxu0
        %v2255 = vadd.f32 %v2122, %v2254
        %v2256 = vpop.f32.mrf.mxu0
        %v2257 = vadd.f32 %v2124, %v2256
        %2258 = vmatmul.bf16.gmra.mxu0 %v1355
        %v2259 = vpop.f32.mrf.mxu0
        %v2260 = vadd.f32 %v2127, %v2259
        %v2261 = vpop.f32.mrf.mxu0
        %v2262 = vadd.f32 %v2129, %v2261
        %2263 = vmatmul.bf16.gmra.mxu0 %v1363
        %v2264 = vpop.f32.mrf.mxu0
        %v2265 = vadd.f32 %v2132, %v2264
        %v2266 = vpop.f32.mrf.mxu0
        %v2267 = vadd.f32 %v2134, %v2266
        %2268 = vmatmul.bf16.gmra.mxu0 %v1371
        %v2269 = vpop.f32.mrf.mxu0
        %v2270 = vadd.f32 %v2137, %v2269
        %v2271 = vpop.f32.mrf.mxu0
        %v2272 = vadd.f32 %v2139, %v2271
        %2273 = vmatmul.bf16.gmra.mxu0 %v1379
        %v2274 = vpop.f32.mrf.mxu0
        %v2275 = vadd.f32 %v2142, %v2274
        %v2276 = vpop.f32.mrf.mxu0
        %v2277 = vadd.f32 %v2144, %v2276
        %2278 = vmatmul.bf16.gmra.mxu0 %v1387
        %v2279 = vpop.f32.mrf.mxu0
        %v2280 = vadd.f32 %v2147, %v2279
        %v2281 = vpop.f32.mrf.mxu0
        %v2282 = vadd.f32 %v2149, %v2281
        %2283 = vmatmul.bf16.gmra.mxu0 %v1395
        %v2284 = vpop.f32.mrf.mxu0
        %v2285 = vadd.f32 %v2152, %v2284
        %v2286 = vpop.f32.mrf.mxu0
        %v2287 = vadd.f32 %v2154, %v2286
        %2288 = vmatmul.bf16.gmra.mxu0 %v1403
        %v2289 = vpop.f32.mrf.mxu0
        %v2290 = vadd.f32 %v2157, %v2289
        %v2291 = vpop.f32.mrf.mxu0
        %v2292 = vadd.f32 %v2159, %v2291
        %2293 = vmatmul.bf16.gmra.mxu0 %v1411
        %v2294 = vpop.f32.mrf.mxu0
        %v2295 = vadd.f32 %v2162, %v2294
        %v2296 = vpop.f32.mrf.mxu0
        %v2297 = vadd.f32 %v2164, %v2296
        %2298 = vmatmul.bf16.gmra.mxu0 %v1419
        %v2299 = vpop.f32.mrf.mxu0
        %v2300 = vadd.f32 %v2167, %v2299
        %v2301 = vpop.f32.mrf.mxu0
        %v2302 = vadd.f32 %v2169, %v2301
        %2303 = vmatmul.bf16.gmra.mxu0 %v1427
        %v2304 = vpop.f32.mrf.mxu0
        %v2305 = vadd.f32 %v2172, %v2304
        %v2306 = vpop.f32.mrf.mxu0
        %v2307 = vadd.f32 %v2174, %v2306
        %2308 = vmatmul.bf16.gmra.mxu0 %v1435
        %v2309 = vpop.f32.mrf.mxu0
        %v2310 = vadd.f32 %v2177, %v2309
        %v2311 = vpop.f32.mrf.mxu0
        %v2312 = vadd.f32 %v2179, %v2311
        %2313 = vmatmul.bf16.gmra.mxu0 %v1443
        %v2314 = vpop.f32.mrf.mxu0
        %v2315 = vadd.f32 %v2182, %v2314
        %v2316 = vpop.f32.mrf.mxu0
        %v2317 = vadd.f32 %v2184, %v2316
        %2318 = vmatmul.bf16.gmra.mxu0 %v1451
        %v2319 = vpop.f32.mrf.mxu0
        %v2320 = vadd.f32 %v2187, %v2319
        %v2321 = vpop.f32.mrf.mxu0
        %v2322 = vadd.f32 %v2189, %v2321
        %2323 = vmatmul.bf16.gmra.mxu0 %v1459
        %v2324 = vpop.f32.mrf.mxu0
        %v2325 = vadd.f32 %v2192, %v2324
        %v2326 = vpop.f32.mrf.mxu0
        %v2327 = vadd.f32 %v2194, %v2326
        %2328 = vmatmul.bf16.gmra.mxu0 %v1467
        %v2329 = vpop.f32.mrf.mxu0
        %v2330 = vadd.f32 %v2197, %v2329
        %v2331 = vpop.f32.mrf.mxu0
        %v2332 = vadd.f32 %v2199, %v2331
        %2333 = vmatmul.bf16.gmra.mxu0 %v1475
        %v2334 = vpop.f32.mrf.mxu0
        %v2335 = vadd.f32 %v2202, %v2334
        %v2336 = vpop.f32.mrf.mxu0
        %v2337 = vadd.f32 %v2204, %v2336
        %2338 = vmatmul.bf16.gmra.mxu0 %v1483
        %v2339 = vpop.f32.mrf.mxu0
        %v2340 = vadd.f32 %v2207, %v2339
        %v2341 = vpop.f32.mrf.mxu0
        %v2342 = vadd.f32 %v2209, %v2341
        %2343 = vmatmul.bf16.gmra.mxu0 %v1491
        %v2344 = vpop.f32.mrf.mxu0
        %v2345 = vadd.f32 %v2212, %v2344
        %v2346 = vpop.f32.mrf.mxu0
        %2347 = vdwg.mxu0
        %2348 = vmatpush.bf16.msra.mxu0 %v1977
        %2349 = vmatpush.bf16.msra.mxu0 %v1976
        %2350 = vmatpush.bf16.msra.mxu0 %v1975
        %2351 = vmatpush.bf16.msra.mxu0 %v1974
        %2352 = vmatpush.bf16.msra.mxu0 %v1973
        %2353 = vmatpush.bf16.msra.mxu0 %v1972
        %2354 = vmatpush.bf16.msra.mxu0 %v1971
        %2355 = vmatpush.bf16.msra.mxu0 %v1970
        %2356 = vmatmul.bf16.gmra.mxu0 %v1300
        %v2357 = vpop.f32.mrf.mxu0
        %v2358 = vadd.f32 %v2225, %v2357
        %v2359 = vpop.f32.mrf.mxu0
        %v2360 = vadd.f32 %v2227, %v2359
        %2361 = vmatmul.bf16.gmra.mxu0 %v1308
        %v2362 = vpop.f32.mrf.mxu0
        %v2363 = vadd.f32 %v2230, %v2362
        %v2364 = vpop.f32.mrf.mxu0
        %v2365 = vadd.f32 %v2232, %v2364
        %2366 = vmatmul.bf16.gmra.mxu0 %v1316
        %v2367 = vpop.f32.mrf.mxu0
        %v2368 = vadd.f32 %v2235, %v2367
        %v2369 = vpop.f32.mrf.mxu0
        %v2370 = vadd.f32 %v2237, %v2369
        %2371 = vmatmul.bf16.gmra.mxu0 %v1324
        %v2372 = vpop.f32.mrf.mxu0
        %v2373 = vadd.f32 %v2240, %v2372
        %v2374 = vpop.f32.mrf.mxu0
        %v2375 = vadd.f32 %v2242, %v2374
        %2376 = vmatmul.bf16.gmra.mxu0 %v1332
        %v2377 = vpop.f32.mrf.mxu0
        %v2378 = vadd.f32 %v2245, %v2377
        %v2379 = vpop.f32.mrf.mxu0
        %v2380 = vadd.f32 %v2247, %v2379
        %2381 = vmatmul.bf16.gmra.mxu0 %v1340
        %v2382 = vpop.f32.mrf.mxu0
        %v2383 = vadd.f32 %v2250, %v2382
        %v2384 = vpop.f32.mrf.mxu0
        %v2385 = vadd.f32 %v2252, %v2384
        %2386 = vmatmul.bf16.gmra.mxu0 %v1348
        %v2387 = vpop.f32.mrf.mxu0
        %v2388 = vadd.f32 %v2255, %v2387
        %v2389 = vpop.f32.mrf.mxu0
        %v2390 = vadd.f32 %v2257, %v2389
        %2391 = vmatmul.bf16.gmra.mxu0 %v1356
        %v2392 = vpop.f32.mrf.mxu0
        %v2393 = vadd.f32 %v2260, %v2392
        %v2394 = vpop.f32.mrf.mxu0
        %v2395 = vadd.f32 %v2262, %v2394
        %2396 = vmatmul.bf16.gmra.mxu0 %v1364
        %v2397 = vpop.f32.mrf.mxu0
        %v2398 = vadd.f32 %v2265, %v2397
        %v2399 = vpop.f32.mrf.mxu0
        %v2400 = vadd.f32 %v2267, %v2399
        %2401 = vmatmul.bf16.gmra.mxu0 %v1372
        %v2402 = vpop.f32.mrf.mxu0
        %v2403 = vadd.f32 %v2270, %v2402
        %v2404 = vpop.f32.mrf.mxu0
        %v2405 = vadd.f32 %v2272, %v2404
        %2406 = vmatmul.bf16.gmra.mxu0 %v1380
        %v2407 = vpop.f32.mrf.mxu0
        %v2408 = vadd.f32 %v2275, %v2407
        %v2409 = vpop.f32.mrf.mxu0
        %v2410 = vadd.f32 %v2277, %v2409
        %2411 = vmatmul.bf16.gmra.mxu0 %v1388
        %v2412 = vpop.f32.mrf.mxu0
        %v2413 = vadd.f32 %v2280, %v2412
        %v2414 = vpop.f32.mrf.mxu0
        %v2415 = vadd.f32 %v2282, %v2414
        %2416 = vmatmul.bf16.gmra.mxu0 %v1396
        %v2417 = vpop.f32.mrf.mxu0
        %v2418 = vadd.f32 %v2285, %v2417
        %v2419 = vpop.f32.mrf.mxu0
        %v2420 = vadd.f32 %v2287, %v2419
        %2421 = vmatmul.bf16.gmra.mxu0 %v1404
        %v2422 = vpop.f32.mrf.mxu0
        %v2423 = vadd.f32 %v2290, %v2422
        %v2424 = vpop.f32.mrf.mxu0
        %v2425 = vadd.f32 %v2292, %v2424
        %2426 = vmatmul.bf16.gmra.mxu0 %v1412
        %v2427 = vpop.f32.mrf.mxu0
        %v2428 = vadd.f32 %v2295, %v2427
        %v2429 = vpop.f32.mrf.mxu0
        %v2430 = vadd.f32 %v2297, %v2429
        %2431 = vmatmul.bf16.gmra.mxu0 %v1420
        %v2432 = vpop.f32.mrf.mxu0
        %v2433 = vadd.f32 %v2300, %v2432
        %v2434 = vpop.f32.mrf.mxu0
        %v2435 = vadd.f32 %v2302, %v2434
        %2436 = vmatmul.bf16.gmra.mxu0 %v1428
        %v2437 = vpop.f32.mrf.mxu0
        %v2438 = vadd.f32 %v2305, %v2437
        %v2439 = vpop.f32.mrf.mxu0
        %v2440 = vadd.f32 %v2307, %v2439
        %2441 = vmatmul.bf16.gmra.mxu0 %v1436
        %v2442 = vpop.f32.mrf.mxu0
        %v2443 = vadd.f32 %v2310, %v2442
        %v2444 = vpop.f32.mrf.mxu0
        %v2445 = vadd.f32 %v2312, %v2444
        %2446 = vmatmul.bf16.gmra.mxu0 %v1444
        %v2447 = vpop.f32.mrf.mxu0
        %v2448 = vadd.f32 %v2315, %v2447
        %v2449 = vpop.f32.mrf.mxu0
        %v2450 = vadd.f32 %v2317, %v2449
        %2451 = vmatmul.bf16.gmra.mxu0 %v1452
        %v2452 = vpop.f32.mrf.mxu0
        %v2453 = vadd.f32 %v2320, %v2452
        %v2454 = vpop.f32.mrf.mxu0
        %v2455 = vadd.f32 %v2322, %v2454
        %2456 = vmatmul.bf16.gmra.mxu0 %v1460
        %v2457 = vpop.f32.mrf.mxu0
        %v2458 = vadd.f32 %v2325, %v2457
        %v2459 = vpop.f32.mrf.mxu0
        %v2460 = vadd.f32 %v2327, %v2459
        %2461 = vmatmul.bf16.gmra.mxu0 %v1468
        %v2462 = vpop.f32.mrf.mxu0
        %v2463 = vadd.f32 %v2330, %v2462
        %v2464 = vpop.f32.mrf.mxu0
        %v2465 = vadd.f32 %v2332, %v2464
        %2466 = vmatmul.bf16.gmra.mxu0 %v1476
        %v2467 = vpop.f32.mrf.mxu0
        %v2468 = vadd.f32 %v2335, %v2467
        %v2469 = vpop.f32.mrf.mxu0
        %v2470 = vadd.f32 %v2337, %v2469
        %2471 = vmatmul.bf16.gmra.mxu0 %v1484
        %v2472 = vpop.f32.mrf.mxu0
        %v2473 = vadd.f32 %v2340, %v2472
        %v2474 = vpop.f32.mrf.mxu0
        %v2475 = vadd.f32 %v2342, %v2474
        %2476 = vmatmul.bf16.gmra.mxu0 %v1492
        %v2477 = vpop.f32.mrf.mxu0
        %v2478 = vadd.f32 %v2345, %v2477
        %v2479 = vpop.f32.mrf.mxu0
        %2480 = vdwg.mxu0
        %2481 = vmatpush.bf16.msra.mxu0 %v1985
        %2482 = vmatpush.bf16.msra.mxu0 %v1984
        %2483 = vmatpush.bf16.msra.mxu0 %v1983
        %2484 = vmatpush.bf16.msra.mxu0 %v1982
        %2485 = vmatpush.bf16.msra.mxu0 %v1981
        %2486 = vmatpush.bf16.msra.mxu0 %v1980
        %2487 = vmatpush.bf16.msra.mxu0 %v1979
        %2488 = vmatpush.bf16.msra.mxu0 %v1978
        %2489 = vmatmul.bf16.gmra.mxu0 %v1301
        %v2490 = vpop.f32.mrf.mxu0
        %v2491 = vadd.f32 %v2358, %v2490
        %v2492 = vpop.f32.mrf.mxu0
        %v2493 = vadd.f32 %v2360, %v2492
        %2494 = vmatmul.bf16.gmra.mxu0 %v1309
        %v2495 = vpop.f32.mrf.mxu0
        %v2496 = vadd.f32 %v2363, %v2495
        %v2497 = vpop.f32.mrf.mxu0
        %v2498 = vadd.f32 %v2365, %v2497
        %2499 = vmatmul.bf16.gmra.mxu0 %v1317
        %v2500 = vpop.f32.mrf.mxu0
        %v2501 = vadd.f32 %v2368, %v2500
        %v2502 = vpop.f32.mrf.mxu0
        %v2503 = vadd.f32 %v2370, %v2502
        %2504 = vmatmul.bf16.gmra.mxu0 %v1325
        %v2505 = vpop.f32.mrf.mxu0
        %v2506 = vadd.f32 %v2373, %v2505
        %v2507 = vpop.f32.mrf.mxu0
        %v2508 = vadd.f32 %v2375, %v2507
        %2509 = vmatmul.bf16.gmra.mxu0 %v1333
        %v2510 = vpop.f32.mrf.mxu0
        %v2511 = vadd.f32 %v2378, %v2510
        %v2512 = vpop.f32.mrf.mxu0
        %v2513 = vadd.f32 %v2380, %v2512
        %2514 = vmatmul.bf16.gmra.mxu0 %v1341
        %v2515 = vpop.f32.mrf.mxu0
        %v2516 = vadd.f32 %v2383, %v2515
        %v2517 = vpop.f32.mrf.mxu0
        %v2518 = vadd.f32 %v2385, %v2517
        %2519 = vmatmul.bf16.gmra.mxu0 %v1349
        %v2520 = vpop.f32.mrf.mxu0
        %v2521 = vadd.f32 %v2388, %v2520
        %v2522 = vpop.f32.mrf.mxu0
        %v2523 = vadd.f32 %v2390, %v2522
        %2524 = vmatmul.bf16.gmra.mxu0 %v1357
        %v2525 = vpop.f32.mrf.mxu0
        %v2526 = vadd.f32 %v2393, %v2525
        %v2527 = vpop.f32.mrf.mxu0
        %v2528 = vadd.f32 %v2395, %v2527
        %2529 = vmatmul.bf16.gmra.mxu0 %v1365
        %v2530 = vpop.f32.mrf.mxu0
        %v2531 = vadd.f32 %v2398, %v2530
        %v2532 = vpop.f32.mrf.mxu0
        %v2533 = vadd.f32 %v2400, %v2532
        %2534 = vmatmul.bf16.gmra.mxu0 %v1373
        %v2535 = vpop.f32.mrf.mxu0
        %v2536 = vadd.f32 %v2403, %v2535
        %v2537 = vpop.f32.mrf.mxu0
        %v2538 = vadd.f32 %v2405, %v2537
        %2539 = vmatmul.bf16.gmra.mxu0 %v1381
        %v2540 = vpop.f32.mrf.mxu0
        %v2541 = vadd.f32 %v2408, %v2540
        %v2542 = vpop.f32.mrf.mxu0
        %v2543 = vadd.f32 %v2410, %v2542
        %2544 = vmatmul.bf16.gmra.mxu0 %v1389
        %v2545 = vpop.f32.mrf.mxu0
        %v2546 = vadd.f32 %v2413, %v2545
        %v2547 = vpop.f32.mrf.mxu0
        %v2548 = vadd.f32 %v2415, %v2547
        %2549 = vmatmul.bf16.gmra.mxu0 %v1397
        %v2550 = vpop.f32.mrf.mxu0
        %v2551 = vadd.f32 %v2418, %v2550
        %v2552 = vpop.f32.mrf.mxu0
        %v2553 = vadd.f32 %v2420, %v2552
        %2554 = vmatmul.bf16.gmra.mxu0 %v1405
        %v2555 = vpop.f32.mrf.mxu0
        %v2556 = vadd.f32 %v2423, %v2555
        %v2557 = vpop.f32.mrf.mxu0
        %v2558 = vadd.f32 %v2425, %v2557
        %2559 = vmatmul.bf16.gmra.mxu0 %v1413
        %v2560 = vpop.f32.mrf.mxu0
        %v2561 = vadd.f32 %v2428, %v2560
        %v2562 = vpop.f32.mrf.mxu0
        %v2563 = vadd.f32 %v2430, %v2562
        %2564 = vmatmul.bf16.gmra.mxu0 %v1421
        %v2565 = vpop.f32.mrf.mxu0
        %v2566 = vadd.f32 %v2433, %v2565
        %v2567 = vpop.f32.mrf.mxu0
        %v2568 = vadd.f32 %v2435, %v2567
        %2569 = vmatmul.bf16.gmra.mxu0 %v1429
        %v2570 = vpop.f32.mrf.mxu0
        %v2571 = vadd.f32 %v2438, %v2570
        %v2572 = vpop.f32.mrf.mxu0
        %v2573 = vadd.f32 %v2440, %v2572
        %2574 = vmatmul.bf16.gmra.mxu0 %v1437
        %v2575 = vpop.f32.mrf.mxu0
        %v2576 = vadd.f32 %v2443, %v2575
        %v2577 = vpop.f32.mrf.mxu0
        %v2578 = vadd.f32 %v2445, %v2577
        %2579 = vmatmul.bf16.gmra.mxu0 %v1445
        %v2580 = vpop.f32.mrf.mxu0
        %v2581 = vadd.f32 %v2448, %v2580
        %v2582 = vpop.f32.mrf.mxu0
        %v2583 = vadd.f32 %v2450, %v2582
        %2584 = vmatmul.bf16.gmra.mxu0 %v1453
        %v2585 = vpop.f32.mrf.mxu0
        %v2586 = vadd.f32 %v2453, %v2585
        %v2587 = vpop.f32.mrf.mxu0
        %v2588 = vadd.f32 %v2455, %v2587
        %2589 = vmatmul.bf16.gmra.mxu0 %v1461
        %v2590 = vpop.f32.mrf.mxu0
        %v2591 = vadd.f32 %v2458, %v2590
        %v2592 = vpop.f32.mrf.mxu0
        %v2593 = vadd.f32 %v2460, %v2592
        %2594 = vmatmul.bf16.gmra.mxu0 %v1469
        %v2595 = vpop.f32.mrf.mxu0
        %v2596 = vadd.f32 %v2463, %v2595
        %v2597 = vpop.f32.mrf.mxu0
        %v2598 = vadd.f32 %v2465, %v2597
        %2599 = vmatmul.bf16.gmra.mxu0 %v1477
        %v2600 = vpop.f32.mrf.mxu0
        %v2601 = vadd.f32 %v2468, %v2600
        %v2602 = vpop.f32.mrf.mxu0
        %v2603 = vadd.f32 %v2470, %v2602
        %2604 = vmatmul.bf16.gmra.mxu0 %v1485
        %v2605 = vpop.f32.mrf.mxu0
        %v2606 = vadd.f32 %v2473, %v2605
        %v2607 = vpop.f32.mrf.mxu0
        %v2608 = vadd.f32 %v2475, %v2607
        %2609 = vmatmul.bf16.gmra.mxu0 %v1493
        %v2610 = vpop.f32.mrf.mxu0
        %v2611 = vadd.f32 %v2478, %v2610
        %v2612 = vpop.f32.mrf.mxu0
        %2613 = vdwg.mxu0
        %2614 = vmatpush.bf16.msra.mxu0 %v1993
        %2615 = vmatpush.bf16.msra.mxu0 %v1992
        %2616 = vmatpush.bf16.msra.mxu0 %v1991
        %2617 = vmatpush.bf16.msra.mxu0 %v1990
        %2618 = vmatpush.bf16.msra.mxu0 %v1989
        %2619 = vmatpush.bf16.msra.mxu0 %v1988
        %2620 = vmatpush.bf16.msra.mxu0 %v1987
        %2621 = vmatpush.bf16.msra.mxu0 %v1986
        %2622 = vmatmul.bf16.gmra.mxu0 %v1302
        %v2623 = vpop.f32.mrf.mxu0
        %v2624 = vadd.f32 %v2491, %v2623
        %v2625 = vpop.f32.mrf.mxu0
        %v2626 = vadd.f32 %v2493, %v2625
        %2627 = vmatmul.bf16.gmra.mxu0 %v1310
        %v2628 = vpop.f32.mrf.mxu0
        %v2629 = vadd.f32 %v2496, %v2628
        %v2630 = vpop.f32.mrf.mxu0
        %v2631 = vadd.f32 %v2498, %v2630
        %2632 = vmatmul.bf16.gmra.mxu0 %v1318
        %v2633 = vpop.f32.mrf.mxu0
        %v2634 = vadd.f32 %v2501, %v2633
        %v2635 = vpop.f32.mrf.mxu0
        %v2636 = vadd.f32 %v2503, %v2635
        %2637 = vmatmul.bf16.gmra.mxu0 %v1326
        %v2638 = vpop.f32.mrf.mxu0
        %v2639 = vadd.f32 %v2506, %v2638
        %v2640 = vpop.f32.mrf.mxu0
        %v2641 = vadd.f32 %v2508, %v2640
        %2642 = vmatmul.bf16.gmra.mxu0 %v1334
        %v2643 = vpop.f32.mrf.mxu0
        %v2644 = vadd.f32 %v2511, %v2643
        %v2645 = vpop.f32.mrf.mxu0
        %v2646 = vadd.f32 %v2513, %v2645
        %2647 = vmatmul.bf16.gmra.mxu0 %v1342
        %v2648 = vpop.f32.mrf.mxu0
        %v2649 = vadd.f32 %v2516, %v2648
        %v2650 = vpop.f32.mrf.mxu0
        %v2651 = vadd.f32 %v2518, %v2650
        %2652 = vmatmul.bf16.gmra.mxu0 %v1350
        %v2653 = vpop.f32.mrf.mxu0
        %v2654 = vadd.f32 %v2521, %v2653
        %v2655 = vpop.f32.mrf.mxu0
        %v2656 = vadd.f32 %v2523, %v2655
        %2657 = vmatmul.bf16.gmra.mxu0 %v1358
        %v2658 = vpop.f32.mrf.mxu0
        %v2659 = vadd.f32 %v2526, %v2658
        %v2660 = vpop.f32.mrf.mxu0
        %v2661 = vadd.f32 %v2528, %v2660
        %2662 = vmatmul.bf16.gmra.mxu0 %v1366
        %v2663 = vpop.f32.mrf.mxu0
        %v2664 = vadd.f32 %v2531, %v2663
        %v2665 = vpop.f32.mrf.mxu0
        %v2666 = vadd.f32 %v2533, %v2665
        %2667 = vmatmul.bf16.gmra.mxu0 %v1374
        %v2668 = vpop.f32.mrf.mxu0
        %v2669 = vadd.f32 %v2536, %v2668
        %v2670 = vpop.f32.mrf.mxu0
        %v2671 = vadd.f32 %v2538, %v2670
        %2672 = vmatmul.bf16.gmra.mxu0 %v1382
        %v2673 = vpop.f32.mrf.mxu0
        %v2674 = vadd.f32 %v2541, %v2673
        %v2675 = vpop.f32.mrf.mxu0
        %v2676 = vadd.f32 %v2543, %v2675
        %2677 = vmatmul.bf16.gmra.mxu0 %v1390
        %v2678 = vpop.f32.mrf.mxu0
        %v2679 = vadd.f32 %v2546, %v2678
        %v2680 = vpop.f32.mrf.mxu0
        %v2681 = vadd.f32 %v2548, %v2680
        %2682 = vmatmul.bf16.gmra.mxu0 %v1398
        %v2683 = vpop.f32.mrf.mxu0
        %v2684 = vadd.f32 %v2551, %v2683
        %v2685 = vpop.f32.mrf.mxu0
        %v2686 = vadd.f32 %v2553, %v2685
        %2687 = vmatmul.bf16.gmra.mxu0 %v1406
        %v2688 = vpop.f32.mrf.mxu0
        %v2689 = vadd.f32 %v2556, %v2688
        %v2690 = vpop.f32.mrf.mxu0
        %v2691 = vadd.f32 %v2558, %v2690
        %2692 = vmatmul.bf16.gmra.mxu0 %v1414
        %v2693 = vpop.f32.mrf.mxu0
        %v2694 = vadd.f32 %v2561, %v2693
        %v2695 = vpop.f32.mrf.mxu0
        %v2696 = vadd.f32 %v2563, %v2695
        %2697 = vmatmul.bf16.gmra.mxu0 %v1422
        %v2698 = vpop.f32.mrf.mxu0
        %v2699 = vadd.f32 %v2566, %v2698
        %v2700 = vpop.f32.mrf.mxu0
        %v2701 = vadd.f32 %v2568, %v2700
        %2702 = vmatmul.bf16.gmra.mxu0 %v1430
        %v2703 = vpop.f32.mrf.mxu0
        %v2704 = vadd.f32 %v2571, %v2703
        %v2705 = vpop.f32.mrf.mxu0
        %v2706 = vadd.f32 %v2573, %v2705
        %2707 = vmatmul.bf16.gmra.mxu0 %v1438
        %v2708 = vpop.f32.mrf.mxu0
        %v2709 = vadd.f32 %v2576, %v2708
        %v2710 = vpop.f32.mrf.mxu0
        %v2711 = vadd.f32 %v2578, %v2710
        %2712 = vmatmul.bf16.gmra.mxu0 %v1446
        %v2713 = vpop.f32.mrf.mxu0
        %v2714 = vadd.f32 %v2581, %v2713
        %v2715 = vpop.f32.mrf.mxu0
        %v2716 = vadd.f32 %v2583, %v2715
        %2717 = vmatmul.bf16.gmra.mxu0 %v1454
        %v2718 = vpop.f32.mrf.mxu0
        %v2719 = vadd.f32 %v2586, %v2718
        %v2720 = vpop.f32.mrf.mxu0
        %v2721 = vadd.f32 %v2588, %v2720
        %2722 = vmatmul.bf16.gmra.mxu0 %v1462
        %v2723 = vpop.f32.mrf.mxu0
        %v2724 = vadd.f32 %v2591, %v2723
        %v2725 = vpop.f32.mrf.mxu0
        %v2726 = vadd.f32 %v2593, %v2725
        %2727 = vmatmul.bf16.gmra.mxu0 %v1470
        %v2728 = vpop.f32.mrf.mxu0
        %v2729 = vadd.f32 %v2596, %v2728
        %v2730 = vpop.f32.mrf.mxu0
        %v2731 = vadd.f32 %v2598, %v2730
        %2732 = vmatmul.bf16.gmra.mxu0 %v1478
        %v2733 = vpop.f32.mrf.mxu0
        %v2734 = vadd.f32 %v2601, %v2733
        %v2735 = vpop.f32.mrf.mxu0
        %v2736 = vadd.f32 %v2603, %v2735
        %2737 = vmatmul.bf16.gmra.mxu0 %v1486
        %v2738 = vpop.f32.mrf.mxu0
        %v2739 = vadd.f32 %v2606, %v2738
        %v2740 = vpop.f32.mrf.mxu0
        %v2741 = vadd.f32 %v2608, %v2740
        %2742 = vmatmul.bf16.gmra.mxu0 %v1494
        %v2743 = vpop.f32.mrf.mxu0
        %v2744 = vadd.f32 %v2611, %v2743
        %v2745 = vpop.f32.mrf.mxu0
        %2746 = vdwg.mxu0
        %2747 = vmatpush.bf16.msra.mxu0 %v2001
        %2748 = vmatpush.bf16.msra.mxu0 %v2000
        %2749 = vmatpush.bf16.msra.mxu0 %v1999
        %2750 = vmatpush.bf16.msra.mxu0 %v1998
        %2751 = vmatpush.bf16.msra.mxu0 %v1997
        %2752 = vmatpush.bf16.msra.mxu0 %v1996
        %2753 = vmatpush.bf16.msra.mxu0 %v1995
        %2754 = vmatpush.bf16.msra.mxu0 %v1994
        %2755 = vmatmul.bf16.gmra.mxu0 %v1303
        %v2756 = vpop.f32.mrf.mxu0
        %v2757 = vadd.f32 %v2624, %v2756
        %v2758 = vpop.f32.mrf.mxu0
        %v2759 = vadd.f32 %v2626, %v2758
        %2760 = vmatmul.bf16.gmra.mxu0 %v1311
        %v2761 = vpop.f32.mrf.mxu0
        %v2762 = vadd.f32 %v2629, %v2761
        %v2763 = vpop.f32.mrf.mxu0
        %v2764 = vadd.f32 %v2631, %v2763
        %2765 = vmatmul.bf16.gmra.mxu0 %v1319
        %v2766 = vpop.f32.mrf.mxu0
        %v2767 = vadd.f32 %v2634, %v2766
        %v2768 = vpop.f32.mrf.mxu0
        %v2769 = vadd.f32 %v2636, %v2768
        %2770 = vmatmul.bf16.gmra.mxu0 %v1327
        %v2771 = vpop.f32.mrf.mxu0
        %v2772 = vadd.f32 %v2639, %v2771
        %v2773 = vpop.f32.mrf.mxu0
        %v2774 = vadd.f32 %v2641, %v2773
        %2775 = vmatmul.bf16.gmra.mxu0 %v1335
        %v2776 = vpop.f32.mrf.mxu0
        %v2777 = vadd.f32 %v2644, %v2776
        %v2778 = vpop.f32.mrf.mxu0
        %v2779 = vadd.f32 %v2646, %v2778
        %2780 = vmatmul.bf16.gmra.mxu0 %v1343
        %v2781 = vpop.f32.mrf.mxu0
        %v2782 = vadd.f32 %v2649, %v2781
        %v2783 = vpop.f32.mrf.mxu0
        %v2784 = vadd.f32 %v2651, %v2783
        %2785 = vmatmul.bf16.gmra.mxu0 %v1351
        %v2786 = vpop.f32.mrf.mxu0
        %v2787 = vadd.f32 %v2654, %v2786
        %v2788 = vpop.f32.mrf.mxu0
        %v2789 = vadd.f32 %v2656, %v2788
        %2790 = vmatmul.bf16.gmra.mxu0 %v1359
        %v2791 = vpop.f32.mrf.mxu0
        %v2792 = vadd.f32 %v2659, %v2791
        %v2793 = vpop.f32.mrf.mxu0
        %v2794 = vadd.f32 %v2661, %v2793
        %2795 = vmatmul.bf16.gmra.mxu0 %v1367
        %v2796 = vpop.f32.mrf.mxu0
        %v2797 = vadd.f32 %v2664, %v2796
        %v2798 = vpop.f32.mrf.mxu0
        %v2799 = vadd.f32 %v2666, %v2798
        %2800 = vmatmul.bf16.gmra.mxu0 %v1375
        %v2801 = vpop.f32.mrf.mxu0
        %v2802 = vadd.f32 %v2669, %v2801
        %v2803 = vpop.f32.mrf.mxu0
        %v2804 = vadd.f32 %v2671, %v2803
        %2805 = vmatmul.bf16.gmra.mxu0 %v1383
        %v2806 = vpop.f32.mrf.mxu0
        %v2807 = vadd.f32 %v2674, %v2806
        %v2808 = vpop.f32.mrf.mxu0
        %v2809 = vadd.f32 %v2676, %v2808
        %2810 = vmatmul.bf16.gmra.mxu0 %v1391
        %v2811 = vpop.f32.mrf.mxu0
        %v2812 = vadd.f32 %v2679, %v2811
        %v2813 = vpop.f32.mrf.mxu0
        %v2814 = vadd.f32 %v2681, %v2813
        %2815 = vmatmul.bf16.gmra.mxu0 %v1399
        %v2816 = vpop.f32.mrf.mxu0
        %v2817 = vadd.f32 %v2684, %v2816
        %v2818 = vpop.f32.mrf.mxu0
        %v2819 = vadd.f32 %v2686, %v2818
        %2820 = vmatmul.bf16.gmra.mxu0 %v1407
        %v2821 = vpop.f32.mrf.mxu0
        %v2822 = vadd.f32 %v2689, %v2821
        %v2823 = vpop.f32.mrf.mxu0
        %v2824 = vadd.f32 %v2691, %v2823
        %2825 = vmatmul.bf16.gmra.mxu0 %v1415
        %v2826 = vpop.f32.mrf.mxu0
        %v2827 = vadd.f32 %v2694, %v2826
        %v2828 = vpop.f32.mrf.mxu0
        %v2829 = vadd.f32 %v2696, %v2828
        %2830 = vmatmul.bf16.gmra.mxu0 %v1423
        %v2831 = vpop.f32.mrf.mxu0
        %v2832 = vadd.f32 %v2699, %v2831
        %v2833 = vpop.f32.mrf.mxu0
        %v2834 = vadd.f32 %v2701, %v2833
        %2835 = vmatmul.bf16.gmra.mxu0 %v1431
        %v2836 = vpop.f32.mrf.mxu0
        %v2837 = vadd.f32 %v2704, %v2836
        %v2838 = vpop.f32.mrf.mxu0
        %v2839 = vadd.f32 %v2706, %v2838
        %2840 = vmatmul.bf16.gmra.mxu0 %v1439
        %v2841 = vpop.f32.mrf.mxu0
        %v2842 = vadd.f32 %v2709, %v2841
        %v2843 = vpop.f32.mrf.mxu0
        %v2844 = vadd.f32 %v2711, %v2843
        %2845 = vmatmul.bf16.gmra.mxu0 %v1447
        %v2846 = vpop.f32.mrf.mxu0
        %v2847 = vadd.f32 %v2714, %v2846
        %v2848 = vpop.f32.mrf.mxu0
        %v2849 = vadd.f32 %v2716, %v2848
        %2850 = vmatmul.bf16.gmra.mxu0 %v1455
        %v2851 = vpop.f32.mrf.mxu0
        %v2852 = vadd.f32 %v2719, %v2851
        %v2853 = vpop.f32.mrf.mxu0
        %v2854 = vadd.f32 %v2721, %v2853
        %2855 = vmatmul.bf16.gmra.mxu0 %v1463
        %v2856 = vpop.f32.mrf.mxu0
        %v2857 = vadd.f32 %v2724, %v2856
        %v2858 = vpop.f32.mrf.mxu0
        %v2859 = vadd.f32 %v2726, %v2858
        %2860 = vmatmul.bf16.gmra.mxu0 %v1471
        %v2861 = vpop.f32.mrf.mxu0
        %v2862 = vadd.f32 %v2729, %v2861
        %v2863 = vpop.f32.mrf.mxu0
        %v2864 = vadd.f32 %v2731, %v2863
        %2865 = vmatmul.bf16.gmra.mxu0 %v1479
        %v2866 = vpop.f32.mrf.mxu0
        %v2867 = vadd.f32 %v2734, %v2866
        %v2868 = vpop.f32.mrf.mxu0
        %v2869 = vadd.f32 %v2736, %v2868
        %2870 = vmatmul.bf16.gmra.mxu0 %v1487
        %v2871 = vpop.f32.mrf.mxu0
        %v2872 = vadd.f32 %v2739, %v2871
        %v2873 = vpop.f32.mrf.mxu0
        %v2874 = vadd.f32 %v2741, %v2873
        %2875 = vmatmul.bf16.gmra.mxu0 %v1495
        %v2876 = vpop.f32.mrf.mxu0
        %v2877 = vadd.f32 %v2744, %v2876
        %v2878 = vpop.f32.mrf.mxu0
        %2879 = vdwg.mxu0
        %2880 = vmatpush.bf16.msra.mxu0 %v2009
        %2881 = vmatpush.bf16.msra.mxu0 %v2008
        %2882 = vmatpush.bf16.msra.mxu0 %v2007
        %2883 = vmatpush.bf16.msra.mxu0 %v2006
        %2884 = vmatpush.bf16.msra.mxu0 %v2005
        %2885 = vmatpush.bf16.msra.mxu0 %v2004
        %2886 = vmatpush.bf16.msra.mxu0 %v2003
        %2887 = vmatpush.bf16.msra.mxu0 %v2002
        %2888 = vmatmul.bf16.gmra.mxu0 %v1304
        %v2889 = vpop.f32.mrf.mxu0
        %v2890 = vadd.f32 %v2757, %v2889
        %v2891 = vpop.f32.mrf.mxu0
        %v2892 = vadd.f32 %v2759, %v2891
        %2893 = vmatmul.bf16.gmra.mxu0 %v1312
        %v2894 = vpop.f32.mrf.mxu0
        %v2895 = vadd.f32 %v2762, %v2894
        %v2896 = vpop.f32.mrf.mxu0
        %v2897 = vadd.f32 %v2764, %v2896
        %2898 = vmatmul.bf16.gmra.mxu0 %v1320
        %v2899 = vpop.f32.mrf.mxu0
        %v2900 = vadd.f32 %v2767, %v2899
        %v2901 = vpop.f32.mrf.mxu0
        %v2902 = vadd.f32 %v2769, %v2901
        %2903 = vmatmul.bf16.gmra.mxu0 %v1328
        %v2904 = vpop.f32.mrf.mxu0
        %v2905 = vadd.f32 %v2772, %v2904
        %v2906 = vpop.f32.mrf.mxu0
        %v2907 = vadd.f32 %v2774, %v2906
        %2908 = vmatmul.bf16.gmra.mxu0 %v1336
        %v2909 = vpop.f32.mrf.mxu0
        %v2910 = vadd.f32 %v2777, %v2909
        %v2911 = vpop.f32.mrf.mxu0
        %v2912 = vadd.f32 %v2779, %v2911
        %2913 = vmatmul.bf16.gmra.mxu0 %v1344
        %v2914 = vpop.f32.mrf.mxu0
        %v2915 = vadd.f32 %v2782, %v2914
        %v2916 = vpop.f32.mrf.mxu0
        %v2917 = vadd.f32 %v2784, %v2916
        %2918 = vmatmul.bf16.gmra.mxu0 %v1352
        %v2919 = vpop.f32.mrf.mxu0
        %v2920 = vadd.f32 %v2787, %v2919
        %v2921 = vpop.f32.mrf.mxu0
        %v2922 = vadd.f32 %v2789, %v2921
        %2923 = vmatmul.bf16.gmra.mxu0 %v1360
        %v2924 = vpop.f32.mrf.mxu0
        %v2925 = vadd.f32 %v2792, %v2924
        %v2926 = vpop.f32.mrf.mxu0
        %v2927 = vadd.f32 %v2794, %v2926
        %2928 = vmatmul.bf16.gmra.mxu0 %v1368
        %v2929 = vpop.f32.mrf.mxu0
        %v2930 = vadd.f32 %v2797, %v2929
        %v2931 = vpop.f32.mrf.mxu0
        %v2932 = vadd.f32 %v2799, %v2931
        %2933 = vmatmul.bf16.gmra.mxu0 %v1376
        %v2934 = vpop.f32.mrf.mxu0
        %v2935 = vadd.f32 %v2802, %v2934
        %v2936 = vpop.f32.mrf.mxu0
        %v2937 = vadd.f32 %v2804, %v2936
        %2938 = vmatmul.bf16.gmra.mxu0 %v1384
        %v2939 = vpop.f32.mrf.mxu0
        %v2940 = vadd.f32 %v2807, %v2939
        %v2941 = vpop.f32.mrf.mxu0
        %v2942 = vadd.f32 %v2809, %v2941
        %2943 = vmatmul.bf16.gmra.mxu0 %v1392
        %v2944 = vpop.f32.mrf.mxu0
        %v2945 = vadd.f32 %v2812, %v2944
        %v2946 = vpop.f32.mrf.mxu0
        %v2947 = vadd.f32 %v2814, %v2946
        %2948 = vmatmul.bf16.gmra.mxu0 %v1400
        %v2949 = vpop.f32.mrf.mxu0
        %v2950 = vadd.f32 %v2817, %v2949
        %v2951 = vpop.f32.mrf.mxu0
        %v2952 = vadd.f32 %v2819, %v2951
        %2953 = vmatmul.bf16.gmra.mxu0 %v1408
        %v2954 = vpop.f32.mrf.mxu0
        %v2955 = vadd.f32 %v2822, %v2954
        %v2956 = vpop.f32.mrf.mxu0
        %v2957 = vadd.f32 %v2824, %v2956
        %2958 = vmatmul.bf16.gmra.mxu0 %v1416
        %v2959 = vpop.f32.mrf.mxu0
        %v2960 = vadd.f32 %v2827, %v2959
        %v2961 = vpop.f32.mrf.mxu0
        %v2962 = vadd.f32 %v2829, %v2961
        %2963 = vmatmul.bf16.gmra.mxu0 %v1424
        %v2964 = vpop.f32.mrf.mxu0
        %v2965 = vadd.f32 %v2832, %v2964
        %v2966 = vpop.f32.mrf.mxu0
        %v2967 = vadd.f32 %v2834, %v2966
        %2968 = vmatmul.bf16.gmra.mxu0 %v1432
        %v2969 = vpop.f32.mrf.mxu0
        %v2970 = vadd.f32 %v2837, %v2969
        %v2971 = vpop.f32.mrf.mxu0
        %v2972 = vadd.f32 %v2839, %v2971
        %2973 = vmatmul.bf16.gmra.mxu0 %v1440
        %v2974 = vpop.f32.mrf.mxu0
        %v2975 = vadd.f32 %v2842, %v2974
        %v2976 = vpop.f32.mrf.mxu0
        %v2977 = vadd.f32 %v2844, %v2976
        %2978 = vmatmul.bf16.gmra.mxu0 %v1448
        %v2979 = vpop.f32.mrf.mxu0
        %v2980 = vadd.f32 %v2847, %v2979
        %v2981 = vpop.f32.mrf.mxu0
        %v2982 = vadd.f32 %v2849, %v2981
        %2983 = vmatmul.bf16.gmra.mxu0 %v1456
        %v2984 = vpop.f32.mrf.mxu0
        %v2985 = vadd.f32 %v2852, %v2984
        %v2986 = vpop.f32.mrf.mxu0
        %v2987 = vadd.f32 %v2854, %v2986
        %2988 = vmatmul.bf16.gmra.mxu0 %v1464
        %v2989 = vpop.f32.mrf.mxu0
        %v2990 = vadd.f32 %v2857, %v2989
        %v2991 = vpop.f32.mrf.mxu0
        %v2992 = vadd.f32 %v2859, %v2991
        %2993 = vmatmul.bf16.gmra.mxu0 %v1472
        %v2994 = vpop.f32.mrf.mxu0
        %v2995 = vadd.f32 %v2862, %v2994
        %v2996 = vpop.f32.mrf.mxu0
        %v2997 = vadd.f32 %v2864, %v2996
        %2998 = vmatmul.bf16.gmra.mxu0 %v1480
        %v2999 = vpop.f32.mrf.mxu0
        %v3000 = vadd.f32 %v2867, %v2999
        %v3001 = vpop.f32.mrf.mxu0
        %v3002 = vadd.f32 %v2869, %v3001
        %3003 = vmatmul.bf16.gmra.mxu0 %v1488
        %v3004 = vpop.f32.mrf.mxu0
        %v3005 = vadd.f32 %v2872, %v3004
        %v3006 = vpop.f32.mrf.mxu0
        %v3007 = vadd.f32 %v2874, %v3006
        %3008 = vmatmul.bf16.gmra.mxu0 %v1496
        %v3009 = vpop.f32.mrf.mxu0
        %v3010 = vadd.f32 %v2877, %v3009
        %v3011 = vpop.f32.mrf.mxu0
        %3012 = vdwg.mxu0
        %3013 = vmatpush.bf16.msra.mxu0 %v2017
        %3014 = vmatpush.bf16.msra.mxu0 %v2016
        %3015 = vmatpush.bf16.msra.mxu0 %v2015
        %3016 = vmatpush.bf16.msra.mxu0 %v2014
        %3017 = vmatpush.bf16.msra.mxu0 %v2013
        %3018 = vmatpush.bf16.msra.mxu0 %v2012
        %3019 = vmatpush.bf16.msra.mxu0 %v2011
        %3020 = vmatpush.bf16.msra.mxu0 %v2010
        %3021 = vmatmul.bf16.gmra.mxu0 %v1305
        %v3022 = vpop.f32.mrf.mxu0
        %v3023 = vadd.f32 %v2890, %v3022
        %v3024 = vpop.f32.mrf.mxu0
        %v3025 = vadd.f32 %v2892, %v3024
        %3026 = vmatmul.bf16.gmra.mxu0 %v1313
        %v3027 = vpop.f32.mrf.mxu0
        %v3028 = vadd.f32 %v2895, %v3027
        %v3029 = vpop.f32.mrf.mxu0
        %v3030 = vadd.f32 %v2897, %v3029
        %3031 = vmatmul.bf16.gmra.mxu0 %v1321
        %v3032 = vpop.f32.mrf.mxu0
        %v3033 = vadd.f32 %v2900, %v3032
        %v3034 = vpop.f32.mrf.mxu0
        %v3035 = vadd.f32 %v2902, %v3034
        %3036 = vmatmul.bf16.gmra.mxu0 %v1329
        %v3037 = vpop.f32.mrf.mxu0
        %v3038 = vadd.f32 %v2905, %v3037
        %v3039 = vpop.f32.mrf.mxu0
        %v3040 = vadd.f32 %v2907, %v3039
        %3041 = vmatmul.bf16.gmra.mxu0 %v1337
        %v3042 = vpop.f32.mrf.mxu0
        %v3043 = vadd.f32 %v2910, %v3042
        %v3044 = vpop.f32.mrf.mxu0
        %v3045 = vadd.f32 %v2912, %v3044
        %3046 = vmatmul.bf16.gmra.mxu0 %v1345
        %v3047 = vpop.f32.mrf.mxu0
        %v3048 = vadd.f32 %v2915, %v3047
        %v3049 = vpop.f32.mrf.mxu0
        %v3050 = vadd.f32 %v2917, %v3049
        %3051 = vmatmul.bf16.gmra.mxu0 %v1353
        %v3052 = vpop.f32.mrf.mxu0
        %v3053 = vadd.f32 %v2920, %v3052
        %v3054 = vpop.f32.mrf.mxu0
        %v3055 = vadd.f32 %v2922, %v3054
        %3056 = vmatmul.bf16.gmra.mxu0 %v1361
        %v3057 = vpop.f32.mrf.mxu0
        %v3058 = vadd.f32 %v2925, %v3057
        %v3059 = vpop.f32.mrf.mxu0
        %v3060 = vadd.f32 %v2927, %v3059
        %3061 = vmatmul.bf16.gmra.mxu0 %v1369
        %v3062 = vpop.f32.mrf.mxu0
        %v3063 = vadd.f32 %v2930, %v3062
        %v3064 = vpop.f32.mrf.mxu0
        %v3065 = vadd.f32 %v2932, %v3064
        %3066 = vmatmul.bf16.gmra.mxu0 %v1377
        %v3067 = vpop.f32.mrf.mxu0
        %v3068 = vadd.f32 %v2935, %v3067
        %v3069 = vpop.f32.mrf.mxu0
        %v3070 = vadd.f32 %v2937, %v3069
        %3071 = vmatmul.bf16.gmra.mxu0 %v1385
        %v3072 = vpop.f32.mrf.mxu0
        %v3073 = vadd.f32 %v2940, %v3072
        %v3074 = vpop.f32.mrf.mxu0
        %v3075 = vadd.f32 %v2942, %v3074
        %3076 = vmatmul.bf16.gmra.mxu0 %v1393
        %v3077 = vpop.f32.mrf.mxu0
        %v3078 = vadd.f32 %v2945, %v3077
        %v3079 = vpop.f32.mrf.mxu0
        %v3080 = vadd.f32 %v2947, %v3079
        %3081 = vmatmul.bf16.gmra.mxu0 %v1401
        %v3082 = vpop.f32.mrf.mxu0
        %v3083 = vadd.f32 %v2950, %v3082
        %v3084 = vpop.f32.mrf.mxu0
        %v3085 = vadd.f32 %v2952, %v3084
        %3086 = vmatmul.bf16.gmra.mxu0 %v1409
        %v3087 = vpop.f32.mrf.mxu0
        %v3088 = vadd.f32 %v2955, %v3087
        %v3089 = vpop.f32.mrf.mxu0
        %v3090 = vadd.f32 %v2957, %v3089
        %3091 = vmatmul.bf16.gmra.mxu0 %v1417
        %v3092 = vpop.f32.mrf.mxu0
        %v3093 = vadd.f32 %v2960, %v3092
        %v3094 = vpop.f32.mrf.mxu0
        %v3095 = vadd.f32 %v2962, %v3094
        %3096 = vmatmul.bf16.gmra.mxu0 %v1425
        %v3097 = vpop.f32.mrf.mxu0
        %v3098 = vadd.f32 %v2965, %v3097
        %v3099 = vpop.f32.mrf.mxu0
        %v3100 = vadd.f32 %v2967, %v3099
        %3101 = vmatmul.bf16.gmra.mxu0 %v1433
        %v3102 = vpop.f32.mrf.mxu0
        %v3103 = vadd.f32 %v2970, %v3102
        %v3104 = vpop.f32.mrf.mxu0
        %v3105 = vadd.f32 %v2972, %v3104
        %3106 = vmatmul.bf16.gmra.mxu0 %v1441
        %v3107 = vpop.f32.mrf.mxu0
        %v3108 = vadd.f32 %v2975, %v3107
        %v3109 = vpop.f32.mrf.mxu0
        %v3110 = vadd.f32 %v2977, %v3109
        %3111 = vmatmul.bf16.gmra.mxu0 %v1449
        %v3112 = vpop.f32.mrf.mxu0
        %v3113 = vadd.f32 %v2980, %v3112
        %v3114 = vpop.f32.mrf.mxu0
        %v3115 = vadd.f32 %v2982, %v3114
        %3116 = vmatmul.bf16.gmra.mxu0 %v1457
        %v3117 = vpop.f32.mrf.mxu0
        %v3118 = vadd.f32 %v2985, %v3117
        %v3119 = vpop.f32.mrf.mxu0
        %v3120 = vadd.f32 %v2987, %v3119
        %3121 = vmatmul.bf16.gmra.mxu0 %v1465
        %v3122 = vpop.f32.mrf.mxu0
        %v3123 = vadd.f32 %v2990, %v3122
        %v3124 = vpop.f32.mrf.mxu0
        %v3125 = vadd.f32 %v2992, %v3124
        %3126 = vmatmul.bf16.gmra.mxu0 %v1473
        %v3127 = vpop.f32.mrf.mxu0
        %v3128 = vadd.f32 %v2995, %v3127
        %v3129 = vpop.f32.mrf.mxu0
        %v3130 = vadd.f32 %v2997, %v3129
        %3131 = vmatmul.bf16.gmra.mxu0 %v1481
        %v3132 = vpop.f32.mrf.mxu0
        %v3133 = vadd.f32 %v3000, %v3132
        %v3134 = vpop.f32.mrf.mxu0
        %v3135 = vadd.f32 %v3002, %v3134
        %3136 = vmatmul.bf16.gmra.mxu0 %v1489
        %v3137 = vpop.f32.mrf.mxu0
        %v3138 = vadd.f32 %v3005, %v3137
        %v3139 = vpop.f32.mrf.mxu0
        %v3140 = vadd.f32 %v3007, %v3139
        %3141 = vmatmul.bf16.gmra.mxu0 %v1497
        %v3142 = vpop.f32.mrf.mxu0
        %v3143 = vadd.f32 %v3010, %v3142
        %v3144 = vpop.f32.mrf.mxu0
        %3145 = vdwg.mxu0
        %vm3146 = vcmp.gt.f32.partialorder %v3023, 0.0
        %vm3147 = vcmp.gt.f32.partialorder %v3025, 0.0
        %vm3148 = vcmp.gt.f32.partialorder %v3028, 0.0
        %vm3149 = vcmp.gt.f32.partialorder %v3030, 0.0
        %vm3150 = vcmp.gt.f32.partialorder %v3033, 0.0
        %vm3151 = vcmp.gt.f32.partialorder %v3035, 0.0
        %vm3152 = vcmp.gt.f32.partialorder %v3038, 0.0
        %vm3153 = vcmp.gt.f32.partialorder %v3040, 0.0
        %vm3154 = vcmp.gt.f32.partialorder %v3043, 0.0
        %vm3155 = vcmp.gt.f32.partialorder %v3045, 0.0
        %vm3156 = vcmp.gt.f32.partialorder %v3048, 0.0
        %vm3157 = vcmp.gt.f32.partialorder %v3050, 0.0
        %vm3158 = vcmp.gt.f32.partialorder %v3053, 0.0
        %vm3159 = vcmp.gt.f32.partialorder %v3055, 0.0
        %vm3160 = vcmp.gt.f32.partialorder %v3058, 0.0
        %vm3161 = vcmp.gt.f32.partialorder %v3060, 0.0
        %vm3162 = vcmp.gt.f32.partialorder %v3063, 0.0
        %vm3163 = vcmp.gt.f32.partialorder %v3065, 0.0
        %vm3164 = vcmp.gt.f32.partialorder %v3068, 0.0
        %vm3165 = vcmp.gt.f32.partialorder %v3070, 0.0
        %vm3166 = vcmp.gt.f32.partialorder %v3073, 0.0
        %vm3167 = vcmp.gt.f32.partialorder %v3075, 0.0
        %vm3168 = vcmp.gt.f32.partialorder %v3078, 0.0
        %vm3169 = vcmp.gt.f32.partialorder %v3080, 0.0
        %vm3170 = vcmp.gt.f32.partialorder %v3083, 0.0
        %vm3171 = vcmp.gt.f32.partialorder %v3085, 0.0
        %vm3172 = vcmp.gt.f32.partialorder %v3088, 0.0
        %vm3173 = vcmp.gt.f32.partialorder %v3090, 0.0
        %vm3174 = vcmp.gt.f32.partialorder %v3093, 0.0
        %vm3175 = vcmp.gt.f32.partialorder %v3095, 0.0
        %vm3176 = vcmp.gt.f32.partialorder %v3098, 0.0
        %vm3177 = vcmp.gt.f32.partialorder %v3100, 0.0
        %vm3178 = vcmp.gt.f32.partialorder %v3103, 0.0
        %vm3179 = vcmp.gt.f32.partialorder %v3105, 0.0
        %vm3180 = vcmp.gt.f32.partialorder %v3108, 0.0
        %vm3181 = vcmp.gt.f32.partialorder %v3110, 0.0
        %vm3182 = vcmp.gt.f32.partialorder %v3113, 0.0
        %vm3183 = vcmp.gt.f32.partialorder %v3115, 0.0
        %vm3184 = vcmp.gt.f32.partialorder %v3118, 0.0
        %vm3185 = vcmp.gt.f32.partialorder %v3120, 0.0
        %vm3186 = vcmp.gt.f32.partialorder %v3123, 0.0
        %vm3187 = vcmp.gt.f32.partialorder %v3125, 0.0
        %vm3188 = vcmp.gt.f32.partialorder %v3128, 0.0
        %vm3189 = vcmp.gt.f32.partialorder %v3130, 0.0
        %vm3190 = vcmp.gt.f32.partialorder %v3133, 0.0
        %vm3191 = vcmp.gt.f32.partialorder %v3135, 0.0
        %vm3192 = vcmp.gt.f32.partialorder %v3138, 0.0
        %vm3193 = vcmp.gt.f32.partialorder %v3140, 0.0
        %vm3194 = vcmp.gt.f32.partialorder %v3143, 0.0
        %v3195 = vmul.f32 %v3023, 0.2
        %v3196 = vmul.f32 %v3025, 0.2
        %v3197 = vmul.f32 %v3028, 0.2
        %v3198 = vmul.f32 %v3030, 0.2
        %v3199 = vmul.f32 %v3033, 0.2
        %v3200 = vmul.f32 %v3035, 0.2
        %v3201 = vmul.f32 %v3038, 0.2
        %v3202 = vmul.f32 %v3040, 0.2
        %v3203 = vmul.f32 %v3043, 0.2
        %v3204 = vmul.f32 %v3045, 0.2
        %v3205 = vmul.f32 %v3048, 0.2
        %v3206 = vmul.f32 %v3050, 0.2
        %v3207 = vmul.f32 %v3053, 0.2
        %v3208 = vmul.f32 %v3055, 0.2
        %v3209 = vmul.f32 %v3058, 0.2
        %v3210 = vmul.f32 %v3060, 0.2
        %v3211 = vmul.f32 %v3063, 0.2
        %v3212 = vmul.f32 %v3065, 0.2
        %v3213 = vmul.f32 %v3068, 0.2
        %v3214 = vmul.f32 %v3070, 0.2
        %v3215 = vmul.f32 %v3073, 0.2
        %v3216 = vmul.f32 %v3075, 0.2
        %v3217 = vmul.f32 %v3078, 0.2
        %v3218 = vmul.f32 %v3080, 0.2
        %v3219 = vmul.f32 %v3083, 0.2
        %v3220 = vmul.f32 %v3085, 0.2
        %v3221 = vmul.f32 %v3088, 0.2
        %v3222 = vmul.f32 %v3090, 0.2
        %v3223 = vmul.f32 %v3093, 0.2
        %v3224 = vmul.f32 %v3095, 0.2
        %v3225 = vmul.f32 %v3098, 0.2
        %v3226 = vmul.f32 %v3100, 0.2
        %v3227 = vmul.f32 %v3103, 0.2
        %v3228 = vmul.f32 %v3105, 0.2
        %v3229 = vmul.f32 %v3108, 0.2
        %v3230 = vmul.f32 %v3110, 0.2
        %v3231 = vmul.f32 %v3113, 0.2
        %v3232 = vmul.f32 %v3115, 0.2
        %v3233 = vmul.f32 %v3118, 0.2
        %v3234 = vmul.f32 %v3120, 0.2
        %v3235 = vmul.f32 %v3123, 0.2
        %v3236 = vmul.f32 %v3125, 0.2
        %v3237 = vmul.f32 %v3128, 0.2
        %v3238 = vmul.f32 %v3130, 0.2
        %v3239 = vmul.f32 %v3133, 0.2
        %v3240 = vmul.f32 %v3135, 0.2
        %v3241 = vmul.f32 %v3138, 0.2
        %v3242 = vmul.f32 %v3140, 0.2
        %v3243 = vmul.f32 %v3143, 0.2
        %v3244 = vsel %vm3146, %v3023, %v3195
        %v3245 = vsel %vm3147, %v3025, %v3196
        %v3246 = vsel %vm3148, %v3028, %v3197
        %v3247 = vsel %vm3149, %v3030, %v3198
        %v3248 = vsel %vm3150, %v3033, %v3199
        %v3249 = vsel %vm3151, %v3035, %v3200
        %v3250 = vsel %vm3152, %v3038, %v3201
        %v3251 = vsel %vm3153, %v3040, %v3202
        %v3252 = vsel %vm3154, %v3043, %v3203
        %v3253 = vsel %vm3155, %v3045, %v3204
        %v3254 = vsel %vm3156, %v3048, %v3205
        %v3255 = vsel %vm3157, %v3050, %v3206
        %v3256 = vsel %vm3158, %v3053, %v3207
        %v3257 = vsel %vm3159, %v3055, %v3208
        %v3258 = vsel %vm3160, %v3058, %v3209
        %v3259 = vsel %vm3161, %v3060, %v3210
        %v3260 = vsel %vm3162, %v3063, %v3211
        %v3261 = vsel %vm3163, %v3065, %v3212
        %v3262 = vsel %vm3164, %v3068, %v3213
        %v3263 = vsel %vm3165, %v3070, %v3214
        %v3264 = vsel %vm3166, %v3073, %v3215
        %v3265 = vsel %vm3167, %v3075, %v3216
        %v3266 = vsel %vm3168, %v3078, %v3217
        %v3267 = vsel %vm3169, %v3080, %v3218
        %v3268 = vsel %vm3170, %v3083, %v3219
        %v3269 = vsel %vm3171, %v3085, %v3220
        %v3270 = vsel %vm3172, %v3088, %v3221
        %v3271 = vsel %vm3173, %v3090, %v3222
        %v3272 = vsel %vm3174, %v3093, %v3223
        %v3273 = vsel %vm3175, %v3095, %v3224
        %v3274 = vsel %vm3176, %v3098, %v3225
        %v3275 = vsel %vm3177, %v3100, %v3226
        %v3276 = vsel %vm3178, %v3103, %v3227
        %v3277 = vsel %vm3179, %v3105, %v3228
        %v3278 = vsel %vm3180, %v3108, %v3229
        %v3279 = vsel %vm3181, %v3110, %v3230
        %v3280 = vsel %vm3182, %v3113, %v3231
        %v3281 = vsel %vm3183, %v3115, %v3232
        %v3282 = vsel %vm3184, %v3118, %v3233
        %v3283 = vsel %vm3185, %v3120, %v3234
        %v3284 = vsel %vm3186, %v3123, %v3235
        %v3285 = vsel %vm3187, %v3125, %v3236
        %v3286 = vsel %vm3188, %v3128, %v3237
        %v3287 = vsel %vm3189, %v3130, %v3238
        %v3288 = vsel %vm3190, %v3133, %v3239
        %v3289 = vsel %vm3191, %v3135, %v3240
        %v3290 = vsel %vm3192, %v3138, %v3241
        %v3291 = vsel %vm3193, %v3140, %v3242
        %v3292 = vsel %vm3194, %v3143, %v3243
        %v3293 = vlaneseq
        %v3294 = vshrl.u32 %v3293, 7
        %v3295 = vadd.s32 %v3294, 8
        %v3296 = vadd.s32 %v3294, 16
        %v3297 = vadd.s32 %v3294, 24
        %v3298 = vadd.s32 %v3294, 32
        %v3299 = vadd.s32 %v3294, 40
        %v3300 = vadd.s32 %v3294, 48
        %v3301 = vadd.s32 %v3294, 56
        %v3302 = vadd.s32 %v3294, 64
        %v3303 = vadd.s32 %v3294, 72
        %v3304 = vadd.s32 %v3294, 80
        %v3305 = vadd.s32 %v3294, 88
        %v3306 = vadd.s32 %v3294, 96
        %v3307 = vadd.s32 %v3294, 104
        %v3308 = vadd.s32 %v3294, 112
        %v3309 = vadd.s32 %v3294, 120
        %v3310 = vadd.s32 %v3294, 128
        %v3311 = vadd.s32 %v3294, 136
        %v3312 = vadd.s32 %v3294, 144
        %v3313 = vadd.s32 %v3294, 152
        %v3314 = vadd.s32 %v3294, 160
        %v3315 = vadd.s32 %v3294, 168
        %v3316 = vadd.s32 %v3294, 176
        %v3317 = vadd.s32 %v3294, 184
        %v3318 = vadd.s32 %v3294, 192
        %v3319 = vadd.s32 %v3294, 200
        %v3320 = vadd.s32 %v3294, 208
        %v3321 = vadd.s32 %v3294, 216
        %v3322 = vadd.s32 %v3294, 224
        %v3323 = vadd.s32 %v3294, 232
        %v3324 = vadd.s32 %v3294, 240
        %v3325 = vadd.s32 %v3294, 248
        %v3326 = vadd.s32 %v3294, 256
        %v3327 = vadd.s32 %v3294, 264
        %v3328 = vadd.s32 %v3294, 272
        %v3329 = vadd.s32 %v3294, 280
        %v3330 = vadd.s32 %v3294, 288
        %v3331 = vadd.s32 %v3294, 296
        %v3332 = vadd.s32 %v3294, 304
        %v3333 = vadd.s32 %v3294, 312
        %v3334 = vadd.s32 %v3294, 320
        %v3335 = vadd.s32 %v3294, 328
        %v3336 = vadd.s32 %v3294, 336
        %v3337 = vadd.s32 %v3294, 344
        %v3338 = vadd.s32 %v3294, 352
        %v3339 = vadd.s32 %v3294, 360
        %v3340 = vadd.s32 %v3294, 368
        %v3341 = vadd.s32 %v3294, 376
        %v3342 = vadd.s32 %v3294, 384
        %vm3343 = vcmp.lt.s32.totalorder %v3294, 0
        %v3344 = vsub.s32 0, %v3294
        %v3345 = vsel %vm3343, %v3344, %v3294
        %v3346 = vshrl.u32 %v3345, 3
        %v3347 = vand.u32 %v3345, 7
        %v3348 = vsub.s32 0, %v3347
        %v3349 = vsel %vm3343, %v3348, %v3347
        %vm3350 = vcmp.lt.s32.totalorder %v3295, 0
        %v3351 = vsub.s32 0, %v3295
        %v3352 = vsel %vm3350, %v3351, %v3295
        %v3353 = vshrl.u32 %v3352, 3
        %v3354 = vand.u32 %v3352, 7
        %v3355 = vsub.s32 0, %v3354
        %v3356 = vsel %vm3350, %v3355, %v3354
        %vm3357 = vcmp.lt.s32.totalorder %v3296, 0
        %v3358 = vsub.s32 0, %v3296
        %v3359 = vsel %vm3357, %v3358, %v3296
        %v3360 = vshrl.u32 %v3359, 3
        %v3361 = vand.u32 %v3359, 7
        %v3362 = vsub.s32 0, %v3361
        %v3363 = vsel %vm3357, %v3362, %v3361
        %vm3364 = vcmp.lt.s32.totalorder %v3297, 0
        %v3365 = vsub.s32 0, %v3297
        %v3366 = vsel %vm3364, %v3365, %v3297
        %v3367 = vshrl.u32 %v3366, 3
        %v3368 = vand.u32 %v3366, 7
        %v3369 = vsub.s32 0, %v3368
        %v3370 = vsel %vm3364, %v3369, %v3368
        %vm3371 = vcmp.lt.s32.totalorder %v3298, 0
        %v3372 = vsub.s32 0, %v3298
        %v3373 = vsel %vm3371, %v3372, %v3298
        %v3374 = vshrl.u32 %v3373, 3
        %v3375 = vand.u32 %v3373, 7
        %v3376 = vsub.s32 0, %v3375
        %v3377 = vsel %vm3371, %v3376, %v3375
        %vm3378 = vcmp.lt.s32.totalorder %v3299, 0
        %v3379 = vsub.s32 0, %v3299
        %v3380 = vsel %vm3378, %v3379, %v3299
        %v3381 = vshrl.u32 %v3380, 3
        %v3382 = vand.u32 %v3380, 7
        %v3383 = vsub.s32 0, %v3382
        %v3384 = vsel %vm3378, %v3383, %v3382
        %vm3385 = vcmp.lt.s32.totalorder %v3300, 0
        %v3386 = vsub.s32 0, %v3300
        %v3387 = vsel %vm3385, %v3386, %v3300
        %v3388 = vshrl.u32 %v3387, 3
        %v3389 = vand.u32 %v3387, 7
        %v3390 = vsub.s32 0, %v3389
        %v3391 = vsel %vm3385, %v3390, %v3389
        %vm3392 = vcmp.lt.s32.totalorder %v3301, 0
        %v3393 = vsub.s32 0, %v3301
        %v3394 = vsel %vm3392, %v3393, %v3301
        %v3395 = vshrl.u32 %v3394, 3
        %v3396 = vand.u32 %v3394, 7
        %v3397 = vsub.s32 0, %v3396
        %v3398 = vsel %vm3392, %v3397, %v3396
        %vm3399 = vcmp.lt.s32.totalorder %v3302, 0
        %v3400 = vsub.s32 0, %v3302
        %v3401 = vsel %vm3399, %v3400, %v3302
        %v3402 = vshrl.u32 %v3401, 3
        %v3403 = vand.u32 %v3401, 7
        %v3404 = vsub.s32 0, %v3403
        %v3405 = vsel %vm3399, %v3404, %v3403
        %vm3406 = vcmp.lt.s32.totalorder %v3303, 0
        %v3407 = vsub.s32 0, %v3303
        %v3408 = vsel %vm3406, %v3407, %v3303
        %v3409 = vshrl.u32 %v3408, 3
        %v3410 = vand.u32 %v3408, 7
        %v3411 = vsub.s32 0, %v3410
        %v3412 = vsel %vm3406, %v3411, %v3410
        %vm3413 = vcmp.lt.s32.totalorder %v3304, 0
        %v3414 = vsub.s32 0, %v3304
        %v3415 = vsel %vm3413, %v3414, %v3304
        %v3416 = vshrl.u32 %v3415, 3
        %v3417 = vand.u32 %v3415, 7
        %v3418 = vsub.s32 0, %v3417
        %v3419 = vsel %vm3413, %v3418, %v3417
        %vm3420 = vcmp.lt.s32.totalorder %v3305, 0
        %v3421 = vsub.s32 0, %v3305
        %v3422 = vsel %vm3420, %v3421, %v3305
        %v3423 = vshrl.u32 %v3422, 3
        %v3424 = vand.u32 %v3422, 7
        %v3425 = vsub.s32 0, %v3424
        %v3426 = vsel %vm3420, %v3425, %v3424
        %vm3427 = vcmp.lt.s32.totalorder %v3306, 0
        %v3428 = vsub.s32 0, %v3306
        %v3429 = vsel %vm3427, %v3428, %v3306
        %v3430 = vshrl.u32 %v3429, 3
        %v3431 = vand.u32 %v3429, 7
        %v3432 = vsub.s32 0, %v3431
        %v3433 = vsel %vm3427, %v3432, %v3431
        %vm3434 = vcmp.lt.s32.totalorder %v3307, 0
        %v3435 = vsub.s32 0, %v3307
        %v3436 = vsel %vm3434, %v3435, %v3307
        %v3437 = vshrl.u32 %v3436, 3
        %v3438 = vand.u32 %v3436, 7
        %v3439 = vsub.s32 0, %v3438
        %v3440 = vsel %vm3434, %v3439, %v3438
        %vm3441 = vcmp.lt.s32.totalorder %v3308, 0
        %v3442 = vsub.s32 0, %v3308
        %v3443 = vsel %vm3441, %v3442, %v3308
        %v3444 = vshrl.u32 %v3443, 3
        %v3445 = vand.u32 %v3443, 7
        %v3446 = vsub.s32 0, %v3445
        %v3447 = vsel %vm3441, %v3446, %v3445
        %vm3448 = vcmp.lt.s32.totalorder %v3309, 0
        %v3449 = vsub.s32 0, %v3309
        %v3450 = vsel %vm3448, %v3449, %v3309
        %v3451 = vshrl.u32 %v3450, 3
        %v3452 = vand.u32 %v3450, 7
        %v3453 = vsub.s32 0, %v3452
        %v3454 = vsel %vm3448, %v3453, %v3452
        %vm3455 = vcmp.lt.s32.totalorder %v3310, 0
        %v3456 = vsub.s32 0, %v3310
        %v3457 = vsel %vm3455, %v3456, %v3310
        %v3458 = vshrl.u32 %v3457, 3
        %v3459 = vand.u32 %v3457, 7
        %v3460 = vsub.s32 0, %v3459
        %v3461 = vsel %vm3455, %v3460, %v3459
        %vm3462 = vcmp.lt.s32.totalorder %v3311, 0
        %v3463 = vsub.s32 0, %v3311
        %v3464 = vsel %vm3462, %v3463, %v3311
        %v3465 = vshrl.u32 %v3464, 3
        %v3466 = vand.u32 %v3464, 7
        %v3467 = vsub.s32 0, %v3466
        %v3468 = vsel %vm3462, %v3467, %v3466
        %vm3469 = vcmp.lt.s32.totalorder %v3312, 0
        %v3470 = vsub.s32 0, %v3312
        %v3471 = vsel %vm3469, %v3470, %v3312
        %v3472 = vshrl.u32 %v3471, 3
        %v3473 = vand.u32 %v3471, 7
        %v3474 = vsub.s32 0, %v3473
        %v3475 = vsel %vm3469, %v3474, %v3473
        %vm3476 = vcmp.lt.s32.totalorder %v3313, 0
        %v3477 = vsub.s32 0, %v3313
        %v3478 = vsel %vm3476, %v3477, %v3313
        %v3479 = vshrl.u32 %v3478, 3
        %v3480 = vand.u32 %v3478, 7
        %v3481 = vsub.s32 0, %v3480
        %v3482 = vsel %vm3476, %v3481, %v3480
        %vm3483 = vcmp.lt.s32.totalorder %v3314, 0
        %v3484 = vsub.s32 0, %v3314
        %v3485 = vsel %vm3483, %v3484, %v3314
        %v3486 = vshrl.u32 %v3485, 3
        %v3487 = vand.u32 %v3485, 7
        %v3488 = vsub.s32 0, %v3487
        %v3489 = vsel %vm3483, %v3488, %v3487
        %vm3490 = vcmp.lt.s32.totalorder %v3315, 0
        %v3491 = vsub.s32 0, %v3315
        %v3492 = vsel %vm3490, %v3491, %v3315
        %v3493 = vshrl.u32 %v3492, 3
        %v3494 = vand.u32 %v3492, 7
        %v3495 = vsub.s32 0, %v3494
        %v3496 = vsel %vm3490, %v3495, %v3494
        %vm3497 = vcmp.lt.s32.totalorder %v3316, 0
        %v3498 = vsub.s32 0, %v3316
        %v3499 = vsel %vm3497, %v3498, %v3316
        %v3500 = vshrl.u32 %v3499, 3
        %v3501 = vand.u32 %v3499, 7
        %v3502 = vsub.s32 0, %v3501
        %v3503 = vsel %vm3497, %v3502, %v3501
        %vm3504 = vcmp.lt.s32.totalorder %v3317, 0
        %v3505 = vsub.s32 0, %v3317
        %v3506 = vsel %vm3504, %v3505, %v3317
        %v3507 = vshrl.u32 %v3506, 3
        %v3508 = vand.u32 %v3506, 7
        %v3509 = vsub.s32 0, %v3508
        %v3510 = vsel %vm3504, %v3509, %v3508
        %vm3511 = vcmp.lt.s32.totalorder %v3318, 0
        %v3512 = vsub.s32 0, %v3318
        %v3513 = vsel %vm3511, %v3512, %v3318
        %v3514 = vshrl.u32 %v3513, 3
        %v3515 = vand.u32 %v3513, 7
        %v3516 = vsub.s32 0, %v3515
        %v3517 = vsel %vm3511, %v3516, %v3515
        %vm3518 = vcmp.lt.s32.totalorder %v3319, 0
        %v3519 = vsub.s32 0, %v3319
        %v3520 = vsel %vm3518, %v3519, %v3319
        %v3521 = vshrl.u32 %v3520, 3
        %v3522 = vand.u32 %v3520, 7
        %v3523 = vsub.s32 0, %v3522
        %v3524 = vsel %vm3518, %v3523, %v3522
        %vm3525 = vcmp.lt.s32.totalorder %v3320, 0
        %v3526 = vsub.s32 0, %v3320
        %v3527 = vsel %vm3525, %v3526, %v3320
        %v3528 = vshrl.u32 %v3527, 3
        %v3529 = vand.u32 %v3527, 7
        %v3530 = vsub.s32 0, %v3529
        %v3531 = vsel %vm3525, %v3530, %v3529
        %vm3532 = vcmp.lt.s32.totalorder %v3321, 0
        %v3533 = vsub.s32 0, %v3321
        %v3534 = vsel %vm3532, %v3533, %v3321
        %v3535 = vshrl.u32 %v3534, 3
        %v3536 = vand.u32 %v3534, 7
        %v3537 = vsub.s32 0, %v3536
        %v3538 = vsel %vm3532, %v3537, %v3536
        %vm3539 = vcmp.lt.s32.totalorder %v3322, 0
        %v3540 = vsub.s32 0, %v3322
        %v3541 = vsel %vm3539, %v3540, %v3322
        %v3542 = vshrl.u32 %v3541, 3
        %v3543 = vand.u32 %v3541, 7
        %v3544 = vsub.s32 0, %v3543
        %v3545 = vsel %vm3539, %v3544, %v3543
        %vm3546 = vcmp.lt.s32.totalorder %v3323, 0
        %v3547 = vsub.s32 0, %v3323
        %v3548 = vsel %vm3546, %v3547, %v3323
        %v3549 = vshrl.u32 %v3548, 3
        %v3550 = vand.u32 %v3548, 7
        %v3551 = vsub.s32 0, %v3550
        %v3552 = vsel %vm3546, %v3551, %v3550
        %vm3553 = vcmp.lt.s32.totalorder %v3324, 0
        %v3554 = vsub.s32 0, %v3324
        %v3555 = vsel %vm3553, %v3554, %v3324
        %v3556 = vshrl.u32 %v3555, 3
        %v3557 = vand.u32 %v3555, 7
        %v3558 = vsub.s32 0, %v3557
        %v3559 = vsel %vm3553, %v3558, %v3557
        %vm3560 = vcmp.lt.s32.totalorder %v3325, 0
        %v3561 = vsub.s32 0, %v3325
        %v3562 = vsel %vm3560, %v3561, %v3325
        %v3563 = vshrl.u32 %v3562, 3
        %v3564 = vand.u32 %v3562, 7
        %v3565 = vsub.s32 0, %v3564
        %v3566 = vsel %vm3560, %v3565, %v3564
        %vm3567 = vcmp.lt.s32.totalorder %v3326, 0
        %v3568 = vsub.s32 0, %v3326
        %v3569 = vsel %vm3567, %v3568, %v3326
        %v3570 = vshrl.u32 %v3569, 3
        %v3571 = vand.u32 %v3569, 7
        %v3572 = vsub.s32 0, %v3571
        %v3573 = vsel %vm3567, %v3572, %v3571
        %vm3574 = vcmp.lt.s32.totalorder %v3327, 0
        %v3575 = vsub.s32 0, %v3327
        %v3576 = vsel %vm3574, %v3575, %v3327
        %v3577 = vshrl.u32 %v3576, 3
        %v3578 = vand.u32 %v3576, 7
        %v3579 = vsub.s32 0, %v3578
        %v3580 = vsel %vm3574, %v3579, %v3578
        %vm3581 = vcmp.lt.s32.totalorder %v3328, 0
        %v3582 = vsub.s32 0, %v3328
        %v3583 = vsel %vm3581, %v3582, %v3328
        %v3584 = vshrl.u32 %v3583, 3
        %v3585 = vand.u32 %v3583, 7
        %v3586 = vsub.s32 0, %v3585
        %v3587 = vsel %vm3581, %v3586, %v3585
        %vm3588 = vcmp.lt.s32.totalorder %v3329, 0
        %v3589 = vsub.s32 0, %v3329
        %v3590 = vsel %vm3588, %v3589, %v3329
        %v3591 = vshrl.u32 %v3590, 3
        %v3592 = vand.u32 %v3590, 7
        %v3593 = vsub.s32 0, %v3592
        %v3594 = vsel %vm3588, %v3593, %v3592
        %vm3595 = vcmp.lt.s32.totalorder %v3330, 0
        %v3596 = vsub.s32 0, %v3330
        %v3597 = vsel %vm3595, %v3596, %v3330
        %v3598 = vshrl.u32 %v3597, 3
        %v3599 = vand.u32 %v3597, 7
        %v3600 = vsub.s32 0, %v3599
        %v3601 = vsel %vm3595, %v3600, %v3599
        %vm3602 = vcmp.lt.s32.totalorder %v3331, 0
        %v3603 = vsub.s32 0, %v3331
        %v3604 = vsel %vm3602, %v3603, %v3331
        %v3605 = vshrl.u32 %v3604, 3
        %v3606 = vand.u32 %v3604, 7
        %v3607 = vsub.s32 0, %v3606
        %v3608 = vsel %vm3602, %v3607, %v3606
        %vm3609 = vcmp.lt.s32.totalorder %v3332, 0
        %v3610 = vsub.s32 0, %v3332
        %v3611 = vsel %vm3609, %v3610, %v3332
        %v3612 = vshrl.u32 %v3611, 3
        %v3613 = vand.u32 %v3611, 7
        %v3614 = vsub.s32 0, %v3613
        %v3615 = vsel %vm3609, %v3614, %v3613
        %vm3616 = vcmp.lt.s32.totalorder %v3333, 0
        %v3617 = vsub.s32 0, %v3333
        %v3618 = vsel %vm3616, %v3617, %v3333
        %v3619 = vshrl.u32 %v3618, 3
        %v3620 = vand.u32 %v3618, 7
        %v3621 = vsub.s32 0, %v3620
        %v3622 = vsel %vm3616, %v3621, %v3620
        %vm3623 = vcmp.lt.s32.totalorder %v3334, 0
        %v3624 = vsub.s32 0, %v3334
        %v3625 = vsel %vm3623, %v3624, %v3334
        %v3626 = vshrl.u32 %v3625, 3
        %v3627 = vand.u32 %v3625, 7
        %v3628 = vsub.s32 0, %v3627
        %v3629 = vsel %vm3623, %v3628, %v3627
        %vm3630 = vcmp.lt.s32.totalorder %v3335, 0
        %v3631 = vsub.s32 0, %v3335
        %v3632 = vsel %vm3630, %v3631, %v3335
        %v3633 = vshrl.u32 %v3632, 3
        %v3634 = vand.u32 %v3632, 7
        %v3635 = vsub.s32 0, %v3634
        %v3636 = vsel %vm3630, %v3635, %v3634
        %vm3637 = vcmp.lt.s32.totalorder %v3336, 0
        %v3638 = vsub.s32 0, %v3336
        %v3639 = vsel %vm3637, %v3638, %v3336
        %v3640 = vshrl.u32 %v3639, 3
        %v3641 = vand.u32 %v3639, 7
        %v3642 = vsub.s32 0, %v3641
        %v3643 = vsel %vm3637, %v3642, %v3641
        %vm3644 = vcmp.lt.s32.totalorder %v3337, 0
        %v3645 = vsub.s32 0, %v3337
        %v3646 = vsel %vm3644, %v3645, %v3337
        %v3647 = vshrl.u32 %v3646, 3
        %v3648 = vand.u32 %v3646, 7
        %v3649 = vsub.s32 0, %v3648
        %v3650 = vsel %vm3644, %v3649, %v3648
        %vm3651 = vcmp.lt.s32.totalorder %v3338, 0
        %v3652 = vsub.s32 0, %v3338
        %v3653 = vsel %vm3651, %v3652, %v3338
        %v3654 = vshrl.u32 %v3653, 3
        %v3655 = vand.u32 %v3653, 7
        %v3656 = vsub.s32 0, %v3655
        %v3657 = vsel %vm3651, %v3656, %v3655
        %vm3658 = vcmp.lt.s32.totalorder %v3339, 0
        %v3659 = vsub.s32 0, %v3339
        %v3660 = vsel %vm3658, %v3659, %v3339
        %v3661 = vshrl.u32 %v3660, 3
        %v3662 = vand.u32 %v3660, 7
        %v3663 = vsub.s32 0, %v3662
        %v3664 = vsel %vm3658, %v3663, %v3662
        %vm3665 = vcmp.lt.s32.totalorder %v3340, 0
        %v3666 = vsub.s32 0, %v3340
        %v3667 = vsel %vm3665, %v3666, %v3340
        %v3668 = vshrl.u32 %v3667, 3
        %v3669 = vand.u32 %v3667, 7
        %v3670 = vsub.s32 0, %v3669
        %v3671 = vsel %vm3665, %v3670, %v3669
        %vm3672 = vcmp.lt.s32.totalorder %v3341, 0
        %v3673 = vsub.s32 0, %v3341
        %v3674 = vsel %vm3672, %v3673, %v3341
        %v3675 = vshrl.u32 %v3674, 3
        %v3676 = vand.u32 %v3674, 7
        %v3677 = vsub.s32 0, %v3676
        %v3678 = vsel %vm3672, %v3677, %v3676
        %vm3679 = vcmp.lt.s32.totalorder %v3342, 0
        %v3680 = vsub.s32 0, %v3342
        %v3681 = vsel %vm3679, %v3680, %v3342
        %v3682 = vshrl.u32 %v3681, 3
        %v3683 = vand.u32 %v3681, 7
        %v3684 = vsub.s32 0, %v3683
        %v3685 = vsel %vm3679, %v3684, %v3683
        %vm3686 = vcmp.ne.s32.totalorder %v3349, 0
        %vm3687 = vcmp.ne.s32.totalorder %v3356, 0
        %vm3688 = vcmp.ne.s32.totalorder %v3363, 0
        %vm3689 = vcmp.ne.s32.totalorder %v3370, 0
        %vm3690 = vcmp.ne.s32.totalorder %v3377, 0
        %vm3691 = vcmp.ne.s32.totalorder %v3384, 0
        %vm3692 = vcmp.ne.s32.totalorder %v3391, 0
        %vm3693 = vcmp.ne.s32.totalorder %v3398, 0
        %vm3694 = vcmp.ne.s32.totalorder %v3405, 0
        %vm3695 = vcmp.ne.s32.totalorder %v3412, 0
        %vm3696 = vcmp.ne.s32.totalorder %v3419, 0
        %vm3697 = vcmp.ne.s32.totalorder %v3426, 0
        %vm3698 = vcmp.ne.s32.totalorder %v3433, 0
        %vm3699 = vcmp.ne.s32.totalorder %v3440, 0
        %vm3700 = vcmp.ne.s32.totalorder %v3447, 0
        %vm3701 = vcmp.ne.s32.totalorder %v3454, 0
        %vm3702 = vcmp.ne.s32.totalorder %v3461, 0
        %vm3703 = vcmp.ne.s32.totalorder %v3468, 0
        %vm3704 = vcmp.ne.s32.totalorder %v3475, 0
        %vm3705 = vcmp.ne.s32.totalorder %v3482, 0
        %vm3706 = vcmp.ne.s32.totalorder %v3489, 0
        %vm3707 = vcmp.ne.s32.totalorder %v3496, 0
        %vm3708 = vcmp.ne.s32.totalorder %v3503, 0
        %vm3709 = vcmp.ne.s32.totalorder %v3510, 0
        %vm3710 = vcmp.ne.s32.totalorder %v3517, 0
        %vm3711 = vcmp.ne.s32.totalorder %v3524, 0
        %vm3712 = vcmp.ne.s32.totalorder %v3531, 0
        %vm3713 = vcmp.ne.s32.totalorder %v3538, 0
        %vm3714 = vcmp.ne.s32.totalorder %v3545, 0
        %vm3715 = vcmp.ne.s32.totalorder %v3552, 0
        %vm3716 = vcmp.ne.s32.totalorder %v3559, 0
        %vm3717 = vcmp.ne.s32.totalorder %v3566, 0
        %vm3718 = vcmp.ne.s32.totalorder %v3573, 0
        %vm3719 = vcmp.ne.s32.totalorder %v3580, 0
        %vm3720 = vcmp.ne.s32.totalorder %v3587, 0
        %vm3721 = vcmp.ne.s32.totalorder %v3594, 0
        %vm3722 = vcmp.ne.s32.totalorder %v3601, 0
        %vm3723 = vcmp.ne.s32.totalorder %v3608, 0
        %vm3724 = vcmp.ne.s32.totalorder %v3615, 0
        %vm3725 = vcmp.ne.s32.totalorder %v3622, 0
        %vm3726 = vcmp.ne.s32.totalorder %v3629, 0
        %vm3727 = vcmp.ne.s32.totalorder %v3636, 0
        %vm3728 = vcmp.ne.s32.totalorder %v3643, 0
        %vm3729 = vcmp.ne.s32.totalorder %v3650, 0
        %vm3730 = vcmp.ne.s32.totalorder %v3657, 0
        %vm3731 = vcmp.ne.s32.totalorder %v3664, 0
        %vm3732 = vcmp.ne.s32.totalorder %v3671, 0
        %vm3733 = vcmp.ne.s32.totalorder %v3678, 0
        %vm3734 = vcmp.ne.s32.totalorder %v3685, 0
        %vm3735 = vcmp.lt.s32.totalorder %v3349, 0
        %vm3736 = vcmp.lt.s32.totalorder %v3356, 0
        %vm3737 = vcmp.lt.s32.totalorder %v3363, 0
        %vm3738 = vcmp.lt.s32.totalorder %v3370, 0
        %vm3739 = vcmp.lt.s32.totalorder %v3377, 0
        %vm3740 = vcmp.lt.s32.totalorder %v3384, 0
        %vm3741 = vcmp.lt.s32.totalorder %v3391, 0
        %vm3742 = vcmp.lt.s32.totalorder %v3398, 0
        %vm3743 = vcmp.lt.s32.totalorder %v3405, 0
        %vm3744 = vcmp.lt.s32.totalorder %v3412, 0
        %vm3745 = vcmp.lt.s32.totalorder %v3419, 0
        %vm3746 = vcmp.lt.s32.totalorder %v3426, 0
        %vm3747 = vcmp.lt.s32.totalorder %v3433, 0
        %vm3748 = vcmp.lt.s32.totalorder %v3440, 0
        %vm3749 = vcmp.lt.s32.totalorder %v3447, 0
        %vm3750 = vcmp.lt.s32.totalorder %v3454, 0
        %vm3751 = vcmp.lt.s32.totalorder %v3461, 0
        %vm3752 = vcmp.lt.s32.totalorder %v3468, 0
        %vm3753 = vcmp.lt.s32.totalorder %v3475, 0
        %vm3754 = vcmp.lt.s32.totalorder %v3482, 0
        %vm3755 = vcmp.lt.s32.totalorder %v3489, 0
        %vm3756 = vcmp.lt.s32.totalorder %v3496, 0
        %vm3757 = vcmp.lt.s32.totalorder %v3503, 0
        %vm3758 = vcmp.lt.s32.totalorder %v3510, 0
        %vm3759 = vcmp.lt.s32.totalorder %v3517, 0
        %vm3760 = vcmp.lt.s32.totalorder %v3524, 0
        %vm3761 = vcmp.lt.s32.totalorder %v3531, 0
        %vm3762 = vcmp.lt.s32.totalorder %v3538, 0
        %vm3763 = vcmp.lt.s32.totalorder %v3545, 0
        %vm3764 = vcmp.lt.s32.totalorder %v3552, 0
        %vm3765 = vcmp.lt.s32.totalorder %v3559, 0
        %vm3766 = vcmp.lt.s32.totalorder %v3566, 0
        %vm3767 = vcmp.lt.s32.totalorder %v3573, 0
        %vm3768 = vcmp.lt.s32.totalorder %v3580, 0
        %vm3769 = vcmp.lt.s32.totalorder %v3587, 0
        %vm3770 = vcmp.lt.s32.totalorder %v3594, 0
        %vm3771 = vcmp.lt.s32.totalorder %v3601, 0
        %vm3772 = vcmp.lt.s32.totalorder %v3608, 0
        %vm3773 = vcmp.lt.s32.totalorder %v3615, 0
        %vm3774 = vcmp.lt.s32.totalorder %v3622, 0
        %vm3775 = vcmp.lt.s32.totalorder %v3629, 0
        %vm3776 = vcmp.lt.s32.totalorder %v3636, 0
        %vm3777 = vcmp.lt.s32.totalorder %v3643, 0
        %vm3778 = vcmp.lt.s32.totalorder %v3650, 0
        %vm3779 = vcmp.lt.s32.totalorder %v3657, 0
        %vm3780 = vcmp.lt.s32.totalorder %v3664, 0
        %vm3781 = vcmp.lt.s32.totalorder %v3671, 0
        %vm3782 = vcmp.lt.s32.totalorder %v3678, 0
        %vm3783 = vcmp.lt.s32.totalorder %v3685, 0
        %vm3784 = vmand %vm3735, %vm3686
        %vm3785 = vmand %vm3736, %vm3687
        %vm3786 = vmand %vm3737, %vm3688
        %vm3787 = vmand %vm3738, %vm3689
        %vm3788 = vmand %vm3739, %vm3690
        %vm3789 = vmand %vm3740, %vm3691
        %vm3790 = vmand %vm3741, %vm3692
        %vm3791 = vmand %vm3742, %vm3693
        %vm3792 = vmand %vm3743, %vm3694
        %vm3793 = vmand %vm3744, %vm3695
        %vm3794 = vmand %vm3745, %vm3696
        %vm3795 = vmand %vm3746, %vm3697
        %vm3796 = vmand %vm3747, %vm3698
        %vm3797 = vmand %vm3748, %vm3699
        %vm3798 = vmand %vm3749, %vm3700
        %vm3799 = vmand %vm3750, %vm3701
        %vm3800 = vmand %vm3751, %vm3702
        %vm3801 = vmand %vm3752, %vm3703
        %vm3802 = vmand %vm3753, %vm3704
        %vm3803 = vmand %vm3754, %vm3705
        %vm3804 = vmand %vm3755, %vm3706
        %vm3805 = vmand %vm3756, %vm3707
        %vm3806 = vmand %vm3757, %vm3708
        %vm3807 = vmand %vm3758, %vm3709
        %vm3808 = vmand %vm3759, %vm3710
        %vm3809 = vmand %vm3760, %vm3711
        %vm3810 = vmand %vm3761, %vm3712
        %vm3811 = vmand %vm3762, %vm3713
        %vm3812 = vmand %vm3763, %vm3714
        %vm3813 = vmand %vm3764, %vm3715
        %vm3814 = vmand %vm3765, %vm3716
        %vm3815 = vmand %vm3766, %vm3717
        %vm3816 = vmand %vm3767, %vm3718
        %vm3817 = vmand %vm3768, %vm3719
        %vm3818 = vmand %vm3769, %vm3720
        %vm3819 = vmand %vm3770, %vm3721
        %vm3820 = vmand %vm3771, %vm3722
        %vm3821 = vmand %vm3772, %vm3723
        %vm3822 = vmand %vm3773, %vm3724
        %vm3823 = vmand %vm3774, %vm3725
        %vm3824 = vmand %vm3775, %vm3726
        %vm3825 = vmand %vm3776, %vm3727
        %vm3826 = vmand %vm3777, %vm3728
        %vm3827 = vmand %vm3778, %vm3729
        %vm3828 = vmand %vm3779, %vm3730
        %vm3829 = vmand %vm3780, %vm3731
        %vm3830 = vmand %vm3781, %vm3732
        %vm3831 = vmand %vm3782, %vm3733
        %vm3832 = vmand %vm3783, %vm3734
        %v3833 = vadd.s32 %v3349, 8
        %v3834 = vadd.s32 %v3356, 8
        %v3835 = vadd.s32 %v3363, 8
        %v3836 = vadd.s32 %v3370, 8
        %v3837 = vadd.s32 %v3377, 8
        %v3838 = vadd.s32 %v3384, 8
        %v3839 = vadd.s32 %v3391, 8
        %v3840 = vadd.s32 %v3398, 8
        %v3841 = vadd.s32 %v3405, 8
        %v3842 = vadd.s32 %v3412, 8
        %v3843 = vadd.s32 %v3419, 8
        %v3844 = vadd.s32 %v3426, 8
        %v3845 = vadd.s32 %v3433, 8
        %v3846 = vadd.s32 %v3440, 8
        %v3847 = vadd.s32 %v3447, 8
        %v3848 = vadd.s32 %v3454, 8
        %v3849 = vadd.s32 %v3461, 8
        %v3850 = vadd.s32 %v3468, 8
        %v3851 = vadd.s32 %v3475, 8
        %v3852 = vadd.s32 %v3482, 8
        %v3853 = vadd.s32 %v3489, 8
        %v3854 = vadd.s32 %v3496, 8
        %v3855 = vadd.s32 %v3503, 8
        %v3856 = vadd.s32 %v3510, 8
        %v3857 = vadd.s32 %v3517, 8
        %v3858 = vadd.s32 %v3524, 8
        %v3859 = vadd.s32 %v3531, 8
        %v3860 = vadd.s32 %v3538, 8
        %v3861 = vadd.s32 %v3545, 8
        %v3862 = vadd.s32 %v3552, 8
        %v3863 = vadd.s32 %v3559, 8
        %v3864 = vadd.s32 %v3566, 8
        %v3865 = vadd.s32 %v3573, 8
        %v3866 = vadd.s32 %v3580, 8
        %v3867 = vadd.s32 %v3587, 8
        %v3868 = vadd.s32 %v3594, 8
        %v3869 = vadd.s32 %v3601, 8
        %v3870 = vadd.s32 %v3608, 8
        %v3871 = vadd.s32 %v3615, 8
        %v3872 = vadd.s32 %v3622, 8
        %v3873 = vadd.s32 %v3629, 8
        %v3874 = vadd.s32 %v3636, 8
        %v3875 = vadd.s32 %v3643, 8
        %v3876 = vadd.s32 %v3650, 8
        %v3877 = vadd.s32 %v3657, 8
        %v3878 = vadd.s32 %v3664, 8
        %v3879 = vadd.s32 %v3671, 8
        %v3880 = vadd.s32 %v3678, 8
        %v3881 = vadd.s32 %v3685, 8
        %v3882 = vsel %vm3784, %v3833, %v3349
        %v3883 = vsel %vm3785, %v3834, %v3356
        %v3884 = vsel %vm3786, %v3835, %v3363
        %v3885 = vsel %vm3787, %v3836, %v3370
        %v3886 = vsel %vm3788, %v3837, %v3377
        %v3887 = vsel %vm3789, %v3838, %v3384
        %v3888 = vsel %vm3790, %v3839, %v3391
        %v3889 = vsel %vm3791, %v3840, %v3398
        %v3890 = vsel %vm3792, %v3841, %v3405
        %v3891 = vsel %vm3793, %v3842, %v3412
        %v3892 = vsel %vm3794, %v3843, %v3419
        %v3893 = vsel %vm3795, %v3844, %v3426
        %v3894 = vsel %vm3796, %v3845, %v3433
        %v3895 = vsel %vm3797, %v3846, %v3440
        %v3896 = vsel %vm3798, %v3847, %v3447
        %v3897 = vsel %vm3799, %v3848, %v3454
        %v3898 = vsel %vm3800, %v3849, %v3461
        %v3899 = vsel %vm3801, %v3850, %v3468
        %v3900 = vsel %vm3802, %v3851, %v3475
        %v3901 = vsel %vm3803, %v3852, %v3482
        %v3902 = vsel %vm3804, %v3853, %v3489
        %v3903 = vsel %vm3805, %v3854, %v3496
        %v3904 = vsel %vm3806, %v3855, %v3503
        %v3905 = vsel %vm3807, %v3856, %v3510
        %v3906 = vsel %vm3808, %v3857, %v3517
        %v3907 = vsel %vm3809, %v3858, %v3524
        %v3908 = vsel %vm3810, %v3859, %v3531
        %v3909 = vsel %vm3811, %v3860, %v3538
        %v3910 = vsel %vm3812, %v3861, %v3545
        %v3911 = vsel %vm3813, %v3862, %v3552
        %v3912 = vsel %vm3814, %v3863, %v3559
        %v3913 = vsel %vm3815, %v3864, %v3566
        %v3914 = vsel %vm3816, %v3865, %v3573
        %v3915 = vsel %vm3817, %v3866, %v3580
        %v3916 = vsel %vm3818, %v3867, %v3587
        %v3917 = vsel %vm3819, %v3868, %v3594
        %v3918 = vsel %vm3820, %v3869, %v3601
        %v3919 = vsel %vm3821, %v3870, %v3608
        %v3920 = vsel %vm3822, %v3871, %v3615
        %v3921 = vsel %vm3823, %v3872, %v3622
        %v3922 = vsel %vm3824, %v3873, %v3629
        %v3923 = vsel %vm3825, %v3874, %v3636
        %v3924 = vsel %vm3826, %v3875, %v3643
        %v3925 = vsel %vm3827, %v3876, %v3650
        %v3926 = vsel %vm3828, %v3877, %v3657
        %v3927 = vsel %vm3829, %v3878, %v3664
        %v3928 = vsel %vm3830, %v3879, %v3671
        %v3929 = vsel %vm3831, %v3880, %v3678
        %v3930 = vsel %vm3832, %v3881, %v3685
        %vm3931 = vcmp.lt.s32.totalorder %v3882, 4
        %vm3932 = vcmp.lt.s32.totalorder %v3883, 4
        %vm3933 = vcmp.lt.s32.totalorder %v3884, 4
        %vm3934 = vcmp.lt.s32.totalorder %v3885, 4
        %vm3935 = vcmp.lt.s32.totalorder %v3886, 4
        %vm3936 = vcmp.lt.s32.totalorder %v3887, 4
        %vm3937 = vcmp.lt.s32.totalorder %v3888, 4
        %vm3938 = vcmp.lt.s32.totalorder %v3889, 4
        %vm3939 = vcmp.lt.s32.totalorder %v3890, 4
        %vm3940 = vcmp.lt.s32.totalorder %v3891, 4
        %vm3941 = vcmp.lt.s32.totalorder %v3892, 4
        %vm3942 = vcmp.lt.s32.totalorder %v3893, 4
        %vm3943 = vcmp.lt.s32.totalorder %v3894, 4
        %vm3944 = vcmp.lt.s32.totalorder %v3895, 4
        %vm3945 = vcmp.lt.s32.totalorder %v3896, 4
        %vm3946 = vcmp.lt.s32.totalorder %v3897, 4
        %vm3947 = vcmp.lt.s32.totalorder %v3898, 4
        %vm3948 = vcmp.lt.s32.totalorder %v3899, 4
        %vm3949 = vcmp.lt.s32.totalorder %v3900, 4
        %vm3950 = vcmp.lt.s32.totalorder %v3901, 4
        %vm3951 = vcmp.lt.s32.totalorder %v3902, 4
        %vm3952 = vcmp.lt.s32.totalorder %v3903, 4
        %vm3953 = vcmp.lt.s32.totalorder %v3904, 4
        %vm3954 = vcmp.lt.s32.totalorder %v3905, 4
        %vm3955 = vcmp.lt.s32.totalorder %v3906, 4
        %vm3956 = vcmp.lt.s32.totalorder %v3907, 4
        %vm3957 = vcmp.lt.s32.totalorder %v3908, 4
        %vm3958 = vcmp.lt.s32.totalorder %v3909, 4
        %vm3959 = vcmp.lt.s32.totalorder %v3910, 4
        %vm3960 = vcmp.lt.s32.totalorder %v3911, 4
        %vm3961 = vcmp.lt.s32.totalorder %v3912, 4
        %vm3962 = vcmp.lt.s32.totalorder %v3913, 4
        %vm3963 = vcmp.lt.s32.totalorder %v3914, 4
        %vm3964 = vcmp.lt.s32.totalorder %v3915, 4
        %vm3965 = vcmp.lt.s32.totalorder %v3916, 4
        %vm3966 = vcmp.lt.s32.totalorder %v3917, 4
        %vm3967 = vcmp.lt.s32.totalorder %v3918, 4
        %vm3968 = vcmp.lt.s32.totalorder %v3919, 4
        %vm3969 = vcmp.lt.s32.totalorder %v3920, 4
        %vm3970 = vcmp.lt.s32.totalorder %v3921, 4
        %vm3971 = vcmp.lt.s32.totalorder %v3922, 4
        %vm3972 = vcmp.lt.s32.totalorder %v3923, 4
        %vm3973 = vcmp.lt.s32.totalorder %v3924, 4
        %vm3974 = vcmp.lt.s32.totalorder %v3925, 4
        %vm3975 = vcmp.lt.s32.totalorder %v3926, 4
        %vm3976 = vcmp.lt.s32.totalorder %v3927, 4
        %vm3977 = vcmp.lt.s32.totalorder %v3928, 4
        %vm3978 = vcmp.lt.s32.totalorder %v3929, 4
        %vm3979 = vcmp.lt.s32.totalorder %v3930, 4
        %v3980 = vsel %vm3931, 1, 0
        %v3981 = vsel %vm3932, 1, 0
        %v3982 = vsel %vm3933, 1, 0
        %v3983 = vsel %vm3934, 1, 0
        %v3984 = vsel %vm3935, 1, 0
        %v3985 = vsel %vm3936, 1, 0
        %v3986 = vsel %vm3937, 1, 0
        %v3987 = vsel %vm3938, 1, 0
        %v3988 = vsel %vm3939, 1, 0
        %v3989 = vsel %vm3940, 1, 0
        %v3990 = vsel %vm3941, 1, 0
        %v3991 = vsel %vm3942, 1, 0
        %v3992 = vsel %vm3943, 1, 0
        %v3993 = vsel %vm3944, 1, 0
        %v3994 = vsel %vm3945, 1, 0
        %v3995 = vsel %vm3946, 1, 0
        %v3996 = vsel %vm3947, 1, 0
        %v3997 = vsel %vm3948, 1, 0
        %v3998 = vsel %vm3949, 1, 0
        %v3999 = vsel %vm3950, 1, 0
        %v4000 = vsel %vm3951, 1, 0
        %v4001 = vsel %vm3952, 1, 0
        %v4002 = vsel %vm3953, 1, 0
        %v4003 = vsel %vm3954, 1, 0
        %v4004 = vsel %vm3955, 1, 0
        %v4005 = vsel %vm3956, 1, 0
        %v4006 = vsel %vm3957, 1, 0
        %v4007 = vsel %vm3958, 1, 0
        %v4008 = vsel %vm3959, 1, 0
        %v4009 = vsel %vm3960, 1, 0
        %v4010 = vsel %vm3961, 1, 0
        %v4011 = vsel %vm3962, 1, 0
        %v4012 = vsel %vm3963, 1, 0
        %v4013 = vsel %vm3964, 1, 0
        %v4014 = vsel %vm3965, 1, 0
        %v4015 = vsel %vm3966, 1, 0
        %v4016 = vsel %vm3967, 1, 0
        %v4017 = vsel %vm3968, 1, 0
        %v4018 = vsel %vm3969, 1, 0
        %v4019 = vsel %vm3970, 1, 0
        %v4020 = vsel %vm3971, 1, 0
        %v4021 = vsel %vm3972, 1, 0
        %v4022 = vsel %vm3973, 1, 0
        %v4023 = vsel %vm3974, 1, 0
        %v4024 = vsel %vm3975, 1, 0
        %v4025 = vsel %vm3976, 1, 0
        %v4026 = vsel %vm3977, 1, 0
        %v4027 = vsel %vm3978, 1, 0
        %v4028 = vsel %vm3979, 1, 0
        %v4029 = vcvt.s32.f32 %v3980
        %v4030 = vcvt.s32.f32 %v3981
        %v4031 = vcvt.s32.f32 %v3982
        %v4032 = vcvt.s32.f32 %v3983
        %v4033 = vcvt.s32.f32 %v3984
        %v4034 = vcvt.s32.f32 %v3985
        %v4035 = vcvt.s32.f32 %v3986
        %v4036 = vcvt.s32.f32 %v3987
        %v4037 = vcvt.s32.f32 %v3988
        %v4038 = vcvt.s32.f32 %v3989
        %v4039 = vcvt.s32.f32 %v3990
        %v4040 = vcvt.s32.f32 %v3991
        %v4041 = vcvt.s32.f32 %v3992
        %v4042 = vcvt.s32.f32 %v3993
        %v4043 = vcvt.s32.f32 %v3994
        %v4044 = vcvt.s32.f32 %v3995
        %v4045 = vcvt.s32.f32 %v3996
        %v4046 = vcvt.s32.f32 %v3997
        %v4047 = vcvt.s32.f32 %v3998
        %v4048 = vcvt.s32.f32 %v3999
        %v4049 = vcvt.s32.f32 %v4000
        %v4050 = vcvt.s32.f32 %v4001
        %v4051 = vcvt.s32.f32 %v4002
        %v4052 = vcvt.s32.f32 %v4003
        %v4053 = vcvt.s32.f32 %v4004
        %v4054 = vcvt.s32.f32 %v4005
        %v4055 = vcvt.s32.f32 %v4006
        %v4056 = vcvt.s32.f32 %v4007
        %v4057 = vcvt.s32.f32 %v4008
        %v4058 = vcvt.s32.f32 %v4009
        %v4059 = vcvt.s32.f32 %v4010
        %v4060 = vcvt.s32.f32 %v4011
        %v4061 = vcvt.s32.f32 %v4012
        %v4062 = vcvt.s32.f32 %v4013
        %v4063 = vcvt.s32.f32 %v4014
        %v4064 = vcvt.s32.f32 %v4015
        %v4065 = vcvt.s32.f32 %v4016
        %v4066 = vcvt.s32.f32 %v4017
        %v4067 = vcvt.s32.f32 %v4018
        %v4068 = vcvt.s32.f32 %v4019
        %v4069 = vcvt.s32.f32 %v4020
        %v4070 = vcvt.s32.f32 %v4021
        %v4071 = vcvt.s32.f32 %v4022
        %v4072 = vcvt.s32.f32 %v4023
        %v4073 = vcvt.s32.f32 %v4024
        %v4074 = vcvt.s32.f32 %v4025
        %v4075 = vcvt.s32.f32 %v4026
        %v4076 = vcvt.s32.f32 %v4027
        %v4077 = vcvt.s32.f32 %v4028
        %v4078 = vmul.f32 %v3244, %v4029
        %v4079 = vmul.f32 %v3245, %v4030
        %v4080 = vmul.f32 %v3246, %v4031
        %v4081 = vmul.f32 %v3247, %v4032
        %v4082 = vmul.f32 %v3248, %v4033
        %v4083 = vmul.f32 %v3249, %v4034
        %v4084 = vmul.f32 %v3250, %v4035
        %v4085 = vmul.f32 %v3251, %v4036
        %v4086 = vmul.f32 %v3252, %v4037
        %v4087 = vmul.f32 %v3253, %v4038
        %v4088 = vmul.f32 %v3254, %v4039
        %v4089 = vmul.f32 %v3255, %v4040
        %v4090 = vmul.f32 %v3256, %v4041
        %v4091 = vmul.f32 %v3257, %v4042
        %v4092 = vmul.f32 %v3258, %v4043
        %v4093 = vmul.f32 %v3259, %v4044
        %v4094 = vmul.f32 %v3260, %v4045
        %v4095 = vmul.f32 %v3261, %v4046
        %v4096 = vmul.f32 %v3262, %v4047
        %v4097 = vmul.f32 %v3263, %v4048
        %v4098 = vmul.f32 %v3264, %v4049
        %v4099 = vmul.f32 %v3265, %v4050
        %v4100 = vmul.f32 %v3266, %v4051
        %v4101 = vmul.f32 %v3267, %v4052
        %v4102 = vmul.f32 %v3268, %v4053
        %v4103 = vmul.f32 %v3269, %v4054
        %v4104 = vmul.f32 %v3270, %v4055
        %v4105 = vmul.f32 %v3271, %v4056
        %v4106 = vmul.f32 %v3272, %v4057
        %v4107 = vmul.f32 %v3273, %v4058
        %v4108 = vmul.f32 %v3274, %v4059
        %v4109 = vmul.f32 %v3275, %v4060
        %v4110 = vmul.f32 %v3276, %v4061
        %v4111 = vmul.f32 %v3277, %v4062
        %v4112 = vmul.f32 %v3278, %v4063
        %v4113 = vmul.f32 %v3279, %v4064
        %v4114 = vmul.f32 %v3280, %v4065
        %v4115 = vmul.f32 %v3281, %v4066
        %v4116 = vmul.f32 %v3282, %v4067
        %v4117 = vmul.f32 %v3283, %v4068
        %v4118 = vmul.f32 %v3284, %v4069
        %v4119 = vmul.f32 %v3285, %v4070
        %v4120 = vmul.f32 %v3286, %v4071
        %v4121 = vmul.f32 %v3287, %v4072
        %v4122 = vmul.f32 %v3288, %v4073
        %v4123 = vmul.f32 %v3289, %v4074
        %v4124 = vmul.f32 %v3290, %v4075
        %v4125 = vmul.f32 %v3291, %v4076
        %v4126 = vmul.f32 %v3292, %v4077
        %v4127 = vadd.f32 %v4078, %v4079
        %v4128 = vadd.f32 %v4127, %v4080
        %v4129 = vadd.f32 %v4128, %v4081
        %v4130 = vadd.f32 %v4129, %v4082
        %v4131 = vadd.f32 %v4130, %v4083
        %v4132 = vadd.f32 %v4131, %v4084
        %v4133 = vadd.f32 %v4132, %v4085
        %v4134 = vadd.f32 %v4133, %v4086
        %v4135 = vadd.f32 %v4134, %v4087
        %v4136 = vadd.f32 %v4135, %v4088
        %v4137 = vadd.f32 %v4136, %v4089
        %v4138 = vadd.f32 %v4137, %v4090
        %v4139 = vadd.f32 %v4138, %v4091
        %v4140 = vadd.f32 %v4139, %v4092
        %v4141 = vadd.f32 %v4140, %v4093
        %v4142 = vadd.f32 %v4141, %v4094
        %v4143 = vadd.f32 %v4142, %v4095
        %v4144 = vadd.f32 %v4143, %v4096
        %v4145 = vadd.f32 %v4144, %v4097
        %v4146 = vadd.f32 %v4145, %v4098
        %v4147 = vadd.f32 %v4146, %v4099
        %v4148 = vadd.f32 %v4147, %v4100
        %v4149 = vadd.f32 %v4148, %v4101
        %v4150 = vadd.f32 %v4149, %v4102
        %v4151 = vadd.f32 %v4150, %v4103
        %v4152 = vadd.f32 %v4151, %v4104
        %v4153 = vadd.f32 %v4152, %v4105
        %v4154 = vadd.f32 %v4153, %v4106
        %v4155 = vadd.f32 %v4154, %v4107
        %v4156 = vadd.f32 %v4155, %v4108
        %v4157 = vadd.f32 %v4156, %v4109
        %v4158 = vadd.f32 %v4157, %v4110
        %v4159 = vadd.f32 %v4158, %v4111
        %v4160 = vadd.f32 %v4159, %v4112
        %v4161 = vadd.f32 %v4160, %v4113
        %v4162 = vadd.f32 %v4161, %v4114
        %v4163 = vadd.f32 %v4162, %v4115
        %v4164 = vadd.f32 %v4163, %v4116
        %v4165 = vadd.f32 %v4164, %v4117
        %v4166 = vadd.f32 %v4165, %v4118
        %v4167 = vadd.f32 %v4166, %v4119
        %v4168 = vadd.f32 %v4167, %v4120
        %v4169 = vadd.f32 %v4168, %v4121
        %v4170 = vadd.f32 %v4169, %v4122
        %v4171 = vadd.f32 %v4170, %v4123
        %v4172 = vadd.f32 %v4171, %v4124
        %v4173 = vadd.f32 %v4172, %v4125
        %v4174 = vadd.f32 %v4173, %v4126
        %v4175 = vrot.slane %v4174, 4
        %v4176 = vadd.f32 %v4174, %v4175
        %v4177 = vrot.slane %v4176, 2
        %v4178 = vadd.f32 %v4176, %v4177
        %v4179 = vrot.slane %v4178, 1
        %v4180 = vadd.f32 %v4178, %v4179
        %v4181 = vmul.f32 %v3244, %v3244
        %v4182 = vmul.f32 %v3245, %v3245
        %v4183 = vmul.f32 %v3246, %v3246
        %v4184 = vmul.f32 %v3247, %v3247
        %v4185 = vmul.f32 %v3248, %v3248
        %v4186 = vmul.f32 %v3249, %v3249
        %v4187 = vmul.f32 %v3250, %v3250
        %v4188 = vmul.f32 %v3251, %v3251
        %v4189 = vmul.f32 %v3252, %v3252
        %v4190 = vmul.f32 %v3253, %v3253
        %v4191 = vmul.f32 %v3254, %v3254
        %v4192 = vmul.f32 %v3255, %v3255
        %v4193 = vmul.f32 %v3256, %v3256
        %v4194 = vmul.f32 %v3257, %v3257
        %v4195 = vmul.f32 %v3258, %v3258
        %v4196 = vmul.f32 %v3259, %v3259
        %v4197 = vmul.f32 %v3260, %v3260
        %v4198 = vmul.f32 %v3261, %v3261
        %v4199 = vmul.f32 %v3262, %v3262
        %v4200 = vmul.f32 %v3263, %v3263
        %v4201 = vmul.f32 %v3264, %v3264
        %v4202 = vmul.f32 %v3265, %v3265
        %v4203 = vmul.f32 %v3266, %v3266
        %v4204 = vmul.f32 %v3267, %v3267
        %v4205 = vmul.f32 %v3268, %v3268
        %v4206 = vmul.f32 %v3269, %v3269
        %v4207 = vmul.f32 %v3270, %v3270
        %v4208 = vmul.f32 %v3271, %v3271
        %v4209 = vmul.f32 %v3272, %v3272
        %v4210 = vmul.f32 %v3273, %v3273
        %v4211 = vmul.f32 %v3274, %v3274
        %v4212 = vmul.f32 %v3275, %v3275
        %v4213 = vmul.f32 %v3276, %v3276
        %v4214 = vmul.f32 %v3277, %v3277
        %v4215 = vmul.f32 %v3278, %v3278
        %v4216 = vmul.f32 %v3279, %v3279
        %v4217 = vmul.f32 %v3280, %v3280
        %v4218 = vmul.f32 %v3281, %v3281
        %v4219 = vmul.f32 %v3282, %v3282
        %v4220 = vmul.f32 %v3283, %v3283
        %v4221 = vmul.f32 %v3284, %v3284
        %v4222 = vmul.f32 %v3285, %v3285
        %v4223 = vmul.f32 %v3286, %v3286
        %v4224 = vmul.f32 %v3287, %v3287
        %v4225 = vmul.f32 %v3288, %v3288
        %v4226 = vmul.f32 %v3289, %v3289
        %v4227 = vmul.f32 %v3290, %v3290
        %v4228 = vmul.f32 %v3291, %v3291
        %v4229 = vmul.f32 %v3292, %v3292
        %v4230 = vmul.f32 %v4181, %v4029
        %v4231 = vmul.f32 %v4182, %v4030
        %v4232 = vmul.f32 %v4183, %v4031
        %v4233 = vmul.f32 %v4184, %v4032
        %v4234 = vmul.f32 %v4185, %v4033
        %v4235 = vmul.f32 %v4186, %v4034
        %v4236 = vmul.f32 %v4187, %v4035
        %v4237 = vmul.f32 %v4188, %v4036
        %v4238 = vmul.f32 %v4189, %v4037
        %v4239 = vmul.f32 %v4190, %v4038
        %v4240 = vmul.f32 %v4191, %v4039
        %v4241 = vmul.f32 %v4192, %v4040
        %v4242 = vmul.f32 %v4193, %v4041
        %v4243 = vmul.f32 %v4194, %v4042
        %v4244 = vmul.f32 %v4195, %v4043
        %v4245 = vmul.f32 %v4196, %v4044
        %v4246 = vmul.f32 %v4197, %v4045
        %v4247 = vmul.f32 %v4198, %v4046
        %v4248 = vmul.f32 %v4199, %v4047
        %v4249 = vmul.f32 %v4200, %v4048
        %v4250 = vmul.f32 %v4201, %v4049
        %v4251 = vmul.f32 %v4202, %v4050
        %v4252 = vmul.f32 %v4203, %v4051
        %v4253 = vmul.f32 %v4204, %v4052
        %v4254 = vmul.f32 %v4205, %v4053
        %v4255 = vmul.f32 %v4206, %v4054
        %v4256 = vmul.f32 %v4207, %v4055
        %v4257 = vmul.f32 %v4208, %v4056
        %v4258 = vmul.f32 %v4209, %v4057
        %v4259 = vmul.f32 %v4210, %v4058
        %v4260 = vmul.f32 %v4211, %v4059
        %v4261 = vmul.f32 %v4212, %v4060
        %v4262 = vmul.f32 %v4213, %v4061
        %v4263 = vmul.f32 %v4214, %v4062
        %v4264 = vmul.f32 %v4215, %v4063
        %v4265 = vmul.f32 %v4216, %v4064
        %v4266 = vmul.f32 %v4217, %v4065
        %v4267 = vmul.f32 %v4218, %v4066
        %v4268 = vmul.f32 %v4219, %v4067
        %v4269 = vmul.f32 %v4220, %v4068
        %v4270 = vmul.f32 %v4221, %v4069
        %v4271 = vmul.f32 %v4222, %v4070
        %v4272 = vmul.f32 %v4223, %v4071
        %v4273 = vmul.f32 %v4224, %v4072
        %v4274 = vmul.f32 %v4225, %v4073
        %v4275 = vmul.f32 %v4226, %v4074
        %v4276 = vmul.f32 %v4227, %v4075
        %v4277 = vmul.f32 %v4228, %v4076
        %v4278 = vmul.f32 %v4229, %v4077
        %v4279 = vadd.f32 %v4230, %v4231
        %v4280 = vadd.f32 %v4279, %v4232
        %v4281 = vadd.f32 %v4280, %v4233
        %v4282 = vadd.f32 %v4281, %v4234
        %v4283 = vadd.f32 %v4282, %v4235
        %v4284 = vadd.f32 %v4283, %v4236
        %v4285 = vadd.f32 %v4284, %v4237
        %v4286 = vadd.f32 %v4285, %v4238
        %v4287 = vadd.f32 %v4286, %v4239
        %v4288 = vadd.f32 %v4287, %v4240
        %v4289 = vadd.f32 %v4288, %v4241
        %v4290 = vadd.f32 %v4289, %v4242
        %v4291 = vadd.f32 %v4290, %v4243
        %v4292 = vadd.f32 %v4291, %v4244
        %v4293 = vadd.f32 %v4292, %v4245
        %v4294 = vadd.f32 %v4293, %v4246
        %v4295 = vadd.f32 %v4294, %v4247
        %v4296 = vadd.f32 %v4295, %v4248
        %v4297 = vadd.f32 %v4296, %v4249
        %v4298 = vadd.f32 %v4297, %v4250
        %v4299 = vadd.f32 %v4298, %v4251
        %v4300 = vadd.f32 %v4299, %v4252
        %v4301 = vadd.f32 %v4300, %v4253
        %v4302 = vadd.f32 %v4301, %v4254
        %v4303 = vadd.f32 %v4302, %v4255
        %v4304 = vadd.f32 %v4303, %v4256
        %v4305 = vadd.f32 %v4304, %v4257
        %v4306 = vadd.f32 %v4305, %v4258
        %v4307 = vadd.f32 %v4306, %v4259
        %v4308 = vadd.f32 %v4307, %v4260
        %v4309 = vadd.f32 %v4308, %v4261
        %v4310 = vadd.f32 %v4309, %v4262
        %v4311 = vadd.f32 %v4310, %v4263
        %v4312 = vadd.f32 %v4311, %v4264
        %v4313 = vadd.f32 %v4312, %v4265
        %v4314 = vadd.f32 %v4313, %v4266
        %v4315 = vadd.f32 %v4314, %v4267
        %v4316 = vadd.f32 %v4315, %v4268
        %v4317 = vadd.f32 %v4316, %v4269
        %v4318 = vadd.f32 %v4317, %v4270
        %v4319 = vadd.f32 %v4318, %v4271
        %v4320 = vadd.f32 %v4319, %v4272
        %v4321 = vadd.f32 %v4320, %v4273
        %v4322 = vadd.f32 %v4321, %v4274
        %v4323 = vadd.f32 %v4322, %v4275
        %v4324 = vadd.f32 %v4323, %v4276
        %v4325 = vadd.f32 %v4324, %v4277
        %v4326 = vadd.f32 %v4325, %v4278
        %v4327 = vrot.slane %v4326, 4
        %v4328 = vadd.f32 %v4326, %v4327
        %v4329 = vrot.slane %v4328, 2
        %v4330 = vadd.f32 %v4328, %v4329
        %v4331 = vrot.slane %v4330, 1
        %v4332 = vadd.f32 %v4330, %v4331
        %v4333 = vrcp.pop 196.0
        %v4334 = vmul.f32 196.0, %v4333
        %v4335 = vsub.f32 1.0, %v4334
        %v4336 = vmul.f32 %v4333, %v4335
        %v4337 = vadd.f32 %v4333, %v4336
        %vm4338 = vweird.f32 %v4333
        %v4339 = vsel %vm4338, %v4333, %v4337
        %v4340 = vmul.f32 %v4180, %v4339
        %v4341 = vmul.f32 %v4332, %v4339
        %v4342 = vmul.f32 %v4340, %v4340
        %v4343 = vsub.f32 %v4341, %v4342
        %v4344 = vmax.f32 %v4343, 0.0
        %v4345 = vld [vmem:[%s3] sm:$0x1]
        %v4346 = vadd.f32 %v4344, 1e-05
        %v4347 = vrsqrt.pop %v4346
        %v4348 = vmul.f32 %v4347, %v4346
        %v4349 = vmul.f32 %v4348, %v4347
        %v4350 = vmul.f32 0.5, %v4349
        %v4351 = vsub.f32 1.5, %v4350
        %v4352 = vmul.f32 %v4347, %v4351
        %vm4353 = vweird.f32 %v4346
        %vm4354 = vweird.f32 %v4347
        %vm4355 = vmor %vm4353, %vm4354
        %v4356 = vsel %vm4355, %v4347, %v4352
        %v4357 = vmul.f32 %v4345, %v4356
        %v4358 = vld [vmem:[%s4] sm:$0x1]
        %v4359 = vmul.f32 %v4340, %v4357
        %v4360 = vsub.f32 %v4358, %v4359
        %v4362 = vperm.slane %v4357, 0
        %v4364 = vmul.f32 %v3244, %v4362
        %v4365 = vmul.f32 %v3245, %v4362
        %v4366 = vmul.f32 %v3246, %v4362
        %v4367 = vmul.f32 %v3247, %v4362
        %v4368 = vmul.f32 %v3248, %v4362
        %v4369 = vmul.f32 %v3249, %v4362
        %v4370 = vmul.f32 %v3250, %v4362
        %v4371 = vmul.f32 %v3251, %v4362
        %v4372 = vmul.f32 %v3252, %v4362
        %v4373 = vmul.f32 %v3253, %v4362
        %v4374 = vmul.f32 %v3254, %v4362
        %v4375 = vmul.f32 %v3255, %v4362
        %v4376 = vmul.f32 %v3256, %v4362
        %v4377 = vmul.f32 %v3257, %v4362
        %v4378 = vmul.f32 %v3258, %v4362
        %v4379 = vmul.f32 %v3259, %v4362
        %v4380 = vmul.f32 %v3260, %v4362
        %v4381 = vmul.f32 %v3261, %v4362
        %v4382 = vmul.f32 %v3262, %v4362
        %v4383 = vmul.f32 %v3263, %v4362
        %v4384 = vmul.f32 %v3264, %v4362
        %v4385 = vmul.f32 %v3265, %v4362
        %v4386 = vmul.f32 %v3266, %v4362
        %v4387 = vmul.f32 %v3267, %v4362
        %v4388 = vmul.f32 %v3268, %v4362
        %v4389 = vmul.f32 %v3269, %v4362
        %v4390 = vmul.f32 %v3270, %v4362
        %v4391 = vmul.f32 %v3271, %v4362
        %v4392 = vmul.f32 %v3272, %v4362
        %v4393 = vmul.f32 %v3273, %v4362
        %v4394 = vmul.f32 %v3274, %v4362
        %v4395 = vmul.f32 %v3275, %v4362
        %v4396 = vmul.f32 %v3276, %v4362
        %v4397 = vmul.f32 %v3277, %v4362
        %v4398 = vmul.f32 %v3278, %v4362
        %v4399 = vmul.f32 %v3279, %v4362
        %v4400 = vmul.f32 %v3280, %v4362
        %v4401 = vmul.f32 %v3281, %v4362
        %v4402 = vmul.f32 %v3282, %v4362
        %v4403 = vmul.f32 %v3283, %v4362
        %v4404 = vmul.f32 %v3284, %v4362
        %v4405 = vmul.f32 %v3285, %v4362
        %v4406 = vmul.f32 %v3286, %v4362
        %v4407 = vmul.f32 %v3287, %v4362
        %v4408 = vmul.f32 %v3288, %v4362
        %v4409 = vmul.f32 %v3289, %v4362
        %v4410 = vmul.f32 %v3290, %v4362
        %v4411 = vmul.f32 %v3291, %v4362
        %v4412 = vmul.f32 %v3292, %v4362
        %v4414 = vperm.slane %v4360, 0
        %v4416 = vadd.f32 %v4364, %v4414
        %v4417 = vadd.f32 %v4365, %v4414
        %v4418 = vadd.f32 %v4366, %v4414
        %v4419 = vadd.f32 %v4367, %v4414
        %v4420 = vadd.f32 %v4368, %v4414
        %v4421 = vadd.f32 %v4369, %v4414
        %v4422 = vadd.f32 %v4370, %v4414
        %v4423 = vadd.f32 %v4371, %v4414
        %v4424 = vadd.f32 %v4372, %v4414
        %v4425 = vadd.f32 %v4373, %v4414
        %v4426 = vadd.f32 %v4374, %v4414
        %v4427 = vadd.f32 %v4375, %v4414
        %v4428 = vadd.f32 %v4376, %v4414
        %v4429 = vadd.f32 %v4377, %v4414
        %v4430 = vadd.f32 %v4378, %v4414
        %v4431 = vadd.f32 %v4379, %v4414
        %v4432 = vadd.f32 %v4380, %v4414
        %v4433 = vadd.f32 %v4381, %v4414
        %v4434 = vadd.f32 %v4382, %v4414
        %v4435 = vadd.f32 %v4383, %v4414
        %v4436 = vadd.f32 %v4384, %v4414
        %v4437 = vadd.f32 %v4385, %v4414
        %v4438 = vadd.f32 %v4386, %v4414
        %v4439 = vadd.f32 %v4387, %v4414
        %v4440 = vadd.f32 %v4388, %v4414
        %v4441 = vadd.f32 %v4389, %v4414
        %v4442 = vadd.f32 %v4390, %v4414
        %v4443 = vadd.f32 %v4391, %v4414
        %v4444 = vadd.f32 %v4392, %v4414
        %v4445 = vadd.f32 %v4393, %v4414
        %v4446 = vadd.f32 %v4394, %v4414
        %v4447 = vadd.f32 %v4395, %v4414
        %v4448 = vadd.f32 %v4396, %v4414
        %v4449 = vadd.f32 %v4397, %v4414
        %v4450 = vadd.f32 %v4398, %v4414
        %v4451 = vadd.f32 %v4399, %v4414
        %v4452 = vadd.f32 %v4400, %v4414
        %v4453 = vadd.f32 %v4401, %v4414
        %v4454 = vadd.f32 %v4402, %v4414
        %v4455 = vadd.f32 %v4403, %v4414
        %v4456 = vadd.f32 %v4404, %v4414
        %v4457 = vadd.f32 %v4405, %v4414
        %v4458 = vadd.f32 %v4406, %v4414
        %v4459 = vadd.f32 %v4407, %v4414
        %v4460 = vadd.f32 %v4408, %v4414
        %v4461 = vadd.f32 %v4409, %v4414
        %v4462 = vadd.f32 %v4410, %v4414
        %v4463 = vadd.f32 %v4411, %v4414
        %v4464 = vadd.f32 %v4412, %v4414
        %4465 = vst [vmem:[#allocation2] sm:$0xff] %v4416
        %4466 = vst [vmem:[#allocation2 + $0x8] sm:$0xff] %v4417
        %4467 = vst [vmem:[#allocation2 + $0x10] sm:$0xff] %v4418
        %4468 = vst [vmem:[#allocation2 + $0x18] sm:$0xff] %v4419
        %4469 = vst [vmem:[#allocation2 + $0x20] sm:$0xff] %v4420
        %4470 = vst [vmem:[#allocation2 + $0x28] sm:$0xff] %v4421
        %4471 = vst [vmem:[#allocation2 + $0x30] sm:$0xff] %v4422
        %4472 = vst [vmem:[#allocation2 + $0x38] sm:$0xff] %v4423
        %4473 = vst [vmem:[#allocation2 + $0x40] sm:$0xff] %v4424
        %4474 = vst [vmem:[#allocation2 + $0x48] sm:$0xff] %v4425
        %4475 = vst [vmem:[#allocation2 + $0x50] sm:$0xff] %v4426
        %4476 = vst [vmem:[#allocation2 + $0x58] sm:$0xff] %v4427
        %4477 = vst [vmem:[#allocation2 + $0x60] sm:$0xff] %v4428
        %4478 = vst [vmem:[#allocation2 + $0x68] sm:$0xff] %v4429
        %4479 = vst [vmem:[#allocation2 + $0x70] sm:$0xff] %v4430
        %4480 = vst [vmem:[#allocation2 + $0x78] sm:$0xff] %v4431
        %4481 = vst [vmem:[#allocation2 + $0x80] sm:$0xff] %v4432
        %4482 = vst [vmem:[#allocation2 + $0x88] sm:$0xff] %v4433
        %4483 = vst [vmem:[#allocation2 + $0x90] sm:$0xff] %v4434
        %4484 = vst [vmem:[#allocation2 + $0x98] sm:$0xff] %v4435
        %4485 = vst [vmem:[#allocation2 + $0xa0] sm:$0xff] %v4436
        %4486 = vst [vmem:[#allocation2 + $0xa8] sm:$0xff] %v4437
        %4487 = vst [vmem:[#allocation2 + $0xb0] sm:$0xff] %v4438
        %4488 = vst [vmem:[#allocation2 + $0xb8] sm:$0xff] %v4439
        %4489 = vst [vmem:[#allocation2 + $0xc0] sm:$0xff] %v4440
        %4490 = vst [vmem:[#allocation2 + $0xc8] sm:$0xff] %v4441
        %4491 = vst [vmem:[#allocation2 + $0xd0] sm:$0xff] %v4442
        %4492 = vst [vmem:[#allocation2 + $0xd8] sm:$0xff] %v4443
        %4493 = vst [vmem:[#allocation2 + $0xe0] sm:$0xff] %v4444
        %4494 = vst [vmem:[#allocation2 + $0xe8] sm:$0xff] %v4445
        %4495 = vst [vmem:[#allocation2 + $0xf0] sm:$0xff] %v4446
        %4496 = vst [vmem:[#allocation2 + $0xf8] sm:$0xff] %v4447
        %4497 = vst [vmem:[#allocation2 + $0x100] sm:$0xff] %v4448
        %4498 = vst [vmem:[#allocation2 + $0x108] sm:$0xff] %v4449
        %4499 = vst [vmem:[#allocation2 + $0x110] sm:$0xff] %v4450
        %4500 = vst [vmem:[#allocation2 + $0x118] sm:$0xff] %v4451
        %4501 = vst [vmem:[#allocation2 + $0x120] sm:$0xff] %v4452
        %4502 = vst [vmem:[#allocation2 + $0x128] sm:$0xff] %v4453
        %4503 = vst [vmem:[#allocation2 + $0x130] sm:$0xff] %v4454
        %4504 = vst [vmem:[#allocation2 + $0x138] sm:$0xff] %v4455
        %4505 = vst [vmem:[#allocation2 + $0x140] sm:$0xff] %v4456
        %4506 = vst [vmem:[#allocation2 + $0x148] sm:$0xff] %v4457
        %4507 = vst [vmem:[#allocation2 + $0x150] sm:$0xff] %v4458
        %4508 = vst [vmem:[#allocation2 + $0x158] sm:$0xff] %v4459
        %4509 = vst [vmem:[#allocation2 + $0x160] sm:$0xff] %v4460
        %4510 = vst [vmem:[#allocation2 + $0x168] sm:$0xff] %v4461
        %4511 = vst [vmem:[#allocation2 + $0x170] sm:$0xff] %v4462
        %4512 = vst [vmem:[#allocation2 + $0x178] sm:$0xff] %v4463
        %4513 = vst [vmem:[#allocation2 + $0x180] sm:$0xff] %v4464
        %v4514 = vld [vmem:[#allocation2] sm:$0xff]
        %4515 = vst [vmem:[#allocation3] sm:$0xff] %v4514
        %v4516 = vld [vmem:[#allocation2 + $0x8] sm:$0xff]
        %4517 = vst [vmem:[#allocation3 + $0x8] sm:$0xff] %v4516
        %v4518 = vld [vmem:[#allocation2 + $0x10] sm:$0xff]
        %4519 = vst [vmem:[#allocation3 + $0x10] sm:$0xff] %v4518
        %v4520 = vld [vmem:[#allocation2 + $0x18] sm:$0xff]
        %4521 = vst [vmem:[#allocation3 + $0x18] sm:$0xff] %v4520
        %v4522 = vld [vmem:[#allocation2 + $0x20] sm:$0xff]
        %4523 = vst [vmem:[#allocation3 + $0x20] sm:$0xff] %v4522
        %v4524 = vld [vmem:[#allocation2 + $0x28] sm:$0xff]
        %4525 = vst [vmem:[#allocation3 + $0x28] sm:$0xff] %v4524
        %v4526 = vld [vmem:[#allocation2 + $0x30] sm:$0xff]
        %4527 = vst [vmem:[#allocation3 + $0x30] sm:$0xff] %v4526
        %v4528 = vld [vmem:[#allocation2 + $0x38] sm:$0xff]
        %4529 = vst [vmem:[#allocation3 + $0x38] sm:$0xff] %v4528
        %v4530 = vld [vmem:[#allocation2 + $0x40] sm:$0xff]
        %4531 = vst [vmem:[#allocation3 + $0x40] sm:$0xff] %v4530
        %v4532 = vld [vmem:[#allocation2 + $0x48] sm:$0xff]
        %4533 = vst [vmem:[#allocation3 + $0x48] sm:$0xff] %v4532
        %v4534 = vld [vmem:[#allocation2 + $0x50] sm:$0xff]
        %4535 = vst [vmem:[#allocation3 + $0x50] sm:$0xff] %v4534
        %v4536 = vld [vmem:[#allocation2 + $0x58] sm:$0xff]
        %4537 = vst [vmem:[#allocation3 + $0x58] sm:$0xff] %v4536
        %v4538 = vld [vmem:[#allocation2 + $0x60] sm:$0xff]
        %4539 = vst [vmem:[#allocation3 + $0x60] sm:$0xff] %v4538
        %v4540 = vld [vmem:[#allocation2 + $0x68] sm:$0xff]
        %4541 = vst [vmem:[#allocation3 + $0x68] sm:$0xff] %v4540
        %v4542 = vld [vmem:[#allocation2 + $0x70] sm:$0xff]
        %4543 = vst [vmem:[#allocation3 + $0x70] sm:$0xff] %v4542
        %v4544 = vld [vmem:[#allocation2 + $0x78] sm:$0xff]
        %4545 = vst [vmem:[#allocation3 + $0x78] sm:$0xff] %v4544
        %v4546 = vld [vmem:[#allocation2 + $0x80] sm:$0xff]
        %4547 = vst [vmem:[#allocation3 + $0x80] sm:$0xff] %v4546
        %v4548 = vld [vmem:[#allocation2 + $0x88] sm:$0xff]
        %4549 = vst [vmem:[#allocation3 + $0x88] sm:$0xff] %v4548
        %v4550 = vld [vmem:[#allocation2 + $0x90] sm:$0xff]
        %4551 = vst [vmem:[#allocation3 + $0x90] sm:$0xff] %v4550
        %v4552 = vld [vmem:[#allocation2 + $0x98] sm:$0xff]
        %4553 = vst [vmem:[#allocation3 + $0x98] sm:$0xff] %v4552
        %v4554 = vld [vmem:[#allocation2 + $0xa0] sm:$0xff]
        %4555 = vst [vmem:[#allocation3 + $0xa0] sm:$0xff] %v4554
        %v4556 = vld [vmem:[#allocation2 + $0xa8] sm:$0xff]
        %4557 = vst [vmem:[#allocation3 + $0xa8] sm:$0xff] %v4556
        %v4558 = vld [vmem:[#allocation2 + $0xb0] sm:$0xff]
        %4559 = vst [vmem:[#allocation3 + $0xb0] sm:$0xff] %v4558
        %v4560 = vld [vmem:[#allocation2 + $0xb8] sm:$0xff]
        %4561 = vst [vmem:[#allocation3 + $0xb8] sm:$0xff] %v4560
        %v4562 = vld [vmem:[#allocation2 + $0xc0] sm:$0xff]
        %4563 = vst [vmem:[#allocation3 + $0xc0] sm:$0xff] %v4562
        %v4564 = vld [vmem:[#allocation2 + $0xc8] sm:$0xff]
        %4565 = vst [vmem:[#allocation3 + $0xc8] sm:$0xff] %v4564
        %v4566 = vld [vmem:[#allocation2 + $0xd0] sm:$0xff]
        %4567 = vst [vmem:[#allocation3 + $0xd0] sm:$0xff] %v4566
        %v4568 = vld [vmem:[#allocation2 + $0xd8] sm:$0xff]
        %4569 = vst [vmem:[#allocation3 + $0xd8] sm:$0xff] %v4568
        %v4570 = vld [vmem:[#allocation2 + $0xe0] sm:$0xff]
        %4571 = vst [vmem:[#allocation3 + $0xe0] sm:$0xff] %v4570
        %v4572 = vld [vmem:[#allocation2 + $0xe8] sm:$0xff]
        %4573 = vst [vmem:[#allocation3 + $0xe8] sm:$0xff] %v4572
        %v4574 = vld [vmem:[#allocation2 + $0xf0] sm:$0xff]
        %4575 = vst [vmem:[#allocation3 + $0xf0] sm:$0xff] %v4574
        %v4576 = vld [vmem:[#allocation2 + $0xf8] sm:$0xff]
        %4577 = vst [vmem:[#allocation3 + $0xf8] sm:$0xff] %v4576
        %v4578 = vld [vmem:[#allocation2 + $0x100] sm:$0xff]
        %4579 = vst [vmem:[#allocation3 + $0x100] sm:$0xff] %v4578
        %v4580 = vld [vmem:[#allocation2 + $0x108] sm:$0xff]
        %4581 = vst [vmem:[#allocation3 + $0x108] sm:$0xff] %v4580
        %v4582 = vld [vmem:[#allocation2 + $0x110] sm:$0xff]
        %4583 = vst [vmem:[#allocation3 + $0x110] sm:$0xff] %v4582
        %v4584 = vld [vmem:[#allocation2 + $0x118] sm:$0xff]
        %4585 = vst [vmem:[#allocation3 + $0x118] sm:$0xff] %v4584
        %v4586 = vld [vmem:[#allocation2 + $0x120] sm:$0xff]
        %4587 = vst [vmem:[#allocation3 + $0x120] sm:$0xff] %v4586
        %v4588 = vld [vmem:[#allocation2 + $0x128] sm:$0xff]
        %4589 = vst [vmem:[#allocation3 + $0x128] sm:$0xff] %v4588
        %v4590 = vld [vmem:[#allocation2 + $0x130] sm:$0xff]
        %4591 = vst [vmem:[#allocation3 + $0x130] sm:$0xff] %v4590
        %v4592 = vld [vmem:[#allocation2 + $0x138] sm:$0xff]
        %4593 = vst [vmem:[#allocation3 + $0x138] sm:$0xff] %v4592
        %v4594 = vld [vmem:[#allocation2 + $0x140] sm:$0xff]
        %4595 = vst [vmem:[#allocation3 + $0x140] sm:$0xff] %v4594
        %v4596 = vld [vmem:[#allocation2 + $0x148] sm:$0xff]
        %4597 = vst [vmem:[#allocation3 + $0x148] sm:$0xff] %v4596
        %v4598 = vld [vmem:[#allocation2 + $0x150] sm:$0xff]
        %4599 = vst [vmem:[#allocation3 + $0x150] sm:$0xff] %v4598
        %v4600 = vld [vmem:[#allocation2 + $0x158] sm:$0xff]
        %4601 = vst [vmem:[#allocation3 + $0x158] sm:$0xff] %v4600
        %v4602 = vld [vmem:[#allocation2 + $0x160] sm:$0xff]
        %4603 = vst [vmem:[#allocation3 + $0x160] sm:$0xff] %v4602
        %v4604 = vld [vmem:[#allocation2 + $0x168] sm:$0xff]
        %4605 = vst [vmem:[#allocation3 + $0x168] sm:$0xff] %v4604
        %v4606 = vld [vmem:[#allocation2 + $0x170] sm:$0xff]
        %4607 = vst [vmem:[#allocation3 + $0x170] sm:$0xff] %v4606
        %v4608 = vld [vmem:[#allocation2 + $0x178] sm:$0xff]
        %4609 = vst [vmem:[#allocation3 + $0x178] sm:$0xff] %v4608
        %v4610 = vld [vmem:[#allocation2 + $0x180] sm:$0xff]
        %4611 = vst [vmem:[#allocation3 + $0x180] sm:$0xff] %v4610
        %4612 = vst [vmem:[#allocation4] sm:$0xff] 0.0
        %4613 = vst [vmem:[#allocation4 + $0x8] sm:$0xff] 0.0
        %4614 = vst [vmem:[#allocation4 + $0x10] sm:$0xff] 0.0
        %4615 = vst [vmem:[#allocation4 + $0x18] sm:$0xff] 0.0
        %4616 = vst [vmem:[#allocation4 + $0x20] sm:$0xff] 0.0
        %4617 = vst [vmem:[#allocation4 + $0x28] sm:$0xff] 0.0
        %4618 = vst [vmem:[#allocation4 + $0x30] sm:$0xff] 0.0
        %4619 = vst [vmem:[#allocation4 + $0x38] sm:$0xff] 0.0
      $region68: #{discriminator_forward.3} parent=63 // pred_fallthru
        _
      %s4620 = smul.u32 %s23, 896
      %s4621 = sshra.s32 %s4620, 7
      %s4622 = sand.u32 %s4620, 127
      %s4623 = smul.addr %s4621, 8
      %s4624 = scalar_lea.vmem [#allocation3], %s4623
      %v4625 = vld [vmem:[%s4624] sm:$0xff]
      %v4626 = vld [vmem:[%s4624 + $0x8] sm:$0xff]
      %v4627 = vld [vmem:[%s4624 + $0x10] sm:$0xff]
      %v4628 = vld [vmem:[%s4624 + $0x18] sm:$0xff]
      %v4629 = vld [vmem:[%s4624 + $0x20] sm:$0xff]
      %v4630 = vld [vmem:[%s4624 + $0x28] sm:$0xff]
      %v4631 = vld [vmem:[%s4624 + $0x30] sm:$0xff]
      %v4632 = vpack.c.bf16 %v4625, %v4625
      %v4633 = vpack.c.bf16 %v4626, %v4626
      %v4634 = vpack.c.bf16 %v4627, %v4627
      %v4635 = vpack.c.bf16 %v4628, %v4628
      %v4636 = vpack.c.bf16 %v4629, %v4629
      %v4637 = vpack.c.bf16 %v4630, %v4630
      %v4638 = vpack.c.bf16 %v4631, %v4631
      %v4639 = vld [vmem:[#allocation4] sm:$0xff]
      %v4640 = vld [vmem:[#allocation4 + $0x8] sm:$0xff]
      %v4641 = vld [vmem:[#allocation4 + $0x10] sm:$0xff]
      %v4642 = vld [vmem:[#allocation4 + $0x18] sm:$0xff]
      %v4643 = vld [vmem:[#allocation4 + $0x20] sm:$0xff]
      %v4644 = vld [vmem:[#allocation4 + $0x28] sm:$0xff]
      %v4645 = vld [vmem:[#allocation4 + $0x30] sm:$0xff]
      %v4646 = vld [vmem:[#allocation4 + $0x38] sm:$0xff]
      %v4647 = vld [vmem:[%s376] sm:$0xff]
      %v4648 = vld [vmem:[%s376 + $0x8] sm:$0xff]
      %v4649 = vld [vmem:[%s376 + $0x10] sm:$0xff]
      %v4650 = vld [vmem:[%s376 + $0x18] sm:$0xff]
      %v4651 = vld [vmem:[%s376 + $0x20] sm:$0xff]
      %v4652 = vld [vmem:[%s376 + $0x28] sm:$0xff]
      %v4653 = vld [vmem:[%s376 + $0x30] sm:$0xff]
      %v4654 = vld [vmem:[%s376 + $0x38] sm:$0xff]
      %v4655 = vld [vmem:[%s376 + $0x40] sm:$0xff]
      %v4656 = vld [vmem:[%s376 + $0x48] sm:$0xff]
      %v4657 = vld [vmem:[%s376 + $0x50] sm:$0xff]
      %v4658 = vld [vmem:[%s376 + $0x58] sm:$0xff]
      %v4659 = vld [vmem:[%s376 + $0x60] sm:$0xff]
      %v4660 = vld [vmem:[%s376 + $0x68] sm:$0xff]
      %v4661 = vld [vmem:[%s376 + $0x70] sm:$0xff]
      %v4662 = vld [vmem:[%s376 + $0x78] sm:$0xff]
      %v4663 = vld [vmem:[%s376 + $0x80] sm:$0xff]
      %v4664 = vld [vmem:[%s376 + $0x88] sm:$0xff]
      %v4665 = vld [vmem:[%s376 + $0x90] sm:$0xff]
      %v4666 = vld [vmem:[%s376 + $0x98] sm:$0xff]
      %v4667 = vld [vmem:[%s376 + $0xa0] sm:$0xff]
      %v4668 = vld [vmem:[%s376 + $0xa8] sm:$0xff]
      %v4669 = vld [vmem:[%s376 + $0xb0] sm:$0xff]
      %v4670 = vld [vmem:[%s376 + $0xb8] sm:$0xff]
      %v4671 = vld [vmem:[%s376 + $0xc0] sm:$0xff]
      %v4672 = vld [vmem:[%s376 + $0xc8] sm:$0xff]
      %v4673 = vld [vmem:[%s376 + $0xd0] sm:$0xff]
      %v4674 = vld [vmem:[%s376 + $0xd8] sm:$0xff]
      %v4675 = vld [vmem:[%s376 + $0xe0] sm:$0xff]
      %v4676 = vld [vmem:[%s376 + $0xe8] sm:$0xff]
      %v4677 = vld [vmem:[%s376 + $0xf0] sm:$0xff]
      %v4678 = vld [vmem:[%s376 + $0xf8] sm:$0xff]
      %v4679 = vld [vmem:[%s376 + $0x100] sm:$0xff]
      %v4680 = vld [vmem:[%s376 + $0x108] sm:$0xff]
      %v4681 = vld [vmem:[%s376 + $0x110] sm:$0xff]
      %v4682 = vld [vmem:[%s376 + $0x118] sm:$0xff]
      %v4683 = vld [vmem:[%s376 + $0x120] sm:$0xff]
      %v4684 = vld [vmem:[%s376 + $0x128] sm:$0xff]
      %v4685 = vld [vmem:[%s376 + $0x130] sm:$0xff]
      %v4686 = vld [vmem:[%s376 + $0x138] sm:$0xff]
      %v4687 = vld [vmem:[%s376 + $0x140] sm:$0xff]
      %v4688 = vld [vmem:[%s376 + $0x148] sm:$0xff]
      %v4689 = vld [vmem:[%s376 + $0x150] sm:$0xff]
      %v4690 = vld [vmem:[%s376 + $0x158] sm:$0xff]
      %v4691 = vld [vmem:[%s376 + $0x160] sm:$0xff]
      %v4692 = vld [vmem:[%s376 + $0x168] sm:$0xff]
      %v4693 = vld [vmem:[%s376 + $0x170] sm:$0xff]
      %v4694 = vld [vmem:[%s376 + $0x178] sm:$0xff]
      %v4695 = vld [vmem:[%s376 + $0x180] sm:$0xff]
      %v4696 = vld [vmem:[%s376 + $0x188] sm:$0xff]
      %v4697 = vld [vmem:[%s376 + $0x190] sm:$0xff]
      %v4698 = vld [vmem:[%s376 + $0x198] sm:$0xff]
      %v4699 = vld [vmem:[%s376 + $0x1a0] sm:$0xff]
      %v4700 = vld [vmem:[%s376 + $0x1a8] sm:$0xff]
      %v4701 = vld [vmem:[%s376 + $0x1b0] sm:$0xff]
      %v4702 = vld [vmem:[%s376 + $0x1b8] sm:$0xff]
      %v4703 = vld [vmem:[%s376 + $0x1c0] sm:$0xff]
      %v4704 = vld [vmem:[%s376 + $0x1c8] sm:$0xff]
      %v4705 = vld [vmem:[%s376 + $0x1d0] sm:$0xff]
      %v4706 = vld [vmem:[%s376 + $0x1d8] sm:$0xff]
      %v4707 = vld [vmem:[%s376 + $0x1e0] sm:$0xff]
      %v4708 = vld [vmem:[%s376 + $0x1e8] sm:$0xff]
      %v4709 = vld [vmem:[%s376 + $0x1f0] sm:$0xff]
      %v4710 = vld [vmem:[%s376 + $0x1f8] sm:$0xff]
      %v4711 = vld [vmem:[%s376 + $0x200] sm:$0xff]
      %v4712 = vld [vmem:[%s376 + $0x208] sm:$0xff]
      %v4713 = vld [vmem:[%s376 + $0x210] sm:$0xff]
      %v4714 = vld [vmem:[%s376 + $0x218] sm:$0xff]
      %v4715 = vld [vmem:[%s376 + $0x220] sm:$0xff]
      %v4716 = vld [vmem:[%s376 + $0x228] sm:$0xff]
      %v4717 = vld [vmem:[%s376 + $0x230] sm:$0xff]
      %v4718 = vld [vmem:[%s376 + $0x238] sm:$0xff]
      %v4719 = vld [vmem:[%s376 + $0x240] sm:$0xff]
      %v4720 = vld [vmem:[%s376 + $0x248] sm:$0xff]
      %v4721 = vld [vmem:[%s376 + $0x250] sm:$0xff]
      %v4722 = vld [vmem:[%s376 + $0x258] sm:$0xff]
      %v4723 = vld [vmem:[%s376 + $0x260] sm:$0xff]
      %v4724 = vld [vmem:[%s376 + $0x268] sm:$0xff]
      %v4725 = vld [vmem:[%s376 + $0x270] sm:$0xff]
      %v4726 = vld [vmem:[%s376 + $0x278] sm:$0xff]
      %v4727 = vld [vmem:[%s376 + $0x280] sm:$0xff]
      %v4728 = vld [vmem:[%s376 + $0x288] sm:$0xff]
      %v4729 = vld [vmem:[%s376 + $0x290] sm:$0xff]
      %v4730 = vld [vmem:[%s376 + $0x298] sm:$0xff]
      %v4731 = vld [vmem:[%s376 + $0x2a0] sm:$0xff]
      %v4732 = vld [vmem:[%s376 + $0x2a8] sm:$0xff]
      %v4733 = vld [vmem:[%s376 + $0x2b0] sm:$0xff]
      %v4734 = vld [vmem:[%s376 + $0x2b8] sm:$0xff]
      %v4735 = vld [vmem:[%s376 + $0x2c0] sm:$0xff]
      %v4736 = vld [vmem:[%s376 + $0x2c8] sm:$0xff]
      %v4737 = vld [vmem:[%s376 + $0x2d0] sm:$0xff]
      %v4738 = vld [vmem:[%s376 + $0x2d8] sm:$0xff]
      %v4739 = vld [vmem:[%s376 + $0x2e0] sm:$0xff]
      %v4740 = vld [vmem:[%s376 + $0x2e8] sm:$0xff]
      %v4741 = vld [vmem:[%s376 + $0x2f0] sm:$0xff]
      %v4742 = vld [vmem:[%s376 + $0x2f8] sm:$0xff]
      %v4743 = vld [vmem:[%s376 + $0x300] sm:$0xff]
      %v4744 = vld [vmem:[%s376 + $0x308] sm:$0xff]
      %v4745 = vld [vmem:[%s376 + $0x310] sm:$0xff]
      %v4746 = vld [vmem:[%s376 + $0x318] sm:$0xff]
      %v4747 = vld [vmem:[%s376 + $0x320] sm:$0xff]
      %v4748 = vld [vmem:[%s376 + $0x328] sm:$0xff]
      %v4749 = vld [vmem:[%s376 + $0x330] sm:$0xff]
      %v4750 = vld [vmem:[%s376 + $0x338] sm:$0xff]
      %v4751 = vld [vmem:[%s376 + $0x340] sm:$0xff]
      %v4752 = vld [vmem:[%s376 + $0x348] sm:$0xff]
      %v4753 = vld [vmem:[%s376 + $0x350] sm:$0xff]
      %v4754 = vld [vmem:[%s376 + $0x358] sm:$0xff]
      %v4755 = vld [vmem:[%s376 + $0x360] sm:$0xff]
      %v4756 = vld [vmem:[%s376 + $0x368] sm:$0xff]
      %v4757 = vld [vmem:[%s376 + $0x370] sm:$0xff]
      %v4758 = vld [vmem:[%s376 + $0x378] sm:$0xff]
      %v4759 = vld [vmem:[%s376 + $0x380] sm:$0xff]
      %v4760 = vld [vmem:[%s376 + $0x388] sm:$0xff]
      %v4761 = vld [vmem:[%s376 + $0x390] sm:$0xff]
      %v4762 = vld [vmem:[%s376 + $0x398] sm:$0xff]
      %v4763 = vld [vmem:[%s376 + $0x3a0] sm:$0xff]
      %v4764 = vld [vmem:[%s376 + $0x3a8] sm:$0xff]
      %v4765 = vld [vmem:[%s376 + $0x3b0] sm:$0xff]
      %v4766 = vld [vmem:[%s376 + $0x3b8] sm:$0xff]
      %v4767 = vld [vmem:[%s376 + $0x3c0] sm:$0xff]
      %v4768 = vld [vmem:[%s376 + $0x3c8] sm:$0xff]
      %v4769 = vld [vmem:[%s376 + $0x3d0] sm:$0xff]
      %v4770 = vld [vmem:[%s376 + $0x3d8] sm:$0xff]
      %v4771 = vld [vmem:[%s376 + $0x3e0] sm:$0xff]
      %v4772 = vld [vmem:[%s376 + $0x3e8] sm:$0xff]
      %v4773 = vld [vmem:[%s376 + $0x3f0] sm:$0xff]
      %v4774 = vld [vmem:[%s376 + $0x3f8] sm:$0xff]
      %v4775 = vld [vmem:[%s376 + $0x400] sm:$0xff]
      %v4776 = vld [vmem:[%s376 + $0x408] sm:$0xff]
      %v4777 = vld [vmem:[%s376 + $0x410] sm:$0xff]
      %v4778 = vld [vmem:[%s376 + $0x418] sm:$0xff]
      %v4779 = vld [vmem:[%s376 + $0x420] sm:$0xff]
      %v4780 = vld [vmem:[%s376 + $0x428] sm:$0xff]
      %v4781 = vld [vmem:[%s376 + $0x430] sm:$0xff]
      %v4782 = vld [vmem:[%s376 + $0x438] sm:$0xff]
      %v4783 = vld [vmem:[%s376 + $0x440] sm:$0xff]
      %v4784 = vld [vmem:[%s376 + $0x448] sm:$0xff]
      %v4785 = vld [vmem:[%s376 + $0x450] sm:$0xff]
      %v4786 = vld [vmem:[%s376 + $0x458] sm:$0xff]
      %v4787 = vld [vmem:[%s376 + $0x460] sm:$0xff]
      %v4788 = vld [vmem:[%s376 + $0x468] sm:$0xff]
      %v4789 = vld [vmem:[%s376 + $0x470] sm:$0xff]
      %v4790 = vld [vmem:[%s376 + $0x478] sm:$0xff]
      %v4791 = vld [vmem:[%s376 + $0x480] sm:$0xff]
      %v4792 = vld [vmem:[%s376 + $0x488] sm:$0xff]
      %v4793 = vld [vmem:[%s376 + $0x490] sm:$0xff]
      %v4794 = vld [vmem:[%s376 + $0x498] sm:$0xff]
      %v4795 = vld [vmem:[%s376 + $0x4a0] sm:$0xff]
      %v4796 = vld [vmem:[%s376 + $0x4a8] sm:$0xff]
      %v4797 = vld [vmem:[%s376 + $0x4b0] sm:$0xff]
      %v4798 = vld [vmem:[%s376 + $0x4b8] sm:$0xff]
      %v4799 = vld [vmem:[%s376 + $0x4c0] sm:$0xff]
      %v4800 = vld [vmem:[%s376 + $0x4c8] sm:$0xff]
      %v4801 = vld [vmem:[%s376 + $0x4d0] sm:$0xff]
      %v4802 = vld [vmem:[%s376 + $0x4d8] sm:$0xff]
      %v4803 = vld [vmem:[%s376 + $0x4e0] sm:$0xff]
      %v4804 = vld [vmem:[%s376 + $0x4e8] sm:$0xff]
      %v4805 = vld [vmem:[%s376 + $0x4f0] sm:$0xff]
      %v4806 = vld [vmem:[%s376 + $0x4f8] sm:$0xff]
      %v4807 = vld [vmem:[%s376 + $0x500] sm:$0xff]
      %v4808 = vld [vmem:[%s376 + $0x508] sm:$0xff]
      %v4809 = vld [vmem:[%s376 + $0x510] sm:$0xff]
      %v4810 = vld [vmem:[%s376 + $0x518] sm:$0xff]
      %v4811 = vld [vmem:[%s376 + $0x520] sm:$0xff]
      %v4812 = vld [vmem:[%s376 + $0x528] sm:$0xff]
      %v4813 = vld [vmem:[%s376 + $0x530] sm:$0xff]
      %v4814 = vld [vmem:[%s376 + $0x538] sm:$0xff]
      %v4815 = vld [vmem:[%s376 + $0x540] sm:$0xff]
      %v4816 = vld [vmem:[%s376 + $0x548] sm:$0xff]
      %v4817 = vld [vmem:[%s376 + $0x550] sm:$0xff]
      %v4818 = vld [vmem:[%s376 + $0x558] sm:$0xff]
      %v4819 = vld [vmem:[%s376 + $0x560] sm:$0xff]
      %v4820 = vld [vmem:[%s376 + $0x568] sm:$0xff]
      %v4821 = vld [vmem:[%s376 + $0x570] sm:$0xff]
      %v4822 = vld [vmem:[%s376 + $0x578] sm:$0xff]
      %v4823 = vld [vmem:[%s376 + $0x580] sm:$0xff]
      %v4824 = vld [vmem:[%s376 + $0x588] sm:$0xff]
      %v4825 = vld [vmem:[%s376 + $0x590] sm:$0xff]
      %v4826 = vld [vmem:[%s376 + $0x598] sm:$0xff]
      %v4827 = vld [vmem:[%s376 + $0x5a0] sm:$0xff]
      %v4828 = vld [vmem:[%s376 + $0x5a8] sm:$0xff]
      %v4829 = vld [vmem:[%s376 + $0x5b0] sm:$0xff]
      %v4830 = vld [vmem:[%s376 + $0x5b8] sm:$0xff]
      %v4831 = vld [vmem:[%s376 + $0x5c0] sm:$0xff]
      %v4832 = vld [vmem:[%s376 + $0x5c8] sm:$0xff]
      %v4833 = vld [vmem:[%s376 + $0x5d0] sm:$0xff]
      %v4834 = vld [vmem:[%s376 + $0x5d8] sm:$0xff]
      %v4835 = vld [vmem:[%s376 + $0x5e0] sm:$0xff]
      %v4836 = vld [vmem:[%s376 + $0x5e8] sm:$0xff]
      %v4837 = vld [vmem:[%s376 + $0x5f0] sm:$0xff]
      %v4838 = vld [vmem:[%s376 + $0x5f8] sm:$0xff]
      %v4839 = vld [vmem:[%s376 + $0x600] sm:$0xff]
      %v4840 = vld [vmem:[%s376 + $0x608] sm:$0xff]
      %v4841 = vld [vmem:[%s376 + $0x610] sm:$0xff]
      %v4842 = vld [vmem:[%s376 + $0x618] sm:$0xff]
      %v4843 = vld [vmem:[%s376 + $0x620] sm:$0xff]
      %v4844 = vld [vmem:[%s376 + $0x628] sm:$0xff]
      %v4845 = vld [vmem:[%s376 + $0x630] sm:$0xff]
      %v4846 = vld [vmem:[%s376 + $0x638] sm:$0xff]
      %v4847 = vld [vmem:[%s376 + $0x640] sm:$0xff]
      %v4848 = vld [vmem:[%s376 + $0x648] sm:$0xff]
      %v4849 = vld [vmem:[%s376 + $0x650] sm:$0xff]
      %v4850 = vld [vmem:[%s376 + $0x658] sm:$0xff]
      %v4851 = vld [vmem:[%s376 + $0x660] sm:$0xff]
      %v4852 = vld [vmem:[%s376 + $0x668] sm:$0xff]
      %v4853 = vld [vmem:[%s376 + $0x670] sm:$0xff]
      %v4854 = vld [vmem:[%s376 + $0x678] sm:$0xff]
      %v4855 = vld [vmem:[%s376 + $0x680] sm:$0xff]
      %v4856 = vld [vmem:[%s376 + $0x688] sm:$0xff]
      %v4857 = vld [vmem:[%s376 + $0x690] sm:$0xff]
      %v4858 = vld [vmem:[%s376 + $0x698] sm:$0xff]
      %v4859 = vld [vmem:[%s376 + $0x6a0] sm:$0xff]
      %v4860 = vld [vmem:[%s376 + $0x6a8] sm:$0xff]
      %v4861 = vld [vmem:[%s376 + $0x6b0] sm:$0xff]
      %v4862 = vld [vmem:[%s376 + $0x6b8] sm:$0xff]
      %v4863 = vld [vmem:[%s376 + $0x6c0] sm:$0xff]
      %v4864 = vld [vmem:[%s376 + $0x6c8] sm:$0xff]
      %v4865 = vld [vmem:[%s376 + $0x6d0] sm:$0xff]
      %v4866 = vld [vmem:[%s376 + $0x6d8] sm:$0xff]
      %v4867 = vld [vmem:[%s376 + $0x6e0] sm:$0xff]
      %v4868 = vld [vmem:[%s376 + $0x6e8] sm:$0xff]
      %v4869 = vld [vmem:[%s376 + $0x6f0] sm:$0xff]
      %v4870 = vld [vmem:[%s376 + $0x6f8] sm:$0xff]
      %v4871 = vld [vmem:[%s376 + $0x700] sm:$0xff]
      %v4872 = vld [vmem:[%s376 + $0x708] sm:$0xff]
      %v4873 = vld [vmem:[%s376 + $0x710] sm:$0xff]
      %v4874 = vld [vmem:[%s376 + $0x718] sm:$0xff]
      %v4875 = vld [vmem:[%s376 + $0x720] sm:$0xff]
      %v4876 = vld [vmem:[%s376 + $0x728] sm:$0xff]
      %v4877 = vld [vmem:[%s376 + $0x730] sm:$0xff]
      %v4878 = vld [vmem:[%s376 + $0x738] sm:$0xff]
      %v4879 = vld [vmem:[%s376 + $0x740] sm:$0xff]
      %v4880 = vld [vmem:[%s376 + $0x748] sm:$0xff]
      %v4881 = vld [vmem:[%s376 + $0x750] sm:$0xff]
      %v4882 = vld [vmem:[%s376 + $0x758] sm:$0xff]
      %v4883 = vld [vmem:[%s376 + $0x760] sm:$0xff]
      %v4884 = vld [vmem:[%s376 + $0x768] sm:$0xff]
      %v4885 = vld [vmem:[%s376 + $0x770] sm:$0xff]
      %v4886 = vld [vmem:[%s376 + $0x778] sm:$0xff]
      %v4887 = vld [vmem:[%s376 + $0x780] sm:$0xff]
      %v4888 = vld [vmem:[%s376 + $0x788] sm:$0xff]
      %v4889 = vld [vmem:[%s376 + $0x790] sm:$0xff]
      %v4890 = vld [vmem:[%s376 + $0x798] sm:$0xff]
      %v4891 = vld [vmem:[%s376 + $0x7a0] sm:$0xff]
      %v4892 = vld [vmem:[%s376 + $0x7a8] sm:$0xff]
      %v4893 = vld [vmem:[%s376 + $0x7b0] sm:$0xff]
      %v4894 = vld [vmem:[%s376 + $0x7b8] sm:$0xff]
      %v4895 = vld [vmem:[%s376 + $0x7c0] sm:$0xff]
      %v4896 = vld [vmem:[%s376 + $0x7c8] sm:$0xff]
      %v4897 = vld [vmem:[%s376 + $0x7d0] sm:$0xff]
      %v4898 = vld [vmem:[%s376 + $0x7d8] sm:$0xff]
      %v4899 = vld [vmem:[%s376 + $0x7e0] sm:$0xff]
      %v4900 = vld [vmem:[%s376 + $0x7e8] sm:$0xff]
      %v4901 = vld [vmem:[%s376 + $0x7f0] sm:$0xff]
      %v4902 = vld [vmem:[%s376 + $0x7f8] sm:$0xff]
      %v4903 = vld [vmem:[%s376 + $0x800] sm:$0xff]
      %v4904 = vld [vmem:[%s376 + $0x808] sm:$0xff]
      %v4905 = vld [vmem:[%s376 + $0x810] sm:$0xff]
      %v4906 = vld [vmem:[%s376 + $0x818] sm:$0xff]
      %v4907 = vld [vmem:[%s376 + $0x820] sm:$0xff]
      %v4908 = vld [vmem:[%s376 + $0x828] sm:$0xff]
      %v4909 = vld [vmem:[%s376 + $0x830] sm:$0xff]
      %v4910 = vld [vmem:[%s376 + $0x838] sm:$0xff]
      %v4911 = vld [vmem:[%s376 + $0x840] sm:$0xff]
      %v4912 = vld [vmem:[%s376 + $0x848] sm:$0xff]
      %v4913 = vld [vmem:[%s376 + $0x850] sm:$0xff]
      %v4914 = vld [vmem:[%s376 + $0x858] sm:$0xff]
      %v4915 = vld [vmem:[%s376 + $0x860] sm:$0xff]
      %v4916 = vld [vmem:[%s376 + $0x868] sm:$0xff]
      %v4917 = vld [vmem:[%s376 + $0x870] sm:$0xff]
      %v4918 = vld [vmem:[%s376 + $0x878] sm:$0xff]
      %v4919 = vld [vmem:[%s376 + $0x880] sm:$0xff]
      %v4920 = vld [vmem:[%s376 + $0x888] sm:$0xff]
      %v4921 = vld [vmem:[%s376 + $0x890] sm:$0xff]
      %v4922 = vld [vmem:[%s376 + $0x898] sm:$0xff]
      %v4923 = vld [vmem:[%s376 + $0x8a0] sm:$0xff]
      %v4924 = vld [vmem:[%s376 + $0x8a8] sm:$0xff]
      %v4925 = vld [vmem:[%s376 + $0x8b0] sm:$0xff]
      %v4926 = vld [vmem:[%s376 + $0x8b8] sm:$0xff]
      %v4927 = vld [vmem:[%s376 + $0x8c0] sm:$0xff]
      %v4928 = vld [vmem:[%s376 + $0x8c8] sm:$0xff]
      %v4929 = vld [vmem:[%s376 + $0x8d0] sm:$0xff]
      %v4930 = vld [vmem:[%s376 + $0x8d8] sm:$0xff]
      %v4931 = vld [vmem:[%s376 + $0x8e0] sm:$0xff]
      %v4932 = vld [vmem:[%s376 + $0x8e8] sm:$0xff]
      %v4933 = vld [vmem:[%s376 + $0x8f0] sm:$0xff]
      %v4934 = vld [vmem:[%s376 + $0x8f8] sm:$0xff]
      %v4935 = vld [vmem:[%s376 + $0x900] sm:$0xff]
      %v4936 = vld [vmem:[%s376 + $0x908] sm:$0xff]
      %v4937 = vld [vmem:[%s376 + $0x910] sm:$0xff]
      %v4938 = vld [vmem:[%s376 + $0x918] sm:$0xff]
      %v4939 = vld [vmem:[%s376 + $0x920] sm:$0xff]
      %v4940 = vld [vmem:[%s376 + $0x928] sm:$0xff]
      %v4941 = vld [vmem:[%s376 + $0x930] sm:$0xff]
      %v4942 = vld [vmem:[%s376 + $0x938] sm:$0xff]
      %v4943 = vld [vmem:[%s376 + $0x940] sm:$0xff]
      %v4944 = vld [vmem:[%s376 + $0x948] sm:$0xff]
      %v4945 = vld [vmem:[%s376 + $0x950] sm:$0xff]
      %v4946 = vld [vmem:[%s376 + $0x958] sm:$0xff]
      %v4947 = vld [vmem:[%s376 + $0x960] sm:$0xff]
      %v4948 = vld [vmem:[%s376 + $0x968] sm:$0xff]
      %v4949 = vld [vmem:[%s376 + $0x970] sm:$0xff]
      %v4950 = vld [vmem:[%s376 + $0x978] sm:$0xff]
      %v4951 = vld [vmem:[%s376 + $0x980] sm:$0xff]
      %v4952 = vld [vmem:[%s376 + $0x988] sm:$0xff]
      %v4953 = vld [vmem:[%s376 + $0x990] sm:$0xff]
      %v4954 = vld [vmem:[%s376 + $0x998] sm:$0xff]
      %v4955 = vld [vmem:[%s376 + $0x9a0] sm:$0xff]
      %v4956 = vld [vmem:[%s376 + $0x9a8] sm:$0xff]
      %v4957 = vld [vmem:[%s376 + $0x9b0] sm:$0xff]
      %v4958 = vld [vmem:[%s376 + $0x9b8] sm:$0xff]
      %v4959 = vld [vmem:[%s376 + $0x9c0] sm:$0xff]
      %v4960 = vld [vmem:[%s376 + $0x9c8] sm:$0xff]
      %v4961 = vld [vmem:[%s376 + $0x9d0] sm:$0xff]
      %v4962 = vld [vmem:[%s376 + $0x9d8] sm:$0xff]
      %v4963 = vld [vmem:[%s376 + $0x9e0] sm:$0xff]
      %v4964 = vld [vmem:[%s376 + $0x9e8] sm:$0xff]
      %v4965 = vld [vmem:[%s376 + $0x9f0] sm:$0xff]
      %v4966 = vld [vmem:[%s376 + $0x9f8] sm:$0xff]
      %v4967 = vld [vmem:[%s376 + $0xa00] sm:$0xff]
      %v4968 = vld [vmem:[%s376 + $0xa08] sm:$0xff]
      %v4969 = vld [vmem:[%s376 + $0xa10] sm:$0xff]
      %v4970 = vld [vmem:[%s376 + $0xa18] sm:$0xff]
      %v4971 = vld [vmem:[%s376 + $0xa20] sm:$0xff]
      %v4972 = vld [vmem:[%s376 + $0xa28] sm:$0xff]
      %v4973 = vld [vmem:[%s376 + $0xa30] sm:$0xff]
      %v4974 = vld [vmem:[%s376 + $0xa38] sm:$0xff]
      %v4975 = vld [vmem:[%s376 + $0xa40] sm:$0xff]
      %v4976 = vld [vmem:[%s376 + $0xa48] sm:$0xff]
      %v4977 = vld [vmem:[%s376 + $0xa50] sm:$0xff]
      %v4978 = vld [vmem:[%s376 + $0xa58] sm:$0xff]
      %v4979 = vld [vmem:[%s376 + $0xa60] sm:$0xff]
      %v4980 = vld [vmem:[%s376 + $0xa68] sm:$0xff]
      %v4981 = vld [vmem:[%s376 + $0xa70] sm:$0xff]
      %v4982 = vld [vmem:[%s376 + $0xa78] sm:$0xff]
      %v4983 = vld [vmem:[%s376 + $0xa80] sm:$0xff]
      %v4984 = vld [vmem:[%s376 + $0xa88] sm:$0xff]
      %v4985 = vld [vmem:[%s376 + $0xa90] sm:$0xff]
      %v4986 = vld [vmem:[%s376 + $0xa98] sm:$0xff]
      %v4987 = vld [vmem:[%s376 + $0xaa0] sm:$0xff]
      %v4988 = vld [vmem:[%s376 + $0xaa8] sm:$0xff]
      %v4989 = vld [vmem:[%s376 + $0xab0] sm:$0xff]
      %v4990 = vld [vmem:[%s376 + $0xab8] sm:$0xff]
      %v4991 = vld [vmem:[%s376 + $0xac0] sm:$0xff]
      %v4992 = vld [vmem:[%s376 + $0xac8] sm:$0xff]
      %v4993 = vld [vmem:[%s376 + $0xad0] sm:$0xff]
      %v4994 = vld [vmem:[%s376 + $0xad8] sm:$0xff]
      %v4995 = vld [vmem:[%s376 + $0xae0] sm:$0xff]
      %v4996 = vld [vmem:[%s376 + $0xae8] sm:$0xff]
      %v4997 = vld [vmem:[%s376 + $0xaf0] sm:$0xff]
      %v4998 = vld [vmem:[%s376 + $0xaf8] sm:$0xff]
      %v4999 = vld [vmem:[%s376 + $0xb00] sm:$0xff]
      %v5000 = vld [vmem:[%s376 + $0xb08] sm:$0xff]
      %v5001 = vld [vmem:[%s376 + $0xb10] sm:$0xff]
      %v5002 = vld [vmem:[%s376 + $0xb18] sm:$0xff]
      %v5003 = vld [vmem:[%s376 + $0xb20] sm:$0xff]
      %v5004 = vld [vmem:[%s376 + $0xb28] sm:$0xff]
      %v5005 = vld [vmem:[%s376 + $0xb30] sm:$0xff]
      %v5006 = vld [vmem:[%s376 + $0xb38] sm:$0xff]
      %v5007 = vld [vmem:[%s376 + $0xb40] sm:$0xff]
      %v5008 = vld [vmem:[%s376 + $0xb48] sm:$0xff]
      %v5009 = vld [vmem:[%s376 + $0xb50] sm:$0xff]
      %v5010 = vld [vmem:[%s376 + $0xb58] sm:$0xff]
      %v5011 = vld [vmem:[%s376 + $0xb60] sm:$0xff]
      %v5012 = vld [vmem:[%s376 + $0xb68] sm:$0xff]
      %v5013 = vld [vmem:[%s376 + $0xb70] sm:$0xff]
      %v5014 = vld [vmem:[%s376 + $0xb78] sm:$0xff]
      %v5015 = vld [vmem:[%s376 + $0xb80] sm:$0xff]
      %v5016 = vld [vmem:[%s376 + $0xb88] sm:$0xff]
      %v5017 = vld [vmem:[%s376 + $0xb90] sm:$0xff]
      %v5018 = vld [vmem:[%s376 + $0xb98] sm:$0xff]
      %v5019 = vld [vmem:[%s376 + $0xba0] sm:$0xff]
      %v5020 = vld [vmem:[%s376 + $0xba8] sm:$0xff]
      %v5021 = vld [vmem:[%s376 + $0xbb0] sm:$0xff]
      %v5022 = vld [vmem:[%s376 + $0xbb8] sm:$0xff]
      %v5023 = vld [vmem:[%s376 + $0xbc0] sm:$0xff]
      %v5024 = vld [vmem:[%s376 + $0xbc8] sm:$0xff]
      %v5025 = vld [vmem:[%s376 + $0xbd0] sm:$0xff]
      %v5026 = vld [vmem:[%s376 + $0xbd8] sm:$0xff]
      %v5027 = vld [vmem:[%s376 + $0xbe0] sm:$0xff]
      %v5028 = vld [vmem:[%s376 + $0xbe8] sm:$0xff]
      %v5029 = vld [vmem:[%s376 + $0xbf0] sm:$0xff]
      %v5030 = vld [vmem:[%s376 + $0xbf8] sm:$0xff]
      %v5031 = vld [vmem:[%s376 + $0xc00] sm:$0xff]
      %v5032 = vld [vmem:[%s376 + $0xc08] sm:$0xff]
      %v5033 = vld [vmem:[%s376 + $0xc10] sm:$0xff]
      %v5034 = vld [vmem:[%s376 + $0xc18] sm:$0xff]
      %v5035 = vld [vmem:[%s376 + $0xc20] sm:$0xff]
      %v5036 = vld [vmem:[%s376 + $0xc28] sm:$0xff]
      %v5037 = vld [vmem:[%s376 + $0xc30] sm:$0xff]
      %v5038 = vld [vmem:[%s376 + $0xc38] sm:$0xff]
      %v5039 = vld [vmem:[%s376 + $0xc40] sm:$0xff]
      %v5040 = vld [vmem:[%s376 + $0xc48] sm:$0xff]
      %v5041 = vld [vmem:[%s376 + $0xc50] sm:$0xff]
      %v5042 = vld [vmem:[%s376 + $0xc58] sm:$0xff]
      %v5043 = vld [vmem:[%s376 + $0xc60] sm:$0xff]
      %v5044 = vld [vmem:[%s376 + $0xc68] sm:$0xff]
      %v5045 = vld [vmem:[%s376 + $0xc70] sm:$0xff]
      %v5046 = vld [vmem:[%s376 + $0xc78] sm:$0xff]
      %v5047 = vld [vmem:[%s376 + $0xc80] sm:$0xff]
      %v5048 = vld [vmem:[%s376 + $0xc88] sm:$0xff]
      %v5049 = vld [vmem:[%s376 + $0xc90] sm:$0xff]
      %v5050 = vld [vmem:[%s376 + $0xc98] sm:$0xff]
      %v5051 = vld [vmem:[%s376 + $0xca0] sm:$0xff]
      %v5052 = vld [vmem:[%s376 + $0xca8] sm:$0xff]
      %v5053 = vld [vmem:[%s376 + $0xcb0] sm:$0xff]
      %v5054 = vld [vmem:[%s376 + $0xcb8] sm:$0xff]
      %v5055 = vld [vmem:[%s376 + $0xcc0] sm:$0xff]
      %v5056 = vld [vmem:[%s376 + $0xcc8] sm:$0xff]
      %v5057 = vld [vmem:[%s376 + $0xcd0] sm:$0xff]
      %v5058 = vld [vmem:[%s376 + $0xcd8] sm:$0xff]
      %v5059 = vld [vmem:[%s376 + $0xce0] sm:$0xff]
      %v5060 = vld [vmem:[%s376 + $0xce8] sm:$0xff]
      %v5061 = vld [vmem:[%s376 + $0xcf0] sm:$0xff]
      %v5062 = vld [vmem:[%s376 + $0xcf8] sm:$0xff]
      %v5063 = vld [vmem:[%s376 + $0xd00] sm:$0xff]
      %v5064 = vld [vmem:[%s376 + $0xd08] sm:$0xff]
      %v5065 = vld [vmem:[%s376 + $0xd10] sm:$0xff]
      %v5066 = vld [vmem:[%s376 + $0xd18] sm:$0xff]
      %v5067 = vld [vmem:[%s376 + $0xd20] sm:$0xff]
      %v5068 = vld [vmem:[%s376 + $0xd28] sm:$0xff]
      %v5069 = vld [vmem:[%s376 + $0xd30] sm:$0xff]
      %v5070 = vld [vmem:[%s376 + $0xd38] sm:$0xff]
      %v5071 = vld [vmem:[%s376 + $0xd40] sm:$0xff]
      %v5072 = vld [vmem:[%s376 + $0xd48] sm:$0xff]
      %v5073 = vld [vmem:[%s376 + $0xd50] sm:$0xff]
      %v5074 = vld [vmem:[%s376 + $0xd58] sm:$0xff]
      %v5075 = vld [vmem:[%s376 + $0xd60] sm:$0xff]
      %v5076 = vld [vmem:[%s376 + $0xd68] sm:$0xff]
      %v5077 = vld [vmem:[%s376 + $0xd70] sm:$0xff]
      %v5078 = vld [vmem:[%s376 + $0xd78] sm:$0xff]
      %v5079 = vld [vmem:[%s376 + $0xd80] sm:$0xff]
      %v5080 = vld [vmem:[%s376 + $0xd88] sm:$0xff]
      %v5081 = vld [vmem:[%s376 + $0xd90] sm:$0xff]
      %v5082 = vld [vmem:[%s376 + $0xd98] sm:$0xff]
      %v5083 = vld [vmem:[%s376 + $0xda0] sm:$0xff]
      %v5084 = vld [vmem:[%s376 + $0xda8] sm:$0xff]
      %v5085 = vld [vmem:[%s376 + $0xdb0] sm:$0xff]
      %v5086 = vld [vmem:[%s376 + $0xdb8] sm:$0xff]
      %v5087 = vld [vmem:[%s376 + $0xdc0] sm:$0xff]
      %v5088 = vld [vmem:[%s376 + $0xdc8] sm:$0xff]
      %v5089 = vld [vmem:[%s376 + $0xdd0] sm:$0xff]
      %v5090 = vld [vmem:[%s376 + $0xdd8] sm:$0xff]
      %v5091 = vld [vmem:[%s376 + $0xde0] sm:$0xff]
      %v5092 = vld [vmem:[%s376 + $0xde8] sm:$0xff]
      %v5093 = vld [vmem:[%s376 + $0xdf0] sm:$0xff]
      %v5094 = vld [vmem:[%s376 + $0xdf8] sm:$0xff]
      %v5543 = vunpack.c.l.b16 %v4647
      %v5544 = vunpack.c.h.b16 %v4647
      %v5545 = vunpack.c.l.b16 %v4648
      %v5546 = vunpack.c.h.b16 %v4648
      %v5547 = vunpack.c.l.b16 %v4649
      %v5548 = vunpack.c.h.b16 %v4649
      %v5549 = vunpack.c.l.b16 %v4650
      %v5550 = vunpack.c.h.b16 %v4650
      %v5551 = vunpack.c.l.b16 %v4651
      %v5552 = vunpack.c.h.b16 %v4651
      %v5553 = vunpack.c.l.b16 %v4652
      %v5554 = vunpack.c.h.b16 %v4652
      %v5555 = vunpack.c.l.b16 %v4653
      %v5556 = vunpack.c.h.b16 %v4653
      %v5557 = vunpack.c.l.b16 %v4654
      %v5558 = vunpack.c.h.b16 %v4654
      %v5559 = vunpack.c.l.b16 %v4655
      %v5560 = vunpack.c.h.b16 %v4655
      %v5561 = vunpack.c.l.b16 %v4656
      %v5562 = vunpack.c.h.b16 %v4656
      %v5563 = vunpack.c.l.b16 %v4657
      %v5564 = vunpack.c.h.b16 %v4657
      %v5565 = vunpack.c.l.b16 %v4658
      %v5566 = vunpack.c.h.b16 %v4658
      %v5567 = vunpack.c.l.b16 %v4659
      %v5568 = vunpack.c.h.b16 %v4659
      %v5569 = vunpack.c.l.b16 %v4660
      %v5570 = vunpack.c.h.b16 %v4660
      %v5571 = vunpack.c.l.b16 %v4661
      %v5572 = vunpack.c.h.b16 %v4661
      %v5573 = vunpack.c.l.b16 %v4662
      %v5574 = vunpack.c.h.b16 %v4662
      %v5575 = vunpack.c.l.b16 %v4663
      %v5576 = vunpack.c.h.b16 %v4663
      %v5577 = vunpack.c.l.b16 %v4664
      %v5578 = vunpack.c.h.b16 %v4664
      %v5579 = vunpack.c.l.b16 %v4665
      %v5580 = vunpack.c.h.b16 %v4665
      %v5581 = vunpack.c.l.b16 %v4666
      %v5582 = vunpack.c.h.b16 %v4666
      %v5583 = vunpack.c.l.b16 %v4667
      %v5584 = vunpack.c.h.b16 %v4667
      %v5585 = vunpack.c.l.b16 %v4668
      %v5586 = vunpack.c.h.b16 %v4668
      %v5587 = vunpack.c.l.b16 %v4669
      %v5588 = vunpack.c.h.b16 %v4669
      %v5589 = vunpack.c.l.b16 %v4670
      %v5590 = vunpack.c.h.b16 %v4670
      %v5591 = vunpack.c.l.b16 %v4671
      %v5592 = vunpack.c.h.b16 %v4671
      %v5593 = vunpack.c.l.b16 %v4672
      %v5594 = vunpack.c.h.b16 %v4672
      %v5595 = vunpack.c.l.b16 %v4673
      %v5596 = vunpack.c.h.b16 %v4673
      %v5597 = vunpack.c.l.b16 %v4674
      %v5598 = vunpack.c.h.b16 %v4674
      %v5599 = vunpack.c.l.b16 %v4675
      %v5600 = vunpack.c.h.b16 %v4675
      %v5601 = vunpack.c.l.b16 %v4676
      %v5602 = vunpack.c.h.b16 %v4676
      %v5603 = vunpack.c.l.b16 %v4677
      %v5604 = vunpack.c.h.b16 %v4677
      %v5605 = vunpack.c.l.b16 %v4678
      %v5606 = vunpack.c.h.b16 %v4678
      %v5607 = vunpack.c.l.b16 %v4679
      %v5608 = vunpack.c.h.b16 %v4679
      %v5609 = vunpack.c.l.b16 %v4680
      %v5610 = vunpack.c.h.b16 %v4680
      %v5611 = vunpack.c.l.b16 %v4681
      %v5612 = vunpack.c.h.b16 %v4681
      %v5613 = vunpack.c.l.b16 %v4682
      %v5614 = vunpack.c.h.b16 %v4682
      %v5615 = vunpack.c.l.b16 %v4683
      %v5616 = vunpack.c.h.b16 %v4683
      %v5617 = vunpack.c.l.b16 %v4684
      %v5618 = vunpack.c.h.b16 %v4684
      %v5619 = vunpack.c.l.b16 %v4685
      %v5620 = vunpack.c.h.b16 %v4685
      %v5621 = vunpack.c.l.b16 %v4686
      %v5622 = vunpack.c.h.b16 %v4686
      %v5623 = vunpack.c.l.b16 %v4687
      %v5624 = vunpack.c.h.b16 %v4687
      %v5625 = vunpack.c.l.b16 %v4688
      %v5626 = vunpack.c.h.b16 %v4688
      %v5627 = vunpack.c.l.b16 %v4689
      %v5628 = vunpack.c.h.b16 %v4689
      %v5629 = vunpack.c.l.b16 %v4690
      %v5630 = vunpack.c.h.b16 %v4690
      %v5631 = vunpack.c.l.b16 %v4691
      %v5632 = vunpack.c.h.b16 %v4691
      %v5633 = vunpack.c.l.b16 %v4692
      %v5634 = vunpack.c.h.b16 %v4692
      %v5635 = vunpack.c.l.b16 %v4693
      %v5636 = vunpack.c.h.b16 %v4693
      %v5637 = vunpack.c.l.b16 %v4694
      %v5638 = vunpack.c.h.b16 %v4694
      %v5639 = vunpack.c.l.b16 %v4695
      %v5640 = vunpack.c.h.b16 %v4695
      %v5641 = vunpack.c.l.b16 %v4696
      %v5642 = vunpack.c.h.b16 %v4696
      %v5643 = vunpack.c.l.b16 %v4697
      %v5644 = vunpack.c.h.b16 %v4697
      %v5645 = vunpack.c.l.b16 %v4698
      %v5646 = vunpack.c.h.b16 %v4698
      %v5647 = vunpack.c.l.b16 %v4699
      %v5648 = vunpack.c.h.b16 %v4699
      %v5649 = vunpack.c.l.b16 %v4700
      %v5650 = vunpack.c.h.b16 %v4700
      %v5651 = vunpack.c.l.b16 %v4701
      %v5652 = vunpack.c.h.b16 %v4701
      %v5653 = vunpack.c.l.b16 %v4702
      %v5654 = vunpack.c.h.b16 %v4702
      %v5655 = vunpack.c.l.b16 %v4703
      %v5656 = vunpack.c.h.b16 %v4703
      %v5657 = vunpack.c.l.b16 %v4704
      %v5658 = vunpack.c.h.b16 %v4704
      %v5659 = vunpack.c.l.b16 %v4705
      %v5660 = vunpack.c.h.b16 %v4705
      %v5661 = vunpack.c.l.b16 %v4706
      %v5662 = vunpack.c.h.b16 %v4706
      %v5663 = vunpack.c.l.b16 %v4707
      %v5664 = vunpack.c.h.b16 %v4707
      %v5665 = vunpack.c.l.b16 %v4708
      %v5666 = vunpack.c.h.b16 %v4708
      %v5667 = vunpack.c.l.b16 %v4709
      %v5668 = vunpack.c.h.b16 %v4709
      %v5669 = vunpack.c.l.b16 %v4710
      %v5670 = vunpack.c.h.b16 %v4710
      %v5671 = vunpack.c.l.b16 %v4711
      %v5672 = vunpack.c.h.b16 %v4711
      %v5673 = vunpack.c.l.b16 %v4712
      %v5674 = vunpack.c.h.b16 %v4712
      %v5675 = vunpack.c.l.b16 %v4713
      %v5676 = vunpack.c.h.b16 %v4713
      %v5677 = vunpack.c.l.b16 %v4714
      %v5678 = vunpack.c.h.b16 %v4714
      %v5679 = vunpack.c.l.b16 %v4715
      %v5680 = vunpack.c.h.b16 %v4715
      %v5681 = vunpack.c.l.b16 %v4716
      %v5682 = vunpack.c.h.b16 %v4716
      %v5683 = vunpack.c.l.b16 %v4717
      %v5684 = vunpack.c.h.b16 %v4717
      %v5685 = vunpack.c.l.b16 %v4718
      %v5686 = vunpack.c.h.b16 %v4718
      %v5687 = vunpack.c.l.b16 %v4719
      %v5688 = vunpack.c.h.b16 %v4719
      %v5689 = vunpack.c.l.b16 %v4720
      %v5690 = vunpack.c.h.b16 %v4720
      %v5691 = vunpack.c.l.b16 %v4721
      %v5692 = vunpack.c.h.b16 %v4721
      %v5693 = vunpack.c.l.b16 %v4722
      %v5694 = vunpack.c.h.b16 %v4722
      %v5695 = vunpack.c.l.b16 %v4723
      %v5696 = vunpack.c.h.b16 %v4723
      %v5697 = vunpack.c.l.b16 %v4724
      %v5698 = vunpack.c.h.b16 %v4724
      %v5699 = vunpack.c.l.b16 %v4725
      %v5700 = vunpack.c.h.b16 %v4725
      %v5701 = vunpack.c.l.b16 %v4726
      %v5702 = vunpack.c.h.b16 %v4726
      %v5703 = vunpack.c.l.b16 %v4727
      %v5704 = vunpack.c.h.b16 %v4727
      %v5705 = vunpack.c.l.b16 %v4728
      %v5706 = vunpack.c.h.b16 %v4728
      %v5707 = vunpack.c.l.b16 %v4729
      %v5708 = vunpack.c.h.b16 %v4729
      %v5709 = vunpack.c.l.b16 %v4730
      %v5710 = vunpack.c.h.b16 %v4730
      %v5711 = vunpack.c.l.b16 %v4731
      %v5712 = vunpack.c.h.b16 %v4731
      %v5713 = vunpack.c.l.b16 %v4732
      %v5714 = vunpack.c.h.b16 %v4732
      %v5715 = vunpack.c.l.b16 %v4733
      %v5716 = vunpack.c.h.b16 %v4733
      %v5717 = vunpack.c.l.b16 %v4734
      %v5718 = vunpack.c.h.b16 %v4734
      %v5719 = vunpack.c.l.b16 %v4735
      %v5720 = vunpack.c.h.b16 %v4735
      %v5721 = vunpack.c.l.b16 %v4736
      %v5722 = vunpack.c.h.b16 %v4736
      %v5723 = vunpack.c.l.b16 %v4737
      %v5724 = vunpack.c.h.b16 %v4737
      %v5725 = vunpack.c.l.b16 %v4738
      %v5726 = vunpack.c.h.b16 %v4738
      %v5727 = vunpack.c.l.b16 %v4739
      %v5728 = vunpack.c.h.b16 %v4739
      %v5729 = vunpack.c.l.b16 %v4740
      %v5730 = vunpack.c.h.b16 %v4740
      %v5731 = vunpack.c.l.b16 %v4741
      %v5732 = vunpack.c.h.b16 %v4741
      %v5733 = vunpack.c.l.b16 %v4742
      %v5734 = vunpack.c.h.b16 %v4742
      %v5735 = vunpack.c.l.b16 %v4743
      %v5736 = vunpack.c.h.b16 %v4743
      %v5737 = vunpack.c.l.b16 %v4744
      %v5738 = vunpack.c.h.b16 %v4744
      %v5739 = vunpack.c.l.b16 %v4745
      %v5740 = vunpack.c.h.b16 %v4745
      %v5741 = vunpack.c.l.b16 %v4746
      %v5742 = vunpack.c.h.b16 %v4746
      %v5743 = vunpack.c.l.b16 %v4747
      %v5744 = vunpack.c.h.b16 %v4747
      %v5745 = vunpack.c.l.b16 %v4748
      %v5746 = vunpack.c.h.b16 %v4748
      %v5747 = vunpack.c.l.b16 %v4749
      %v5748 = vunpack.c.h.b16 %v4749
      %v5749 = vunpack.c.l.b16 %v4750
      %v5750 = vunpack.c.h.b16 %v4750
      %v5751 = vunpack.c.l.b16 %v4751
      %v5752 = vunpack.c.h.b16 %v4751
      %v5753 = vunpack.c.l.b16 %v4752
      %v5754 = vunpack.c.h.b16 %v4752
      %v5755 = vunpack.c.l.b16 %v4753
      %v5756 = vunpack.c.h.b16 %v4753
      %v5757 = vunpack.c.l.b16 %v4754
      %v5758 = vunpack.c.h.b16 %v4754
      %v5759 = vunpack.c.l.b16 %v4755
      %v5760 = vunpack.c.h.b16 %v4755
      %v5761 = vunpack.c.l.b16 %v4756
      %v5762 = vunpack.c.h.b16 %v4756
      %v5763 = vunpack.c.l.b16 %v4757
      %v5764 = vunpack.c.h.b16 %v4757
      %v5765 = vunpack.c.l.b16 %v4758
      %v5766 = vunpack.c.h.b16 %v4758
      %v5767 = vunpack.c.l.b16 %v4759
      %v5768 = vunpack.c.h.b16 %v4759
      %v5769 = vunpack.c.l.b16 %v4760
      %v5770 = vunpack.c.h.b16 %v4760
      %v5771 = vunpack.c.l.b16 %v4761
      %v5772 = vunpack.c.h.b16 %v4761
      %v5773 = vunpack.c.l.b16 %v4762
      %v5774 = vunpack.c.h.b16 %v4762
      %v5775 = vunpack.c.l.b16 %v4763
      %v5776 = vunpack.c.h.b16 %v4763
      %v5777 = vunpack.c.l.b16 %v4764
      %v5778 = vunpack.c.h.b16 %v4764
      %v5779 = vunpack.c.l.b16 %v4765
      %v5780 = vunpack.c.h.b16 %v4765
      %v5781 = vunpack.c.l.b16 %v4766
      %v5782 = vunpack.c.h.b16 %v4766
      %v5783 = vunpack.c.l.b16 %v4767
      %v5784 = vunpack.c.h.b16 %v4767
      %v5785 = vunpack.c.l.b16 %v4768
      %v5786 = vunpack.c.h.b16 %v4768
      %v5787 = vunpack.c.l.b16 %v4769
      %v5788 = vunpack.c.h.b16 %v4769
      %v5789 = vunpack.c.l.b16 %v4770
      %v5790 = vunpack.c.h.b16 %v4770
      %v5791 = vunpack.c.l.b16 %v4771
      %v5792 = vunpack.c.h.b16 %v4771
      %v5793 = vunpack.c.l.b16 %v4772
      %v5794 = vunpack.c.h.b16 %v4772
      %v5795 = vunpack.c.l.b16 %v4773
      %v5796 = vunpack.c.h.b16 %v4773
      %v5797 = vunpack.c.l.b16 %v4774
      %v5798 = vunpack.c.h.b16 %v4774
      %v5799 = vunpack.c.l.b16 %v4775
      %v5800 = vunpack.c.h.b16 %v4775
      %v5801 = vunpack.c.l.b16 %v4776
      %v5802 = vunpack.c.h.b16 %v4776
      %v5803 = vunpack.c.l.b16 %v4777
      %v5804 = vunpack.c.h.b16 %v4777
      %v5805 = vunpack.c.l.b16 %v4778
      %v5806 = vunpack.c.h.b16 %v4778
      %v5807 = vunpack.c.l.b16 %v4779
      %v5808 = vunpack.c.h.b16 %v4779
      %v5809 = vunpack.c.l.b16 %v4780
      %v5810 = vunpack.c.h.b16 %v4780
      %v5811 = vunpack.c.l.b16 %v4781
      %v5812 = vunpack.c.h.b16 %v4781
      %v5813 = vunpack.c.l.b16 %v4782
      %v5814 = vunpack.c.h.b16 %v4782
      %v5815 = vunpack.c.l.b16 %v4783
      %v5816 = vunpack.c.h.b16 %v4783
      %v5817 = vunpack.c.l.b16 %v4784
      %v5818 = vunpack.c.h.b16 %v4784
      %v5819 = vunpack.c.l.b16 %v4785
      %v5820 = vunpack.c.h.b16 %v4785
      %v5821 = vunpack.c.l.b16 %v4786
      %v5822 = vunpack.c.h.b16 %v4786
      %v5823 = vunpack.c.l.b16 %v4787
      %v5824 = vunpack.c.h.b16 %v4787
      %v5825 = vunpack.c.l.b16 %v4788
      %v5826 = vunpack.c.h.b16 %v4788
      %v5827 = vunpack.c.l.b16 %v4789
      %v5828 = vunpack.c.h.b16 %v4789
      %v5829 = vunpack.c.l.b16 %v4790
      %v5830 = vunpack.c.h.b16 %v4790
      %v5831 = vunpack.c.l.b16 %v4791
      %v5832 = vunpack.c.h.b16 %v4791
      %v5833 = vunpack.c.l.b16 %v4792
      %v5834 = vunpack.c.h.b16 %v4792
      %v5835 = vunpack.c.l.b16 %v4793
      %v5836 = vunpack.c.h.b16 %v4793
      %v5837 = vunpack.c.l.b16 %v4794
      %v5838 = vunpack.c.h.b16 %v4794
      %v5839 = vunpack.c.l.b16 %v4795
      %v5840 = vunpack.c.h.b16 %v4795
      %v5841 = vunpack.c.l.b16 %v4796
      %v5842 = vunpack.c.h.b16 %v4796
      %v5843 = vunpack.c.l.b16 %v4797
      %v5844 = vunpack.c.h.b16 %v4797
      %v5845 = vunpack.c.l.b16 %v4798
      %v5846 = vunpack.c.h.b16 %v4798
      %v5847 = vunpack.c.l.b16 %v4799
      %v5848 = vunpack.c.h.b16 %v4799
      %v5849 = vunpack.c.l.b16 %v4800
      %v5850 = vunpack.c.h.b16 %v4800
      %v5851 = vunpack.c.l.b16 %v4801
      %v5852 = vunpack.c.h.b16 %v4801
      %v5853 = vunpack.c.l.b16 %v4802
      %v5854 = vunpack.c.h.b16 %v4802
      %v5855 = vunpack.c.l.b16 %v4803
      %v5856 = vunpack.c.h.b16 %v4803
      %v5857 = vunpack.c.l.b16 %v4804
      %v5858 = vunpack.c.h.b16 %v4804
      %v5859 = vunpack.c.l.b16 %v4805
      %v5860 = vunpack.c.h.b16 %v4805
      %v5861 = vunpack.c.l.b16 %v4806
      %v5862 = vunpack.c.h.b16 %v4806
      %v5863 = vunpack.c.l.b16 %v4807
      %v5864 = vunpack.c.h.b16 %v4807
      %v5865 = vunpack.c.l.b16 %v4808
      %v5866 = vunpack.c.h.b16 %v4808
      %v5867 = vunpack.c.l.b16 %v4809
      %v5868 = vunpack.c.h.b16 %v4809
      %v5869 = vunpack.c.l.b16 %v4810
      %v5870 = vunpack.c.h.b16 %v4810
      %v5871 = vunpack.c.l.b16 %v4811
      %v5872 = vunpack.c.h.b16 %v4811
      %v5873 = vunpack.c.l.b16 %v4812
      %v5874 = vunpack.c.h.b16 %v4812
      %v5875 = vunpack.c.l.b16 %v4813
      %v5876 = vunpack.c.h.b16 %v4813
      %v5877 = vunpack.c.l.b16 %v4814
      %v5878 = vunpack.c.h.b16 %v4814
      %v5879 = vunpack.c.l.b16 %v4815
      %v5880 = vunpack.c.h.b16 %v4815
      %v5881 = vunpack.c.l.b16 %v4816
      %v5882 = vunpack.c.h.b16 %v4816
      %v5883 = vunpack.c.l.b16 %v4817
      %v5884 = vunpack.c.h.b16 %v4817
      %v5885 = vunpack.c.l.b16 %v4818
      %v5886 = vunpack.c.h.b16 %v4818
      %v5887 = vunpack.c.l.b16 %v4819
      %v5888 = vunpack.c.h.b16 %v4819
      %v5889 = vunpack.c.l.b16 %v4820
      %v5890 = vunpack.c.h.b16 %v4820
      %v5891 = vunpack.c.l.b16 %v4821
      %v5892 = vunpack.c.h.b16 %v4821
      %v5893 = vunpack.c.l.b16 %v4822
      %v5894 = vunpack.c.h.b16 %v4822
      %v5895 = vunpack.c.l.b16 %v4823
      %v5896 = vunpack.c.h.b16 %v4823
      %v5897 = vunpack.c.l.b16 %v4824
      %v5898 = vunpack.c.h.b16 %v4824
      %v5899 = vunpack.c.l.b16 %v4825
      %v5900 = vunpack.c.h.b16 %v4825
      %v5901 = vunpack.c.l.b16 %v4826
      %v5902 = vunpack.c.h.b16 %v4826
      %v5903 = vunpack.c.l.b16 %v4827
      %v5904 = vunpack.c.h.b16 %v4827
      %v5905 = vunpack.c.l.b16 %v4828
      %v5906 = vunpack.c.h.b16 %v4828
      %v5907 = vunpack.c.l.b16 %v4829
      %v5908 = vunpack.c.h.b16 %v4829
      %v5909 = vunpack.c.l.b16 %v4830
      %v5910 = vunpack.c.h.b16 %v4830
      %v5911 = vunpack.c.l.b16 %v4831
      %v5912 = vunpack.c.h.b16 %v4831
      %v5913 = vunpack.c.l.b16 %v4832
      %v5914 = vunpack.c.h.b16 %v4832
      %v5915 = vunpack.c.l.b16 %v4833
      %v5916 = vunpack.c.h.b16 %v4833
      %v5917 = vunpack.c.l.b16 %v4834
      %v5918 = vunpack.c.h.b16 %v4834
      %v5919 = vunpack.c.l.b16 %v4835
      %v5920 = vunpack.c.h.b16 %v4835
      %v5921 = vunpack.c.l.b16 %v4836
      %v5922 = vunpack.c.h.b16 %v4836
      %v5923 = vunpack.c.l.b16 %v4837
      %v5924 = vunpack.c.h.b16 %v4837
      %v5925 = vunpack.c.l.b16 %v4838
      %v5926 = vunpack.c.h.b16 %v4838
      %v5927 = vunpack.c.l.b16 %v4839
      %v5928 = vunpack.c.h.b16 %v4839
      %v5929 = vunpack.c.l.b16 %v4840
      %v5930 = vunpack.c.h.b16 %v4840
      %v5931 = vunpack.c.l.b16 %v4841
      %v5932 = vunpack.c.h.b16 %v4841
      %v5933 = vunpack.c.l.b16 %v4842
      %v5934 = vunpack.c.h.b16 %v4842
      %v5935 = vunpack.c.l.b16 %v4843
      %v5936 = vunpack.c.h.b16 %v4843
      %v5937 = vunpack.c.l.b16 %v4844
      %v5938 = vunpack.c.h.b16 %v4844
      %v5939 = vunpack.c.l.b16 %v4845
      %v5940 = vunpack.c.h.b16 %v4845
      %v5941 = vunpack.c.l.b16 %v4846
      %v5942 = vunpack.c.h.b16 %v4846
      %v5943 = vunpack.c.l.b16 %v4847
      %v5944 = vunpack.c.h.b16 %v4847
      %v5945 = vunpack.c.l.b16 %v4848
      %v5946 = vunpack.c.h.b16 %v4848
      %v5947 = vunpack.c.l.b16 %v4849
      %v5948 = vunpack.c.h.b16 %v4849
      %v5949 = vunpack.c.l.b16 %v4850
      %v5950 = vunpack.c.h.b16 %v4850
      %v5951 = vunpack.c.l.b16 %v4851
      %v5952 = vunpack.c.h.b16 %v4851
      %v5953 = vunpack.c.l.b16 %v4852
      %v5954 = vunpack.c.h.b16 %v4852
      %v5955 = vunpack.c.l.b16 %v4853
      %v5956 = vunpack.c.h.b16 %v4853
      %v5957 = vunpack.c.l.b16 %v4854
      %v5958 = vunpack.c.h.b16 %v4854
      %v5959 = vunpack.c.l.b16 %v4855
      %v5960 = vunpack.c.h.b16 %v4855
      %v5961 = vunpack.c.l.b16 %v4856
      %v5962 = vunpack.c.h.b16 %v4856
      %v5963 = vunpack.c.l.b16 %v4857
      %v5964 = vunpack.c.h.b16 %v4857
      %v5965 = vunpack.c.l.b16 %v4858
      %v5966 = vunpack.c.h.b16 %v4858
      %v5967 = vunpack.c.l.b16 %v4859
      %v5968 = vunpack.c.h.b16 %v4859
      %v5969 = vunpack.c.l.b16 %v4860
      %v5970 = vunpack.c.h.b16 %v4860
      %v5971 = vunpack.c.l.b16 %v4861
      %v5972 = vunpack.c.h.b16 %v4861
      %v5973 = vunpack.c.l.b16 %v4862
      %v5974 = vunpack.c.h.b16 %v4862
      %v5975 = vunpack.c.l.b16 %v4863
      %v5976 = vunpack.c.h.b16 %v4863
      %v5977 = vunpack.c.l.b16 %v4864
      %v5978 = vunpack.c.h.b16 %v4864
      %v5979 = vunpack.c.l.b16 %v4865
      %v5980 = vunpack.c.h.b16 %v4865
      %v5981 = vunpack.c.l.b16 %v4866
      %v5982 = vunpack.c.h.b16 %v4866
      %v5983 = vunpack.c.l.b16 %v4867
      %v5984 = vunpack.c.h.b16 %v4867
      %v5985 = vunpack.c.l.b16 %v4868
      %v5986 = vunpack.c.h.b16 %v4868
      %v5987 = vunpack.c.l.b16 %v4869
      %v5988 = vunpack.c.h.b16 %v4869
      %v5989 = vunpack.c.l.b16 %v4870
      %v5990 = vunpack.c.h.b16 %v4870
      %v5991 = vunpack.c.l.b16 %v4871
      %v5992 = vunpack.c.h.b16 %v4871
      %v5993 = vunpack.c.l.b16 %v4872
      %v5994 = vunpack.c.h.b16 %v4872
      %v5995 = vunpack.c.l.b16 %v4873
      %v5996 = vunpack.c.h.b16 %v4873
      %v5997 = vunpack.c.l.b16 %v4874
      %v5998 = vunpack.c.h.b16 %v4874
      %v5999 = vunpack.c.l.b16 %v4875
      %v6000 = vunpack.c.h.b16 %v4875
      %v6001 = vunpack.c.l.b16 %v4876
      %v6002 = vunpack.c.h.b16 %v4876
      %v6003 = vunpack.c.l.b16 %v4877
      %v6004 = vunpack.c.h.b16 %v4877
      %v6005 = vunpack.c.l.b16 %v4878
      %v6006 = vunpack.c.h.b16 %v4878
      %v6007 = vunpack.c.l.b16 %v4879
      %v6008 = vunpack.c.h.b16 %v4879
      %v6009 = vunpack.c.l.b16 %v4880
      %v6010 = vunpack.c.h.b16 %v4880
      %v6011 = vunpack.c.l.b16 %v4881
      %v6012 = vunpack.c.h.b16 %v4881
      %v6013 = vunpack.c.l.b16 %v4882
      %v6014 = vunpack.c.h.b16 %v4882
      %v6015 = vunpack.c.l.b16 %v4883
      %v6016 = vunpack.c.h.b16 %v4883
      %v6017 = vunpack.c.l.b16 %v4884
      %v6018 = vunpack.c.h.b16 %v4884
      %v6019 = vunpack.c.l.b16 %v4885
      %v6020 = vunpack.c.h.b16 %v4885
      %v6021 = vunpack.c.l.b16 %v4886
      %v6022 = vunpack.c.h.b16 %v4886
      %v6023 = vunpack.c.l.b16 %v4887
      %v6024 = vunpack.c.h.b16 %v4887
      %v6025 = vunpack.c.l.b16 %v4888
      %v6026 = vunpack.c.h.b16 %v4888
      %v6027 = vunpack.c.l.b16 %v4889
      %v6028 = vunpack.c.h.b16 %v4889
      %v6029 = vunpack.c.l.b16 %v4890
      %v6030 = vunpack.c.h.b16 %v4890
      %v6031 = vunpack.c.l.b16 %v4891
      %v6032 = vunpack.c.h.b16 %v4891
      %v6033 = vunpack.c.l.b16 %v4892
      %v6034 = vunpack.c.h.b16 %v4892
      %v6035 = vunpack.c.l.b16 %v4893
      %v6036 = vunpack.c.h.b16 %v4893
      %v6037 = vunpack.c.l.b16 %v4894
      %v6038 = vunpack.c.h.b16 %v4894
      %v6039 = vunpack.c.l.b16 %v4895
      %v6040 = vunpack.c.h.b16 %v4895
      %v6041 = vunpack.c.l.b16 %v4896
      %v6042 = vunpack.c.h.b16 %v4896
      %v6043 = vunpack.c.l.b16 %v4897
      %v6044 = vunpack.c.h.b16 %v4897
      %v6045 = vunpack.c.l.b16 %v4898
      %v6046 = vunpack.c.h.b16 %v4898
      %v6047 = vunpack.c.l.b16 %v4899
      %v6048 = vunpack.c.h.b16 %v4899
      %v6049 = vunpack.c.l.b16 %v4900
      %v6050 = vunpack.c.h.b16 %v4900
      %v6051 = vunpack.c.l.b16 %v4901
      %v6052 = vunpack.c.h.b16 %v4901
      %v6053 = vunpack.c.l.b16 %v4902
      %v6054 = vunpack.c.h.b16 %v4902
      %v6055 = vunpack.c.l.b16 %v4903
      %v6056 = vunpack.c.h.b16 %v4903
      %v6057 = vunpack.c.l.b16 %v4904
      %v6058 = vunpack.c.h.b16 %v4904
      %v6059 = vunpack.c.l.b16 %v4905
      %v6060 = vunpack.c.h.b16 %v4905
      %v6061 = vunpack.c.l.b16 %v4906
      %v6062 = vunpack.c.h.b16 %v4906
      %v6063 = vunpack.c.l.b16 %v4907
      %v6064 = vunpack.c.h.b16 %v4907
      %v6065 = vunpack.c.l.b16 %v4908
      %v6066 = vunpack.c.h.b16 %v4908
      %v6067 = vunpack.c.l.b16 %v4909
      %v6068 = vunpack.c.h.b16 %v4909
      %v6069 = vunpack.c.l.b16 %v4910
      %v6070 = vunpack.c.h.b16 %v4910
      %v6071 = vunpack.c.l.b16 %v4911
      %v6072 = vunpack.c.h.b16 %v4911
      %v6073 = vunpack.c.l.b16 %v4912
      %v6074 = vunpack.c.h.b16 %v4912
      %v6075 = vunpack.c.l.b16 %v4913
      %v6076 = vunpack.c.h.b16 %v4913
      %v6077 = vunpack.c.l.b16 %v4914
      %v6078 = vunpack.c.h.b16 %v4914
      %v6079 = vunpack.c.l.b16 %v4915
      %v6080 = vunpack.c.h.b16 %v4915
      %v6081 = vunpack.c.l.b16 %v4916
      %v6082 = vunpack.c.h.b16 %v4916
      %v6083 = vunpack.c.l.b16 %v4917
      %v6084 = vunpack.c.h.b16 %v4917
      %v6085 = vunpack.c.l.b16 %v4918
      %v6086 = vunpack.c.h.b16 %v4918
      %v6087 = vunpack.c.l.b16 %v4919
      %v6088 = vunpack.c.h.b16 %v4919
      %v6089 = vunpack.c.l.b16 %v4920
      %v6090 = vunpack.c.h.b16 %v4920
      %v6091 = vunpack.c.l.b16 %v4921
      %v6092 = vunpack.c.h.b16 %v4921
      %v6093 = vunpack.c.l.b16 %v4922
      %v6094 = vunpack.c.h.b16 %v4922
      %v6095 = vunpack.c.l.b16 %v4923
      %v6096 = vunpack.c.h.b16 %v4923
      %v6097 = vunpack.c.l.b16 %v4924
      %v6098 = vunpack.c.h.b16 %v4924
      %v6099 = vunpack.c.l.b16 %v4925
      %v6100 = vunpack.c.h.b16 %v4925
      %v6101 = vunpack.c.l.b16 %v4926
      %v6102 = vunpack.c.h.b16 %v4926
      %v6103 = vunpack.c.l.b16 %v4927
      %v6104 = vunpack.c.h.b16 %v4927
      %v6105 = vunpack.c.l.b16 %v4928
      %v6106 = vunpack.c.h.b16 %v4928
      %v6107 = vunpack.c.l.b16 %v4929
      %v6108 = vunpack.c.h.b16 %v4929
      %v6109 = vunpack.c.l.b16 %v4930
      %v6110 = vunpack.c.h.b16 %v4930
      %v6111 = vunpack.c.l.b16 %v4931
      %v6112 = vunpack.c.h.b16 %v4931
      %v6113 = vunpack.c.l.b16 %v4932
      %v6114 = vunpack.c.h.b16 %v4932
      %v6115 = vunpack.c.l.b16 %v4933
      %v6116 = vunpack.c.h.b16 %v4933
      %v6117 = vunpack.c.l.b16 %v4934
      %v6118 = vunpack.c.h.b16 %v4934
      %v6119 = vunpack.c.l.b16 %v4935
      %v6120 = vunpack.c.h.b16 %v4935
      %v6121 = vunpack.c.l.b16 %v4936
      %v6122 = vunpack.c.h.b16 %v4936
      %v6123 = vunpack.c.l.b16 %v4937
      %v6124 = vunpack.c.h.b16 %v4937
      %v6125 = vunpack.c.l.b16 %v4938
      %v6126 = vunpack.c.h.b16 %v4938
      %v6127 = vunpack.c.l.b16 %v4939
      %v6128 = vunpack.c.h.b16 %v4939
      %v6129 = vunpack.c.l.b16 %v4940
      %v6130 = vunpack.c.h.b16 %v4940
      %v6131 = vunpack.c.l.b16 %v4941
      %v6132 = vunpack.c.h.b16 %v4941
      %v6133 = vunpack.c.l.b16 %v4942
      %v6134 = vunpack.c.h.b16 %v4942
      %v6135 = vunpack.c.l.b16 %v4943
      %v6136 = vunpack.c.h.b16 %v4943
      %v6137 = vunpack.c.l.b16 %v4944
      %v6138 = vunpack.c.h.b16 %v4944
      %v6139 = vunpack.c.l.b16 %v4945
      %v6140 = vunpack.c.h.b16 %v4945
      %v6141 = vunpack.c.l.b16 %v4946
      %v6142 = vunpack.c.h.b16 %v4946
      %v6143 = vunpack.c.l.b16 %v4947
      %v6144 = vunpack.c.h.b16 %v4947
      %v6145 = vunpack.c.l.b16 %v4948
      %v6146 = vunpack.c.h.b16 %v4948
      %v6147 = vunpack.c.l.b16 %v4949
      %v6148 = vunpack.c.h.b16 %v4949
      %v6149 = vunpack.c.l.b16 %v4950
      %v6150 = vunpack.c.h.b16 %v4950
      %v6151 = vunpack.c.l.b16 %v4951
      %v6152 = vunpack.c.h.b16 %v4951
      %v6153 = vunpack.c.l.b16 %v4952
      %v6154 = vunpack.c.h.b16 %v4952
      %v6155 = vunpack.c.l.b16 %v4953
      %v6156 = vunpack.c.h.b16 %v4953
      %v6157 = vunpack.c.l.b16 %v4954
      %v6158 = vunpack.c.h.b16 %v4954
      %v6159 = vunpack.c.l.b16 %v4955
      %v6160 = vunpack.c.h.b16 %v4955
      %v6161 = vunpack.c.l.b16 %v4956
      %v6162 = vunpack.c.h.b16 %v4956
      %v6163 = vunpack.c.l.b16 %v4957
      %v6164 = vunpack.c.h.b16 %v4957
      %v6165 = vunpack.c.l.b16 %v4958
      %v6166 = vunpack.c.h.b16 %v4958
      %v6167 = vunpack.c.l.b16 %v4959
      %v6168 = vunpack.c.h.b16 %v4959
      %v6169 = vunpack.c.l.b16 %v4960
      %v6170 = vunpack.c.h.b16 %v4960
      %v6171 = vunpack.c.l.b16 %v4961
      %v6172 = vunpack.c.h.b16 %v4961
      %v6173 = vunpack.c.l.b16 %v4962
      %v6174 = vunpack.c.h.b16 %v4962
      %v6175 = vunpack.c.l.b16 %v4963
      %v6176 = vunpack.c.h.b16 %v4963
      %v6177 = vunpack.c.l.b16 %v4964
      %v6178 = vunpack.c.h.b16 %v4964
      %v6179 = vunpack.c.l.b16 %v4965
      %v6180 = vunpack.c.h.b16 %v4965
      %v6181 = vunpack.c.l.b16 %v4966
      %v6182 = vunpack.c.h.b16 %v4966
      %v6183 = vunpack.c.l.b16 %v4967
      %v6184 = vunpack.c.h.b16 %v4967
      %v6185 = vunpack.c.l.b16 %v4968
      %v6186 = vunpack.c.h.b16 %v4968
      %v6187 = vunpack.c.l.b16 %v4969
      %v6188 = vunpack.c.h.b16 %v4969
      %v6189 = vunpack.c.l.b16 %v4970
      %v6190 = vunpack.c.h.b16 %v4970
      %v6191 = vunpack.c.l.b16 %v4971
      %v6192 = vunpack.c.h.b16 %v4971
      %v6193 = vunpack.c.l.b16 %v4972
      %v6194 = vunpack.c.h.b16 %v4972
      %v6195 = vunpack.c.l.b16 %v4973
      %v6196 = vunpack.c.h.b16 %v4973
      %v6197 = vunpack.c.l.b16 %v4974
      %v6198 = vunpack.c.h.b16 %v4974
      %v6199 = vunpack.c.l.b16 %v4975
      %v6200 = vunpack.c.h.b16 %v4975
      %v6201 = vunpack.c.l.b16 %v4976
      %v6202 = vunpack.c.h.b16 %v4976
      %v6203 = vunpack.c.l.b16 %v4977
      %v6204 = vunpack.c.h.b16 %v4977
      %v6205 = vunpack.c.l.b16 %v4978
      %v6206 = vunpack.c.h.b16 %v4978
      %v6207 = vunpack.c.l.b16 %v4979
      %v6208 = vunpack.c.h.b16 %v4979
      %v6209 = vunpack.c.l.b16 %v4980
      %v6210 = vunpack.c.h.b16 %v4980
      %v6211 = vunpack.c.l.b16 %v4981
      %v6212 = vunpack.c.h.b16 %v4981
      %v6213 = vunpack.c.l.b16 %v4982
      %v6214 = vunpack.c.h.b16 %v4982
      %v6215 = vunpack.c.l.b16 %v4983
      %v6216 = vunpack.c.h.b16 %v4983
      %v6217 = vunpack.c.l.b16 %v4984
      %v6218 = vunpack.c.h.b16 %v4984
      %v6219 = vunpack.c.l.b16 %v4985
      %v6220 = vunpack.c.h.b16 %v4985
      %v6221 = vunpack.c.l.b16 %v4986
      %v6222 = vunpack.c.h.b16 %v4986
      %v6223 = vunpack.c.l.b16 %v4987
      %v6224 = vunpack.c.h.b16 %v4987
      %v6225 = vunpack.c.l.b16 %v4988
      %v6226 = vunpack.c.h.b16 %v4988
      %v6227 = vunpack.c.l.b16 %v4989
      %v6228 = vunpack.c.h.b16 %v4989
      %v6229 = vunpack.c.l.b16 %v4990
      %v6230 = vunpack.c.h.b16 %v4990
      %v6231 = vunpack.c.l.b16 %v4991
      %v6232 = vunpack.c.h.b16 %v4991
      %v6233 = vunpack.c.l.b16 %v4992
      %v6234 = vunpack.c.h.b16 %v4992
      %v6235 = vunpack.c.l.b16 %v4993
      %v6236 = vunpack.c.h.b16 %v4993
      %v6237 = vunpack.c.l.b16 %v4994
      %v6238 = vunpack.c.h.b16 %v4994
      %v6239 = vunpack.c.l.b16 %v4995
      %v6240 = vunpack.c.h.b16 %v4995
      %v6241 = vunpack.c.l.b16 %v4996
      %v6242 = vunpack.c.h.b16 %v4996
      %v6243 = vunpack.c.l.b16 %v4997
      %v6244 = vunpack.c.h.b16 %v4997
      %v6245 = vunpack.c.l.b16 %v4998
      %v6246 = vunpack.c.h.b16 %v4998
      %v6247 = vunpack.c.l.b16 %v4999
      %v6248 = vunpack.c.h.b16 %v4999
      %v6249 = vunpack.c.l.b16 %v5000
      %v6250 = vunpack.c.h.b16 %v5000
      %v6251 = vunpack.c.l.b16 %v5001
      %v6252 = vunpack.c.h.b16 %v5001
      %v6253 = vunpack.c.l.b16 %v5002
      %v6254 = vunpack.c.h.b16 %v5002
      %v6255 = vunpack.c.l.b16 %v5003
      %v6256 = vunpack.c.h.b16 %v5003
      %v6257 = vunpack.c.l.b16 %v5004
      %v6258 = vunpack.c.h.b16 %v5004
      %v6259 = vunpack.c.l.b16 %v5005
      %v6260 = vunpack.c.h.b16 %v5005
      %v6261 = vunpack.c.l.b16 %v5006
      %v6262 = vunpack.c.h.b16 %v5006
      %v6263 = vunpack.c.l.b16 %v5007
      %v6264 = vunpack.c.h.b16 %v5007
      %v6265 = vunpack.c.l.b16 %v5008
      %v6266 = vunpack.c.h.b16 %v5008
      %v6267 = vunpack.c.l.b16 %v5009
      %v6268 = vunpack.c.h.b16 %v5009
      %v6269 = vunpack.c.l.b16 %v5010
      %v6270 = vunpack.c.h.b16 %v5010
      %v6271 = vunpack.c.l.b16 %v5011
      %v6272 = vunpack.c.h.b16 %v5011
      %v6273 = vunpack.c.l.b16 %v5012
      %v6274 = vunpack.c.h.b16 %v5012
      %v6275 = vunpack.c.l.b16 %v5013
      %v6276 = vunpack.c.h.b16 %v5013
      %v6277 = vunpack.c.l.b16 %v5014
      %v6278 = vunpack.c.h.b16 %v5014
      %v6279 = vunpack.c.l.b16 %v5015
      %v6280 = vunpack.c.h.b16 %v5015
      %v6281 = vunpack.c.l.b16 %v5016
      %v6282 = vunpack.c.h.b16 %v5016
      %v6283 = vunpack.c.l.b16 %v5017
      %v6284 = vunpack.c.h.b16 %v5017
      %v6285 = vunpack.c.l.b16 %v5018
      %v6286 = vunpack.c.h.b16 %v5018
      %v6287 = vunpack.c.l.b16 %v5019
      %v6288 = vunpack.c.h.b16 %v5019
      %v6289 = vunpack.c.l.b16 %v5020
      %v6290 = vunpack.c.h.b16 %v5020
      %v6291 = vunpack.c.l.b16 %v5021
      %v6292 = vunpack.c.h.b16 %v5021
      %v6293 = vunpack.c.l.b16 %v5022
      %v6294 = vunpack.c.h.b16 %v5022
      %v6295 = vunpack.c.l.b16 %v5023
      %v6296 = vunpack.c.h.b16 %v5023
      %v6297 = vunpack.c.l.b16 %v5024
      %v6298 = vunpack.c.h.b16 %v5024
      %v6299 = vunpack.c.l.b16 %v5025
      %v6300 = vunpack.c.h.b16 %v5025
      %v6301 = vunpack.c.l.b16 %v5026
      %v6302 = vunpack.c.h.b16 %v5026
      %v6303 = vunpack.c.l.b16 %v5027
      %v6304 = vunpack.c.h.b16 %v5027
      %v6305 = vunpack.c.l.b16 %v5028
      %v6306 = vunpack.c.h.b16 %v5028
      %v6307 = vunpack.c.l.b16 %v5029
      %v6308 = vunpack.c.h.b16 %v5029
      %v6309 = vunpack.c.l.b16 %v5030
      %v6310 = vunpack.c.h.b16 %v5030
      %v6311 = vunpack.c.l.b16 %v5031
      %v6312 = vunpack.c.h.b16 %v5031
      %v6313 = vunpack.c.l.b16 %v5032
      %v6314 = vunpack.c.h.b16 %v5032
      %v6315 = vunpack.c.l.b16 %v5033
      %v6316 = vunpack.c.h.b16 %v5033
      %v6317 = vunpack.c.l.b16 %v5034
      %v6318 = vunpack.c.h.b16 %v5034
      %v6319 = vunpack.c.l.b16 %v5035
      %v6320 = vunpack.c.h.b16 %v5035
      %v6321 = vunpack.c.l.b16 %v5036
      %v6322 = vunpack.c.h.b16 %v5036
      %v6323 = vunpack.c.l.b16 %v5037
      %v6324 = vunpack.c.h.b16 %v5037
      %v6325 = vunpack.c.l.b16 %v5038
      %v6326 = vunpack.c.h.b16 %v5038
      %v6327 = vunpack.c.l.b16 %v5039
      %v6328 = vunpack.c.h.b16 %v5039
      %v6329 = vunpack.c.l.b16 %v5040
      %v6330 = vunpack.c.h.b16 %v5040
      %v6331 = vunpack.c.l.b16 %v5041
      %v6332 = vunpack.c.h.b16 %v5041
      %v6333 = vunpack.c.l.b16 %v5042
      %v6334 = vunpack.c.h.b16 %v5042
      %v6335 = vunpack.c.l.b16 %v5043
      %v6336 = vunpack.c.h.b16 %v5043
      %v6337 = vunpack.c.l.b16 %v5044
      %v6338 = vunpack.c.h.b16 %v5044
      %v6339 = vunpack.c.l.b16 %v5045
      %v6340 = vunpack.c.h.b16 %v5045
      %v6341 = vunpack.c.l.b16 %v5046
      %v6342 = vunpack.c.h.b16 %v5046
      %v6343 = vunpack.c.l.b16 %v5047
      %v6344 = vunpack.c.h.b16 %v5047
      %v6345 = vunpack.c.l.b16 %v5048
      %v6346 = vunpack.c.h.b16 %v5048
      %v6347 = vunpack.c.l.b16 %v5049
      %v6348 = vunpack.c.h.b16 %v5049
      %v6349 = vunpack.c.l.b16 %v5050
      %v6350 = vunpack.c.h.b16 %v5050
      %v6351 = vunpack.c.l.b16 %v5051
      %v6352 = vunpack.c.h.b16 %v5051
      %v6353 = vunpack.c.l.b16 %v5052
      %v6354 = vunpack.c.h.b16 %v5052
      %v6355 = vunpack.c.l.b16 %v5053
      %v6356 = vunpack.c.h.b16 %v5053
      %v6357 = vunpack.c.l.b16 %v5054
      %v6358 = vunpack.c.h.b16 %v5054
      %v6359 = vunpack.c.l.b16 %v5055
      %v6360 = vunpack.c.h.b16 %v5055
      %v6361 = vunpack.c.l.b16 %v5056
      %v6362 = vunpack.c.h.b16 %v5056
      %v6363 = vunpack.c.l.b16 %v5057
      %v6364 = vunpack.c.h.b16 %v5057
      %v6365 = vunpack.c.l.b16 %v5058
      %v6366 = vunpack.c.h.b16 %v5058
      %v6367 = vunpack.c.l.b16 %v5059
      %v6368 = vunpack.c.h.b16 %v5059
      %v6369 = vunpack.c.l.b16 %v5060
      %v6370 = vunpack.c.h.b16 %v5060
      %v6371 = vunpack.c.l.b16 %v5061
      %v6372 = vunpack.c.h.b16 %v5061
      %v6373 = vunpack.c.l.b16 %v5062
      %v6374 = vunpack.c.h.b16 %v5062
      %v6375 = vunpack.c.l.b16 %v5063
      %v6376 = vunpack.c.h.b16 %v5063
      %v6377 = vunpack.c.l.b16 %v5064
      %v6378 = vunpack.c.h.b16 %v5064
      %v6379 = vunpack.c.l.b16 %v5065
      %v6380 = vunpack.c.h.b16 %v5065
      %v6381 = vunpack.c.l.b16 %v5066
      %v6382 = vunpack.c.h.b16 %v5066
      %v6383 = vunpack.c.l.b16 %v5067
      %v6384 = vunpack.c.h.b16 %v5067
      %v6385 = vunpack.c.l.b16 %v5068
      %v6386 = vunpack.c.h.b16 %v5068
      %v6387 = vunpack.c.l.b16 %v5069
      %v6388 = vunpack.c.h.b16 %v5069
      %v6389 = vunpack.c.l.b16 %v5070
      %v6390 = vunpack.c.h.b16 %v5070
      %v6391 = vunpack.c.l.b16 %v5071
      %v6392 = vunpack.c.h.b16 %v5071
      %v6393 = vunpack.c.l.b16 %v5072
      %v6394 = vunpack.c.h.b16 %v5072
      %v6395 = vunpack.c.l.b16 %v5073
      %v6396 = vunpack.c.h.b16 %v5073
      %v6397 = vunpack.c.l.b16 %v5074
      %v6398 = vunpack.c.h.b16 %v5074
      %v6399 = vunpack.c.l.b16 %v5075
      %v6400 = vunpack.c.h.b16 %v5075
      %v6401 = vunpack.c.l.b16 %v5076
      %v6402 = vunpack.c.h.b16 %v5076
      %v6403 = vunpack.c.l.b16 %v5077
      %v6404 = vunpack.c.h.b16 %v5077
      %v6405 = vunpack.c.l.b16 %v5078
      %v6406 = vunpack.c.h.b16 %v5078
      %v6407 = vunpack.c.l.b16 %v5079
      %v6408 = vunpack.c.h.b16 %v5079
      %v6409 = vunpack.c.l.b16 %v5080
      %v6410 = vunpack.c.h.b16 %v5080
      %v6411 = vunpack.c.l.b16 %v5081
      %v6412 = vunpack.c.h.b16 %v5081
      %v6413 = vunpack.c.l.b16 %v5082
      %v6414 = vunpack.c.h.b16 %v5082
      %v6415 = vunpack.c.l.b16 %v5083
      %v6416 = vunpack.c.h.b16 %v5083
      %v6417 = vunpack.c.l.b16 %v5084
      %v6418 = vunpack.c.h.b16 %v5084
      %v6419 = vunpack.c.l.b16 %v5085
      %v6420 = vunpack.c.h.b16 %v5085
      %v6421 = vunpack.c.l.b16 %v5086
      %v6422 = vunpack.c.h.b16 %v5086
      %v6423 = vunpack.c.l.b16 %v5087
      %v6424 = vunpack.c.h.b16 %v5087
      %v6425 = vunpack.c.l.b16 %v5088
      %v6426 = vunpack.c.h.b16 %v5088
      %v6427 = vunpack.c.l.b16 %v5089
      %v6428 = vunpack.c.h.b16 %v5089
      %v6429 = vunpack.c.l.b16 %v5090
      %v6430 = vunpack.c.h.b16 %v5090
      %v6431 = vunpack.c.l.b16 %v5091
      %v6432 = vunpack.c.h.b16 %v5091
      %v6433 = vunpack.c.l.b16 %v5092
      %v6434 = vunpack.c.h.b16 %v5092
      %v6435 = vunpack.c.l.b16 %v5093
      %v6436 = vunpack.c.h.b16 %v5093
      %v6437 = vunpack.c.l.b16 %v5094
      %v6438 = vunpack.c.h.b16 %v5094
      %v6439 = vpack.c.b16 %v5551, %v5543
      %v6440 = vpack.c.b16 %v5552, %v5544
      %v6441 = vpack.c.b16 %v5553, %v5545
      %v6442 = vpack.c.b16 %v5554, %v5546
      %v6443 = vpack.c.b16 %v5555, %v5547
      %v6444 = vpack.c.b16 %v5556, %v5548
      %v6445 = vpack.c.b16 %v5557, %v5549
      %v6446 = vpack.c.b16 %v5558, %v5550
      %v6447 = vpack.c.b16 %v5567, %v5559
      %v6448 = vpack.c.b16 %v5568, %v5560
      %v6449 = vpack.c.b16 %v5569, %v5561
      %v6450 = vpack.c.b16 %v5570, %v5562
      %v6451 = vpack.c.b16 %v5571, %v5563
      %v6452 = vpack.c.b16 %v5572, %v5564
      %v6453 = vpack.c.b16 %v5573, %v5565
      %v6454 = vpack.c.b16 %v5574, %v5566
      %v6455 = vpack.c.b16 %v5583, %v5575
      %v6456 = vpack.c.b16 %v5584, %v5576
      %v6457 = vpack.c.b16 %v5585, %v5577
      %v6458 = vpack.c.b16 %v5586, %v5578
      %v6459 = vpack.c.b16 %v5587, %v5579
      %v6460 = vpack.c.b16 %v5588, %v5580
      %v6461 = vpack.c.b16 %v5589, %v5581
      %v6462 = vpack.c.b16 %v5590, %v5582
      %v6463 = vpack.c.b16 %v5599, %v5591
      %v6464 = vpack.c.b16 %v5600, %v5592
      %v6465 = vpack.c.b16 %v5601, %v5593
      %v6466 = vpack.c.b16 %v5602, %v5594
      %v6467 = vpack.c.b16 %v5603, %v5595
      %v6468 = vpack.c.b16 %v5604, %v5596
      %v6469 = vpack.c.b16 %v5605, %v5597
      %v6470 = vpack.c.b16 %v5606, %v5598
      %v6471 = vpack.c.b16 %v5615, %v5607
      %v6472 = vpack.c.b16 %v5616, %v5608
      %v6473 = vpack.c.b16 %v5617, %v5609
      %v6474 = vpack.c.b16 %v5618, %v5610
      %v6475 = vpack.c.b16 %v5619, %v5611
      %v6476 = vpack.c.b16 %v5620, %v5612
      %v6477 = vpack.c.b16 %v5621, %v5613
      %v6478 = vpack.c.b16 %v5622, %v5614
      %v6479 = vpack.c.b16 %v5631, %v5623
      %v6480 = vpack.c.b16 %v5632, %v5624
      %v6481 = vpack.c.b16 %v5633, %v5625
      %v6482 = vpack.c.b16 %v5634, %v5626
      %v6483 = vpack.c.b16 %v5635, %v5627
      %v6484 = vpack.c.b16 %v5636, %v5628
      %v6485 = vpack.c.b16 %v5637, %v5629
      %v6486 = vpack.c.b16 %v5638, %v5630
      %v6487 = vpack.c.b16 %v5647, %v5639
      %v6488 = vpack.c.b16 %v5648, %v5640
      %v6489 = vpack.c.b16 %v5649, %v5641
      %v6490 = vpack.c.b16 %v5650, %v5642
      %v6491 = vpack.c.b16 %v5651, %v5643
      %v6492 = vpack.c.b16 %v5652, %v5644
      %v6493 = vpack.c.b16 %v5653, %v5645
      %v6494 = vpack.c.b16 %v5654, %v5646
      %v6495 = vpack.c.b16 %v5663, %v5655
      %v6496 = vpack.c.b16 %v5664, %v5656
      %v6497 = vpack.c.b16 %v5665, %v5657
      %v6498 = vpack.c.b16 %v5666, %v5658
      %v6499 = vpack.c.b16 %v5667, %v5659
      %v6500 = vpack.c.b16 %v5668, %v5660
      %v6501 = vpack.c.b16 %v5669, %v5661
      %v6502 = vpack.c.b16 %v5670, %v5662
      %v6503 = vpack.c.b16 %v5679, %v5671
      %v6504 = vpack.c.b16 %v5680, %v5672
      %v6505 = vpack.c.b16 %v5681, %v5673
      %v6506 = vpack.c.b16 %v5682, %v5674
      %v6507 = vpack.c.b16 %v5683, %v5675
      %v6508 = vpack.c.b16 %v5684, %v5676
      %v6509 = vpack.c.b16 %v5685, %v5677
      %v6510 = vpack.c.b16 %v5686, %v5678
      %v6511 = vpack.c.b16 %v5695, %v5687
      %v6512 = vpack.c.b16 %v5696, %v5688
      %v6513 = vpack.c.b16 %v5697, %v5689
      %v6514 = vpack.c.b16 %v5698, %v5690
      %v6515 = vpack.c.b16 %v5699, %v5691
      %v6516 = vpack.c.b16 %v5700, %v5692
      %v6517 = vpack.c.b16 %v5701, %v5693
      %v6518 = vpack.c.b16 %v5702, %v5694
      %v6519 = vpack.c.b16 %v5711, %v5703
      %v6520 = vpack.c.b16 %v5712, %v5704
      %v6521 = vpack.c.b16 %v5713, %v5705
      %v6522 = vpack.c.b16 %v5714, %v5706
      %v6523 = vpack.c.b16 %v5715, %v5707
      %v6524 = vpack.c.b16 %v5716, %v5708
      %v6525 = vpack.c.b16 %v5717, %v5709
      %v6526 = vpack.c.b16 %v5718, %v5710
      %v6527 = vpack.c.b16 %v5727, %v5719
      %v6528 = vpack.c.b16 %v5728, %v5720
      %v6529 = vpack.c.b16 %v5729, %v5721
      %v6530 = vpack.c.b16 %v5730, %v5722
      %v6531 = vpack.c.b16 %v5731, %v5723
      %v6532 = vpack.c.b16 %v5732, %v5724
      %v6533 = vpack.c.b16 %v5733, %v5725
      %v6534 = vpack.c.b16 %v5734, %v5726
      %v6535 = vpack.c.b16 %v5743, %v5735
      %v6536 = vpack.c.b16 %v5744, %v5736
      %v6537 = vpack.c.b16 %v5745, %v5737
      %v6538 = vpack.c.b16 %v5746, %v5738
      %v6539 = vpack.c.b16 %v5747, %v5739
      %v6540 = vpack.c.b16 %v5748, %v5740
      %v6541 = vpack.c.b16 %v5749, %v5741
      %v6542 = vpack.c.b16 %v5750, %v5742
      %v6543 = vpack.c.b16 %v5759, %v5751
      %v6544 = vpack.c.b16 %v5760, %v5752
      %v6545 = vpack.c.b16 %v5761, %v5753
      %v6546 = vpack.c.b16 %v5762, %v5754
      %v6547 = vpack.c.b16 %v5763, %v5755
      %v6548 = vpack.c.b16 %v5764, %v5756
      %v6549 = vpack.c.b16 %v5765, %v5757
      %v6550 = vpack.c.b16 %v5766, %v5758
      %v6551 = vpack.c.b16 %v5775, %v5767
      %v6552 = vpack.c.b16 %v5776, %v5768
      %v6553 = vpack.c.b16 %v5777, %v5769
      %v6554 = vpack.c.b16 %v5778, %v5770
      %v6555 = vpack.c.b16 %v5779, %v5771
      %v6556 = vpack.c.b16 %v5780, %v5772
      %v6557 = vpack.c.b16 %v5781, %v5773
      %v6558 = vpack.c.b16 %v5782, %v5774
      %v6559 = vpack.c.b16 %v5791, %v5783
      %v6560 = vpack.c.b16 %v5792, %v5784
      %v6561 = vpack.c.b16 %v5793, %v5785
      %v6562 = vpack.c.b16 %v5794, %v5786
      %v6563 = vpack.c.b16 %v5795, %v5787
      %v6564 = vpack.c.b16 %v5796, %v5788
      %v6565 = vpack.c.b16 %v5797, %v5789
      %v6566 = vpack.c.b16 %v5798, %v5790
      %v6567 = vpack.c.b16 %v5807, %v5799
      %v6568 = vpack.c.b16 %v5808, %v5800
      %v6569 = vpack.c.b16 %v5809, %v5801
      %v6570 = vpack.c.b16 %v5810, %v5802
      %v6571 = vpack.c.b16 %v5811, %v5803
      %v6572 = vpack.c.b16 %v5812, %v5804
      %v6573 = vpack.c.b16 %v5813, %v5805
      %v6574 = vpack.c.b16 %v5814, %v5806
      %v6575 = vpack.c.b16 %v5823, %v5815
      %v6576 = vpack.c.b16 %v5824, %v5816
      %v6577 = vpack.c.b16 %v5825, %v5817
      %v6578 = vpack.c.b16 %v5826, %v5818
      %v6579 = vpack.c.b16 %v5827, %v5819
      %v6580 = vpack.c.b16 %v5828, %v5820
      %v6581 = vpack.c.b16 %v5829, %v5821
      %v6582 = vpack.c.b16 %v5830, %v5822
      %v6583 = vpack.c.b16 %v5839, %v5831
      %v6584 = vpack.c.b16 %v5840, %v5832
      %v6585 = vpack.c.b16 %v5841, %v5833
      %v6586 = vpack.c.b16 %v5842, %v5834
      %v6587 = vpack.c.b16 %v5843, %v5835
      %v6588 = vpack.c.b16 %v5844, %v5836
      %v6589 = vpack.c.b16 %v5845, %v5837
      %v6590 = vpack.c.b16 %v5846, %v5838
      %v6591 = vpack.c.b16 %v5855, %v5847
      %v6592 = vpack.c.b16 %v5856, %v5848
      %v6593 = vpack.c.b16 %v5857, %v5849
      %v6594 = vpack.c.b16 %v5858, %v5850
      %v6595 = vpack.c.b16 %v5859, %v5851
      %v6596 = vpack.c.b16 %v5860, %v5852
      %v6597 = vpack.c.b16 %v5861, %v5853
      %v6598 = vpack.c.b16 %v5862, %v5854
      %v6599 = vpack.c.b16 %v5871, %v5863
      %v6600 = vpack.c.b16 %v5872, %v5864
      %v6601 = vpack.c.b16 %v5873, %v5865
      %v6602 = vpack.c.b16 %v5874, %v5866
      %v6603 = vpack.c.b16 %v5875, %v5867
      %v6604 = vpack.c.b16 %v5876, %v5868
      %v6605 = vpack.c.b16 %v5877, %v5869
      %v6606 = vpack.c.b16 %v5878, %v5870
      %v6607 = vpack.c.b16 %v5887, %v5879
      %v6608 = vpack.c.b16 %v5888, %v5880
      %v6609 = vpack.c.b16 %v5889, %v5881
      %v6610 = vpack.c.b16 %v5890, %v5882
      %v6611 = vpack.c.b16 %v5891, %v5883
      %v6612 = vpack.c.b16 %v5892, %v5884
      %v6613 = vpack.c.b16 %v5893, %v5885
      %v6614 = vpack.c.b16 %v5894, %v5886
      %v6615 = vpack.c.b16 %v5903, %v5895
      %v6616 = vpack.c.b16 %v5904, %v5896
      %v6617 = vpack.c.b16 %v5905, %v5897
      %v6618 = vpack.c.b16 %v5906, %v5898
      %v6619 = vpack.c.b16 %v5907, %v5899
      %v6620 = vpack.c.b16 %v5908, %v5900
      %v6621 = vpack.c.b16 %v5909, %v5901
      %v6622 = vpack.c.b16 %v5910, %v5902
      %v6623 = vpack.c.b16 %v5919, %v5911
      %v6624 = vpack.c.b16 %v5920, %v5912
      %v6625 = vpack.c.b16 %v5921, %v5913
      %v6626 = vpack.c.b16 %v5922, %v5914
      %v6627 = vpack.c.b16 %v5923, %v5915
      %v6628 = vpack.c.b16 %v5924, %v5916
      %v6629 = vpack.c.b16 %v5925, %v5917
      %v6630 = vpack.c.b16 %v5926, %v5918
      %v6631 = vpack.c.b16 %v5935, %v5927
      %v6632 = vpack.c.b16 %v5936, %v5928
      %v6633 = vpack.c.b16 %v5937, %v5929
      %v6634 = vpack.c.b16 %v5938, %v5930
      %v6635 = vpack.c.b16 %v5939, %v5931
      %v6636 = vpack.c.b16 %v5940, %v5932
      %v6637 = vpack.c.b16 %v5941, %v5933
      %v6638 = vpack.c.b16 %v5942, %v5934
      %v6639 = vpack.c.b16 %v5951, %v5943
      %v6640 = vpack.c.b16 %v5952, %v5944
      %v6641 = vpack.c.b16 %v5953, %v5945
      %v6642 = vpack.c.b16 %v5954, %v5946
      %v6643 = vpack.c.b16 %v5955, %v5947
      %v6644 = vpack.c.b16 %v5956, %v5948
      %v6645 = vpack.c.b16 %v5957, %v5949
      %v6646 = vpack.c.b16 %v5958, %v5950
      %v6647 = vpack.c.b16 %v5967, %v5959
      %v6648 = vpack.c.b16 %v5968, %v5960
      %v6649 = vpack.c.b16 %v5969, %v5961
      %v6650 = vpack.c.b16 %v5970, %v5962
      %v6651 = vpack.c.b16 %v5971, %v5963
      %v6652 = vpack.c.b16 %v5972, %v5964
      %v6653 = vpack.c.b16 %v5973, %v5965
      %v6654 = vpack.c.b16 %v5974, %v5966
      %v6655 = vpack.c.b16 %v5983, %v5975
      %v6656 = vpack.c.b16 %v5984, %v5976
      %v6657 = vpack.c.b16 %v5985, %v5977
      %v6658 = vpack.c.b16 %v5986, %v5978
      %v6659 = vpack.c.b16 %v5987, %v5979
      %v6660 = vpack.c.b16 %v5988, %v5980
      %v6661 = vpack.c.b16 %v5989, %v5981
      %v6662 = vpack.c.b16 %v5990, %v5982
      %v6663 = vpack.c.b16 %v5999, %v5991
      %v6664 = vpack.c.b16 %v6000, %v5992
      %v6665 = vpack.c.b16 %v6001, %v5993
      %v6666 = vpack.c.b16 %v6002, %v5994
      %v6667 = vpack.c.b16 %v6003, %v5995
      %v6668 = vpack.c.b16 %v6004, %v5996
      %v6669 = vpack.c.b16 %v6005, %v5997
      %v6670 = vpack.c.b16 %v6006, %v5998
      %v6671 = vpack.c.b16 %v6015, %v6007
      %v6672 = vpack.c.b16 %v6016, %v6008
      %v6673 = vpack.c.b16 %v6017, %v6009
      %v6674 = vpack.c.b16 %v6018, %v6010
      %v6675 = vpack.c.b16 %v6019, %v6011
      %v6676 = vpack.c.b16 %v6020, %v6012
      %v6677 = vpack.c.b16 %v6021, %v6013
      %v6678 = vpack.c.b16 %v6022, %v6014
      %v6679 = vpack.c.b16 %v6031, %v6023
      %v6680 = vpack.c.b16 %v6032, %v6024
      %v6681 = vpack.c.b16 %v6033, %v6025
      %v6682 = vpack.c.b16 %v6034, %v6026
      %v6683 = vpack.c.b16 %v6035, %v6027
      %v6684 = vpack.c.b16 %v6036, %v6028
      %v6685 = vpack.c.b16 %v6037, %v6029
      %v6686 = vpack.c.b16 %v6038, %v6030
      %v6687 = vpack.c.b16 %v6047, %v6039
      %v6688 = vpack.c.b16 %v6048, %v6040
      %v6689 = vpack.c.b16 %v6049, %v6041
      %v6690 = vpack.c.b16 %v6050, %v6042
      %v6691 = vpack.c.b16 %v6051, %v6043
      %v6692 = vpack.c.b16 %v6052, %v6044
      %v6693 = vpack.c.b16 %v6053, %v6045
      %v6694 = vpack.c.b16 %v6054, %v6046
      %v6695 = vpack.c.b16 %v6063, %v6055
      %v6696 = vpack.c.b16 %v6064, %v6056
      %v6697 = vpack.c.b16 %v6065, %v6057
      %v6698 = vpack.c.b16 %v6066, %v6058
      %v6699 = vpack.c.b16 %v6067, %v6059
      %v6700 = vpack.c.b16 %v6068, %v6060
      %v6701 = vpack.c.b16 %v6069, %v6061
      %v6702 = vpack.c.b16 %v6070, %v6062
      %v6703 = vpack.c.b16 %v6079, %v6071
      %v6704 = vpack.c.b16 %v6080, %v6072
      %v6705 = vpack.c.b16 %v6081, %v6073
      %v6706 = vpack.c.b16 %v6082, %v6074
      %v6707 = vpack.c.b16 %v6083, %v6075
      %v6708 = vpack.c.b16 %v6084, %v6076
      %v6709 = vpack.c.b16 %v6085, %v6077
      %v6710 = vpack.c.b16 %v6086, %v6078
      %v6711 = vpack.c.b16 %v6095, %v6087
      %v6712 = vpack.c.b16 %v6096, %v6088
      %v6713 = vpack.c.b16 %v6097, %v6089
      %v6714 = vpack.c.b16 %v6098, %v6090
      %v6715 = vpack.c.b16 %v6099, %v6091
      %v6716 = vpack.c.b16 %v6100, %v6092
      %v6717 = vpack.c.b16 %v6101, %v6093
      %v6718 = vpack.c.b16 %v6102, %v6094
      %v6719 = vpack.c.b16 %v6111, %v6103
      %v6720 = vpack.c.b16 %v6112, %v6104
      %v6721 = vpack.c.b16 %v6113, %v6105
      %v6722 = vpack.c.b16 %v6114, %v6106
      %v6723 = vpack.c.b16 %v6115, %v6107
      %v6724 = vpack.c.b16 %v6116, %v6108
      %v6725 = vpack.c.b16 %v6117, %v6109
      %v6726 = vpack.c.b16 %v6118, %v6110
      %v6727 = vpack.c.b16 %v6127, %v6119
      %v6728 = vpack.c.b16 %v6128, %v6120
      %v6729 = vpack.c.b16 %v6129, %v6121
      %v6730 = vpack.c.b16 %v6130, %v6122
      %v6731 = vpack.c.b16 %v6131, %v6123
      %v6732 = vpack.c.b16 %v6132, %v6124
      %v6733 = vpack.c.b16 %v6133, %v6125
      %v6734 = vpack.c.b16 %v6134, %v6126
      %v6735 = vpack.c.b16 %v6143, %v6135
      %v6736 = vpack.c.b16 %v6144, %v6136
      %v6737 = vpack.c.b16 %v6145, %v6137
      %v6738 = vpack.c.b16 %v6146, %v6138
      %v6739 = vpack.c.b16 %v6147, %v6139
      %v6740 = vpack.c.b16 %v6148, %v6140
      %v6741 = vpack.c.b16 %v6149, %v6141
      %v6742 = vpack.c.b16 %v6150, %v6142
      %v6743 = vpack.c.b16 %v6159, %v6151
      %v6744 = vpack.c.b16 %v6160, %v6152
      %v6745 = vpack.c.b16 %v6161, %v6153
      %v6746 = vpack.c.b16 %v6162, %v6154
      %v6747 = vpack.c.b16 %v6163, %v6155
      %v6748 = vpack.c.b16 %v6164, %v6156
      %v6749 = vpack.c.b16 %v6165, %v6157
      %v6750 = vpack.c.b16 %v6166, %v6158
      %v6751 = vpack.c.b16 %v6175, %v6167
      %v6752 = vpack.c.b16 %v6176, %v6168
      %v6753 = vpack.c.b16 %v6177, %v6169
      %v6754 = vpack.c.b16 %v6178, %v6170
      %v6755 = vpack.c.b16 %v6179, %v6171
      %v6756 = vpack.c.b16 %v6180, %v6172
      %v6757 = vpack.c.b16 %v6181, %v6173
      %v6758 = vpack.c.b16 %v6182, %v6174
      %v6759 = vpack.c.b16 %v6191, %v6183
      %v6760 = vpack.c.b16 %v6192, %v6184
      %v6761 = vpack.c.b16 %v6193, %v6185
      %v6762 = vpack.c.b16 %v6194, %v6186
      %v6763 = vpack.c.b16 %v6195, %v6187
      %v6764 = vpack.c.b16 %v6196, %v6188
      %v6765 = vpack.c.b16 %v6197, %v6189
      %v6766 = vpack.c.b16 %v6198, %v6190
      %v6767 = vpack.c.b16 %v6207, %v6199
      %v6768 = vpack.c.b16 %v6208, %v6200
      %v6769 = vpack.c.b16 %v6209, %v6201
      %v6770 = vpack.c.b16 %v6210, %v6202
      %v6771 = vpack.c.b16 %v6211, %v6203
      %v6772 = vpack.c.b16 %v6212, %v6204
      %v6773 = vpack.c.b16 %v6213, %v6205
      %v6774 = vpack.c.b16 %v6214, %v6206
      %v6775 = vpack.c.b16 %v6223, %v6215
      %v6776 = vpack.c.b16 %v6224, %v6216
      %v6777 = vpack.c.b16 %v6225, %v6217
      %v6778 = vpack.c.b16 %v6226, %v6218
      %v6779 = vpack.c.b16 %v6227, %v6219
      %v6780 = vpack.c.b16 %v6228, %v6220
      %v6781 = vpack.c.b16 %v6229, %v6221
      %v6782 = vpack.c.b16 %v6230, %v6222
      %v6783 = vpack.c.b16 %v6239, %v6231
      %v6784 = vpack.c.b16 %v6240, %v6232
      %v6785 = vpack.c.b16 %v6241, %v6233
      %v6786 = vpack.c.b16 %v6242, %v6234
      %v6787 = vpack.c.b16 %v6243, %v6235
      %v6788 = vpack.c.b16 %v6244, %v6236
      %v6789 = vpack.c.b16 %v6245, %v6237
      %v6790 = vpack.c.b16 %v6246, %v6238
      %v6791 = vpack.c.b16 %v6255, %v6247
      %v6792 = vpack.c.b16 %v6256, %v6248
      %v6793 = vpack.c.b16 %v6257, %v6249
      %v6794 = vpack.c.b16 %v6258, %v6250
      %v6795 = vpack.c.b16 %v6259, %v6251
      %v6796 = vpack.c.b16 %v6260, %v6252
      %v6797 = vpack.c.b16 %v6261, %v6253
      %v6798 = vpack.c.b16 %v6262, %v6254
      %v6799 = vpack.c.b16 %v6271, %v6263
      %v6800 = vpack.c.b16 %v6272, %v6264
      %v6801 = vpack.c.b16 %v6273, %v6265
      %v6802 = vpack.c.b16 %v6274, %v6266
      %v6803 = vpack.c.b16 %v6275, %v6267
      %v6804 = vpack.c.b16 %v6276, %v6268
      %v6805 = vpack.c.b16 %v6277, %v6269
      %v6806 = vpack.c.b16 %v6278, %v6270
      %v6807 = vpack.c.b16 %v6287, %v6279
      %v6808 = vpack.c.b16 %v6288, %v6280
      %v6809 = vpack.c.b16 %v6289, %v6281
      %v6810 = vpack.c.b16 %v6290, %v6282
      %v6811 = vpack.c.b16 %v6291, %v6283
      %v6812 = vpack.c.b16 %v6292, %v6284
      %v6813 = vpack.c.b16 %v6293, %v6285
      %v6814 = vpack.c.b16 %v6294, %v6286
      %v6815 = vpack.c.b16 %v6303, %v6295
      %v6816 = vpack.c.b16 %v6304, %v6296
      %v6817 = vpack.c.b16 %v6305, %v6297
      %v6818 = vpack.c.b16 %v6306, %v6298
      %v6819 = vpack.c.b16 %v6307, %v6299
      %v6820 = vpack.c.b16 %v6308, %v6300
      %v6821 = vpack.c.b16 %v6309, %v6301
      %v6822 = vpack.c.b16 %v6310, %v6302
      %v6823 = vpack.c.b16 %v6319, %v6311
      %v6824 = vpack.c.b16 %v6320, %v6312
      %v6825 = vpack.c.b16 %v6321, %v6313
      %v6826 = vpack.c.b16 %v6322, %v6314
      %v6827 = vpack.c.b16 %v6323, %v6315
      %v6828 = vpack.c.b16 %v6324, %v6316
      %v6829 = vpack.c.b16 %v6325, %v6317
      %v6830 = vpack.c.b16 %v6326, %v6318
      %v6831 = vpack.c.b16 %v6335, %v6327
      %v6832 = vpack.c.b16 %v6336, %v6328
      %v6833 = vpack.c.b16 %v6337, %v6329
      %v6834 = vpack.c.b16 %v6338, %v6330
      %v6835 = vpack.c.b16 %v6339, %v6331
      %v6836 = vpack.c.b16 %v6340, %v6332
      %v6837 = vpack.c.b16 %v6341, %v6333
      %v6838 = vpack.c.b16 %v6342, %v6334
      %v6839 = vpack.c.b16 %v6351, %v6343
      %v6840 = vpack.c.b16 %v6352, %v6344
      %v6841 = vpack.c.b16 %v6353, %v6345
      %v6842 = vpack.c.b16 %v6354, %v6346
      %v6843 = vpack.c.b16 %v6355, %v6347
      %v6844 = vpack.c.b16 %v6356, %v6348
      %v6845 = vpack.c.b16 %v6357, %v6349
      %v6846 = vpack.c.b16 %v6358, %v6350
      %v6847 = vpack.c.b16 %v6367, %v6359
      %v6848 = vpack.c.b16 %v6368, %v6360
      %v6849 = vpack.c.b16 %v6369, %v6361
      %v6850 = vpack.c.b16 %v6370, %v6362
      %v6851 = vpack.c.b16 %v6371, %v6363
      %v6852 = vpack.c.b16 %v6372, %v6364
      %v6853 = vpack.c.b16 %v6373, %v6365
      %v6854 = vpack.c.b16 %v6374, %v6366
      %v6855 = vpack.c.b16 %v6383, %v6375
      %v6856 = vpack.c.b16 %v6384, %v6376
      %v6857 = vpack.c.b16 %v6385, %v6377
      %v6858 = vpack.c.b16 %v6386, %v6378
      %v6859 = vpack.c.b16 %v6387, %v6379
      %v6860 = vpack.c.b16 %v6388, %v6380
      %v6861 = vpack.c.b16 %v6389, %v6381
      %v6862 = vpack.c.b16 %v6390, %v6382
      %v6863 = vpack.c.b16 %v6399, %v6391
      %v6864 = vpack.c.b16 %v6400, %v6392
      %v6865 = vpack.c.b16 %v6401, %v6393
      %v6866 = vpack.c.b16 %v6402, %v6394
      %v6867 = vpack.c.b16 %v6403, %v6395
      %v6868 = vpack.c.b16 %v6404, %v6396
      %v6869 = vpack.c.b16 %v6405, %v6397
      %v6870 = vpack.c.b16 %v6406, %v6398
      %v6871 = vpack.c.b16 %v6415, %v6407
      %v6872 = vpack.c.b16 %v6416, %v6408
      %v6873 = vpack.c.b16 %v6417, %v6409
      %v6874 = vpack.c.b16 %v6418, %v6410
      %v6875 = vpack.c.b16 %v6419, %v6411
      %v6876 = vpack.c.b16 %v6420, %v6412
      %v6877 = vpack.c.b16 %v6421, %v6413
      %v6878 = vpack.c.b16 %v6422, %v6414
      %v6879 = vpack.c.b16 %v6431, %v6423
      %v6880 = vpack.c.b16 %v6432, %v6424
      %v6881 = vpack.c.b16 %v6433, %v6425
      %v6882 = vpack.c.b16 %v6434, %v6426
      %v6883 = vpack.c.b16 %v6435, %v6427
      %v6884 = vpack.c.b16 %v6436, %v6428
      %v6885 = vpack.c.b16 %v6437, %v6429
      %v6886 = vpack.c.b16 %v6438, %v6430
      %7335 = vmatpush.bf16.msra.mxu0 %v6495
      %7336 = vmatpush.bf16.msra.mxu0 %v6487
      %7337 = vmatpush.bf16.msra.mxu0 %v6479
      %7338 = vmatpush.bf16.msra.mxu0 %v6471
      %7339 = vmatpush.bf16.msra.mxu0 %v6463
      %7340 = vmatpush.bf16.msra.mxu0 %v6455
      %7341 = vmatpush.bf16.msra.mxu0 %v6447
      %7342 = vmatpush.bf16.msra.mxu0 %v6439
      %7343 = vmatmul.bf16.gmra.mxu0 %v4632
      %v7344 = vpop.f32.mrf.mxu0
      %v7345 = vadd.f32 0.0, %v7344
      %v7346 = vpop.f32.mrf.mxu0
      %7347 = vdwg.mxu0
      %7348 = vmatpush.bf16.msra.mxu0 %v6559
      %7349 = vmatpush.bf16.msra.mxu0 %v6551
      %7350 = vmatpush.bf16.msra.mxu0 %v6543
      %7351 = vmatpush.bf16.msra.mxu0 %v6535
      %7352 = vmatpush.bf16.msra.mxu0 %v6527
      %7353 = vmatpush.bf16.msra.mxu0 %v6519
      %7354 = vmatpush.bf16.msra.mxu0 %v6511
      %7355 = vmatpush.bf16.msra.mxu0 %v6503
      %7356 = vmatmul.bf16.gmra.mxu0 %v4633
      %v7357 = vpop.f32.mrf.mxu0
      %v7358 = vadd.f32 %v7345, %v7357
      %v7359 = vpop.f32.mrf.mxu0
      %7360 = vdwg.mxu0
      %7361 = vmatpush.bf16.msra.mxu0 %v6623
      %7362 = vmatpush.bf16.msra.mxu0 %v6615
      %7363 = vmatpush.bf16.msra.mxu0 %v6607
      %7364 = vmatpush.bf16.msra.mxu0 %v6599
      %7365 = vmatpush.bf16.msra.mxu0 %v6591
      %7366 = vmatpush.bf16.msra.mxu0 %v6583
      %7367 = vmatpush.bf16.msra.mxu0 %v6575
      %7368 = vmatpush.bf16.msra.mxu0 %v6567
      %7369 = vmatmul.bf16.gmra.mxu0 %v4634
      %v7370 = vpop.f32.mrf.mxu0
      %v7371 = vadd.f32 %v7358, %v7370
      %v7372 = vpop.f32.mrf.mxu0
      %7373 = vdwg.mxu0
      %7374 = vmatpush.bf16.msra.mxu0 %v6687
      %7375 = vmatpush.bf16.msra.mxu0 %v6679
      %7376 = vmatpush.bf16.msra.mxu0 %v6671
      %7377 = vmatpush.bf16.msra.mxu0 %v6663
      %7378 = vmatpush.bf16.msra.mxu0 %v6655
      %7379 = vmatpush.bf16.msra.mxu0 %v6647
      %7380 = vmatpush.bf16.msra.mxu0 %v6639
      %7381 = vmatpush.bf16.msra.mxu0 %v6631
      %7382 = vmatmul.bf16.gmra.mxu0 %v4635
      %v7383 = vpop.f32.mrf.mxu0
      %v7384 = vadd.f32 %v7371, %v7383
      %v7385 = vpop.f32.mrf.mxu0
      %7386 = vdwg.mxu0
      %7387 = vmatpush.bf16.msra.mxu0 %v6751
      %7388 = vmatpush.bf16.msra.mxu0 %v6743
      %7389 = vmatpush.bf16.msra.mxu0 %v6735
      %7390 = vmatpush.bf16.msra.mxu0 %v6727
      %7391 = vmatpush.bf16.msra.mxu0 %v6719
      %7392 = vmatpush.bf16.msra.mxu0 %v6711
      %7393 = vmatpush.bf16.msra.mxu0 %v6703
      %7394 = vmatpush.bf16.msra.mxu0 %v6695
      %7395 = vmatmul.bf16.gmra.mxu0 %v4636
      %v7396 = vpop.f32.mrf.mxu0
      %v7397 = vadd.f32 %v7384, %v7396
      %v7398 = vpop.f32.mrf.mxu0
      %7399 = vdwg.mxu0
      %7400 = vmatpush.bf16.msra.mxu0 %v6815
      %7401 = vmatpush.bf16.msra.mxu0 %v6807
      %7402 = vmatpush.bf16.msra.mxu0 %v6799
      %7403 = vmatpush.bf16.msra.mxu0 %v6791
      %7404 = vmatpush.bf16.msra.mxu0 %v6783
      %7405 = vmatpush.bf16.msra.mxu0 %v6775
      %7406 = vmatpush.bf16.msra.mxu0 %v6767
      %7407 = vmatpush.bf16.msra.mxu0 %v6759
      %7408 = vmatmul.bf16.gmra.mxu0 %v4637
      %v7409 = vpop.f32.mrf.mxu0
      %v7410 = vadd.f32 %v7397, %v7409
      %v7411 = vpop.f32.mrf.mxu0
      %7412 = vdwg.mxu0
      %7413 = vmatpush.bf16.msra.mxu0 %v6879
      %7414 = vmatpush.bf16.msra.mxu0 %v6871
      %7415 = vmatpush.bf16.msra.mxu0 %v6863
      %7416 = vmatpush.bf16.msra.mxu0 %v6855
      %7417 = vmatpush.bf16.msra.mxu0 %v6847
      %7418 = vmatpush.bf16.msra.mxu0 %v6839
      %7419 = vmatpush.bf16.msra.mxu0 %v6831
      %7420 = vmatpush.bf16.msra.mxu0 %v6823
      %7421 = vmatmul.bf16.gmra.mxu0 %v4638
      %v7422 = vpop.f32.mrf.mxu0
      %v7423 = vadd.f32 %v7410, %v7422
      %v7424 = vpop.f32.mrf.mxu0
      %7425 = vdwg.mxu0
      %7426 = vmatpush.bf16.msra.mxu0 %v6496
      %7427 = vmatpush.bf16.msra.mxu0 %v6488
      %7428 = vmatpush.bf16.msra.mxu0 %v6480
      %7429 = vmatpush.bf16.msra.mxu0 %v6472
      %7430 = vmatpush.bf16.msra.mxu0 %v6464
      %7431 = vmatpush.bf16.msra.mxu0 %v6456
      %7432 = vmatpush.bf16.msra.mxu0 %v6448
      %7433 = vmatpush.bf16.msra.mxu0 %v6440
      %7434 = vmatmul.bf16.gmra.mxu0 %v4632
      %v7435 = vpop.f32.mrf.mxu0
      %v7436 = vadd.f32 0.0, %v7435
      %v7437 = vpop.f32.mrf.mxu0
      %7438 = vdwg.mxu0
      %7439 = vmatpush.bf16.msra.mxu0 %v6560
      %7440 = vmatpush.bf16.msra.mxu0 %v6552
      %7441 = vmatpush.bf16.msra.mxu0 %v6544
      %7442 = vmatpush.bf16.msra.mxu0 %v6536
      %7443 = vmatpush.bf16.msra.mxu0 %v6528
      %7444 = vmatpush.bf16.msra.mxu0 %v6520
      %7445 = vmatpush.bf16.msra.mxu0 %v6512
      %7446 = vmatpush.bf16.msra.mxu0 %v6504
      %7447 = vmatmul.bf16.gmra.mxu0 %v4633
      %v7448 = vpop.f32.mrf.mxu0
      %v7449 = vadd.f32 %v7436, %v7448
      %v7450 = vpop.f32.mrf.mxu0
      %7451 = vdwg.mxu0
      %7452 = vmatpush.bf16.msra.mxu0 %v6624
      %7453 = vmatpush.bf16.msra.mxu0 %v6616
      %7454 = vmatpush.bf16.msra.mxu0 %v6608
      %7455 = vmatpush.bf16.msra.mxu0 %v6600
      %7456 = vmatpush.bf16.msra.mxu0 %v6592
      %7457 = vmatpush.bf16.msra.mxu0 %v6584
      %7458 = vmatpush.bf16.msra.mxu0 %v6576
      %7459 = vmatpush.bf16.msra.mxu0 %v6568
      %7460 = vmatmul.bf16.gmra.mxu0 %v4634
      %v7461 = vpop.f32.mrf.mxu0
      %v7462 = vadd.f32 %v7449, %v7461
      %v7463 = vpop.f32.mrf.mxu0
      %7464 = vdwg.mxu0
      %7465 = vmatpush.bf16.msra.mxu0 %v6688
      %7466 = vmatpush.bf16.msra.mxu0 %v6680
      %7467 = vmatpush.bf16.msra.mxu0 %v6672
      %7468 = vmatpush.bf16.msra.mxu0 %v6664
      %7469 = vmatpush.bf16.msra.mxu0 %v6656
      %7470 = vmatpush.bf16.msra.mxu0 %v6648
      %7471 = vmatpush.bf16.msra.mxu0 %v6640
      %7472 = vmatpush.bf16.msra.mxu0 %v6632
      %7473 = vmatmul.bf16.gmra.mxu0 %v4635
      %v7474 = vpop.f32.mrf.mxu0
      %v7475 = vadd.f32 %v7462, %v7474
      %v7476 = vpop.f32.mrf.mxu0
      %7477 = vdwg.mxu0
      %7478 = vmatpush.bf16.msra.mxu0 %v6752
      %7479 = vmatpush.bf16.msra.mxu0 %v6744
      %7480 = vmatpush.bf16.msra.mxu0 %v6736
      %7481 = vmatpush.bf16.msra.mxu0 %v6728
      %7482 = vmatpush.bf16.msra.mxu0 %v6720
      %7483 = vmatpush.bf16.msra.mxu0 %v6712
      %7484 = vmatpush.bf16.msra.mxu0 %v6704
      %7485 = vmatpush.bf16.msra.mxu0 %v6696
      %7486 = vmatmul.bf16.gmra.mxu0 %v4636
      %v7487 = vpop.f32.mrf.mxu0
      %v7488 = vadd.f32 %v7475, %v7487
      %v7489 = vpop.f32.mrf.mxu0
      %7490 = vdwg.mxu0
      %7491 = vmatpush.bf16.msra.mxu0 %v6816
      %7492 = vmatpush.bf16.msra.mxu0 %v6808
      %7493 = vmatpush.bf16.msra.mxu0 %v6800
      %7494 = vmatpush.bf16.msra.mxu0 %v6792
      %7495 = vmatpush.bf16.msra.mxu0 %v6784
      %7496 = vmatpush.bf16.msra.mxu0 %v6776
      %7497 = vmatpush.bf16.msra.mxu0 %v6768
      %7498 = vmatpush.bf16.msra.mxu0 %v6760
      %7499 = vmatmul.bf16.gmra.mxu0 %v4637
      %v7500 = vpop.f32.mrf.mxu0
      %v7501 = vadd.f32 %v7488, %v7500
      %v7502 = vpop.f32.mrf.mxu0
      %7503 = vdwg.mxu0
      %7504 = vmatpush.bf16.msra.mxu0 %v6880
      %7505 = vmatpush.bf16.msra.mxu0 %v6872
      %7506 = vmatpush.bf16.msra.mxu0 %v6864
      %7507 = vmatpush.bf16.msra.mxu0 %v6856
      %7508 = vmatpush.bf16.msra.mxu0 %v6848
      %7509 = vmatpush.bf16.msra.mxu0 %v6840
      %7510 = vmatpush.bf16.msra.mxu0 %v6832
      %7511 = vmatpush.bf16.msra.mxu0 %v6824
      %7512 = vmatmul.bf16.gmra.mxu0 %v4638
      %v7513 = vpop.f32.mrf.mxu0
      %v7514 = vadd.f32 %v7501, %v7513
      %v7515 = vpop.f32.mrf.mxu0
      %7516 = vdwg.mxu0
      %7517 = vmatpush.bf16.msra.mxu0 %v6497
      %7518 = vmatpush.bf16.msra.mxu0 %v6489
      %7519 = vmatpush.bf16.msra.mxu0 %v6481
      %7520 = vmatpush.bf16.msra.mxu0 %v6473
      %7521 = vmatpush.bf16.msra.mxu0 %v6465
      %7522 = vmatpush.bf16.msra.mxu0 %v6457
      %7523 = vmatpush.bf16.msra.mxu0 %v6449
      %7524 = vmatpush.bf16.msra.mxu0 %v6441
      %7525 = vmatmul.bf16.gmra.mxu0 %v4632
      %v7526 = vpop.f32.mrf.mxu0
      %v7527 = vadd.f32 0.0, %v7526
      %v7528 = vpop.f32.mrf.mxu0
      %7529 = vdwg.mxu0
      %7530 = vmatpush.bf16.msra.mxu0 %v6561
      %7531 = vmatpush.bf16.msra.mxu0 %v6553
      %7532 = vmatpush.bf16.msra.mxu0 %v6545
      %7533 = vmatpush.bf16.msra.mxu0 %v6537
      %7534 = vmatpush.bf16.msra.mxu0 %v6529
      %7535 = vmatpush.bf16.msra.mxu0 %v6521
      %7536 = vmatpush.bf16.msra.mxu0 %v6513
      %7537 = vmatpush.bf16.msra.mxu0 %v6505
      %7538 = vmatmul.bf16.gmra.mxu0 %v4633
      %v7539 = vpop.f32.mrf.mxu0
      %v7540 = vadd.f32 %v7527, %v7539
      %v7541 = vpop.f32.mrf.mxu0
      %7542 = vdwg.mxu0
      %7543 = vmatpush.bf16.msra.mxu0 %v6625
      %7544 = vmatpush.bf16.msra.mxu0 %v6617
      %7545 = vmatpush.bf16.msra.mxu0 %v6609
      %7546 = vmatpush.bf16.msra.mxu0 %v6601
      %7547 = vmatpush.bf16.msra.mxu0 %v6593
      %7548 = vmatpush.bf16.msra.mxu0 %v6585
      %7549 = vmatpush.bf16.msra.mxu0 %v6577
      %7550 = vmatpush.bf16.msra.mxu0 %v6569
      %7551 = vmatmul.bf16.gmra.mxu0 %v4634
      %v7552 = vpop.f32.mrf.mxu0
      %v7553 = vadd.f32 %v7540, %v7552
      %v7554 = vpop.f32.mrf.mxu0
      %7555 = vdwg.mxu0
      %7556 = vmatpush.bf16.msra.mxu0 %v6689
      %7557 = vmatpush.bf16.msra.mxu0 %v6681
      %7558 = vmatpush.bf16.msra.mxu0 %v6673
      %7559 = vmatpush.bf16.msra.mxu0 %v6665
      %7560 = vmatpush.bf16.msra.mxu0 %v6657
      %7561 = vmatpush.bf16.msra.mxu0 %v6649
      %7562 = vmatpush.bf16.msra.mxu0 %v6641
      %7563 = vmatpush.bf16.msra.mxu0 %v6633
      %7564 = vmatmul.bf16.gmra.mxu0 %v4635
      %v7565 = vpop.f32.mrf.mxu0
      %v7566 = vadd.f32 %v7553, %v7565
      %v7567 = vpop.f32.mrf.mxu0
      %7568 = vdwg.mxu0
      %7569 = vmatpush.bf16.msra.mxu0 %v6753
      %7570 = vmatpush.bf16.msra.mxu0 %v6745
      %7571 = vmatpush.bf16.msra.mxu0 %v6737
      %7572 = vmatpush.bf16.msra.mxu0 %v6729
      %7573 = vmatpush.bf16.msra.mxu0 %v6721
      %7574 = vmatpush.bf16.msra.mxu0 %v6713
      %7575 = vmatpush.bf16.msra.mxu0 %v6705
      %7576 = vmatpush.bf16.msra.mxu0 %v6697
      %7577 = vmatmul.bf16.gmra.mxu0 %v4636
      %v7578 = vpop.f32.mrf.mxu0
      %v7579 = vadd.f32 %v7566, %v7578
      %v7580 = vpop.f32.mrf.mxu0
      %7581 = vdwg.mxu0
      %7582 = vmatpush.bf16.msra.mxu0 %v6817
      %7583 = vmatpush.bf16.msra.mxu0 %v6809
      %7584 = vmatpush.bf16.msra.mxu0 %v6801
      %7585 = vmatpush.bf16.msra.mxu0 %v6793
      %7586 = vmatpush.bf16.msra.mxu0 %v6785
      %7587 = vmatpush.bf16.msra.mxu0 %v6777
      %7588 = vmatpush.bf16.msra.mxu0 %v6769
      %7589 = vmatpush.bf16.msra.mxu0 %v6761
      %7590 = vmatmul.bf16.gmra.mxu0 %v4637
      %v7591 = vpop.f32.mrf.mxu0
      %v7592 = vadd.f32 %v7579, %v7591
      %v7593 = vpop.f32.mrf.mxu0
      %7594 = vdwg.mxu0
      %7595 = vmatpush.bf16.msra.mxu0 %v6881
      %7596 = vmatpush.bf16.msra.mxu0 %v6873
      %7597 = vmatpush.bf16.msra.mxu0 %v6865
      %7598 = vmatpush.bf16.msra.mxu0 %v6857
      %7599 = vmatpush.bf16.msra.mxu0 %v6849
      %7600 = vmatpush.bf16.msra.mxu0 %v6841
      %7601 = vmatpush.bf16.msra.mxu0 %v6833
      %7602 = vmatpush.bf16.msra.mxu0 %v6825
      %7603 = vmatmul.bf16.gmra.mxu0 %v4638
      %v7604 = vpop.f32.mrf.mxu0
      %v7605 = vadd.f32 %v7592, %v7604
      %v7606 = vpop.f32.mrf.mxu0
      %7607 = vdwg.mxu0
      %7608 = vmatpush.bf16.msra.mxu0 %v6498
      %7609 = vmatpush.bf16.msra.mxu0 %v6490
      %7610 = vmatpush.bf16.msra.mxu0 %v6482
      %7611 = vmatpush.bf16.msra.mxu0 %v6474
      %7612 = vmatpush.bf16.msra.mxu0 %v6466
      %7613 = vmatpush.bf16.msra.mxu0 %v6458
      %7614 = vmatpush.bf16.msra.mxu0 %v6450
      %7615 = vmatpush.bf16.msra.mxu0 %v6442
      %7616 = vmatmul.bf16.gmra.mxu0 %v4632
      %v7617 = vpop.f32.mrf.mxu0
      %v7618 = vadd.f32 0.0, %v7617
      %v7619 = vpop.f32.mrf.mxu0
      %7620 = vdwg.mxu0
      %7621 = vmatpush.bf16.msra.mxu0 %v6562
      %7622 = vmatpush.bf16.msra.mxu0 %v6554
      %7623 = vmatpush.bf16.msra.mxu0 %v6546
      %7624 = vmatpush.bf16.msra.mxu0 %v6538
      %7625 = vmatpush.bf16.msra.mxu0 %v6530
      %7626 = vmatpush.bf16.msra.mxu0 %v6522
      %7627 = vmatpush.bf16.msra.mxu0 %v6514
      %7628 = vmatpush.bf16.msra.mxu0 %v6506
      %7629 = vmatmul.bf16.gmra.mxu0 %v4633
      %v7630 = vpop.f32.mrf.mxu0
      %v7631 = vadd.f32 %v7618, %v7630
      %v7632 = vpop.f32.mrf.mxu0
      %7633 = vdwg.mxu0
      %7634 = vmatpush.bf16.msra.mxu0 %v6626
      %7635 = vmatpush.bf16.msra.mxu0 %v6618
      %7636 = vmatpush.bf16.msra.mxu0 %v6610
      %7637 = vmatpush.bf16.msra.mxu0 %v6602
      %7638 = vmatpush.bf16.msra.mxu0 %v6594
      %7639 = vmatpush.bf16.msra.mxu0 %v6586
      %7640 = vmatpush.bf16.msra.mxu0 %v6578
      %7641 = vmatpush.bf16.msra.mxu0 %v6570
      %7642 = vmatmul.bf16.gmra.mxu0 %v4634
      %v7643 = vpop.f32.mrf.mxu0
      %v7644 = vadd.f32 %v7631, %v7643
      %v7645 = vpop.f32.mrf.mxu0
      %7646 = vdwg.mxu0
      %7647 = vmatpush.bf16.msra.mxu0 %v6690
      %7648 = vmatpush.bf16.msra.mxu0 %v6682
      %7649 = vmatpush.bf16.msra.mxu0 %v6674
      %7650 = vmatpush.bf16.msra.mxu0 %v6666
      %7651 = vmatpush.bf16.msra.mxu0 %v6658
      %7652 = vmatpush.bf16.msra.mxu0 %v6650
      %7653 = vmatpush.bf16.msra.mxu0 %v6642
      %7654 = vmatpush.bf16.msra.mxu0 %v6634
      %7655 = vmatmul.bf16.gmra.mxu0 %v4635
      %v7656 = vpop.f32.mrf.mxu0
      %v7657 = vadd.f32 %v7644, %v7656
      %v7658 = vpop.f32.mrf.mxu0
      %7659 = vdwg.mxu0
      %7660 = vmatpush.bf16.msra.mxu0 %v6754
      %7661 = vmatpush.bf16.msra.mxu0 %v6746
      %7662 = vmatpush.bf16.msra.mxu0 %v6738
      %7663 = vmatpush.bf16.msra.mxu0 %v6730
      %7664 = vmatpush.bf16.msra.mxu0 %v6722
      %7665 = vmatpush.bf16.msra.mxu0 %v6714
      %7666 = vmatpush.bf16.msra.mxu0 %v6706
      %7667 = vmatpush.bf16.msra.mxu0 %v6698
      %7668 = vmatmul.bf16.gmra.mxu0 %v4636
      %v7669 = vpop.f32.mrf.mxu0
      %v7670 = vadd.f32 %v7657, %v7669
      %v7671 = vpop.f32.mrf.mxu0
      %7672 = vdwg.mxu0
      %7673 = vmatpush.bf16.msra.mxu0 %v6818
      %7674 = vmatpush.bf16.msra.mxu0 %v6810
      %7675 = vmatpush.bf16.msra.mxu0 %v6802
      %7676 = vmatpush.bf16.msra.mxu0 %v6794
      %7677 = vmatpush.bf16.msra.mxu0 %v6786
      %7678 = vmatpush.bf16.msra.mxu0 %v6778
      %7679 = vmatpush.bf16.msra.mxu0 %v6770
      %7680 = vmatpush.bf16.msra.mxu0 %v6762
      %7681 = vmatmul.bf16.gmra.mxu0 %v4637
      %v7682 = vpop.f32.mrf.mxu0
      %v7683 = vadd.f32 %v7670, %v7682
      %v7684 = vpop.f32.mrf.mxu0
      %7685 = vdwg.mxu0
      %7686 = vmatpush.bf16.msra.mxu0 %v6882
      %7687 = vmatpush.bf16.msra.mxu0 %v6874
      %7688 = vmatpush.bf16.msra.mxu0 %v6866
      %7689 = vmatpush.bf16.msra.mxu0 %v6858
      %7690 = vmatpush.bf16.msra.mxu0 %v6850
      %7691 = vmatpush.bf16.msra.mxu0 %v6842
      %7692 = vmatpush.bf16.msra.mxu0 %v6834
      %7693 = vmatpush.bf16.msra.mxu0 %v6826
      %7694 = vmatmul.bf16.gmra.mxu0 %v4638
      %v7695 = vpop.f32.mrf.mxu0
      %v7696 = vadd.f32 %v7683, %v7695
      %v7697 = vpop.f32.mrf.mxu0
      %7698 = vdwg.mxu0
      %7699 = vmatpush.bf16.msra.mxu0 %v6499
      %7700 = vmatpush.bf16.msra.mxu0 %v6491
      %7701 = vmatpush.bf16.msra.mxu0 %v6483
      %7702 = vmatpush.bf16.msra.mxu0 %v6475
      %7703 = vmatpush.bf16.msra.mxu0 %v6467
      %7704 = vmatpush.bf16.msra.mxu0 %v6459
      %7705 = vmatpush.bf16.msra.mxu0 %v6451
      %7706 = vmatpush.bf16.msra.mxu0 %v6443
      %7707 = vmatmul.bf16.gmra.mxu0 %v4632
      %v7708 = vpop.f32.mrf.mxu0
      %v7709 = vadd.f32 0.0, %v7708
      %v7710 = vpop.f32.mrf.mxu0
      %7711 = vdwg.mxu0
      %7712 = vmatpush.bf16.msra.mxu0 %v6563
      %7713 = vmatpush.bf16.msra.mxu0 %v6555
      %7714 = vmatpush.bf16.msra.mxu0 %v6547
      %7715 = vmatpush.bf16.msra.mxu0 %v6539
      %7716 = vmatpush.bf16.msra.mxu0 %v6531
      %7717 = vmatpush.bf16.msra.mxu0 %v6523
      %7718 = vmatpush.bf16.msra.mxu0 %v6515
      %7719 = vmatpush.bf16.msra.mxu0 %v6507
      %7720 = vmatmul.bf16.gmra.mxu0 %v4633
      %v7721 = vpop.f32.mrf.mxu0
      %v7722 = vadd.f32 %v7709, %v7721
      %v7723 = vpop.f32.mrf.mxu0
      %7724 = vdwg.mxu0
      %7725 = vmatpush.bf16.msra.mxu0 %v6627
      %7726 = vmatpush.bf16.msra.mxu0 %v6619
      %7727 = vmatpush.bf16.msra.mxu0 %v6611
      %7728 = vmatpush.bf16.msra.mxu0 %v6603
      %7729 = vmatpush.bf16.msra.mxu0 %v6595
      %7730 = vmatpush.bf16.msra.mxu0 %v6587
      %7731 = vmatpush.bf16.msra.mxu0 %v6579
      %7732 = vmatpush.bf16.msra.mxu0 %v6571
      %7733 = vmatmul.bf16.gmra.mxu0 %v4634
      %v7734 = vpop.f32.mrf.mxu0
      %v7735 = vadd.f32 %v7722, %v7734
      %v7736 = vpop.f32.mrf.mxu0
      %7737 = vdwg.mxu0
      %7738 = vmatpush.bf16.msra.mxu0 %v6691
      %7739 = vmatpush.bf16.msra.mxu0 %v6683
      %7740 = vmatpush.bf16.msra.mxu0 %v6675
      %7741 = vmatpush.bf16.msra.mxu0 %v6667
      %7742 = vmatpush.bf16.msra.mxu0 %v6659
      %7743 = vmatpush.bf16.msra.mxu0 %v6651
      %7744 = vmatpush.bf16.msra.mxu0 %v6643
      %7745 = vmatpush.bf16.msra.mxu0 %v6635
      %7746 = vmatmul.bf16.gmra.mxu0 %v4635
      %v7747 = vpop.f32.mrf.mxu0
      %v7748 = vadd.f32 %v7735, %v7747
      %v7749 = vpop.f32.mrf.mxu0
      %7750 = vdwg.mxu0
      %7751 = vmatpush.bf16.msra.mxu0 %v6755
      %7752 = vmatpush.bf16.msra.mxu0 %v6747
      %7753 = vmatpush.bf16.msra.mxu0 %v6739
      %7754 = vmatpush.bf16.msra.mxu0 %v6731
      %7755 = vmatpush.bf16.msra.mxu0 %v6723
      %7756 = vmatpush.bf16.msra.mxu0 %v6715
      %7757 = vmatpush.bf16.msra.mxu0 %v6707
      %7758 = vmatpush.bf16.msra.mxu0 %v6699
      %7759 = vmatmul.bf16.gmra.mxu0 %v4636
      %v7760 = vpop.f32.mrf.mxu0
      %v7761 = vadd.f32 %v7748, %v7760
      %v7762 = vpop.f32.mrf.mxu0
      %7763 = vdwg.mxu0
      %7764 = vmatpush.bf16.msra.mxu0 %v6819
      %7765 = vmatpush.bf16.msra.mxu0 %v6811
      %7766 = vmatpush.bf16.msra.mxu0 %v6803
      %7767 = vmatpush.bf16.msra.mxu0 %v6795
      %7768 = vmatpush.bf16.msra.mxu0 %v6787
      %7769 = vmatpush.bf16.msra.mxu0 %v6779
      %7770 = vmatpush.bf16.msra.mxu0 %v6771
      %7771 = vmatpush.bf16.msra.mxu0 %v6763
      %7772 = vmatmul.bf16.gmra.mxu0 %v4637
      %v7773 = vpop.f32.mrf.mxu0
      %v7774 = vadd.f32 %v7761, %v7773
      %v7775 = vpop.f32.mrf.mxu0
      %7776 = vdwg.mxu0
      %7777 = vmatpush.bf16.msra.mxu0 %v6883
      %7778 = vmatpush.bf16.msra.mxu0 %v6875
      %7779 = vmatpush.bf16.msra.mxu0 %v6867
      %7780 = vmatpush.bf16.msra.mxu0 %v6859
      %7781 = vmatpush.bf16.msra.mxu0 %v6851
      %7782 = vmatpush.bf16.msra.mxu0 %v6843
      %7783 = vmatpush.bf16.msra.mxu0 %v6835
      %7784 = vmatpush.bf16.msra.mxu0 %v6827
      %7785 = vmatmul.bf16.gmra.mxu0 %v4638
      %v7786 = vpop.f32.mrf.mxu0
      %v7787 = vadd.f32 %v7774, %v7786
      %v7788 = vpop.f32.mrf.mxu0
      %7789 = vdwg.mxu0
      %7790 = vmatpush.bf16.msra.mxu0 %v6500
      %7791 = vmatpush.bf16.msra.mxu0 %v6492
      %7792 = vmatpush.bf16.msra.mxu0 %v6484
      %7793 = vmatpush.bf16.msra.mxu0 %v6476
      %7794 = vmatpush.bf16.msra.mxu0 %v6468
      %7795 = vmatpush.bf16.msra.mxu0 %v6460
      %7796 = vmatpush.bf16.msra.mxu0 %v6452
      %7797 = vmatpush.bf16.msra.mxu0 %v6444
      %7798 = vmatmul.bf16.gmra.mxu0 %v4632
      %v7799 = vpop.f32.mrf.mxu0
      %v7800 = vadd.f32 0.0, %v7799
      %v7801 = vpop.f32.mrf.mxu0
      %7802 = vdwg.mxu0
      %7803 = vmatpush.bf16.msra.mxu0 %v6564
      %7804 = vmatpush.bf16.msra.mxu0 %v6556
      %7805 = vmatpush.bf16.msra.mxu0 %v6548
      %7806 = vmatpush.bf16.msra.mxu0 %v6540
      %7807 = vmatpush.bf16.msra.mxu0 %v6532
      %7808 = vmatpush.bf16.msra.mxu0 %v6524
      %7809 = vmatpush.bf16.msra.mxu0 %v6516
      %7810 = vmatpush.bf16.msra.mxu0 %v6508
      %7811 = vmatmul.bf16.gmra.mxu0 %v4633
      %v7812 = vpop.f32.mrf.mxu0
      %v7813 = vadd.f32 %v7800, %v7812
      %v7814 = vpop.f32.mrf.mxu0
      %7815 = vdwg.mxu0
      %7816 = vmatpush.bf16.msra.mxu0 %v6628
      %7817 = vmatpush.bf16.msra.mxu0 %v6620
      %7818 = vmatpush.bf16.msra.mxu0 %v6612
      %7819 = vmatpush.bf16.msra.mxu0 %v6604
      %7820 = vmatpush.bf16.msra.mxu0 %v6596
      %7821 = vmatpush.bf16.msra.mxu0 %v6588
      %7822 = vmatpush.bf16.msra.mxu0 %v6580
      %7823 = vmatpush.bf16.msra.mxu0 %v6572
      %7824 = vmatmul.bf16.gmra.mxu0 %v4634
      %v7825 = vpop.f32.mrf.mxu0
      %v7826 = vadd.f32 %v7813, %v7825
      %v7827 = vpop.f32.mrf.mxu0
      %7828 = vdwg.mxu0
      %7829 = vmatpush.bf16.msra.mxu0 %v6692
      %7830 = vmatpush.bf16.msra.mxu0 %v6684
      %7831 = vmatpush.bf16.msra.mxu0 %v6676
      %7832 = vmatpush.bf16.msra.mxu0 %v6668
      %7833 = vmatpush.bf16.msra.mxu0 %v6660
      %7834 = vmatpush.bf16.msra.mxu0 %v6652
      %7835 = vmatpush.bf16.msra.mxu0 %v6644
      %7836 = vmatpush.bf16.msra.mxu0 %v6636
      %7837 = vmatmul.bf16.gmra.mxu0 %v4635
      %v7838 = vpop.f32.mrf.mxu0
      %v7839 = vadd.f32 %v7826, %v7838
      %v7840 = vpop.f32.mrf.mxu0
      %7841 = vdwg.mxu0
      %7842 = vmatpush.bf16.msra.mxu0 %v6756
      %7843 = vmatpush.bf16.msra.mxu0 %v6748
      %7844 = vmatpush.bf16.msra.mxu0 %v6740
      %7845 = vmatpush.bf16.msra.mxu0 %v6732
      %7846 = vmatpush.bf16.msra.mxu0 %v6724
      %7847 = vmatpush.bf16.msra.mxu0 %v6716
      %7848 = vmatpush.bf16.msra.mxu0 %v6708
      %7849 = vmatpush.bf16.msra.mxu0 %v6700
      %7850 = vmatmul.bf16.gmra.mxu0 %v4636
      %v7851 = vpop.f32.mrf.mxu0
      %v7852 = vadd.f32 %v7839, %v7851
      %v7853 = vpop.f32.mrf.mxu0
      %7854 = vdwg.mxu0
      %7855 = vmatpush.bf16.msra.mxu0 %v6820
      %7856 = vmatpush.bf16.msra.mxu0 %v6812
      %7857 = vmatpush.bf16.msra.mxu0 %v6804
      %7858 = vmatpush.bf16.msra.mxu0 %v6796
      %7859 = vmatpush.bf16.msra.mxu0 %v6788
      %7860 = vmatpush.bf16.msra.mxu0 %v6780
      %7861 = vmatpush.bf16.msra.mxu0 %v6772
      %7862 = vmatpush.bf16.msra.mxu0 %v6764
      %7863 = vmatmul.bf16.gmra.mxu0 %v4637
      %v7864 = vpop.f32.mrf.mxu0
      %v7865 = vadd.f32 %v7852, %v7864
      %v7866 = vpop.f32.mrf.mxu0
      %7867 = vdwg.mxu0
      %7868 = vmatpush.bf16.msra.mxu0 %v6884
      %7869 = vmatpush.bf16.msra.mxu0 %v6876
      %7870 = vmatpush.bf16.msra.mxu0 %v6868
      %7871 = vmatpush.bf16.msra.mxu0 %v6860
      %7872 = vmatpush.bf16.msra.mxu0 %v6852
      %7873 = vmatpush.bf16.msra.mxu0 %v6844
      %7874 = vmatpush.bf16.msra.mxu0 %v6836
      %7875 = vmatpush.bf16.msra.mxu0 %v6828
      %7876 = vmatmul.bf16.gmra.mxu0 %v4638
      %v7877 = vpop.f32.mrf.mxu0
      %v7878 = vadd.f32 %v7865, %v7877
      %v7879 = vpop.f32.mrf.mxu0
      %7880 = vdwg.mxu0
      %7881 = vmatpush.bf16.msra.mxu0 %v6501
      %7882 = vmatpush.bf16.msra.mxu0 %v6493
      %7883 = vmatpush.bf16.msra.mxu0 %v6485
      %7884 = vmatpush.bf16.msra.mxu0 %v6477
      %7885 = vmatpush.bf16.msra.mxu0 %v6469
      %7886 = vmatpush.bf16.msra.mxu0 %v6461
      %7887 = vmatpush.bf16.msra.mxu0 %v6453
      %7888 = vmatpush.bf16.msra.mxu0 %v6445
      %7889 = vmatmul.bf16.gmra.mxu0 %v4632
      %v7890 = vpop.f32.mrf.mxu0
      %v7891 = vadd.f32 0.0, %v7890
      %v7892 = vpop.f32.mrf.mxu0
      %7893 = vdwg.mxu0
      %7894 = vmatpush.bf16.msra.mxu0 %v6565
      %7895 = vmatpush.bf16.msra.mxu0 %v6557
      %7896 = vmatpush.bf16.msra.mxu0 %v6549
      %7897 = vmatpush.bf16.msra.mxu0 %v6541
      %7898 = vmatpush.bf16.msra.mxu0 %v6533
      %7899 = vmatpush.bf16.msra.mxu0 %v6525
      %7900 = vmatpush.bf16.msra.mxu0 %v6517
      %7901 = vmatpush.bf16.msra.mxu0 %v6509
      %7902 = vmatmul.bf16.gmra.mxu0 %v4633
      %v7903 = vpop.f32.mrf.mxu0
      %v7904 = vadd.f32 %v7891, %v7903
      %v7905 = vpop.f32.mrf.mxu0
      %7906 = vdwg.mxu0
      %7907 = vmatpush.bf16.msra.mxu0 %v6629
      %7908 = vmatpush.bf16.msra.mxu0 %v6621
      %7909 = vmatpush.bf16.msra.mxu0 %v6613
      %7910 = vmatpush.bf16.msra.mxu0 %v6605
      %7911 = vmatpush.bf16.msra.mxu0 %v6597
      %7912 = vmatpush.bf16.msra.mxu0 %v6589
      %7913 = vmatpush.bf16.msra.mxu0 %v6581
      %7914 = vmatpush.bf16.msra.mxu0 %v6573
      %7915 = vmatmul.bf16.gmra.mxu0 %v4634
      %v7916 = vpop.f32.mrf.mxu0
      %v7917 = vadd.f32 %v7904, %v7916
      %v7918 = vpop.f32.mrf.mxu0
      %7919 = vdwg.mxu0
      %7920 = vmatpush.bf16.msra.mxu0 %v6693
      %7921 = vmatpush.bf16.msra.mxu0 %v6685
      %7922 = vmatpush.bf16.msra.mxu0 %v6677
      %7923 = vmatpush.bf16.msra.mxu0 %v6669
      %7924 = vmatpush.bf16.msra.mxu0 %v6661
      %7925 = vmatpush.bf16.msra.mxu0 %v6653
      %7926 = vmatpush.bf16.msra.mxu0 %v6645
      %7927 = vmatpush.bf16.msra.mxu0 %v6637
      %7928 = vmatmul.bf16.gmra.mxu0 %v4635
      %v7929 = vpop.f32.mrf.mxu0
      %v7930 = vadd.f32 %v7917, %v7929
      %v7931 = vpop.f32.mrf.mxu0
      %7932 = vdwg.mxu0
      %7933 = vmatpush.bf16.msra.mxu0 %v6757
      %7934 = vmatpush.bf16.msra.mxu0 %v6749
      %7935 = vmatpush.bf16.msra.mxu0 %v6741
      %7936 = vmatpush.bf16.msra.mxu0 %v6733
      %7937 = vmatpush.bf16.msra.mxu0 %v6725
      %7938 = vmatpush.bf16.msra.mxu0 %v6717
      %7939 = vmatpush.bf16.msra.mxu0 %v6709
      %7940 = vmatpush.bf16.msra.mxu0 %v6701
      %7941 = vmatmul.bf16.gmra.mxu0 %v4636
      %v7942 = vpop.f32.mrf.mxu0
      %v7943 = vadd.f32 %v7930, %v7942
      %v7944 = vpop.f32.mrf.mxu0
      %7945 = vdwg.mxu0
      %7946 = vmatpush.bf16.msra.mxu0 %v6821
      %7947 = vmatpush.bf16.msra.mxu0 %v6813
      %7948 = vmatpush.bf16.msra.mxu0 %v6805
      %7949 = vmatpush.bf16.msra.mxu0 %v6797
      %7950 = vmatpush.bf16.msra.mxu0 %v6789
      %7951 = vmatpush.bf16.msra.mxu0 %v6781
      %7952 = vmatpush.bf16.msra.mxu0 %v6773
      %7953 = vmatpush.bf16.msra.mxu0 %v6765
      %7954 = vmatmul.bf16.gmra.mxu0 %v4637
      %v7955 = vpop.f32.mrf.mxu0
      %v7956 = vadd.f32 %v7943, %v7955
      %v7957 = vpop.f32.mrf.mxu0
      %7958 = vdwg.mxu0
      %7959 = vmatpush.bf16.msra.mxu0 %v6885
      %7960 = vmatpush.bf16.msra.mxu0 %v6877
      %7961 = vmatpush.bf16.msra.mxu0 %v6869
      %7962 = vmatpush.bf16.msra.mxu0 %v6861
      %7963 = vmatpush.bf16.msra.mxu0 %v6853
      %7964 = vmatpush.bf16.msra.mxu0 %v6845
      %7965 = vmatpush.bf16.msra.mxu0 %v6837
      %7966 = vmatpush.bf16.msra.mxu0 %v6829
      %7967 = vmatmul.bf16.gmra.mxu0 %v4638
      %v7968 = vpop.f32.mrf.mxu0
      %v7969 = vadd.f32 %v7956, %v7968
      %v7970 = vpop.f32.mrf.mxu0
      %7971 = vdwg.mxu0
      %7972 = vmatpush.bf16.msra.mxu0 %v6502
      %7973 = vmatpush.bf16.msra.mxu0 %v6494
      %7974 = vmatpush.bf16.msra.mxu0 %v6486
      %7975 = vmatpush.bf16.msra.mxu0 %v6478
      %7976 = vmatpush.bf16.msra.mxu0 %v6470
      %7977 = vmatpush.bf16.msra.mxu0 %v6462
      %7978 = vmatpush.bf16.msra.mxu0 %v6454
      %7979 = vmatpush.bf16.msra.mxu0 %v6446
      %7980 = vmatmul.bf16.gmra.mxu0 %v4632
      %v7981 = vpop.f32.mrf.mxu0
      %v7982 = vadd.f32 0.0, %v7981
      %v7983 = vpop.f32.mrf.mxu0
      %7984 = vdwg.mxu0
      %7985 = vmatpush.bf16.msra.mxu0 %v6566
      %7986 = vmatpush.bf16.msra.mxu0 %v6558
      %7987 = vmatpush.bf16.msra.mxu0 %v6550
      %7988 = vmatpush.bf16.msra.mxu0 %v6542
      %7989 = vmatpush.bf16.msra.mxu0 %v6534
      %7990 = vmatpush.bf16.msra.mxu0 %v6526
      %7991 = vmatpush.bf16.msra.mxu0 %v6518
      %7992 = vmatpush.bf16.msra.mxu0 %v6510
      %7993 = vmatmul.bf16.gmra.mxu0 %v4633
      %v7994 = vpop.f32.mrf.mxu0
      %v7995 = vadd.f32 %v7982, %v7994
      %v7996 = vpop.f32.mrf.mxu0
      %7997 = vdwg.mxu0
      %7998 = vmatpush.bf16.msra.mxu0 %v6630
      %7999 = vmatpush.bf16.msra.mxu0 %v6622
      %8000 = vmatpush.bf16.msra.mxu0 %v6614
      %8001 = vmatpush.bf16.msra.mxu0 %v6606
      %8002 = vmatpush.bf16.msra.mxu0 %v6598
      %8003 = vmatpush.bf16.msra.mxu0 %v6590
      %8004 = vmatpush.bf16.msra.mxu0 %v6582
      %8005 = vmatpush.bf16.msra.mxu0 %v6574
      %8006 = vmatmul.bf16.gmra.mxu0 %v4634
      %v8007 = vpop.f32.mrf.mxu0
      %v8008 = vadd.f32 %v7995, %v8007
      %v8009 = vpop.f32.mrf.mxu0
      %8010 = vdwg.mxu0
      %8011 = vmatpush.bf16.msra.mxu0 %v6694
      %8012 = vmatpush.bf16.msra.mxu0 %v6686
      %8013 = vmatpush.bf16.msra.mxu0 %v6678
      %8014 = vmatpush.bf16.msra.mxu0 %v6670
      %8015 = vmatpush.bf16.msra.mxu0 %v6662
      %8016 = vmatpush.bf16.msra.mxu0 %v6654
      %8017 = vmatpush.bf16.msra.mxu0 %v6646
      %8018 = vmatpush.bf16.msra.mxu0 %v6638
      %8019 = vmatmul.bf16.gmra.mxu0 %v4635
      %v8020 = vpop.f32.mrf.mxu0
      %v8021 = vadd.f32 %v8008, %v8020
      %v8022 = vpop.f32.mrf.mxu0
      %8023 = vdwg.mxu0
      %8024 = vmatpush.bf16.msra.mxu0 %v6758
      %8025 = vmatpush.bf16.msra.mxu0 %v6750
      %8026 = vmatpush.bf16.msra.mxu0 %v6742
      %8027 = vmatpush.bf16.msra.mxu0 %v6734
      %8028 = vmatpush.bf16.msra.mxu0 %v6726
      %8029 = vmatpush.bf16.msra.mxu0 %v6718
      %8030 = vmatpush.bf16.msra.mxu0 %v6710
      %8031 = vmatpush.bf16.msra.mxu0 %v6702
      %8032 = vmatmul.bf16.gmra.mxu0 %v4636
      %v8033 = vpop.f32.mrf.mxu0
      %v8034 = vadd.f32 %v8021, %v8033
      %v8035 = vpop.f32.mrf.mxu0
      %8036 = vdwg.mxu0
      %8037 = vmatpush.bf16.msra.mxu0 %v6822
      %8038 = vmatpush.bf16.msra.mxu0 %v6814
      %8039 = vmatpush.bf16.msra.mxu0 %v6806
      %8040 = vmatpush.bf16.msra.mxu0 %v6798
      %8041 = vmatpush.bf16.msra.mxu0 %v6790
      %8042 = vmatpush.bf16.msra.mxu0 %v6782
      %8043 = vmatpush.bf16.msra.mxu0 %v6774
      %8044 = vmatpush.bf16.msra.mxu0 %v6766
      %8045 = vmatmul.bf16.gmra.mxu0 %v4637
      %v8046 = vpop.f32.mrf.mxu0
      %v8047 = vadd.f32 %v8034, %v8046
      %v8048 = vpop.f32.mrf.mxu0
      %8049 = vdwg.mxu0
      %8050 = vmatpush.bf16.msra.mxu0 %v6886
      %8051 = vmatpush.bf16.msra.mxu0 %v6878
      %8052 = vmatpush.bf16.msra.mxu0 %v6870
      %8053 = vmatpush.bf16.msra.mxu0 %v6862
      %8054 = vmatpush.bf16.msra.mxu0 %v6854
      %8055 = vmatpush.bf16.msra.mxu0 %v6846
      %8056 = vmatpush.bf16.msra.mxu0 %v6838
      %8057 = vmatpush.bf16.msra.mxu0 %v6830
      %8058 = vmatmul.bf16.gmra.mxu0 %v4638
      %v8059 = vpop.f32.mrf.mxu0
      %v8060 = vadd.f32 %v8047, %v8059
      %v8061 = vpop.f32.mrf.mxu0
      %8062 = vdwg.mxu0
      %v8063 = vadd.f32 %v4639, %v7423
      %v8064 = vadd.f32 %v4640, %v7514
      %v8065 = vadd.f32 %v4641, %v7605
      %v8066 = vadd.f32 %v4642, %v7696
      %v8067 = vadd.f32 %v4643, %v7787
      %v8068 = vadd.f32 %v4644, %v7878
      %v8069 = vadd.f32 %v4645, %v7969
      %v8070 = vadd.f32 %v4646, %v8060
      %8071 = vst [vmem:[#allocation4] sm:$0xff] %v8063
      %8072 = vst [vmem:[#allocation4 + $0x8] sm:$0xff] %v8064
      %8073 = vst [vmem:[#allocation4 + $0x10] sm:$0xff] %v8065
      %8074 = vst [vmem:[#allocation4 + $0x18] sm:$0xff] %v8066
      %8075 = vst [vmem:[#allocation4 + $0x20] sm:$0xff] %v8067
      %8076 = vst [vmem:[#allocation4 + $0x28] sm:$0xff] %v8068
      %8077 = vst [vmem:[#allocation4 + $0x30] sm:$0xff] %v8069
      %8078 = vst [vmem:[#allocation4 + $0x38] sm:$0xff] %v8070
      %p8079 = scmp.eq.s32.totalorder %s23, 6
      // Predicated region
      $region69: #{discriminator_forward.3} parent=63 // pred_check
        %p8080 = pneg %p8079
      $region70: #{discriminator_forward.3} parent=63 // pred_check_branch
        %8082 = sbr.rel (%p8080) target = $region72
      $region71: #{discriminator_forward.3} parent=63 // pred_region
        %v8083 = vld [vmem:[#allocation4] sm:$0xff]
        %v8084 = vld [vmem:[#allocation4 + $0x8] sm:$0xff]
        %v8085 = vld [vmem:[#allocation4 + $0x10] sm:$0xff]
        %v8086 = vld [vmem:[#allocation4 + $0x18] sm:$0xff]
        %v8087 = vld [vmem:[#allocation4 + $0x20] sm:$0xff]
        %v8088 = vld [vmem:[#allocation4 + $0x28] sm:$0xff]
        %v8089 = vld [vmem:[#allocation4 + $0x30] sm:$0xff]
        %v8090 = vld [vmem:[#allocation4 + $0x38] sm:$0xff]
        %v8091 = vld [vmem:[%s6] sm:$0xff]
        %v8093 = vperm.slane %v8091, 0
        %v8094 = vperm.slane %v8091, 1
        %v8095 = vperm.slane %v8091, 2
        %v8096 = vperm.slane %v8091, 3
        %v8097 = vperm.slane %v8091, 4
        %v8098 = vperm.slane %v8091, 5
        %v8099 = vperm.slane %v8091, 6
        %v8100 = vperm.slane %v8091, 7
        %v8109 = vadd.f32 %v8083, %v8093
        %v8110 = vadd.f32 %v8084, %v8094
        %v8111 = vadd.f32 %v8085, %v8095
        %v8112 = vadd.f32 %v8086, %v8096
        %v8113 = vadd.f32 %v8087, %v8097
        %v8114 = vadd.f32 %v8088, %v8098
        %v8115 = vadd.f32 %v8089, %v8099
        %v8116 = vadd.f32 %v8090, %v8100
        %v8117 = vlaneseq
        %v8118 = vshrl.u32 %v8117, 7
        %vm8119 = vcmp.lt.s32.totalorder %v8118, 4
        %v8120 = vsel %vm8119, 1, 0
        %v8121 = vcvt.s32.f32 %v8120
        %v8122 = vmul.f32 %v8109, %v8121
        %v8123 = vmul.f32 %v8110, %v8121
        %v8124 = vmul.f32 %v8111, %v8121
        %v8125 = vmul.f32 %v8112, %v8121
        %v8126 = vmul.f32 %v8113, %v8121
        %v8127 = vmul.f32 %v8114, %v8121
        %v8128 = vmul.f32 %v8115, %v8121
        %v8129 = vmul.f32 %v8116, %v8121
        %v8130 = vrot.slane %v8122, 4
        %v8131 = vadd.f32 %v8122, %v8130
        %v8132 = vrot.slane %v8131, 2
        %v8133 = vadd.f32 %v8131, %v8132
        %v8134 = vrot.slane %v8133, 1
        %v8135 = vadd.f32 %v8133, %v8134
        %v8136 = vrot.slane %v8123, 4
        %v8137 = vadd.f32 %v8123, %v8136
        %v8138 = vrot.slane %v8137, 2
        %v8139 = vadd.f32 %v8137, %v8138
        %v8140 = vrot.slane %v8139, 1
        %v8141 = vadd.f32 %v8139, %v8140
        %v8142 = vrot.slane %v8124, 4
        %v8143 = vadd.f32 %v8124, %v8142
        %v8144 = vrot.slane %v8143, 2
        %v8145 = vadd.f32 %v8143, %v8144
        %v8146 = vrot.slane %v8145, 1
        %v8147 = vadd.f32 %v8145, %v8146
        %v8148 = vrot.slane %v8125, 4
        %v8149 = vadd.f32 %v8125, %v8148
        %v8150 = vrot.slane %v8149, 2
        %v8151 = vadd.f32 %v8149, %v8150
        %v8152 = vrot.slane %v8151, 1
        %v8153 = vadd.f32 %v8151, %v8152
        %v8154 = vrot.slane %v8126, 4
        %v8155 = vadd.f32 %v8126, %v8154
        %v8156 = vrot.slane %v8155, 2
        %v8157 = vadd.f32 %v8155, %v8156
        %v8158 = vrot.slane %v8157, 1
        %v8159 = vadd.f32 %v8157, %v8158
        %v8160 = vrot.slane %v8127, 4
        %v8161 = vadd.f32 %v8127, %v8160
        %v8162 = vrot.slane %v8161, 2
        %v8163 = vadd.f32 %v8161, %v8162
        %v8164 = vrot.slane %v8163, 1
        %v8165 = vadd.f32 %v8163, %v8164
        %v8166 = vrot.slane %v8128, 4
        %v8167 = vadd.f32 %v8128, %v8166
        %v8168 = vrot.slane %v8167, 2
        %v8169 = vadd.f32 %v8167, %v8168
        %v8170 = vrot.slane %v8169, 1
        %v8171 = vadd.f32 %v8169, %v8170
        %v8172 = vrot.slane %v8129, 4
        %v8173 = vadd.f32 %v8129, %v8172
        %v8174 = vrot.slane %v8173, 2
        %v8175 = vadd.f32 %v8173, %v8174
        %v8176 = vrot.slane %v8175, 1
        %v8177 = vadd.f32 %v8175, %v8176
        %v8178 = vrcp.pop 4.0
        %v8179 = vmul.f32 4.0, %v8178
        %v8180 = vsub.f32 1.0, %v8179
        %v8181 = vmul.f32 %v8178, %v8180
        %v8182 = vadd.f32 %v8178, %v8181
        %vm8183 = vweird.f32 %v8178
        %v8184 = vsel %vm8183, %v8178, %v8182
        %v8185 = vmul.f32 %v8135, %v8184
        %v8186 = vmul.f32 %v8141, %v8184
        %v8187 = vmul.f32 %v8147, %v8184
        %v8188 = vmul.f32 %v8153, %v8184
        %v8189 = vmul.f32 %v8159, %v8184
        %v8190 = vmul.f32 %v8165, %v8184
        %v8191 = vmul.f32 %v8171, %v8184
        %v8192 = vmul.f32 %v8177, %v8184
        %v8193 = vmul.f32 %v8109, %v8109
        %v8194 = vmul.f32 %v8110, %v8110
        %v8195 = vmul.f32 %v8111, %v8111
        %v8196 = vmul.f32 %v8112, %v8112
        %v8197 = vmul.f32 %v8113, %v8113
        %v8198 = vmul.f32 %v8114, %v8114
        %v8199 = vmul.f32 %v8115, %v8115
        %v8200 = vmul.f32 %v8116, %v8116
        %v8201 = vmul.f32 %v8193, %v8121
        %v8202 = vmul.f32 %v8194, %v8121
        %v8203 = vmul.f32 %v8195, %v8121
        %v8204 = vmul.f32 %v8196, %v8121
        %v8205 = vmul.f32 %v8197, %v8121
        %v8206 = vmul.f32 %v8198, %v8121
        %v8207 = vmul.f32 %v8199, %v8121
        %v8208 = vmul.f32 %v8200, %v8121
        %v8209 = vrot.slane %v8201, 4
        %v8210 = vadd.f32 %v8201, %v8209
        %v8211 = vrot.slane %v8210, 2
        %v8212 = vadd.f32 %v8210, %v8211
        %v8213 = vrot.slane %v8212, 1
        %v8214 = vadd.f32 %v8212, %v8213
        %v8215 = vrot.slane %v8202, 4
        %v8216 = vadd.f32 %v8202, %v8215
        %v8217 = vrot.slane %v8216, 2
        %v8218 = vadd.f32 %v8216, %v8217
        %v8219 = vrot.slane %v8218, 1
        %v8220 = vadd.f32 %v8218, %v8219
        %v8221 = vrot.slane %v8203, 4
        %v8222 = vadd.f32 %v8203, %v8221
        %v8223 = vrot.slane %v8222, 2
        %v8224 = vadd.f32 %v8222, %v8223
        %v8225 = vrot.slane %v8224, 1
        %v8226 = vadd.f32 %v8224, %v8225
        %v8227 = vrot.slane %v8204, 4
        %v8228 = vadd.f32 %v8204, %v8227
        %v8229 = vrot.slane %v8228, 2
        %v8230 = vadd.f32 %v8228, %v8229
        %v8231 = vrot.slane %v8230, 1
        %v8232 = vadd.f32 %v8230, %v8231
        %v8233 = vrot.slane %v8205, 4
        %v8234 = vadd.f32 %v8205, %v8233
        %v8235 = vrot.slane %v8234, 2
        %v8236 = vadd.f32 %v8234, %v8235
        %v8237 = vrot.slane %v8236, 1
        %v8238 = vadd.f32 %v8236, %v8237
        %v8239 = vrot.slane %v8206, 4
        %v8240 = vadd.f32 %v8206, %v8239
        %v8241 = vrot.slane %v8240, 2
        %v8242 = vadd.f32 %v8240, %v8241
        %v8243 = vrot.slane %v8242, 1
        %v8244 = vadd.f32 %v8242, %v8243
        %v8245 = vrot.slane %v8207, 4
        %v8246 = vadd.f32 %v8207, %v8245
        %v8247 = vrot.slane %v8246, 2
        %v8248 = vadd.f32 %v8246, %v8247
        %v8249 = vrot.slane %v8248, 1
        %v8250 = vadd.f32 %v8248, %v8249
        %v8251 = vrot.slane %v8208, 4
        %v8252 = vadd.f32 %v8208, %v8251
        %v8253 = vrot.slane %v8252, 2
        %v8254 = vadd.f32 %v8252, %v8253
        %v8255 = vrot.slane %v8254, 1
        %v8256 = vadd.f32 %v8254, %v8255
        %v8257 = vmul.f32 %v8214, %v8184
        %v8258 = vmul.f32 %v8220, %v8184
        %v8259 = vmul.f32 %v8226, %v8184
        %v8260 = vmul.f32 %v8232, %v8184
        %v8261 = vmul.f32 %v8238, %v8184
        %v8262 = vmul.f32 %v8244, %v8184
        %v8263 = vmul.f32 %v8250, %v8184
        %v8264 = vmul.f32 %v8256, %v8184
        %v8265 = vmul.f32 %v8185, %v8185
        %v8266 = vmul.f32 %v8186, %v8186
        %v8267 = vmul.f32 %v8187, %v8187
        %v8268 = vmul.f32 %v8188, %v8188
        %v8269 = vmul.f32 %v8189, %v8189
        %v8270 = vmul.f32 %v8190, %v8190
        %v8271 = vmul.f32 %v8191, %v8191
        %v8272 = vmul.f32 %v8192, %v8192
        %v8273 = vsub.f32 %v8257, %v8265
        %v8274 = vsub.f32 %v8258, %v8266
        %v8275 = vsub.f32 %v8259, %v8267
        %v8276 = vsub.f32 %v8260, %v8268
        %v8277 = vsub.f32 %v8261, %v8269
        %v8278 = vsub.f32 %v8262, %v8270
        %v8279 = vsub.f32 %v8263, %v8271
        %v8280 = vsub.f32 %v8264, %v8272
        %v8281 = vmax.f32 %v8273, 0.0
        %v8282 = vmax.f32 %v8274, 0.0
        %v8283 = vmax.f32 %v8275, 0.0
        %v8284 = vmax.f32 %v8276, 0.0
        %v8285 = vmax.f32 %v8277, 0.0
        %v8286 = vmax.f32 %v8278, 0.0
        %v8287 = vmax.f32 %v8279, 0.0
        %v8288 = vmax.f32 %v8280, 0.0
        %v8289 = vsub.f32 %v8109, %v8185
        %v8290 = vsub.f32 %v8110, %v8186
        %v8291 = vsub.f32 %v8111, %v8187
        %v8292 = vsub.f32 %v8112, %v8188
        %v8293 = vsub.f32 %v8113, %v8189
        %v8294 = vsub.f32 %v8114, %v8190
        %v8295 = vsub.f32 %v8115, %v8191
        %v8296 = vsub.f32 %v8116, %v8192
        %v8297 = vadd.f32 %v8281, 1e-05
        %v8298 = vadd.f32 %v8282, 1e-05
        %v8299 = vadd.f32 %v8283, 1e-05
        %v8300 = vadd.f32 %v8284, 1e-05
        %v8301 = vadd.f32 %v8285, 1e-05
        %v8302 = vadd.f32 %v8286, 1e-05
        %v8303 = vadd.f32 %v8287, 1e-05
        %v8304 = vadd.f32 %v8288, 1e-05
        %v8305 = vrsqrt.pop %v8297
        %v8306 = vmul.f32 %v8305, %v8297
        %v8307 = vmul.f32 %v8306, %v8305
        %v8308 = vmul.f32 0.5, %v8307
        %v8309 = vsub.f32 1.5, %v8308
        %v8310 = vmul.f32 %v8305, %v8309
        %vm8311 = vweird.f32 %v8297
        %vm8312 = vweird.f32 %v8305
        %vm8313 = vmor %vm8311, %vm8312
        %v8314 = vsel %vm8313, %v8305, %v8310
        %v8315 = vrsqrt.pop %v8298
        %v8316 = vmul.f32 %v8315, %v8298
        %v8317 = vmul.f32 %v8316, %v8315
        %v8318 = vmul.f32 0.5, %v8317
        %v8319 = vsub.f32 1.5, %v8318
        %v8320 = vmul.f32 %v8315, %v8319
        %vm8321 = vweird.f32 %v8298
        %vm8322 = vweird.f32 %v8315
        %vm8323 = vmor %vm8321, %vm8322
        %v8324 = vsel %vm8323, %v8315, %v8320
        %v8325 = vrsqrt.pop %v8299
        %v8326 = vmul.f32 %v8325, %v8299
        %v8327 = vmul.f32 %v8326, %v8325
        %v8328 = vmul.f32 0.5, %v8327
        %v8329 = vsub.f32 1.5, %v8328
        %v8330 = vmul.f32 %v8325, %v8329
        %vm8331 = vweird.f32 %v8299
        %vm8332 = vweird.f32 %v8325
        %vm8333 = vmor %vm8331, %vm8332
        %v8334 = vsel %vm8333, %v8325, %v8330
        %v8335 = vrsqrt.pop %v8300
        %v8336 = vmul.f32 %v8335, %v8300
        %v8337 = vmul.f32 %v8336, %v8335
        %v8338 = vmul.f32 0.5, %v8337
        %v8339 = vsub.f32 1.5, %v8338
        %v8340 = vmul.f32 %v8335, %v8339
        %vm8341 = vweird.f32 %v8300
        %vm8342 = vweird.f32 %v8335
        %vm8343 = vmor %vm8341, %vm8342
        %v8344 = vsel %vm8343, %v8335, %v8340
        %v8345 = vrsqrt.pop %v8301
        %v8346 = vmul.f32 %v8345, %v8301
        %v8347 = vmul.f32 %v8346, %v8345
        %v8348 = vmul.f32 0.5, %v8347
        %v8349 = vsub.f32 1.5, %v8348
        %v8350 = vmul.f32 %v8345, %v8349
        %vm8351 = vweird.f32 %v8301
        %vm8352 = vweird.f32 %v8345
        %vm8353 = vmor %vm8351, %vm8352
        %v8354 = vsel %vm8353, %v8345, %v8350
        %v8355 = vrsqrt.pop %v8302
        %v8356 = vmul.f32 %v8355, %v8302
        %v8357 = vmul.f32 %v8356, %v8355
        %v8358 = vmul.f32 0.5, %v8357
        %v8359 = vsub.f32 1.5, %v8358
        %v8360 = vmul.f32 %v8355, %v8359
        %vm8361 = vweird.f32 %v8302
        %vm8362 = vweird.f32 %v8355
        %vm8363 = vmor %vm8361, %vm8362
        %v8364 = vsel %vm8363, %v8355, %v8360
        %v8365 = vrsqrt.pop %v8303
        %v8366 = vmul.f32 %v8365, %v8303
        %v8367 = vmul.f32 %v8366, %v8365
        %v8368 = vmul.f32 0.5, %v8367
        %v8369 = vsub.f32 1.5, %v8368
        %v8370 = vmul.f32 %v8365, %v8369
        %vm8371 = vweird.f32 %v8303
        %vm8372 = vweird.f32 %v8365
        %vm8373 = vmor %vm8371, %vm8372
        %v8374 = vsel %vm8373, %v8365, %v8370
        %v8375 = vrsqrt.pop %v8304
        %v8376 = vmul.f32 %v8375, %v8304
        %v8377 = vmul.f32 %v8376, %v8375
        %v8378 = vmul.f32 0.5, %v8377
        %v8379 = vsub.f32 1.5, %v8378
        %v8380 = vmul.f32 %v8375, %v8379
        %vm8381 = vweird.f32 %v8304
        %vm8382 = vweird.f32 %v8375
        %vm8383 = vmor %vm8381, %vm8382
        %v8384 = vsel %vm8383, %v8375, %v8380
        %v8385 = vmul.f32 %v8289, %v8314
        %v8386 = vmul.f32 %v8290, %v8324
        %v8387 = vmul.f32 %v8291, %v8334
        %v8388 = vmul.f32 %v8292, %v8344
        %v8389 = vmul.f32 %v8293, %v8354
        %v8390 = vmul.f32 %v8294, %v8364
        %v8391 = vmul.f32 %v8295, %v8374
        %v8392 = vmul.f32 %v8296, %v8384
        %v8393 = vld [vmem:[%s7] sm:$0xff]
        %v8395 = vperm.slane %v8393, 0
        %v8396 = vperm.slane %v8393, 1
        %v8397 = vperm.slane %v8393, 2
        %v8398 = vperm.slane %v8393, 3
        %v8399 = vperm.slane %v8393, 4
        %v8400 = vperm.slane %v8393, 5
        %v8401 = vperm.slane %v8393, 6
        %v8402 = vperm.slane %v8393, 7
        %v8411 = vmul.f32 %v8385, %v8395
        %v8412 = vmul.f32 %v8386, %v8396
        %v8413 = vmul.f32 %v8387, %v8397
        %v8414 = vmul.f32 %v8388, %v8398
        %v8415 = vmul.f32 %v8389, %v8399
        %v8416 = vmul.f32 %v8390, %v8400
        %v8417 = vmul.f32 %v8391, %v8401
        %v8418 = vmul.f32 %v8392, %v8402
        %v8419 = vld [vmem:[%s8] sm:$0xff]
        %v8421 = vperm.slane %v8419, 0
        %v8422 = vperm.slane %v8419, 1
        %v8423 = vperm.slane %v8419, 2
        %v8424 = vperm.slane %v8419, 3
        %v8425 = vperm.slane %v8419, 4
        %v8426 = vperm.slane %v8419, 5
        %v8427 = vperm.slane %v8419, 6
        %v8428 = vperm.slane %v8419, 7
        %v8437 = vadd.f32 %v8411, %v8421
        %v8438 = vadd.f32 %v8412, %v8422
        %v8439 = vadd.f32 %v8413, %v8423
        %v8440 = vadd.f32 %v8414, %v8424
        %v8441 = vadd.f32 %v8415, %v8425
        %v8442 = vadd.f32 %v8416, %v8426
        %v8443 = vadd.f32 %v8417, %v8427
        %v8444 = vadd.f32 %v8418, %v8428
        %vm8445 = vcmp.gt.f32.partialorder %v8437, 0.0
        %vm8446 = vcmp.gt.f32.partialorder %v8438, 0.0
        %vm8447 = vcmp.gt.f32.partialorder %v8439, 0.0
        %vm8448 = vcmp.gt.f32.partialorder %v8440, 0.0
        %vm8449 = vcmp.gt.f32.partialorder %v8441, 0.0
        %vm8450 = vcmp.gt.f32.partialorder %v8442, 0.0
        %vm8451 = vcmp.gt.f32.partialorder %v8443, 0.0
        %vm8452 = vcmp.gt.f32.partialorder %v8444, 0.0
        %v8453 = vmul.f32 %v8437, 0.2
        %v8454 = vmul.f32 %v8438, 0.2
        %v8455 = vmul.f32 %v8439, 0.2
        %v8456 = vmul.f32 %v8440, 0.2
        %v8457 = vmul.f32 %v8441, 0.2
        %v8458 = vmul.f32 %v8442, 0.2
        %v8459 = vmul.f32 %v8443, 0.2
        %v8460 = vmul.f32 %v8444, 0.2
        %v8461 = vsel %vm8445, %v8437, %v8453
        %v8462 = vsel %vm8446, %v8438, %v8454
        %v8463 = vsel %vm8447, %v8439, %v8455
        %v8464 = vsel %vm8448, %v8440, %v8456
        %v8465 = vsel %vm8449, %v8441, %v8457
        %v8466 = vsel %vm8450, %v8442, %v8458
        %v8467 = vsel %vm8451, %v8443, %v8459
        %v8468 = vsel %vm8452, %v8444, %v8460
        %v8469 = vld [vmem:[%s9] sm:$0xff]
        %v8471 = vperm.slane %v8469, 0
        %v8472 = vperm.slane %v8469, 1
        %v8473 = vperm.slane %v8469, 2
        %v8474 = vperm.slane %v8469, 3
        %v8475 = vperm.slane %v8469, 4
        %v8476 = vperm.slane %v8469, 5
        %v8477 = vperm.slane %v8469, 6
        %v8478 = vperm.slane %v8469, 7
        %v8487 = vmul.f32 %v8461, %v8471
        %v8488 = vmul.f32 %v8462, %v8472
        %v8489 = vmul.f32 %v8463, %v8473
        %v8490 = vmul.f32 %v8464, %v8474
        %v8491 = vmul.f32 %v8465, %v8475
        %v8492 = vmul.f32 %v8466, %v8476
        %v8493 = vmul.f32 %v8467, %v8477
        %v8494 = vmul.f32 %v8468, %v8478
        %v8495 = vadd.f32 %v8487, %v8488
        %v8496 = vadd.f32 %v8495, %v8489
        %v8497 = vadd.f32 %v8496, %v8490
        %v8498 = vadd.f32 %v8497, %v8491
        %v8499 = vadd.f32 %v8498, %v8492
        %v8500 = vadd.f32 %v8499, %v8493
        %v8501 = vadd.f32 %v8500, %v8494
        %8502 = vadd.xlane.f32.xlu0 %v8501
        %v8503 = vpop.xlane.xlu0 %8502
        %s8504 = sld [smem:[#allocation5]]
        %v8505 = vstv %s8504
        %v8506 = vadd.f32 %v8503, %v8505
        %v8507 = vsub.f32 0.0, %v8506
        %v8508 = vmul.f32 %v8507, 1.442695
        %v8509 = vpow.pop %v8508
        %v8510 = vadd.f32 %v8509, 1.0
        %v8511 = vrcp.pop %v8510
        %v8512 = vmul.f32 %v8510, %v8511
        %v8513 = vsub.f32 1.0, %v8512
        %v8514 = vmul.f32 %v8511, %v8513
        %v8515 = vadd.f32 %v8511, %v8514
        %vm8516 = vweird.f32 %v8510
        %vm8517 = vweird.f32 %v8511
        %vm8518 = vmor %vm8516, %vm8517
        %v8519 = vsel %vm8518, %v8511, %v8515
        %v8520 = vand.u32 2147483647, %v8510
        %vm8521 = vcmp.eq.f32.partialorder %v8520, 8.507059e+37
        %v8522 = vand.u32 %v8510, 2147483648
        %v8523 = vor.u32 1.1754944e-38, %v8522
        %v8524 = vsel %vm8521, %v8523, %v8519
        %v8525 = vmul.f32 1.0, %v8524
        %vm8526 = vcmask 7168
        %8527 = vst.msk [vmem:[%s11] sm:$0xff] %vm8526, %v8525
      $region72: #{discriminator_forward.3} parent=63 // pred_fallthru
        _
      // Predicated region
      $region73: #{discriminator_forward.3} parent=63 // pred_check
        %p8528 = pneg %p272
      $region74: #{discriminator_forward.3} parent=63 // pred_check_branch
        %8530 = sbr.rel (%p8528) target = $region76
      $region75: #{discriminator_forward.3} parent=63 // pred_region
        _
      $region76: #{discriminator_forward.3} parent=63 // pred_fallthru
        _
      // Predicated region
      $region77: #{discriminator_forward.3} parent=63 // pred_check
        %p8531 = pneg %p272
      $region78: #{discriminator_forward.3} parent=63 // pred_check_branch
        %8533 = sbr.rel (%p8531) target = $region80
      $region79: #{discriminator_forward.3} parent=63 // pred_region
        _
      $region80: #{discriminator_forward.3} parent=63 // pred_fallthru
        _
    $region64: #{discriminator_forward.3} parent=5 // pred_fallthru
      _
    %p8534 = scmp.le.s32.totalorder 2, %s18
    // Predicated region
    $region81: #{discriminator_forward.3} parent=5 // pred_check
      %p8535 = pneg %p8534
    $region82: #{discriminator_forward.3} parent=5 // pred_check_branch
      %8537 = sbr.rel (%p8535) target = $region84
    $region83: #{discriminator_forward.3} parent=5 // pred_region
      %s8538 = ssub.s32 %s18, 2
    $region84: #{discriminator_forward.3} parent=5 // pred_fallthru
      _
  $region6: #{discriminator_forward.3} parent=0 // loop_footer
    %s22 = sadd.s32 1, %s18
  $region7: #{discriminator_forward.3} parent=0 // loop_footer_branch
    %17 = sbr.rel target = $region3
  $region8: #{discriminator_forward.3} parent=0 // loop_exit
    _

</llo_original>
